<compile_context>
chip_gen: v7x
topology: tpu7x:2x2x1
jax: 0.10.0
libtpu: 0.0.40
codegen_flags: <defaults>
</compile_context>

<pallas_src>
import functools

import jax
import jax.numpy as jnp
from jax.experimental import pallas as pl
from jax.experimental.pallas import tpu as pltpu

BN_EPS = 1e-5
ACT_DTYPE = jnp.bfloat16            # activations / weights fed to the MXU (f32 accumulation)
_W2_TILE_BYTES = 8 * 1024 * 1024    # tile conv2 Cout only when its weight exceeds this
_SUBLANE = 16                       # bf16 sublane tile (stage column padding)


@functools.lru_cache(maxsize=1)
def _vmem_limit_bytes():
    # ~3/4 of physical VMEM: ~48 MiB on v7x (64 MiB/TC), ~96 MiB on v5e/v6e (128 MiB).
    try:
        cap = pltpu.get_tpu_info().vmem_capacity_bytes
    except Exception:
        cap = 64 * 1024 * 1024
    return int(min(cap * 3 // 4, 112 * 1024 * 1024))


def _cparams(semantics):
    return pltpu.CompilerParams(
        dimension_semantics=semantics,
        vmem_limit_bytes=_vmem_limit_bytes(),
    )


@functools.lru_cache(maxsize=1)
def _single_buffering_ok():
    """Probe whether pipeline_mode=pl.Buffered(1) is supported (used to single-buffer
    constant-block-index weight/scale operands, halving their resident VMEM)."""
    try:
        def k(x_ref, o_ref):
            o_ref[...] = x_ref[...] + 1.0

        out = pl.pallas_call(
            k,
            out_shape=jax.ShapeDtypeStruct((8, 128), jnp.float32),
            grid=(2,),
            in_specs=[pl.BlockSpec((8, 128), lambda i: (0, 0),
                                   pipeline_mode=pl.Buffered(1))],
            out_specs=pl.BlockSpec((8, 128), lambda i: (0, 0)),
        )(jnp.zeros((8, 128), jnp.float32))
        jax.block_until_ready(out)
        return True
    except Exception:
        return False


def _pad_to(v, m):
    return -(-v // m) * m


def _mode_of(w):
    # Packed weight layouts (see _pack_conv3x3): ndim 2 -> "pack9", 3 -> "pack3", 4 -> "plane".
    return {2: "pack9", 3: "pack3", 4: "plane"}[w.ndim]


def _stage_shape(mode, nb, h, w, c):
    wp = _pad_to(w, _SUBLANE)
    if mode == "pack9":
        return (nb, h, wp, 9 * c)
    if mode == "pack3":
        return (nb, h + 2, wp, 3 * c)
    return (3, nb, h + 2, wp, c)


# --------------------------------------------------------------------------
# In-kernel helpers: VMEM "stage" padding + 3x3 conv as shifted matmuls
# --------------------------------------------------------------------------
def _fill_stage(stage_ref, xv, mode):
    """Write the zero-padded 3x3-tap layout of xv (nb, h, w, c) into the VMEM stage.

    Only the halo (border rows / column strips) and the sublane-pad columns are zeroed
    instead of a full-buffer memset (vst is the scarce VLIW slot).
    """
    nb, h, w, c = xv.shape
    dt = stage_ref.dtype
    xv = xv.astype(dt)

    if mode == "pack9":                       # stage (nb, h, wp, 9c); stem im2col, K = 9c
        wp = stage_ref.shape[2]
        if wp > w:
            stage_ref[:, :, w:wp, :] = jnp.zeros((nb, h, wp - w, 9 * c), dt)
        for dy in range(3):
            for dx in range(3):
                k = (3 * dy + dx) * c
                yd0, yd1 = max(0, 1 - dy), min(h, h + 1 - dy)
                xd0, xd1 = max(0, 1 - dx), min(w, w + 1 - dx)
                if yd1 > yd0 and xd1 > xd0:
                    stage_ref[:, yd0:yd1, xd0:xd1, k:k + c] = (
                        xv[:, yd0 + dy - 1:yd1 + dy - 1, xd0 + dx - 1:xd1 + dx - 1, :])
                if dy == 0:
                    stage_ref[:, 0:1, :, k:k + c] = jnp.zeros((nb, 1, wp, c), dt)
                if dy == 2:
                    stage_ref[:, h - 1:h, :, k:k + c] = jnp.zeros((nb, 1, wp, c), dt)
                if dx == 0:
                    stage_ref[:, :, 0:1, k:k + c] = jnp.zeros((nb, h, 1, c), dt)
                if dx == 2:
                    stage_ref[:, :, w - 1:w, k:k + c] = jnp.zeros((nb, h, 1, c), dt)
        return

    if mode == "pack3":                       # stage (nb, h+2, wp, 3c); dx folded into K
        wp = stage_ref.shape[2]
        if wp > w:
            stage_ref[:, :, w:wp, :] = jnp.zeros((nb, h + 2, wp - w, 3 * c), dt)
        stage_ref[:, 0:1, :, :] = jnp.zeros((nb, 1, wp, 3 * c), dt)
        stage_ref[:, h + 1:h + 2, :, :] = jnp.zeros((nb, 1, wp, 3 * c), dt)
        stage_ref[:, 1:h + 1, 0:w, c:2 * c] = xv
        if w > 1:
            stage_ref[:, 1:h + 1, 1:w, 0:c] = xv[:, :, 0:w - 1, :]
            stage_ref[:, 1:h + 1, 0:w - 1, 2 * c:3 * c] = xv[:, :, 1:w, :]
        stage_ref[:, 1:h + 1, 0:1, 0:c] = jnp.zeros((nb, h, 1, c), dt)
        stage_ref[:, 1:h + 1, w - 1:w, 2 * c:3 * c] = jnp.zeros((nb, h, 1, c), dt)
        return

    # "plane": stage (3, nb, h+2, wp, c); one shifted copy per dx (9 matmuls per conv)
    wp = stage_ref.shape[3]
    if wp > w:
        stage_ref[:, :, :, w:wp, :] = jnp.zeros((3, nb, h + 2, wp - w, c), dt)
    stage_ref[:, :, 0:1, :, :] = jnp.zeros((3, nb, 1, wp, c), dt)
    stage_ref[:, :, h + 1:h + 2, :, :] = jnp.zeros((3, nb, 1, wp, c), dt)
    stage_ref[1, :, 1:h + 1, 0:w, :] = xv
    if w > 1:
        stage_ref[0, :, 1:h + 1, 1:w, :] = xv[:, :, 0:w - 1, :]
        stage_ref[2, :, 1:h + 1, 0:w - 1, :] = xv[:, :, 1:w, :]
    stage_ref[0, :, 1:h + 1, 0:1, :] = jnp.zeros((nb, h, 1, c), dt)
    stage_ref[2, :, 1:h + 1, w - 1:w, :] = jnp.zeros((nb, h, 1, c), dt)


def _conv3x3_from_stage(stage_ref, w_ref, mode):
    """f32 (nb, h, wp, co) = 3x3 conv of the staged input with the packed weight block.

    The per-dy tap shift is applied by slicing the matmul *result* on a free (non-minor)
    dim, so no per-tap slice ever crosses a sublane tile boundary.
    """
    if mode == "pack9":
        nb, h, wp, k = stage_ref.shape
        co = w_ref.shape[-1]
        flat = stage_ref[...].reshape(nb * h * wp, k)
        res = jnp.dot(flat, w_ref[...], preferred_element_type=jnp.float32)
        return res.reshape(nb, h, wp, co)

    if mode == "pack3":
        nb, hp2, wp, k = stage_ref.shape
        h = hp2 - 2
        co = w_ref.shape[-1]
        flat = stage_ref[...].reshape(nb * hp2 * wp, k)
        acc = jnp.zeros((nb, h, wp, co), jnp.float32)
        for dy in range(3):
            res = jnp.dot(flat, w_ref[dy], preferred_element_type=jnp.float32)
            acc = acc + res.reshape(nb, hp2, wp, co)[:, dy:dy + h]
        return acc

    _, nb, hp2, wp, c = stage_ref.shape       # "plane"
    h = hp2 - 2
    co = w_ref.shape[-1]
    acc = jnp.zeros((nb, h, wp, co), jnp.float32)
    for dx in range(3):
        flat = stage_ref[dx].reshape(nb * hp2 * wp, c)
        for dy in range(3):
            res = jnp.dot(flat, w_ref[dy, dx], preferred_element_type=jnp.float32)
            acc = acc + res.reshape(nb, hp2, wp, co)[:, dy:dy + h]
    return acc


# --------------------------------------------------------------------------
# Fused (optional MaxPool2d) + (Conv3x3 -> BN(eval) -> ReLU) x 2
# --------------------------------------------------------------------------
def _make_double_conv_kernel(n_in, pool, modes, mode2):
    def kernel(*refs):
        x_refs = refs[:n_in]
        w1_refs = refs[n_in:2 * n_in]
        s1_ref, b1_ref, w2_ref, s2_ref, b2_ref, o_ref = refs[2 * n_in:2 * n_in + 6]
        stage1_refs = refs[2 * n_in + 6:3 * n_in + 6]
        stage2_ref = refs[3 * n_in + 6]

        nb, h, w, _ = o_ref.shape
        j = pl.program_id(1)

        # First conv (+ optional 2x2 max-pool) once per batch tile; its ReLU'd result is
        # cached in the stage2 VMEM scratch and reused by every Cout tile of conv2.
        @pl.when(j == 0)
        def _first_conv():
            acc = None
            for idx in range(n_in):
                if pool:
                    ev = x_refs[idx][:, :, pl.ds(0, w, 2), :]       # even columns
                    od = x_refs[idx][:, :, pl.ds(1, w, 2), :]       # odd columns
                    m = jnp.maximum(ev, od)                         # (nb, 2h, w, c)
                    m = m.reshape(nb, h, 2, w, m.shape[-1])         # free row-pair split
                    xv = jnp.maximum(m[:, :, 0], m[:, :, 1])        # (nb, h, w, c)
                else:
                    xv = x_refs[idx][...]
                _fill_stage(stage1_refs[idx], xv, modes[idx])
                r = _conv3x3_from_stage(stage1_refs[idx], w1_refs[idx], modes[idx])
                if r.shape[2] != w:                                 # drop sublane-pad cols
                    r = r[:, :, :w, :]
                acc = r if acc is None else acc + r
            y1 = jnp.maximum(acc * s1_ref[0] + b1_ref[0], 0.0)      # f32 BN + ReLU
            _fill_stage(stage2_ref, y1, mode2)

        # Second conv for Cout tile j.
        acc2 = _conv3x3_from_stage(stage2_ref, w2_ref, mode2)
        if acc2.shape[2] != w:
            acc2 = acc2[:, :, :w, :]
        y2 = jnp.maximum(acc2 * s2_ref[0] + b2_ref[0], 0.0)
        o_ref[...] = y2.astype(o_ref.dtype)

    return kernel


def _pick_batch_tile(n, xs, modes, mode2, h, w, cmid, tc, fixed_bytes):
    """Largest divisor of N whose per-step VMEM estimate fits the budget.
    Packing batch into the matmul M dim matters most at the tiny-spatial bottleneck."""
    bpe = 2                                           # bf16
    wp = _pad_to(w, _SUBLANE)

    def stage_bytes(mode, nb, c):
        s = _stage_shape(mode, nb, h, w, c)
        flat = 1
        for d in s[:-1]:
            flat *= d
        return flat * _pad_to(s[-1], 128) * bpe

    def est(nb):
        b = fixed_bytes
        for x, mode in zip(xs, modes):
            hin, win, c = x.shape[1], x.shape[2], x.shape[3]
            b += 2 * nb * hin * _pad_to(win, _SUBLANE) * _pad_to(c, 128) * bpe   # in (2 bufs)
            b += stage_bytes(mode, nb, c)
        b += stage_bytes(mode2, nb, cmid)
        b += 2 * nb * h * wp * _pad_to(tc, 128) * bpe                            # out (2 bufs)
        b += nb * h * wp * (_pad_to(cmid, 128) + _pad_to(tc, 128)) * 4           # f32 accums
        return b

    budget = _vmem_limit_bytes() * 3 // 5
    for nb in range(n, 0, -1):
        if n % nb == 0 and (nb == 1 or est(nb) <= budget):
            return nb
    return 1


def fused_double_conv(xs, w1s, s1, b1, w2, s2, b2, *, pool=False):
    """(Conv3x3 pad=1 no-bias -> BN(eval) -> ReLU) x 2, optionally preceded by MaxPool2d(2).

    xs:  list of NHWC bf16 activations (channel concat is expressed as split-K).
    w1s: matching list of packed first-conv weights (see _pack_conv3x3).
    """
    n, hin, win = xs[0].shape[0], xs[0].shape[1], xs[0].shape[2]
    if pool:
        assert hin % 2 == 0 and win % 2 == 0
        h, w = hin // 2, win // 2
    else:
        h, w = hin, win
    cmid, cout = int(s1.shape[0]), int(s2.shape[0])
    modes = tuple(_mode_of(w1) for w1 in w1s)
    mode2 = _mode_of(w2)
    assert mode2 in ("pack3", "plane")

    # Tile conv2's Cout only when its weight block is large (bounds resident VMEM).
    tc = cout
    if int(w2.size) * 2 > _W2_TILE_BYTES:
        for cand in (256, 128):
            if cout % cand == 0:
                tc = cand
                break
    assert cout % tc == 0
    nj = cout // tc

    fixed = (sum(int(w1.size) for w1 in w1s) + int(w2.size) // nj) * 2 * 2  # weights, 2 bufs
    nb = _pick_batch_tile(n, xs, modes, mode2, h, w, cmid, tc, fixed)
    nbgrid = n // nb

    single_ok = _single_buffering_ok()

    def spec(shape, index_map, constant):
        if constant and single_ok:
            return pl.BlockSpec(shape, index_map, pipeline_mode=pl.Buffered(1))
        return pl.BlockSpec(shape, index_map)

    in_arrays, in_specs = [], []
    for x in xs:
        c = x.shape[-1]
        in_arrays.append(x)
        in_specs.append(spec((nb, hin, win, c), lambda bi, j: (bi, 0, 0, 0),
                             constant=(nbgrid == 1)))
    for w1 in w1s:
        in_arrays.append(w1)
        zmap = {2: lambda bi, j: (0, 0),
                3: lambda bi, j: (0, 0, 0),
                4: lambda bi, j: (0, 0, 0, 0)}[w1.ndim]
        in_specs.append(spec(w1.shape, zmap, constant=True))
    in_arrays += [s1.reshape(1, cmid), b1.reshape(1, cmid), w2,
                  s2.reshape(1, cout), b2.reshape(1, cout)]
    in_specs.append(spec((1, cmid), lambda bi, j: (0, 0), constant=True))
    in_specs.append(spec((1, cmid), lambda bi, j: (0, 0), constant=True))
    if mode2 == "pack3":
        in_specs.append(spec((3, 3 * cmid, tc), lambda bi, j: (0, 0, j), constant=(nj == 1)))
    else:
        in_specs.append(spec((3, 3, cmid, tc), lambda bi, j: (0, 0, 0, j), constant=(nj == 1)))
    in_specs.append(spec((1, tc), lambda bi, j: (0, j), constant=(nj == 1)))
    in_specs.append(spec((1, tc), lambda bi, j: (0, j), constant=(nj == 1)))

    scratch = [pltpu.VMEM(_stage_shape(m, nb, h, w, x.shape[-1]), ACT_DTYPE)
               for x, m in zip(xs, modes)]
    scratch.append(pltpu.VMEM(_stage_shape(mode2, nb, h, w, cmid), ACT_DTYPE))

    return pl.pallas_call(
        _make_double_conv_kernel(len(xs), pool, modes, mode2),
        out_shape=jax.ShapeDtypeStruct((n, h, w, cout), ACT_DTYPE),
        grid=(nbgrid, nj),
        in_specs=in_specs,
        out_specs=pl.BlockSpec((nb, h, w, tc), lambda bi, j: (bi, 0, 0, j)),
        scratch_shapes=scratch,
        compiler_params=_cparams(("parallel", "arbitrary")),
    )(*in_arrays)


# --------------------------------------------------------------------------
# 2x2 stride-2 transposed conv (with bias), sub-pixel column index folded into lanes
# --------------------------------------------------------------------------
def _make_conv_transpose_kernel(h, w):
    flat_ok = (w % _SUBLANE) == 0

    def kernel(x_ref, w_ref, b_ref, o_ref):
        # x_ref: (1, h, w, cin); w_ref: (2, cin, 2*cout) with lane index q*cout + co
        # b_ref: (1, 2*cout);    o_ref: (1, h, 2, w, 2*cout)
        cin = x_ref.shape[3]
        c2 = o_ref.shape[4]
        if flat_ok:
            x2d = x_ref[0].reshape(h * w, cin)
            for p in range(2):
                y = jnp.dot(x2d, w_ref[p], preferred_element_type=jnp.float32) + b_ref[...]
                o_ref[0, :, p, :, :] = y.reshape(h, w, c2).astype(o_ref.dtype)
        else:
            # Tiny-spatial fallback: per-row matmuls avoid layout-changing value reshapes.
            for p in range(2):
                for r in range(h):
                    y = (jnp.dot(x_ref[0, r], w_ref[p], preferred_element_type=jnp.float32)
                         + b_ref[...])
                    o_ref[0, r, p, :, :] = y.astype(o_ref.dtype)

    return kernel


def conv_transpose2x2(x, w2, b2):
    """ConvTranspose2d(k=2, s=2) + bias.  x: (N,H,W,Cin) -> (N,2H,2W,Cout) bf16."""
    n, h, w, cin = x.shape
    c2 = w2.shape[-1]
    cout = c2 // 2
    out = pl.pallas_call(
        _make_conv_transpose_kernel(h, w),
        out_shape=jax.ShapeDtypeStruct((n, h, 2, w, c2), ACT_DTYPE),
        grid=(n,),
        in_specs=[
            pl.BlockSpec((1, h, w, cin), lambda i: (i, 0, 0, 0)),
            pl.BlockSpec((2, cin, c2), lambda i: (0, 0, 0)),
            pl.BlockSpec((1, c2), lambda i: (0, 0)),
        ],
        out_specs=pl.BlockSpec((1, h, 2, w, c2), lambda i: (i, 0, 0, 0, 0)),
        compiler_params=_cparams(("parallel",)),
    )(x, w2, b2.reshape(1, c2))
    # TODO(synk): this (N,H,2,W,2,C) -> (N,2H,2W,C) interleave is left to XLA and may cost
    # an HBM relayout pass; fusing the transposed conv into the Up DoubleConv would remove it.
    return out.reshape(n, 2 * h, 2 * w, cout)


# --------------------------------------------------------------------------
# 1x1 conv (with bias) -- OutConv, only n_classes output lanes are written
# --------------------------------------------------------------------------
def _make_conv1x1_kernel(h, w):
    flat_ok = (w % _SUBLANE) == 0

    def kernel(x_ref, w_ref, b_ref, o_ref):
        cin = x_ref.shape[3]
        co = o_ref.shape[3]
        if flat_ok:
            y = jnp.dot(x_ref[0].reshape(h * w, cin), w_ref[...],
                        preferred_element_type=jnp.float32) + b_ref[...]
            o_ref[0] = y.reshape(h, w, co)
        else:
            for r in range(h):
                y = jnp.dot(x_ref[0, r], w_ref[...],
                            preferred_element_type=jnp.float32) + b_ref[...]
                o_ref[0, r] = y

    return kernel


def conv1x1(x, w, b):
    """OutConv: 1x1 conv + bias; f32 NHWC output with exactly n_classes channels."""
    n, h, wd, cin = x.shape
    co = w.shape[-1]
    return pl.pallas_call(
        _make_conv1x1_kernel(h, wd),
        out_shape=jax.ShapeDtypeStruct((n, h, wd, co), jnp.float32),
        grid=(n,),
        in_specs=[
            pl.BlockSpec((1, h, wd, cin), lambda i: (i, 0, 0, 0)),
            pl.BlockSpec((cin, co), lambda i: (0, 0)),
            pl.BlockSpec((1, co), lambda i: (0, 0)),
        ],
        out_specs=pl.BlockSpec((1, h, wd, co), lambda i: (i, 0, 0, 0)),
        compiler_params=_cparams(("parallel",)),
    )(x, w, b.reshape(1, co))


# --------------------------------------------------------------------------
# Module composition (glue)
# --------------------------------------------------------------------------
def apply_double_conv(xs, p, pool=False):
    w1s = [p["w1"]] if "w1" in p else [p["w1a"], p["w1b"]]
    return fused_double_conv(xs, w1s, p["s1"], p["sh1"], p["w2"], p["s2"], p["sh2"], pool=pool)


def apply_up(x1, x2, p):
    u = conv_transpose2x2(x1, p["up_w"], p["up_b"])
    dy = x2.shape[1] - u.shape[1]
    dx = x2.shape[2] - u.shape[2]
    if dy or dx:
        # TODO(synk): assumes dy, dx >= 0 (true for even input sizes, as in the reference).
        u = jnp.pad(u, ((0, 0), (dy // 2, dy - dy // 2), (dx // 2, dx - dx // 2), (0, 0)))
    # torch.cat([x2, x1], dim=1) is expressed as split-K accumulation in the fused conv.
    return apply_double_conv([x2, u], p["conv"])


def unet_forward(x_nchw, params, n_classes=1):
    x = jnp.transpose(x_nchw, (0, 2, 3, 1)).astype(ACT_DTYPE)   # NCHW -> NHWC, bf16
    x1 = apply_double_conv([x], params["inc"])
    x2 = apply_double_conv([x1], params["down1"], pool=True)
    x3 = apply_double_conv([x2], params["down2"], pool=True)
    x4 = apply_double_conv([x3], params["down3"], pool=True)
    x5 = apply_double_conv([x4], params["down4"], pool=True)
    y = apply_up(x5, x4, params["up1"])
    y = apply_up(y, x3, params["up2"])
    y = apply_up(y, x2, params["up3"])
    y = apply_up(y, x1, params["up4"])
    logits = conv1x1(y, params["outc"]["w"], params["outc"]["b"])  # (N, H, W, n_classes) f32
    return jnp.transpose(logits, (0, 3, 1, 2))                     # NHWC -> NCHW


# --------------------------------------------------------------------------
# Deterministic parameter init (UNet defaults: n_channels=3, n_classes=1, bilinear=False)
# --------------------------------------------------------------------------
def _pack_conv3x3(w):
    """Canonical (3,3,cin,cout) f32 -> MXU-friendly packed bf16 layout.

    cin % 128 == 0 -> (3, 3*cin, cout)  (dx folded into K; 3 matmuls per conv)
    cin <= 16      -> (9*cin, cout)     (full im2col; 1 matmul per conv -- the stem)
    otherwise      -> (3, 3, cin, cout) (plane layout; 9 matmuls per conv)
    """
    cin, cout = w.shape[2], w.shape[3]
    if cin % 128 == 0:
        return w.reshape(3, 3 * cin, cout).astype(ACT_DTYPE)
    if cin <= 16:
        return w.reshape(9 * cin, cout).astype(ACT_DTYPE)
    return w.astype(ACT_DTYPE)


def init_unet_params(key, n_channels=3, n_classes=1):
    state = {"key": key}

    def nk():
        state["key"], sub = jax.random.split(state["key"])
        return sub

    def conv3x3_w(cin, cout):
        return jax.random.normal(nk(), (3, 3, cin, cout), jnp.float32) * (2.0 / (9 * cin)) ** 0.5

    def bn_affine(c):
        gamma = 1.0 + 0.05 * jax.random.normal(nk(), (c,), jnp.float32)
        beta = 0.05 * jax.random.normal(nk(), (c,), jnp.float32)
        # eval-mode BN with fresh running stats: mean=0, var=1
        scale = gamma / jnp.sqrt(1.0 + BN_EPS)
        return scale, beta

    def double_conv(cin, cout, split_k=None):
        cmid = cout
        w1 = conv3x3_w(cin, cmid)
        s1, sh1 = bn_affine(cmid)
        w2 = conv3x3_w(cmid, cout)
        s2, sh2 = bn_affine(cout)
        p = dict(s1=s1, sh1=sh1, w2=_pack_conv3x3(w2), s2=s2, sh2=sh2)
        if split_k is None:
            p["w1"] = _pack_conv3x3(w1)
        else:   # K-split matching the concat order [skip, upsampled]
            p["w1a"] = _pack_conv3x3(w1[:, :, :split_k, :])
            p["w1b"] = _pack_conv3x3(w1[:, :, split_k:, :])
        return p

    def up_block(cin, cout):
        c_half = cin // 2
        # nn.ConvTranspose2d(cin, cin//2, kernel_size=2, stride=2); weight laid out as
        # (p, ci, q*c_half + co) so the kernel writes the (q, co) lane block densely.
        wb = jax.random.normal(nk(), (2, 2, cin, c_half), jnp.float32) * (1.0 / (4 * cin)) ** 0.5
        up_w = wb.transpose(0, 2, 1, 3).reshape(2, cin, 2 * c_half).astype(ACT_DTYPE)
        b = 0.05 * jax.random.normal(nk(), (c_half,), jnp.float32)
        up_b = jnp.tile(b, 2)                       # same bias for both q lane halves
        return dict(up_w=up_w, up_b=up_b, conv=double_conv(cin, cout, split_k=c_half))

    w_oc = jax.random.normal(nk(), (64, n_classes), jnp.float32) * (1.0 / 64.0) ** 0.5
    b_oc = 0.05 * jax.random.normal(nk(), (n_classes,), jnp.float32)

    return dict(
        inc=double_conv(n_channels, 64),
        down1=double_conv(64, 128),
        down2=double_conv(128, 256),
        down3=double_conv(256, 512),
        down4=double_conv(512, 1024),
        up1=up_block(1024, 512),
        up2=up_block(512, 256),
        up3=up_block(256, 128),
        up4=up_block(128, 64),
        outc=dict(w=w_oc.astype(ACT_DTYPE), b=b_oc),
    )


if __name__ == "__main__":
    key = jax.random.PRNGKey(0)
    pkey, xkey = jax.random.split(key)
    params = init_unet_params(pkey, n_channels=3, n_classes=1)
    # Input in PyTorch NCHW convention: batch=2, channels=3, spatial=16x16
    x = jax.random.normal(xkey, (2, 3, 16, 16), jnp.float32)
    logits = unet_forward(x, params, n_classes=1)
    jax.block_until_ready(logits)
    assert logits.shape == (2, 1, 16, 16), logits.shape
    assert bool(jnp.all(jnp.isfinite(logits)))
    print("KERNEL_OK")
</pallas_src>

<mosaic_0001>
module attributes {stable_mosaic.version = 11 : i64} {
  func.func @k(%arg0: i32, %arg1: memref<8x128xf32, #tpu.memory_space<vmem>>, %arg2: memref<8x128xf32, #tpu.memory_space<vmem>>) attributes {dimension_semantics = [#tpu.dimension_semantics<arbitrary>], iteration_bounds = array<i64: 2>, scalar_prefetch = 0 : i64, scratch_operands = 0 : i64, tpu.core_type = #tpu.core_type<tc>, window_params = [{pipeline_mode = #tpu.pipeline_mode<synchronous>, transform_indices = @transform_0, window_bounds = array<i64: 8, 128>}, {pipeline_mode = #tpu.pipeline_mode<synchronous>, transform_indices = @transform_1, window_bounds = array<i64: 8, 128>}]} {
    %c0 = arith.constant 0 : index
    %c0_0 = arith.constant 0 : index
    %0 = vector.load %arg1[%c0, %c0_0] : memref<8x128xf32, #tpu.memory_space<vmem>>, vector<8x128xf32>
    %cst = arith.constant 1.000000e+00 : f32
    %1 = vector.broadcast %cst : f32 to vector<8x128xf32>
    %2 = arith.addf %0, %1 : vector<8x128xf32>
    %c0_1 = arith.constant 0 : index
    %c0_2 = arith.constant 0 : index
    %3 = vector.load %arg2[%c0_1, %c0_2] : memref<8x128xf32, #tpu.memory_space<vmem>>, vector<8x128xf32>
    tpu.vector_store %arg2[%c0_1, %c0_2], %2 {strides = array<i32>} : memref<8x128xf32, #tpu.memory_space<vmem>>, vector<8x128xf32>,
    return
  }
  func.func @transform_0(%arg0: i32) -> (i32, i32) {
    %c0_i32 = arith.constant 0 : i32
    %c0_i32_0 = arith.constant 0 : i32
    %c0_i32_1 = arith.constant 0 : i32
    return %c0_i32, %c0_i32_0 : i32, i32
  }
  func.func @transform_1(%arg0: i32) -> (i32, i32) {
    %c0_i32 = arith.constant 0 : i32
    %c0_i32_0 = arith.constant 0 : i32
    %c0_i32_1 = arith.constant 0 : i32
    return %c0_i32, %c0_i32_0 : i32, i32
  }
}

module attributes {stable_mosaic.version = 11 : i64} {
  func.func @kernel(%arg0: i32, %arg1: i32, %arg2: memref<2x16x16x3xbf16, #tpu.memory_space<vmem>>, %arg3: memref<27x64xbf16, #tpu.memory_space<vmem>>, %arg4: memref<1x64xf32, #tpu.memory_space<vmem>>, %arg5: memref<1x64xf32, #tpu.memory_space<vmem>>, %arg6: memref<3x3x64x64xbf16, #tpu.memory_space<vmem>>, %arg7: memref<1x64xf32, #tpu.memory_space<vmem>>, %arg8: memref<1x64xf32, #tpu.memory_space<vmem>>, %arg9: memref<2x16x16x64xbf16, #tpu.memory_space<vmem>>, %arg10: memref<2x16x16x27xbf16, #tpu.memory_space<vmem>>, %arg11: memref<3x2x18x16x64xbf16, #tpu.memory_space<vmem>>) attributes {dimension_semantics = [#tpu.dimension_semantics<parallel>, #tpu.dimension_semantics<arbitrary>], iteration_bounds = array<i64: 1, 1>, scalar_prefetch = 0 : i64, scratch_operands = 2 : i64, tpu.core_type = #tpu.core_type<tc>, window_params = [{transform_indices = @transform_0, window_bounds = array<i64: 2, 16, 16, 3>}, {pipeline_mode = #tpu.pipeline_mode<synchronous>, transform_indices = @transform_1, window_bounds = array<i64: 27, 64>}, {pipeline_mode = #tpu.pipeline_mode<synchronous>, transform_indices = @transform_2, window_bounds = array<i64: 1, 64>}, {pipeline_mode = #tpu.pipeline_mode<synchronous>, transform_indices = @transform_3, window_bounds = array<i64: 1, 64>}, {transform_indices = @transform_4, window_bounds = array<i64: 3, 3, 64, 64>}, {transform_indices = @transform_5, window_bounds = array<i64: 1, 64>}, {transform_indices = @transform_6, window_bounds = array<i64: 1, 64>}, {transform_indices = @transform_7, window_bounds = array<i64: 2, 16, 16, 64>}]} {
    %c0_i32 = arith.constant 0 : i32
    %0 = arith.cmpi eq, %arg1, %c0_i32 : i32
    %1 = arith.extui %0 : i1 to i32
    %c0_i32_0 = arith.constant 0 : i32
    %2 = arith.cmpi ne, %1, %c0_i32_0 : i32
    scf.if %2 {
      %c0_67 = arith.constant 0 : index
      %c0_68 = arith.constant 0 : index
      %c0_69 = arith.constant 0 : index
      %c0_70 = arith.constant 0 : index
      %81 = vector.load %arg2[%c0_67, %c0_68, %c0_69, %c0_70] : memref<2x16x16x3xbf16, #tpu.memory_space<vmem>>, vector<2x16x16x3xbf16>
      %82 = vector.extract_strided_slice %81 {offsets = [0, 0, 0, 0], sizes = [2, 15, 15, 3], strides = [1, 1, 1, 1]} : vector<2x16x16x3xbf16> to vector<2x15x15x3xbf16>
      %c0_71 = arith.constant 0 : index
      %c1_72 = arith.constant 1 : index
      %c1_73 = arith.constant 1 : index
      %c0_74 = arith.constant 0 : index
      %83 = vector.load %arg10[%c0_71, %c1_72, %c1_73, %c0_74] : memref<2x16x16x27xbf16, #tpu.memory_space<vmem>>, vector<2x15x15x3xbf16>
      tpu.vector_store %arg10[%c0_71, %c1_72, %c1_73, %c0_74], %82 {strides = array<i32>} : memref<2x16x16x27xbf16, #tpu.memory_space<vmem>>, vector<2x15x15x3xbf16>,
      %cst_75 = arith.constant 0.000000e+00 : bf16
      %84 = vector.broadcast %cst_75 : bf16 to vector<2x1x16x3xbf16>
      %c0_76 = arith.constant 0 : index
      %c0_77 = arith.constant 0 : index
      %c0_78 = arith.constant 0 : index
      %c0_79 = arith.constant 0 : index
      %85 = vector.load %arg10[%c0_76, %c0_77, %c0_78, %c0_79] : memref<2x16x16x27xbf16, #tpu.memory_space<vmem>>, vector<2x1x16x3xbf16>
      tpu.vector_store %arg10[%c0_76, %c0_77, %c0_78, %c0_79], %84 {strides = array<i32>} : memref<2x16x16x27xbf16, #tpu.memory_space<vmem>>, vector<2x1x16x3xbf16>,
      %cst_80 = arith.constant 0.000000e+00 : bf16
      %86 = vector.broadcast %cst_80 : bf16 to vector<2x16x1x3xbf16>
      %c0_81 = arith.constant 0 : index
      %c0_82 = arith.constant 0 : index
      %c0_83 = arith.constant 0 : index
      %c0_84 = arith.constant 0 : index
      %87 = vector.load %arg10[%c0_81, %c0_82, %c0_83, %c0_84] : memref<2x16x16x27xbf16, #tpu.memory_space<vmem>>, vector<2x16x1x3xbf16>
      tpu.vector_store %arg10[%c0_81, %c0_82, %c0_83, %c0_84], %86 {strides = array<i32>} : memref<2x16x16x27xbf16, #tpu.memory_space<vmem>>, vector<2x16x1x3xbf16>,
      %88 = vector.extract_strided_slice %81 {offsets = [0, 0, 0, 0], sizes = [2, 15, 16, 3], strides = [1, 1, 1, 1]} : vector<2x16x16x3xbf16> to vector<2x15x16x3xbf16>
      %c0_85 = arith.constant 0 : index
      %c1_86 = arith.constant 1 : index
      %c0_87 = arith.constant 0 : index
      %c3 = arith.constant 3 : index
      %89 = vector.load %arg10[%c0_85, %c1_86, %c0_87, %c3] : memref<2x16x16x27xbf16, #tpu.memory_space<vmem>>, vector<2x15x16x3xbf16>
      tpu.vector_store %arg10[%c0_85, %c1_86, %c0_87, %c3], %88 {strides = array<i32>} : memref<2x16x16x27xbf16, #tpu.memory_space<vmem>>, vector<2x15x16x3xbf16>,
      %cst_88 = arith.constant 0.000000e+00 : bf16
      %90 = vector.broadcast %cst_88 : bf16 to vector<2x1x16x3xbf16>
      %c0_89 = arith.constant 0 : index
      %c0_90 = arith.constant 0 : index
      %c0_91 = arith.constant 0 : index
      %c3_92 = arith.constant 3 : index
      %91 = vector.load %arg10[%c0_89, %c0_90, %c0_91, %c3_92] : memref<2x16x16x27xbf16, #tpu.memory_space<vmem>>, vector<2x1x16x3xbf16>
      tpu.vector_store %arg10[%c0_89, %c0_90, %c0_91, %c3_92], %90 {strides = array<i32>} : memref<2x16x16x27xbf16, #tpu.memory_space<vmem>>, vector<2x1x16x3xbf16>,
      %92 = vector.extract_strided_slice %81 {offsets = [0, 0, 1, 0], sizes = [2, 15, 15, 3], strides = [1, 1, 1, 1]} : vector<2x16x16x3xbf16> to vector<2x15x15x3xbf16>
      %c0_93 = arith.constant 0 : index
      %c1_94 = arith.constant 1 : index
      %c0_95 = arith.constant 0 : index
      %c6 = arith.constant 6 : index
      %93 = vector.load %arg10[%c0_93, %c1_94, %c0_95, %c6] : memref<2x16x16x27xbf16, #tpu.memory_space<vmem>>, vector<2x15x15x3xbf16>
      tpu.vector_store %arg10[%c0_93, %c1_94, %c0_95, %c6], %92 {strides = array<i32>} : memref<2x16x16x27xbf16, #tpu.memory_space<vmem>>, vector<2x15x15x3xbf16>,
      %cst_96 = arith.constant 0.000000e+00 : bf16
      %94 = vector.broadcast %cst_96 : bf16 to vector<2x1x16x3xbf16>
      %c0_97 = arith.constant 0 : index
      %c0_98 = arith.constant 0 : index
      %c0_99 = arith.constant 0 : index
      %c6_100 = arith.constant 6 : index
      %95 = vector.load %arg10[%c0_97, %c0_98, %c0_99, %c6_100] : memref<2x16x16x27xbf16, #tpu.memory_space<vmem>>, vector<2x1x16x3xbf16>
      tpu.vector_store %arg10[%c0_97, %c0_98, %c0_99, %c6_100], %94 {strides = array<i32>} : memref<2x16x16x27xbf16, #tpu.memory_space<vmem>>, vector<2x1x16x3xbf16>,
      %cst_101 = arith.constant 0.000000e+00 : bf16
      %96 = vector.broadcast %cst_101 : bf16 to vector<2x16x1x3xbf16>
      %c0_102 = arith.constant 0 : index
      %c0_103 = arith.constant 0 : index
      %c15 = arith.constant 15 : index
      %c6_104 = arith.constant 6 : index
      %97 = vector.load %arg10[%c0_102, %c0_103, %c15, %c6_104] : memref<2x16x16x27xbf16, #tpu.memory_space<vmem>>, vector<2x16x1x3xbf16>
      tpu.vector_store %arg10[%c0_102, %c0_103, %c15, %c6_104], %96 {strides = array<i32>} : memref<2x16x16x27xbf16, #tpu.memory_space<vmem>>, vector<2x16x1x3xbf16>,
      %98 = vector.extract_strided_slice %81 {offsets = [0, 0, 0, 0], sizes = [2, 16, 15, 3], strides = [1, 1, 1, 1]} : vector<2x16x16x3xbf16> to vector<2x16x15x3xbf16>
      %c0_105 = arith.constant 0 : index
      %c0_106 = arith.constant 0 : index
      %c1_107 = arith.constant 1 : index
      %c9 = arith.constant 9 : index
      %99 = vector.load %arg10[%c0_105, %c0_106, %c1_107, %c9] : memref<2x16x16x27xbf16, #tpu.memory_space<vmem>>, vector<2x16x15x3xbf16>
      tpu.vector_store %arg10[%c0_105, %c0_106, %c1_107, %c9], %98 {strides = array<i32>} : memref<2x16x16x27xbf16, #tpu.memory_space<vmem>>, vector<2x16x15x3xbf16>,
      %cst_108 = arith.constant 0.000000e+00 : bf16
      %100 = vector.broadcast %cst_108 : bf16 to vector<2x16x1x3xbf16>
      %c0_109 = arith.constant 0 : index
      %c0_110 = arith.constant 0 : index
      %c0_111 = arith.constant 0 : index
      %c9_112 = arith.constant 9 : index
      %101 = vector.load %arg10[%c0_109, %c0_110, %c0_111, %c9_112] : memref<2x16x16x27xbf16, #tpu.memory_space<vmem>>, vector<2x16x1x3xbf16>
      tpu.vector_store %arg10[%c0_109, %c0_110, %c0_111, %c9_112], %100 {strides = array<i32>} : memref<2x16x16x27xbf16, #tpu.memory_space<vmem>>, vector<2x16x1x3xbf16>,
      %c0_113 = arith.constant 0 : index
      %c0_114 = arith.constant 0 : index
      %c0_115 = arith.constant 0 : index
      %c12 = arith.constant 12 : index
      %102 = vector.load %arg10[%c0_113, %c0_114, %c0_115, %c12] : memref<2x16x16x27xbf16, #tpu.memory_space<vmem>>, vector<2x16x16x3xbf16>
      tpu.vector_store %arg10[%c0_113, %c0_114, %c0_115, %c12], %81 {strides = array<i32>} : memref<2x16x16x27xbf16, #tpu.memory_space<vmem>>, vector<2x16x16x3xbf16>,
      %103 = vector.extract_strided_slice %81 {offsets = [0, 0, 1, 0], sizes = [2, 16, 15, 3], strides = [1, 1, 1, 1]} : vector<2x16x16x3xbf16> to vector<2x16x15x3xbf16>
      %c0_116 = arith.constant 0 : index
      %c0_117 = arith.constant 0 : index
      %c0_118 = arith.constant 0 : index
      %c15_119 = arith.constant 15 : index
      %104 = vector.load %arg10[%c0_116, %c0_117, %c0_118, %c15_119] : memref<2x16x16x27xbf16, #tpu.memory_space<vmem>>, vector<2x16x15x3xbf16>
      tpu.vector_store %arg10[%c0_116, %c0_117, %c0_118, %c15_119], %103 {strides = array<i32>} : memref<2x16x16x27xbf16, #tpu.memory_space<vmem>>, vector<2x16x15x3xbf16>,
      %cst_120 = arith.constant 0.000000e+00 : bf16
      %105 = vector.broadcast %cst_120 : bf16 to vector<2x16x1x3xbf16>
      %c0_121 = arith.constant 0 : index
      %c0_122 = arith.constant 0 : index
      %c15_123 = arith.constant 15 : index
      %c15_124 = arith.constant 15 : index
      %106 = vector.load %arg10[%c0_121, %c0_122, %c15_123, %c15_124] : memref<2x16x16x27xbf16, #tpu.memory_space<vmem>>, vector<2x16x1x3xbf16>
      tpu.vector_store %arg10[%c0_121, %c0_122, %c15_123, %c15_124], %105 {strides = array<i32>} : memref<2x16x16x27xbf16, #tpu.memory_space<vmem>>, vector<2x16x1x3xbf16>,
      %107 = vector.extract_strided_slice %81 {offsets = [0, 1, 0, 0], sizes = [2, 15, 15, 3], strides = [1, 1, 1, 1]} : vector<2x16x16x3xbf16> to vector<2x15x15x3xbf16>
      %c0_125 = arith.constant 0 : index
      %c0_126 = arith.constant 0 : index
      %c1_127 = arith.constant 1 : index
      %c18 = arith.constant 18 : index
      %108 = vector.load %arg10[%c0_125, %c0_126, %c1_127, %c18] : memref<2x16x16x27xbf16, #tpu.memory_space<vmem>>, vector<2x15x15x3xbf16>
      tpu.vector_store %arg10[%c0_125, %c0_126, %c1_127, %c18], %107 {strides = array<i32>} : memref<2x16x16x27xbf16, #tpu.memory_space<vmem>>, vector<2x15x15x3xbf16>,
      %cst_128 = arith.constant 0.000000e+00 : bf16
      %109 = vector.broadcast %cst_128 : bf16 to vector<2x1x16x3xbf16>
      %c0_129 = arith.constant 0 : index
      %c15_130 = arith.constant 15 : index
      %c0_131 = arith.constant 0 : index
      %c18_132 = arith.constant 18 : index
      %110 = vector.load %arg10[%c0_129, %c15_130, %c0_131, %c18_132] : memref<2x16x16x27xbf16, #tpu.memory_space<vmem>>, vector<2x1x16x3xbf16>
      tpu.vector_store %arg10[%c0_129, %c15_130, %c0_131, %c18_132], %109 {strides = array<i32>} : memref<2x16x16x27xbf16, #tpu.memory_space<vmem>>, vector<2x1x16x3xbf16>,
      %cst_133 = arith.constant 0.000000e+00 : bf16
      %111 = vector.broadcast %cst_133 : bf16 to vector<2x16x1x3xbf16>
      %c0_134 = arith.constant 0 : index
      %c0_135 = arith.constant 0 : index
      %c0_136 = arith.constant 0 : index
      %c18_137 = arith.constant 18 : index
      %112 = vector.load %arg10[%c0_134, %c0_135, %c0_136, %c18_137] : memref<2x16x16x27xbf16, #tpu.memory_space<vmem>>, vector<2x16x1x3xbf16>
      tpu.vector_store %arg10[%c0_134, %c0_135, %c0_136, %c18_137], %111 {strides = array<i32>} : memref<2x16x16x27xbf16, #tpu.memory_space<vmem>>, vector<2x16x1x3xbf16>,
      %113 = vector.extract_strided_slice %81 {offsets = [0, 1, 0, 0], sizes = [2, 15, 16, 3], strides = [1, 1, 1, 1]} : vector<2x16x16x3xbf16> to vector<2x15x16x3xbf16>
      %c0_138 = arith.constant 0 : index
      %c0_139 = arith.constant 0 : index
      %c0_140 = arith.constant 0 : index
      %c21 = arith.constant 21 : index
      %114 = vector.load %arg10[%c0_138, %c0_139, %c0_140, %c21] : memref<2x16x16x27xbf16, #tpu.memory_space<vmem>>, vector<2x15x16x3xbf16>
      tpu.vector_store %arg10[%c0_138, %c0_139, %c0_140, %c21], %113 {strides = array<i32>} : memref<2x16x16x27xbf16, #tpu.memory_space<vmem>>, vector<2x15x16x3xbf16>,
      %cst_141 = arith.constant 0.000000e+00 : bf16
      %115 = vector.broadcast %cst_141 : bf16 to vector<2x1x16x3xbf16>
      %c0_142 = arith.constant 0 : index
      %c15_143 = arith.constant 15 : index
      %c0_144 = arith.constant 0 : index
      %c21_145 = arith.constant 21 : index
      %116 = vector.load %arg10[%c0_142, %c15_143, %c0_144, %c21_145] : memref<2x16x16x27xbf16, #tpu.memory_space<vmem>>, vector<2x1x16x3xbf16>
      tpu.vector_store %arg10[%c0_142, %c15_143, %c0_144, %c21_145], %115 {strides = array<i32>} : memref<2x16x16x27xbf16, #tpu.memory_space<vmem>>, vector<2x1x16x3xbf16>,
      %117 = vector.extract_strided_slice %81 {offsets = [0, 1, 1, 0], sizes = [2, 15, 15, 3], strides = [1, 1, 1, 1]} : vector<2x16x16x3xbf16> to vector<2x15x15x3xbf16>
      %c0_146 = arith.constant 0 : index
      %c0_147 = arith.constant 0 : index
      %c0_148 = arith.constant 0 : index
      %c24 = arith.constant 24 : index
      %118 = vector.load %arg10[%c0_146, %c0_147, %c0_148, %c24] : memref<2x16x16x27xbf16, #tpu.memory_space<vmem>>, vector<2x15x15x3xbf16>
      tpu.vector_store %arg10[%c0_146, %c0_147, %c0_148, %c24], %117 {strides = array<i32>} : memref<2x16x16x27xbf16, #tpu.memory_space<vmem>>, vector<2x15x15x3xbf16>,
      %cst_149 = arith.constant 0.000000e+00 : bf16
      %119 = vector.broadcast %cst_149 : bf16 to vector<2x1x16x3xbf16>
      %c0_150 = arith.constant 0 : index
      %c15_151 = arith.constant 15 : index
      %c0_152 = arith.constant 0 : index
      %c24_153 = arith.constant 24 : index
      %120 = vector.load %arg10[%c0_150, %c15_151, %c0_152, %c24_153] : memref<2x16x16x27xbf16, #tpu.memory_space<vmem>>, vector<2x1x16x3xbf16>
      tpu.vector_store %arg10[%c0_150, %c15_151, %c0_152, %c24_153], %119 {strides = array<i32>} : memref<2x16x16x27xbf16, #tpu.memory_space<vmem>>, vector<2x1x16x3xbf16>,
      %cst_154 = arith.constant 0.000000e+00 : bf16
      %121 = vector.broadcast %cst_154 : bf16 to vector<2x16x1x3xbf16>
      %c0_155 = arith.constant 0 : index
      %c0_156 = arith.constant 0 : index
      %c15_157 = arith.constant 15 : index
      %c24_158 = arith.constant 24 : index
      %122 = vector.load %arg10[%c0_155, %c0_156, %c15_157, %c24_158] : memref<2x16x16x27xbf16, #tpu.memory_space<vmem>>, vector<2x16x1x3xbf16>
      tpu.vector_store %arg10[%c0_155, %c0_156, %c15_157, %c24_158], %121 {strides = array<i32>} : memref<2x16x16x27xbf16, #tpu.memory_space<vmem>>, vector<2x16x1x3xbf16>,
      %c0_159 = arith.constant 0 : index
      %c0_160 = arith.constant 0 : index
      %c0_161 = arith.constant 0 : index
      %c0_162 = arith.constant 0 : index
      %123 = vector.load %arg10[%c0_159, %c0_160, %c0_161, %c0_162] : memref<2x16x16x27xbf16, #tpu.memory_space<vmem>>, vector<2x16x16x27xbf16>
      %124 = vector.shape_cast %123 : vector<2x16x16x27xbf16> to vector<512x27xbf16>
      %c0_163 = arith.constant 0 : index
      %c0_164 = arith.constant 0 : index
      %125 = vector.load %arg3[%c0_163, %c0_164] : memref<27x64xbf16, #tpu.memory_space<vmem>>, vector<27x64xbf16>
      %cst_165 = arith.constant dense<0.000000e+00> : vector<512x64xf32>
      %126 = tpu.matmul %124, %125, %cst_165 {dimension_numbers = #tpu.dot_dimension_numbers<[1], [0], [0], [1], [0, 0, 1, 1], [], []>} : vector<512x27xbf16>, vector<27x64xbf16>, vector<512x64xf32> -> vector<512x64xf32>
      %127 = vector.shape_cast %126 : vector<512x64xf32> to vector<2x16x16x64xf32>
      %c0_166 = arith.constant 0 : index
      %c0_167 = arith.constant 0 : index
      %128 = vector.load %arg4[%c0_166, %c0_167] : memref<1x64xf32, #tpu.memory_space<vmem>>, vector<1x64xf32>
      %129 = vector.shape_cast %128 : vector<1x64xf32> to vector<64xf32>
      %130 = vector.shape_cast %129 : vector<64xf32> to vector<1x1x1x64xf32>
      %131 = vector.broadcast %130 : vector<1x1x1x64xf32> to vector<2x16x16x64xf32>
      %132 = arith.mulf %127, %131 : vector<2x16x16x64xf32>
      %c0_168 = arith.constant 0 : index
      %c0_169 = arith.constant 0 : index
      %133 = vector.load %arg5[%c0_168, %c0_169] : memref<1x64xf32, #tpu.memory_space<vmem>>, vector<1x64xf32>
      %134 = vector.shape_cast %133 : vector<1x64xf32> to vector<64xf32>
      %135 = vector.shape_cast %134 : vector<64xf32> to vector<1x1x1x64xf32>
      %136 = vector.broadcast %135 : vector<1x1x1x64xf32> to vector<2x16x16x64xf32>
      %137 = arith.addf %132, %136 : vector<2x16x16x64xf32>
      %cst_170 = arith.constant 0.000000e+00 : f32
      %138 = vector.broadcast %cst_170 : f32 to vector<2x16x16x64xf32>
      %139 = arith.maximumf %137, %138 : vector<2x16x16x64xf32>
      %140 = arith.truncf %139 : vector<2x16x16x64xf32> to vector<2x16x16x64xbf16>
      %cst_171 = arith.constant 0.000000e+00 : bf16
      %141 = vector.broadcast %cst_171 : bf16 to vector<3x2x1x16x64xbf16>
      %c0_172 = arith.constant 0 : index
      %c0_173 = arith.constant 0 : index
      %c0_174 = arith.constant 0 : index
      %c0_175 = arith.constant 0 : index
      %c0_176 = arith.constant 0 : index
      %142 = vector.load %arg11[%c0_172, %c0_173, %c0_174, %c0_175, %c0_176] : memref<3x2x18x16x64xbf16, #tpu.memory_space<vmem>>, vector<3x2x1x16x64xbf16>
      tpu.vector_store %arg11[%c0_172, %c0_173, %c0_174, %c0_175, %c0_176], %141 {strides = array<i32>} : memref<3x2x18x16x64xbf16, #tpu.memory_space<vmem>>, vector<3x2x1x16x64xbf16>,
      %cst_177 = arith.constant 0.000000e+00 : bf16
      %143 = vector.broadcast %cst_177 : bf16 to vector<3x2x1x16x64xbf16>
      %c0_178 = arith.constant 0 : index
      %c0_179 = arith.constant 0 : index
      %c17 = arith.constant 17 : index
      %c0_180 = arith.constant 0 : index
      %c0_181 = arith.constant 0 : index
      %144 = vector.load %arg11[%c0_178, %c0_179, %c17, %c0_180, %c0_181] : memref<3x2x18x16x64xbf16, #tpu.memory_space<vmem>>, vector<3x2x1x16x64xbf16>
      tpu.vector_store %arg11[%c0_178, %c0_179, %c17, %c0_180, %c0_181], %143 {strides = array<i32>} : memref<3x2x18x16x64xbf16, #tpu.memory_space<vmem>>, vector<3x2x1x16x64xbf16>,
      %c1_182 = arith.constant 1 : index
      %c0_183 = arith.constant 0 : index
      %c1_184 = arith.constant 1 : index
      %c0_185 = arith.constant 0 : index
      %c0_186 = arith.constant 0 : index
      %145 = vector.load %arg11[%c1_182, %c0_183, %c1_184, %c0_185, %c0_186] : memref<3x2x18x16x64xbf16, #tpu.memory_space<vmem>>, vector<1x2x16x16x64xbf16>
      %146 = vector.shape_cast %145 : vector<1x2x16x16x64xbf16> to vector<2x16x16x64xbf16>
      %147 = vector.shape_cast %140 : vector<2x16x16x64xbf16> to vector<1x2x16x16x64xbf16>
      tpu.vector_store %arg11[%c1_182, %c0_183, %c1_184, %c0_185, %c0_186], %147 {strides = array<i32>} : memref<3x2x18x16x64xbf16, #tpu.memory_space<vmem>>, vector<1x2x16x16x64xbf16>,
      %148 = vector.extract_strided_slice %140 {offsets = [0, 0, 0, 0], sizes = [2, 16, 15, 64], strides = [1, 1, 1, 1]} : vector<2x16x16x64xbf16> to vector<2x16x15x64xbf16>
      %c0_187 = arith.constant 0 : index
      %c0_188 = arith.constant 0 : index
      %c1_189 = arith.constant 1 : index
      %c1_190 = arith.constant 1 : index
      %c0_191 = arith.constant 0 : index
      %149 = vector.load %arg11[%c0_187, %c0_188, %c1_189, %c1_190, %c0_191] : memref<3x2x18x16x64xbf16, #tpu.memory_space<vmem>>, vector<1x2x16x15x64xbf16>
      %150 = vector.shape_cast %149 : vector<1x2x16x15x64xbf16> to vector<2x16x15x64xbf16>
      %151 = vector.shape_cast %148 : vector<2x16x15x64xbf16> to vector<1x2x16x15x64xbf16>
      tpu.vector_store %arg11[%c0_187, %c0_188, %c1_189, %c1_190, %c0_191], %151 {strides = array<i32>} : memref<3x2x18x16x64xbf16, #tpu.memory_space<vmem>>, vector<1x2x16x15x64xbf16>,
      %152 = vector.extract_strided_slice %140 {offsets = [0, 0, 1, 0], sizes = [2, 16, 15, 64], strides = [1, 1, 1, 1]} : vector<2x16x16x64xbf16> to vector<2x16x15x64xbf16>
      %c2_192 = arith.constant 2 : index
      %c0_193 = arith.constant 0 : index
      %c1_194 = arith.constant 1 : index
      %c0_195 = arith.constant 0 : index
      %c0_196 = arith.constant 0 : index
      %153 = vector.load %arg11[%c2_192, %c0_193, %c1_194, %c0_195, %c0_196] : memref<3x2x18x16x64xbf16, #tpu.memory_space<vmem>>, vector<1x2x16x15x64xbf16>
      %154 = vector.shape_cast %153 : vector<1x2x16x15x64xbf16> to vector<2x16x15x64xbf16>
      %155 = vector.shape_cast %152 : vector<2x16x15x64xbf16> to vector<1x2x16x15x64xbf16>
      tpu.vector_store %arg11[%c2_192, %c0_193, %c1_194, %c0_195, %c0_196], %155 {strides = array<i32>} : memref<3x2x18x16x64xbf16, #tpu.memory_space<vmem>>, vector<1x2x16x15x64xbf16>,
      %cst_197 = arith.constant 0.000000e+00 : bf16
      %156 = vector.broadcast %cst_197 : bf16 to vector<2x16x1x64xbf16>
      %c0_198 = arith.constant 0 : index
      %c0_199 = arith.constant 0 : index
      %c1_200 = arith.constant 1 : index
      %c0_201 = arith.constant 0 : index
      %c0_202 = arith.constant 0 : index
      %157 = vector.load %arg11[%c0_198, %c0_199, %c1_200, %c0_201, %c0_202] : memref<3x2x18x16x64xbf16, #tpu.memory_space<vmem>>, vector<1x2x16x1x64xbf16>
      %158 = vector.shape_cast %157 : vector<1x2x16x1x64xbf16> to vector<2x16x1x64xbf16>
      %159 = vector.shape_cast %156 : vector<2x16x1x64xbf16> to vector<1x2x16x1x64xbf16>
      tpu.vector_store %arg11[%c0_198, %c0_199, %c1_200, %c0_201, %c0_202], %159 {strides = array<i32>} : memref<3x2x18x16x64xbf16, #tpu.memory_space<vmem>>, vector<1x2x16x1x64xbf16>,
      %cst_203 = arith.constant 0.000000e+00 : bf16
      %160 = vector.broadcast %cst_203 : bf16 to vector<2x16x1x64xbf16>
      %c2_204 = arith.constant 2 : index
      %c0_205 = arith.constant 0 : index
      %c1_206 = arith.constant 1 : index
      %c15_207 = arith.constant 15 : index
      %c0_208 = arith.constant 0 : index
      %161 = vector.load %arg11[%c2_204, %c0_205, %c1_206, %c15_207, %c0_208] : memref<3x2x18x16x64xbf16, #tpu.memory_space<vmem>>, vector<1x2x16x1x64xbf16>
      %162 = vector.shape_cast %161 : vector<1x2x16x1x64xbf16> to vector<2x16x1x64xbf16>
      %163 = vector.shape_cast %160 : vector<2x16x1x64xbf16> to vector<1x2x16x1x64xbf16>
      tpu.vector_store %arg11[%c2_204, %c0_205, %c1_206, %c15_207, %c0_208], %163 {strides = array<i32>} : memref<3x2x18x16x64xbf16, #tpu.memory_space<vmem>>, vector<1x2x16x1x64xbf16>,
    } else {
    }
    %cst = arith.constant 0.000000e+00 : f32
    %3 = vector.broadcast %cst : f32 to vector<2x16x16x64xf32>
    %c0 = arith.constant 0 : index
    %c0_1 = arith.constant 0 : index
    %c0_2 = arith.constant 0 : index
    %c0_3 = arith.constant 0 : index
    %c0_4 = arith.constant 0 : index
    %4 = vector.load %arg11[%c0, %c0_1, %c0_2, %c0_3, %c0_4] : memref<3x2x18x16x64xbf16, #tpu.memory_space<vmem>>, vector<1x2x18x16x64xbf16>
    %5 = vector.shape_cast %4 : vector<1x2x18x16x64xbf16> to vector<2x18x16x64xbf16>
    %6 = vector.shape_cast %5 : vector<2x18x16x64xbf16> to vector<576x64xbf16>
    %c0_5 = arith.constant 0 : index
    %c0_6 = arith.constant 0 : index
    %c0_7 = arith.constant 0 : index
    %c0_8 = arith.constant 0 : index
    %7 = vector.load %arg6[%c0_5, %c0_6, %c0_7, %c0_8] : memref<3x3x64x64xbf16, #tpu.memory_space<vmem>>, vector<1x1x64x64xbf16>
    %8 = vector.shape_cast %7 : vector<1x1x64x64xbf16> to vector<64x64xbf16>
    %cst_9 = arith.constant dense<0.000000e+00> : vector<576x64xf32>
    %9 = tpu.matmul %6, %8, %cst_9 {dimension_numbers = #tpu.dot_dimension_numbers<[1], [0], [0], [1], [0, 0, 1, 1], [], []>} : vector<576x64xbf16>, vector<64x64xbf16>, vector<576x64xf32> -> vector<576x64xf32>
    %10 = vector.shape_cast %9 : vector<576x64xf32> to vector<2x18x16x64xf32>
    %11 = vector.extract_strided_slice %10 {offsets = [0, 0, 0, 0], sizes = [2, 16, 16, 64], strides = [1, 1, 1, 1]} : vector<2x18x16x64xf32> to vector<2x16x16x64xf32>
    %12 = arith.addf %3, %11 : vector<2x16x16x64xf32>
    %c1 = arith.constant 1 : index
    %c0_10 = arith.constant 0 : index
    %c0_11 = arith.constant 0 : index
    %c0_12 = arith.constant 0 : index
    %13 = vector.load %arg6[%c1, %c0_10, %c0_11, %c0_12] : memref<3x3x64x64xbf16, #tpu.memory_space<vmem>>, vector<1x1x64x64xbf16>
    %14 = vector.shape_cast %13 : vector<1x1x64x64xbf16> to vector<64x64xbf16>
    %cst_13 = arith.constant dense<0.000000e+00> : vector<576x64xf32>
    %15 = tpu.matmul %6, %14, %cst_13 {dimension_numbers = #tpu.dot_dimension_numbers<[1], [0], [0], [1], [0, 0, 1, 1], [], []>} : vector<576x64xbf16>, vector<64x64xbf16>, vector<576x64xf32> -> vector<576x64xf32>
    %16 = vector.shape_cast %15 : vector<576x64xf32> to vector<2x18x16x64xf32>
    %17 = vector.extract_strided_slice %16 {offsets = [0, 1, 0, 0], sizes = [2, 16, 16, 64], strides = [1, 1, 1, 1]} : vector<2x18x16x64xf32> to vector<2x16x16x64xf32>
    %18 = arith.addf %12, %17 : vector<2x16x16x64xf32>
    %c2 = arith.constant 2 : index
    %c0_14 = arith.constant 0 : index
    %c0_15 = arith.constant 0 : index
    %c0_16 = arith.constant 0 : index
    %19 = vector.load %arg6[%c2, %c0_14, %c0_15, %c0_16] : memref<3x3x64x64xbf16, #tpu.memory_space<vmem>>, vector<1x1x64x64xbf16>
    %20 = vector.shape_cast %19 : vector<1x1x64x64xbf16> to vector<64x64xbf16>
    %cst_17 = arith.constant dense<0.000000e+00> : vector<576x64xf32>
    %21 = tpu.matmul %6, %20, %cst_17 {dimension_numbers = #tpu.dot_dimension_numbers<[1], [0], [0], [1], [0, 0, 1, 1], [], []>} : vector<576x64xbf16>, vector<64x64xbf16>, vector<576x64xf32> -> vector<576x64xf32>
    %22 = vector.shape_cast %21 : vector<576x64xf32> to vector<2x18x16x64xf32>
    %23 = vector.extract_strided_slice %22 {offsets = [0, 2, 0, 0], sizes = [2, 16, 16, 64], strides = [1, 1, 1, 1]} : vector<2x18x16x64xf32> to vector<2x16x16x64xf32>
    %24 = arith.addf %18, %23 : vector<2x16x16x64xf32>
    %c1_18 = arith.constant 1 : index
    %c0_19 = arith.constant 0 : index
    %c0_20 = arith.constant 0 : index
    %c0_21 = arith.constant 0 : index
    %c0_22 = arith.constant 0 : index
    %25 = vector.load %arg11[%c1_18, %c0_19, %c0_20, %c0_21, %c0_22] : memref<3x2x18x16x64xbf16, #tpu.memory_space<vmem>>, vector<1x2x18x16x64xbf16>
    %26 = vector.shape_cast %25 : vector<1x2x18x16x64xbf16> to vector<2x18x16x64xbf16>
    %27 = vector.shape_cast %26 : vector<2x18x16x64xbf16> to vector<576x64xbf16>
    %c0_23 = arith.constant 0 : index
    %c1_24 = arith.constant 1 : index
    %c0_25 = arith.constant 0 : index
    %c0_26 = arith.constant 0 : index
    %28 = vector.load %arg6[%c0_23, %c1_24, %c0_25, %c0_26] : memref<3x3x64x64xbf16, #tpu.memory_space<vmem>>, vector<1x1x64x64xbf16>
    %29 = vector.shape_cast %28 : vector<1x1x64x64xbf16> to vector<64x64xbf16>
    %cst_27 = arith.constant dense<0.000000e+00> : vector<576x64xf32>
    %30 = tpu.matmul %27, %29, %cst_27 {dimension_numbers = #tpu.dot_dimension_numbers<[1], [0], [0], [1], [0, 0, 1, 1], [], []>} : vector<576x64xbf16>, vector<64x64xbf16>, vector<576x64xf32> -> vector<576x64xf32>
    %31 = vector.shape_cast %30 : vector<576x64xf32> to vector<2x18x16x64xf32>
    %32 = vector.extract_strided_slice %31 {offsets = [0, 0, 0, 0], sizes = [2, 16, 16, 64], strides = [1, 1, 1, 1]} : vector<2x18x16x64xf32> to vector<2x16x16x64xf32>
    %33 = arith.addf %24, %32 : vector<2x16x16x64xf32>
    %c1_28 = arith.constant 1 : index
    %c1_29 = arith.constant 1 : index
    %c0_30 = arith.constant 0 : index
    %c0_31 = arith.constant 0 : index
    %34 = vector.load %arg6[%c1_28, %c1_29, %c0_30, %c0_31] : memref<3x3x64x64xbf16, #tpu.memory_space<vmem>>, vector<1x1x64x64xbf16>
    %35 = vector.shape_cast %34 : vector<1x1x64x64xbf16> to vector<64x64xbf16>
    %cst_32 = arith.constant dense<0.000000e+00> : vector<576x64xf32>
    %36 = tpu.matmul %27, %35, %cst_32 {dimension_numbers = #tpu.dot_dimension_numbers<[1], [0], [0], [1], [0, 0, 1, 1], [], []>} : vector<576x64xbf16>, vector<64x64xbf16>, vector<576x64xf32> -> vector<576x64xf32>
    %37 = vector.shape_cast %36 : vector<576x64xf32> to vector<2x18x16x64xf32>
    %38 = vector.extract_strided_slice %37 {offsets = [0, 1, 0, 0], sizes = [2, 16, 16, 64], strides = [1, 1, 1, 1]} : vector<2x18x16x64xf32> to vector<2x16x16x64xf32>
    %39 = arith.addf %33, %38 : vector<2x16x16x64xf32>
    %c2_33 = arith.constant 2 : index
    %c1_34 = arith.constant 1 : index
    %c0_35 = arith.constant 0 : index
    %c0_36 = arith.constant 0 : index
    %40 = vector.load %arg6[%c2_33, %c1_34, %c0_35, %c0_36] : memref<3x3x64x64xbf16, #tpu.memory_space<vmem>>, vector<1x1x64x64xbf16>
    %41 = vector.shape_cast %40 : vector<1x1x64x64xbf16> to vector<64x64xbf16>
    %cst_37 = arith.constant dense<0.000000e+00> : vector<576x64xf32>
    %42 = tpu.matmul %27, %41, %cst_37 {dimension_numbers = #tpu.dot_dimension_numbers<[1], [0], [0], [1], [0, 0, 1, 1], [], []>} : vector<576x64xbf16>, vector<64x64xbf16>, vector<576x64xf32> -> vector<576x64xf32>
    %43 = vector.shape_cast %42 : vector<576x64xf32> to vector<2x18x16x64xf32>
    %44 = vector.extract_strided_slice %43 {offsets = [0, 2, 0, 0], sizes = [2, 16, 16, 64], strides = [1, 1, 1, 1]} : vector<2x18x16x64xf32> to vector<2x16x16x64xf32>
    %45 = arith.addf %39, %44 : vector<2x16x16x64xf32>
    %c2_38 = arith.constant 2 : index
    %c0_39 = arith.constant 0 : index
    %c0_40 = arith.constant 0 : index
    %c0_41 = arith.constant 0 : index
    %c0_42 = arith.constant 0 : index
    %46 = vector.load %arg11[%c2_38, %c0_39, %c0_40, %c0_41, %c0_42] : memref<3x2x18x16x64xbf16, #tpu.memory_space<vmem>>, vector<1x2x18x16x64xbf16>
    %47 = vector.shape_cast %46 : vector<1x2x18x16x64xbf16> to vector<2x18x16x64xbf16>
    %48 = vector.shape_cast %47 : vector<2x18x16x64xbf16> to vector<576x64xbf16>
    %c0_43 = arith.constant 0 : index
    %c2_44 = arith.constant 2 : index
    %c0_45 = arith.constant 0 : index
    %c0_46 = arith.constant 0 : index
    %49 = vector.load %arg6[%c0_43, %c2_44, %c0_45, %c0_46] : memref<3x3x64x64xbf16, #tpu.memory_space<vmem>>, vector<1x1x64x64xbf16>
    %50 = vector.shape_cast %49 : vector<1x1x64x64xbf16> to vector<64x64xbf16>
    %cst_47 = arith.constant dense<0.000000e+00> : vector<576x64xf32>
    %51 = tpu.matmul %48, %50, %cst_47 {dimension_numbers = #tpu.dot_dimension_numbers<[1], [0], [0], [1], [0, 0, 1, 1], [], []>} : vector<576x64xbf16>, vector<64x64xbf16>, vector<576x64xf32> -> vector<576x64xf32>
    %52 = vector.shape_cast %51 : vector<576x64xf32> to vector<2x18x16x64xf32>
    %53 = vector.extract_strided_slice %52 {offsets = [0, 0, 0, 0], sizes = [2, 16, 16, 64], strides = [1, 1, 1, 1]} : vector<2x18x16x64xf32> to vector<2x16x16x64xf32>
    %54 = arith.addf %45, %53 : vector<2x16x16x64xf32>
    %c1_48 = arith.constant 1 : index
    %c2_49 = arith.constant 2 : index
    %c0_50 = arith.constant 0 : index
    %c0_51 = arith.constant 0 : index
    %55 = vector.load %arg6[%c1_48, %c2_49, %c0_50, %c0_51] : memref<3x3x64x64xbf16, #tpu.memory_space<vmem>>, vector<1x1x64x64xbf16>
    %56 = vector.shape_cast %55 : vector<1x1x64x64xbf16> to vector<64x64xbf16>
    %cst_52 = arith.constant dense<0.000000e+00> : vector<576x64xf32>
    %57 = tpu.matmul %48, %56, %cst_52 {dimension_numbers = #tpu.dot_dimension_numbers<[1], [0], [0], [1], [0, 0, 1, 1], [], []>} : vector<576x64xbf16>, vector<64x64xbf16>, vector<576x64xf32> -> vector<576x64xf32>
    %58 = vector.shape_cast %57 : vector<576x64xf32> to vector<2x18x16x64xf32>
    %59 = vector.extract_strided_slice %58 {offsets = [0, 1, 0, 0], sizes = [2, 16, 16, 64], strides = [1, 1, 1, 1]} : vector<2x18x16x64xf32> to vector<2x16x16x64xf32>
    %60 = arith.addf %54, %59 : vector<2x16x16x64xf32>
    %c2_53 = arith.constant 2 : index
    %c2_54 = arith.constant 2 : index
    %c0_55 = arith.constant 0 : index
    %c0_56 = arith.constant 0 : index
    %61 = vector.load %arg6[%c2_53, %c2_54, %c0_55, %c0_56] : memref<3x3x64x64xbf16, #tpu.memory_space<vmem>>, vector<1x1x64x64xbf16>
    %62 = vector.shape_cast %61 : vector<1x1x64x64xbf16> to vector<64x64xbf16>
    %cst_57 = arith.constant dense<0.000000e+00> : vector<576x64xf32>
    %63 = tpu.matmul %48, %62, %cst_57 {dimension_numbers = #tpu.dot_dimension_numbers<[1], [0], [0], [1], [0, 0, 1, 1], [], []>} : vector<576x64xbf16>, vector<64x64xbf16>, vector<576x64xf32> -> vector<576x64xf32>
    %64 = vector.shape_cast %63 : vector<576x64xf32> to vector<2x18x16x64xf32>
    %65 = vector.extract_strided_slice %64 {offsets = [0, 2, 0, 0], sizes = [2, 16, 16, 64], strides = [1, 1, 1, 1]} : vector<2x18x16x64xf32> to vector<2x16x16x64xf32>
    %66 = arith.addf %60, %65 : vector<2x16x16x64xf32>
    %c0_58 = arith.constant 0 : index
    %c0_59 = arith.constant 0 : index
    %67 = vector.load %arg7[%c0_58, %c0_59] : memref<1x64xf32, #tpu.memory_space<vmem>>, vector<1x64xf32>
    %68 = vector.shape_cast %67 : vector<1x64xf32> to vector<64xf32>
    %69 = vector.shape_cast %68 : vector<64xf32> to vector<1x1x1x64xf32>
    %70 = vector.broadcast %69 : vector<1x1x1x64xf32> to vector<2x16x16x64xf32>
    %71 = arith.mulf %66, %70 : vector<2x16x16x64xf32>
    %c0_60 = arith.constant 0 : index
    %c0_61 = arith.constant 0 : index
    %72 = vector.load %arg8[%c0_60, %c0_61] : memref<1x64xf32, #tpu.memory_space<vmem>>, vector<1x64xf32>
    %73 = vector.shape_cast %72 : vector<1x64xf32> to vector<64xf32>
    %74 = vector.shape_cast %73 : vector<64xf32> to vector<1x1x1x64xf32>
    %75 = vector.broadcast %74 : vector<1x1x1x64xf32> to vector<2x16x16x64xf32>
    %76 = arith.addf %71, %75 : vector<2x16x16x64xf32>
    %cst_62 = arith.constant 0.000000e+00 : f32
    %77 = vector.broadcast %cst_62 : f32 to vector<2x16x16x64xf32>
    %78 = arith.maximumf %76, %77 : vector<2x16x16x64xf32>
    %79 = arith.truncf %78 : vector<2x16x16x64xf32> to vector<2x16x16x64xbf16>
    %c0_63 = arith.constant 0 : index
    %c0_64 = arith.constant 0 : index
    %c0_65 = arith.constant 0 : index
    %c0_66 = arith.constant 0 : index
    %80 = vector.load %arg9[%c0_63, %c0_64, %c0_65, %c0_66] : memref<2x16x16x64xbf16, #tpu.memory_space<vmem>>, vector<2x16x16x64xbf16>
    tpu.vector_store %arg9[%c0_63, %c0_64, %c0_65, %c0_66], %79 {strides = array<i32>} : memref<2x16x16x64xbf16, #tpu.memory_space<vmem>>, vector<2x16x16x64xbf16>,
    return
  }
  func.func @transform_0(%arg0: i32, %arg1: i32) -> (i32, i32, i32, i32) {
    %c0_i32 = arith.constant 0 : i32
    %c0_i32_0 = arith.constant 0 : i32
    %c0_i32_1 = arith.constant 0 : i32
    %c0_i32_2 = arith.constant 0 : i32
    return %arg0, %c0_i32, %c0_i32_0, %c0_i32_1 : i32, i32, i32, i32
  }
  func.func @transform_1(%arg0: i32, %arg1: i32) -> (i32, i32) {
    %c0_i32 = arith.constant 0 : i32
    %c0_i32_0 = arith.constant 0 : i32
    %c0_i32_1 = arith.constant 0 : i32
    return %c0_i32, %c0_i32_0 : i32, i32
  }
  func.func @transform_2(%arg0: i32, %arg1: i32) -> (i32, i32) {
    %c0_i32 = arith.constant 0 : i32
    %c0_i32_0 = arith.constant 0 : i32
    %c0_i32_1 = arith.constant 0 : i32
    return %c0_i32, %c0_i32_0 : i32, i32
  }
  func.func @transform_3(%arg0: i32, %arg1: i32) -> (i32, i32) {
    %c0_i32 = arith.constant 0 : i32
    %c0_i32_0 = arith.constant 0 : i32
    %c0_i32_1 = arith.constant 0 : i32
    return %c0_i32, %c0_i32_0 : i32, i32
  }
  func.func @transform_4(%arg0: i32, %arg1: i32) -> (i32, i32, i32, i32) {
    %c0_i32 = arith.constant 0 : i32
    %c0_i32_0 = arith.constant 0 : i32
    %c0_i32_1 = arith.constant 0 : i32
    %c0_i32_2 = arith.constant 0 : i32
    return %c0_i32, %c0_i32_0, %c0_i32_1, %arg1 : i32, i32, i32, i32
  }
  func.func @transform_5(%arg0: i32, %arg1: i32) -> (i32, i32) {
    %c0_i32 = arith.constant 0 : i32
    %c0_i32_0 = arith.constant 0 : i32
    return %c0_i32, %arg1 : i32, i32
  }
  func.func @transform_6(%arg0: i32, %arg1: i32) -> (i32, i32) {
    %c0_i32 = arith.constant 0 : i32
    %c0_i32_0 = arith.constant 0 : i32
    return %c0_i32, %arg1 : i32, i32
  }
  func.func @transform_7(%arg0: i32, %arg1: i32) -> (i32, i32, i32, i32) {
    %c0_i32 = arith.constant 0 : i32
    %c0_i32_0 = arith.constant 0 : i32
    %c0_i32_1 = arith.constant 0 : i32
    return %arg0, %c0_i32, %c0_i32_0, %arg1 : i32, i32, i32, i32
  }
}

</mosaic_0001>

<llo_original>
// kernel: tpu_custom_call.1
$region0: #{tpu_custom_call.1}
  #allocation0 [shape = 'u32[]', space=smem, size = 0x4, offset = 0x4, fixed_abs, tag = 'smem constant byte address 0x4 - core index']
  #allocation1 [shape = 'u32[144,128]{1,0:T(1,128)}', space=vmem, size = 0x12000, scoped, tag = 'internal scratch']
  %s0 = inlined_call_operand.hbm [shape: f32[8,128], index: 0, kind: input, shape index: {}]
  %s1 = inlined_call_operand.hbm [shape: f32[8,128], index: 1, kind: output, shape index: {}]
  %s2 = sld [smem:[#allocation0]]
  $region41: #{tpu_custom_call.1} parent=0
    _
  %s4 = ssub.s32 1, %s2
  %s5 = scalar_select 0, %s4, %s2
  $region1: #{tpu_custom_call.1} parent=0
    #allocation2 [shape = 'u8[4096]{0}', space=vmem, size = 0x1000, scoped, tag = 'input window, operand 0, single buffered']
    #allocation3 [shape = 's32[2]{0}', space=sflag, size = 0x8, scoped, tag = 'scoped memory for tpu_custom_call.1']
    #allocation4 [shape = 's32[2]{0}', space=sflag, size = 0x8, scoped, tag = 'scoped memory for tpu_custom_call.1']
    #allocation5 [shape = 'u8[4096]{0}', space=vmem, size = 0x1000, scoped, tag = 'output window, operand 0, single buffered']
    %6 = vsyncpa [#allocation3], 0
    %7 = vsyncpa [#allocation4], 0
    loop: start=0, step=1, limit=4
    $region2: #{tpu_custom_call.1} parent=1 // loop_pre_header
      _
    $region3: #{tpu_custom_call.1} parent=1 // loop_header
      %s9 = sphi 0, %s13
      %p10 = scmp.ge.s32.totalorder %s9, 4
      %s17 = sphi 0, %s17
      %s19 = sphi 0, %s17
      %s20 = sphi 0, %s19
      %s34 = sphi 0, %s20
      %s38 = sphi 0, %s38
      %s40 = sphi 0, %s38
      %s41 = sphi 0, %s40
      %s55 = sphi 0, %s41
    $region4: #{tpu_custom_call.1} parent=1 // loop_header_branch
      %12 = sbr.rel (%p10) target = $region8
    $region5: #{tpu_custom_call.1} parent=1 // loop_body
      %s14 = ssub.s32 %s9, 1
      %s15 = ssub.s32 %s9, 2
      %s16 = sadd.s32 %s9, 1
      %s18 = sadd.s32 %s17, 1
      %p21 = scmp.eq.s32.totalorder %s9, 1
      %p22 = scmp.ne.s32.totalorder %s17, %s19
      %p23 = scmp.eq.s32.totalorder %s9, 0
      %p24 = por %p22, %p23
      %p25 = scmp.ne.s32.totalorder %s17, %s19
      %p26 = scmp.eq.s32.totalorder %s14, 1
      %p27 = por %p25, %p26
      %p28 = scmp.ne.s32.totalorder %s19, %s20
      %p29 = scmp.eq.s32.totalorder %s14, 0
      %p30 = por %p28, %p29
      %p31 = scmp.ne.s32.totalorder %s19, %s20
      %p32 = scmp.eq.s32.totalorder %s15, 1
      %p33 = por %p31, %p32
      %p35 = scmp.ne.s32.totalorder %s20, %s34
      %p36 = scmp.eq.s32.totalorder %s15, 0
      %p37 = por %p35, %p36
      %s39 = sadd.s32 %s38, 1
      %p42 = scmp.eq.s32.totalorder %s9, 1
      %p43 = scmp.ne.s32.totalorder %s38, %s40
      %p44 = scmp.eq.s32.totalorder %s9, 0
      %p45 = por %p43, %p44
      %p46 = scmp.ne.s32.totalorder %s38, %s40
      %p47 = scmp.eq.s32.totalorder %s14, 1
      %p48 = por %p46, %p47
      %p49 = scmp.ne.s32.totalorder %s40, %s41
      %p50 = scmp.eq.s32.totalorder %s14, 0
      %p51 = por %p49, %p50
      %p52 = scmp.ne.s32.totalorder %s40, %s41
      %p53 = scmp.eq.s32.totalorder %s15, 1
      %p54 = por %p52, %p53
      %p56 = scmp.ne.s32.totalorder %s41, %s55
      %p57 = scmp.eq.s32.totalorder %s15, 0
      %p58 = por %p56, %p57
      %p59 = scmp.le.s32.totalorder 1, %s9
      %p60 = scmp.lt.s32.totalorder %s9, 3
      %p61 = pnand %p59, %p60
      %p62 = pneg %p61
      // Predicated region
      $region9: #{tpu_custom_call.1} parent=5 // pred_check
        _
      $region10: #{tpu_custom_call.1} parent=5 // pred_check_branch
        %64 = sbr.rel (%p61) target = $region12
      $region11: #{tpu_custom_call.1} parent=5 // pred_region
        %s65 = ssub.s32 %s9, 1
        // Predicated region
        $region13: #{tpu_custom_call.1} parent=11 // pred_check
          %p66 = pneg %p30
        $region14: #{tpu_custom_call.1} parent=11 // pred_check_branch
          %68 = sbr.rel (%p66) target = $region16
        $region15: #{tpu_custom_call.1} parent=11 // pred_region
          %s70 = ssub.s32 128, 128
          %71 = vsyncadd [#allocation3], %s70
          %s73 = sshll.u32 [#allocation2], 4
          %s74 = int_to_ptr.vmem [resolvable:$true] %s73
          %76 = dma.hbm_to_vmem [thread:$0]  %s0, 128, %s74, [#allocation3]
        $region16: #{tpu_custom_call.1} parent=11 // pred_fallthru
          _
      $region12: #{tpu_custom_call.1} parent=5 // pred_fallthru
        _
      %p77 = scmp.lt.s32.totalorder %s9, 2
      // Predicated region
      $region17: #{tpu_custom_call.1} parent=5 // pred_check
        %p78 = pneg %p77
      $region18: #{tpu_custom_call.1} parent=5 // pred_check_branch
        %80 = sbr.rel (%p78) target = $region20
      $region19: #{tpu_custom_call.1} parent=5 // pred_region
        _
      $region20: #{tpu_custom_call.1} parent=5 // pred_fallthru
        _
      %p81 = scmp.le.s32.totalorder 1, %s9
      %p82 = scmp.lt.s32.totalorder %s9, 3
      %p83 = pnand %p81, %p82
      %p84 = pneg %p83
      // Predicated region
      $region21: #{tpu_custom_call.1} parent=5 // pred_check
        _
      $region22: #{tpu_custom_call.1} parent=5 // pred_check_branch
        %86 = sbr.rel (%p83) target = $region24
      $region23: #{tpu_custom_call.1} parent=5 // pred_region
        %s87 = ssub.s32 %s9, 1
        // Predicated region
        $region25: #{tpu_custom_call.1} parent=23 // pred_check
          %p88 = pneg %p30
        $region26: #{tpu_custom_call.1} parent=23 // pred_check_branch
          %90 = sbr.rel (%p88) target = $region28
        $region27: #{tpu_custom_call.1} parent=23 // pred_region
          %91 = dma.done [#allocation3], 128
        $region28: #{tpu_custom_call.1} parent=23 // pred_fallthru
          _
        %p92 = pneg %p30
        %p93 = pneg %p27
        %p94 = pneg %p51
        %p95 = pneg %p48
        %v96 = vld [vmem:[#allocation2] sm:$0xff]
        %v97 = vadd.f32 %v96, 1.0
        %98 = vst [vmem:[#allocation5] sm:$0xff] %v97
        // Predicated region
        $region29: #{tpu_custom_call.1} parent=23 // pred_check
          %p99 = pneg %p48
        $region30: #{tpu_custom_call.1} parent=23 // pred_check_branch
          %101 = sbr.rel (%p99) target = $region32
        $region31: #{tpu_custom_call.1} parent=23 // pred_region
          %s103 = ssub.s32 128, 128
          %104 = vsyncadd [#allocation4], %s103
          %s106 = sshll.u32 [#allocation5], 4
          %s107 = int_to_ptr.vmem [resolvable:$true] %s106
          %109 = dma.vmem_to_hbm [thread:$0]  %s107, 128, %s1, [#allocation4]
        $region32: #{tpu_custom_call.1} parent=23 // pred_fallthru
          _
        // Predicated region
        $region33: #{tpu_custom_call.1} parent=23 // pred_check
          %p110 = pneg %p48
        $region34: #{tpu_custom_call.1} parent=23 // pred_check_branch
          %112 = sbr.rel (%p110) target = $region36
        $region35: #{tpu_custom_call.1} parent=23 // pred_region
          %113 = dma.done [#allocation4], 128
        $region36: #{tpu_custom_call.1} parent=23 // pred_fallthru
          _
      $region24: #{tpu_custom_call.1} parent=5 // pred_fallthru
        _
      %p114 = scmp.le.s32.totalorder 2, %s9
      // Predicated region
      $region37: #{tpu_custom_call.1} parent=5 // pred_check
        %p115 = pneg %p114
      $region38: #{tpu_custom_call.1} parent=5 // pred_check_branch
        %117 = sbr.rel (%p115) target = $region40
      $region39: #{tpu_custom_call.1} parent=5 // pred_region
        %s118 = ssub.s32 %s9, 2
      $region40: #{tpu_custom_call.1} parent=5 // pred_fallthru
        _
    $region6: #{tpu_custom_call.1} parent=1 // loop_footer
      %s13 = sadd.s32 1, %s9
    $region7: #{tpu_custom_call.1} parent=1 // loop_footer_branch
      %8 = sbr.rel target = $region3
    $region8: #{tpu_custom_call.1} parent=1 // loop_exit
      _
    %119 = vsyncpa [#allocation3], 1
    %s120 = scalar_lea.sflag [#allocation3], 1
    %121 = vsyncpa %s120, 1
    %122 = vsyncpa [#allocation4], 1
    %s123 = scalar_lea.sflag [#allocation4], 1
    %124 = vsyncpa %s123, 1

// kernel: tpu_custom_call.1
$region0: #{tpu_custom_call.1}
  #allocation0 [shape = 'u32[]', space=smem, size = 0x4, offset = 0x4, fixed_abs, tag = 'smem constant byte address 0x4 - core index']
  #allocation1 [shape = 'u32[144,128]{1,0:T(1,128)}', space=vmem, size = 0x12000, scoped, tag = 'internal scratch']
  #allocation2 [shape = 'bf16[2,16,16,27]{3,2,1,0:T(16,128)(2,1)}', space=vmem, size = 0x20000, scoped, tag = 'scratch operand']
  #allocation3 [shape = 'bf16[3,2,18,16,64]{4,3,2,1,0:T(16,128)(2,1)}', space=vmem, size = 0x6c000, scoped, tag = 'scratch operand']
  %s0 = inlined_call_operand.vmem [shape: bf16[2,16,16,3], index: 0, kind: input, shape index: {}]
  %s1 = inlined_call_operand.vmem [shape: bf16[27,64], index: 1, kind: input, shape index: {}]
  %s2 = inlined_call_operand.vmem [shape: f32[1,64], index: 2, kind: input, shape index: {}]
  %s3 = inlined_call_operand.vmem [shape: f32[1,64], index: 3, kind: input, shape index: {}]
  %s4 = inlined_call_operand.vmem [shape: bf16[3,3,64,64], index: 4, kind: input, shape index: {}]
  %s5 = inlined_call_operand.vmem [shape: f32[1,64], index: 5, kind: input, shape index: {}]
  %s6 = inlined_call_operand.vmem [shape: f32[1,64], index: 6, kind: input, shape index: {}]
  %s7 = inlined_call_operand.hbm [shape: bf16[2,16,16,64], index: 7, kind: output, shape index: {}]
  %s8 = sld [smem:[#allocation0]]
  $region42: #{tpu_custom_call.1} parent=0
    _
  %s10 = ssub.s32 1, %s8
  %s11 = scalar_select 0, %s10, %s8
  $region1: #{tpu_custom_call.1} parent=0
    #allocation4 [shape = 'u8[131072]{0}', space=vmem, size = 0x20000, scoped, tag = 'output window, operand 0, single buffered']
    #allocation5 [shape = 's32[1]{0}', space=sflag, size = 0x4, scoped, tag = 'scoped memory for tpu_custom_call.1']
    %12 = vsyncpa [#allocation5], 0
    // Predicated region
    $region2: #{tpu_custom_call.1} parent=1 // pred_check
      _
    $region3: #{tpu_custom_call.1} parent=1 // pred_check_branch
      %14 = sbr.rel (0) target = $region5
    $region4: #{tpu_custom_call.1} parent=1 // pred_region
      _
    $region5: #{tpu_custom_call.1} parent=1 // pred_fallthru
      _
    // Predicated region
    $region6: #{tpu_custom_call.1} parent=1 // pred_check
      _
    $region7: #{tpu_custom_call.1} parent=1 // pred_check_branch
      %16 = sbr.rel (0) target = $region9
    $region8: #{tpu_custom_call.1} parent=1 // pred_region
      _
    $region9: #{tpu_custom_call.1} parent=1 // pred_fallthru
      _
    // Predicated region
    $region10: #{tpu_custom_call.1} parent=1 // pred_check
      _
    $region11: #{tpu_custom_call.1} parent=1 // pred_check_branch
      %18 = sbr.rel (0) target = $region13
    $region12: #{tpu_custom_call.1} parent=1 // pred_region
      _
    $region13: #{tpu_custom_call.1} parent=1 // pred_fallthru
      _
    // Predicated region
    $region14: #{tpu_custom_call.1} parent=1 // pred_check
      _
    $region15: #{tpu_custom_call.1} parent=1 // pred_check_branch
      %20 = sbr.rel (0) target = $region17
    $region16: #{tpu_custom_call.1} parent=1 // pred_region
      _
    $region17: #{tpu_custom_call.1} parent=1 // pred_fallthru
      _
    // Predicated region
    $region18: #{tpu_custom_call.1} parent=1 // pred_check
      _
    $region19: #{tpu_custom_call.1} parent=1 // pred_check_branch
      %22 = sbr.rel (0) target = $region21
    $region20: #{tpu_custom_call.1} parent=1 // pred_region
      _
    $region21: #{tpu_custom_call.1} parent=1 // pred_fallthru
      _
    // Predicated region
    $region22: #{tpu_custom_call.1} parent=1 // pred_check
      _
    $region23: #{tpu_custom_call.1} parent=1 // pred_check_branch
      %24 = sbr.rel (0) target = $region25
    $region24: #{tpu_custom_call.1} parent=1 // pred_region
      _
    $region25: #{tpu_custom_call.1} parent=1 // pred_fallthru
      _
    // Predicated region
    $region26: #{tpu_custom_call.1} parent=1 // pred_check
      _
    $region27: #{tpu_custom_call.1} parent=1 // pred_check_branch
      %26 = sbr.rel (0) target = $region29
    $region28: #{tpu_custom_call.1} parent=1 // pred_region
      _
    $region29: #{tpu_custom_call.1} parent=1 // pred_fallthru
      _
    %p28 = scmp.eq.s32.totalorder 0, 0
    // Predicated region
    $region30: #{tpu_custom_call.1} parent=1 // pred_check
      %p29 = pneg %p28
    $region31: #{tpu_custom_call.1} parent=1 // pred_check_branch
      %31 = sbr.rel (%p29) target = $region33
    $region32: #{tpu_custom_call.1} parent=1 // pred_region
      %v32 = vld [vmem:[%s0] sm:$0xf]
      %v33 = vld [vmem:[%s0 + $0x4] sm:$0xf]
      %v34 = vld [vmem:[%s0 + $0x8] sm:$0xf]
      %v35 = vld [vmem:[%s0 + $0xc] sm:$0xf]
      %v36 = vld [vmem:[%s0 + $0x10] sm:$0xf]
      %v37 = vld [vmem:[%s0 + $0x14] sm:$0xf]
      %v38 = vld [vmem:[%s0 + $0x18] sm:$0xf]
      %v39 = vld [vmem:[%s0 + $0x1c] sm:$0xf]
      %v40 = vld [vmem:[%s0 + $0x20] sm:$0xf]
      %v41 = vld [vmem:[%s0 + $0x24] sm:$0xf]
      %v42 = vld [vmem:[%s0 + $0x28] sm:$0xf]
      %v43 = vld [vmem:[%s0 + $0x2c] sm:$0xf]
      %v44 = vld [vmem:[%s0 + $0x30] sm:$0xf]
      %v45 = vld [vmem:[%s0 + $0x34] sm:$0xf]
      %v46 = vld [vmem:[%s0 + $0x38] sm:$0xf]
      %v47 = vld [vmem:[%s0 + $0x3c] sm:$0xf]
      %v48 = vld [vmem:[%s0 + $0x40] sm:$0xf]
      %v49 = vld [vmem:[%s0 + $0x44] sm:$0xf]
      %v50 = vld [vmem:[%s0 + $0x48] sm:$0xf]
      %v51 = vld [vmem:[%s0 + $0x4c] sm:$0xf]
      %v52 = vld [vmem:[%s0 + $0x50] sm:$0xf]
      %v53 = vld [vmem:[%s0 + $0x54] sm:$0xf]
      %v54 = vld [vmem:[%s0 + $0x58] sm:$0xf]
      %v55 = vld [vmem:[%s0 + $0x5c] sm:$0xf]
      %v56 = vld [vmem:[%s0 + $0x60] sm:$0xf]
      %v57 = vld [vmem:[%s0 + $0x64] sm:$0xf]
      %v58 = vld [vmem:[%s0 + $0x68] sm:$0xf]
      %v59 = vld [vmem:[%s0 + $0x6c] sm:$0xf]
      %v60 = vld [vmem:[%s0 + $0x70] sm:$0xf]
      %v61 = vld [vmem:[%s0 + $0x74] sm:$0xf]
      %v62 = vld [vmem:[%s0 + $0x78] sm:$0xf]
      %v63 = vld [vmem:[%s0 + $0x7c] sm:$0xf]
      %v64 = vld [vmem:[%s0 + $0x80] sm:$0xf]
      %v65 = vld [vmem:[%s0 + $0x84] sm:$0xf]
      %v66 = vld [vmem:[%s0 + $0x88] sm:$0xf]
      %v67 = vld [vmem:[%s0 + $0x8c] sm:$0xf]
      %v68 = vld [vmem:[%s0 + $0x90] sm:$0xf]
      %v69 = vld [vmem:[%s0 + $0x94] sm:$0xf]
      %v70 = vld [vmem:[%s0 + $0x98] sm:$0xf]
      %v71 = vld [vmem:[%s0 + $0x9c] sm:$0xf]
      %v72 = vld [vmem:[%s0 + $0xa0] sm:$0xf]
      %v73 = vld [vmem:[%s0 + $0xa4] sm:$0xf]
      %v74 = vld [vmem:[%s0 + $0xa8] sm:$0xf]
      %v75 = vld [vmem:[%s0 + $0xac] sm:$0xf]
      %v76 = vld [vmem:[%s0 + $0xb0] sm:$0xf]
      %v77 = vld [vmem:[%s0 + $0xb4] sm:$0xf]
      %v78 = vld [vmem:[%s0 + $0xb8] sm:$0xf]
      %v79 = vld [vmem:[%s0 + $0xbc] sm:$0xf]
      %v80 = vld [vmem:[%s0 + $0xc0] sm:$0xf]
      %v81 = vld [vmem:[%s0 + $0xc4] sm:$0xf]
      %v82 = vld [vmem:[%s0 + $0xc8] sm:$0xf]
      %v83 = vld [vmem:[%s0 + $0xcc] sm:$0xf]
      %v84 = vld [vmem:[%s0 + $0xd0] sm:$0xf]
      %v85 = vld [vmem:[%s0 + $0xd4] sm:$0xf]
      %v86 = vld [vmem:[%s0 + $0xd8] sm:$0xf]
      %v87 = vld [vmem:[%s0 + $0xdc] sm:$0xf]
      %v88 = vld [vmem:[%s0 + $0xe0] sm:$0xf]
      %v89 = vld [vmem:[%s0 + $0xe4] sm:$0xf]
      %v90 = vld [vmem:[%s0 + $0xe8] sm:$0xf]
      %v91 = vld [vmem:[%s0 + $0xec] sm:$0xf]
      %v92 = vld [vmem:[%s0 + $0xf0] sm:$0xf]
      %v93 = vld [vmem:[%s0 + $0xf4] sm:$0xf]
      %v94 = vld [vmem:[%s0 + $0xf8] sm:$0xf]
      %v95 = vld [vmem:[%s0 + $0xfc] sm:$0xf]
      %v156 = vunpack.c.l.b16 %v32
      %v157 = vunpack.c.l.b16 %v33
      %v158 = vunpack.c.l.b16 %v34
      %v159 = vunpack.c.l.b16 %v35
      %v160 = vunpack.c.l.b16 %v36
      %v161 = vunpack.c.l.b16 %v37
      %v162 = vunpack.c.l.b16 %v38
      %v163 = vunpack.c.l.b16 %v39
      %v164 = vunpack.c.l.b16 %v40
      %v165 = vunpack.c.l.b16 %v41
      %v166 = vunpack.c.l.b16 %v42
      %v167 = vunpack.c.l.b16 %v43
      %v168 = vunpack.c.l.b16 %v44
      %v169 = vunpack.c.l.b16 %v45
      %v170 = vunpack.c.l.b16 %v46
      %v171 = vunpack.c.l.b16 %v47
      %v172 = vunpack.c.l.b16 %v48
      %v173 = vunpack.c.l.b16 %v49
      %v174 = vunpack.c.l.b16 %v50
      %v175 = vunpack.c.l.b16 %v51
      %v176 = vunpack.c.l.b16 %v52
      %v177 = vunpack.c.l.b16 %v53
      %v178 = vunpack.c.l.b16 %v54
      %v179 = vunpack.c.l.b16 %v55
      %v180 = vunpack.c.l.b16 %v56
      %v181 = vunpack.c.l.b16 %v57
      %v182 = vunpack.c.l.b16 %v58
      %v183 = vunpack.c.l.b16 %v59
      %v184 = vunpack.c.l.b16 %v60
      %v185 = vunpack.c.l.b16 %v61
      %v186 = vunpack.c.l.b16 %v64
      %v187 = vunpack.c.l.b16 %v65
      %v188 = vunpack.c.l.b16 %v66
      %v189 = vunpack.c.l.b16 %v67
      %v190 = vunpack.c.l.b16 %v68
      %v191 = vunpack.c.l.b16 %v69
      %v192 = vunpack.c.l.b16 %v70
      %v193 = vunpack.c.l.b16 %v71
      %v194 = vunpack.c.l.b16 %v72
      %v195 = vunpack.c.l.b16 %v73
      %v196 = vunpack.c.l.b16 %v74
      %v197 = vunpack.c.l.b16 %v75
      %v198 = vunpack.c.l.b16 %v76
      %v199 = vunpack.c.l.b16 %v77
      %v200 = vunpack.c.l.b16 %v78
      %v201 = vunpack.c.l.b16 %v79
      %v202 = vunpack.c.l.b16 %v80
      %v203 = vunpack.c.l.b16 %v81
      %v204 = vunpack.c.l.b16 %v82
      %v205 = vunpack.c.l.b16 %v83
      %v206 = vunpack.c.l.b16 %v84
      %v207 = vunpack.c.l.b16 %v85
      %v208 = vunpack.c.l.b16 %v86
      %v209 = vunpack.c.l.b16 %v87
      %v210 = vunpack.c.l.b16 %v88
      %v211 = vunpack.c.l.b16 %v89
      %v212 = vunpack.c.l.b16 %v90
      %v213 = vunpack.c.l.b16 %v91
      %v214 = vunpack.c.l.b16 %v92
      %v215 = vunpack.c.l.b16 %v93
      %v216 = vpack.c.b16 %v157, %v156
      %v217 = vpack.c.b16 %v159, %v158
      %v218 = vpack.c.b16 %v161, %v160
      %v219 = vpack.c.b16 %v163, %v162
      %v220 = vpack.c.b16 %v165, %v164
      %v221 = vpack.c.b16 %v167, %v166
      %v222 = vpack.c.b16 %v169, %v168
      %v223 = vpack.c.b16 %v171, %v170
      %v224 = vpack.c.b16 %v173, %v172
      %v225 = vpack.c.b16 %v175, %v174
      %v226 = vpack.c.b16 %v177, %v176
      %v227 = vpack.c.b16 %v179, %v178
      %v228 = vpack.c.b16 %v181, %v180
      %v229 = vpack.c.b16 %v183, %v182
      %v230 = vpack.c.b16 %v185, %v184
      %v231 = vpack.c.b16 %v187, %v186
      %v232 = vpack.c.b16 %v189, %v188
      %v233 = vpack.c.b16 %v191, %v190
      %v234 = vpack.c.b16 %v193, %v192
      %v235 = vpack.c.b16 %v195, %v194
      %v236 = vpack.c.b16 %v197, %v196
      %v237 = vpack.c.b16 %v199, %v198
      %v238 = vpack.c.b16 %v201, %v200
      %v239 = vpack.c.b16 %v203, %v202
      %v240 = vpack.c.b16 %v205, %v204
      %v241 = vpack.c.b16 %v207, %v206
      %v242 = vpack.c.b16 %v209, %v208
      %v243 = vpack.c.b16 %v211, %v210
      %v244 = vpack.c.b16 %v213, %v212
      %v245 = vpack.c.b16 %v215, %v214
      %v247 = vshrl.u32 %v216, 16
      %v249 = vrot.slane %v247, 7
      %v250 = vshll.u32 %v216, 16
      %v252 = vor.u32 %v249, %v250
      %v254 = vshrl.u32 %v217, 16
      %v256 = vrot.slane %v254, 7
      %v257 = vshll.u32 %v217, 16
      %v259 = vor.u32 %v256, %v257
      %v261 = vshrl.u32 %v218, 16
      %v263 = vrot.slane %v261, 7
      %v264 = vshll.u32 %v218, 16
      %v266 = vor.u32 %v263, %v264
      %v268 = vshrl.u32 %v219, 16
      %v270 = vrot.slane %v268, 7
      %v271 = vshll.u32 %v219, 16
      %v273 = vor.u32 %v270, %v271
      %v275 = vshrl.u32 %v220, 16
      %v277 = vrot.slane %v275, 7
      %v278 = vshll.u32 %v220, 16
      %v280 = vor.u32 %v277, %v278
      %v282 = vshrl.u32 %v221, 16
      %v284 = vrot.slane %v282, 7
      %v285 = vshll.u32 %v221, 16
      %v287 = vor.u32 %v284, %v285
      %v289 = vshrl.u32 %v222, 16
      %v291 = vrot.slane %v289, 7
      %v292 = vshll.u32 %v222, 16
      %v294 = vor.u32 %v291, %v292
      %v296 = vshrl.u32 %v223, 16
      %v298 = vrot.slane %v296, 7
      %v299 = vshll.u32 %v223, 16
      %v301 = vor.u32 %v298, %v299
      %v303 = vshrl.u32 %v224, 16
      %v305 = vrot.slane %v303, 7
      %v306 = vshll.u32 %v224, 16
      %v308 = vor.u32 %v305, %v306
      %v310 = vshrl.u32 %v225, 16
      %v312 = vrot.slane %v310, 7
      %v313 = vshll.u32 %v225, 16
      %v315 = vor.u32 %v312, %v313
      %v317 = vshrl.u32 %v226, 16
      %v319 = vrot.slane %v317, 7
      %v320 = vshll.u32 %v226, 16
      %v322 = vor.u32 %v319, %v320
      %v324 = vshrl.u32 %v227, 16
      %v326 = vrot.slane %v324, 7
      %v327 = vshll.u32 %v227, 16
      %v329 = vor.u32 %v326, %v327
      %v331 = vshrl.u32 %v228, 16
      %v333 = vrot.slane %v331, 7
      %v334 = vshll.u32 %v228, 16
      %v336 = vor.u32 %v333, %v334
      %v338 = vshrl.u32 %v229, 16
      %v340 = vrot.slane %v338, 7
      %v341 = vshll.u32 %v229, 16
      %v343 = vor.u32 %v340, %v341
      %v345 = vshrl.u32 %v230, 16
      %v347 = vrot.slane %v345, 7
      %v348 = vshll.u32 %v230, 16
      %v350 = vor.u32 %v347, %v348
      %v352 = vshrl.u32 %v231, 16
      %v354 = vrot.slane %v352, 7
      %v355 = vshll.u32 %v231, 16
      %v357 = vor.u32 %v354, %v355
      %v359 = vshrl.u32 %v232, 16
      %v361 = vrot.slane %v359, 7
      %v362 = vshll.u32 %v232, 16
      %v364 = vor.u32 %v361, %v362
      %v366 = vshrl.u32 %v233, 16
      %v368 = vrot.slane %v366, 7
      %v369 = vshll.u32 %v233, 16
      %v371 = vor.u32 %v368, %v369
      %v373 = vshrl.u32 %v234, 16
      %v375 = vrot.slane %v373, 7
      %v376 = vshll.u32 %v234, 16
      %v378 = vor.u32 %v375, %v376
      %v380 = vshrl.u32 %v235, 16
      %v382 = vrot.slane %v380, 7
      %v383 = vshll.u32 %v235, 16
      %v385 = vor.u32 %v382, %v383
      %v387 = vshrl.u32 %v236, 16
      %v389 = vrot.slane %v387, 7
      %v390 = vshll.u32 %v236, 16
      %v392 = vor.u32 %v389, %v390
      %v394 = vshrl.u32 %v237, 16
      %v396 = vrot.slane %v394, 7
      %v397 = vshll.u32 %v237, 16
      %v399 = vor.u32 %v396, %v397
      %v401 = vshrl.u32 %v238, 16
      %v403 = vrot.slane %v401, 7
      %v404 = vshll.u32 %v238, 16
      %v406 = vor.u32 %v403, %v404
      %v408 = vshrl.u32 %v239, 16
      %v410 = vrot.slane %v408, 7
      %v411 = vshll.u32 %v239, 16
      %v413 = vor.u32 %v410, %v411
      %v415 = vshrl.u32 %v240, 16
      %v417 = vrot.slane %v415, 7
      %v418 = vshll.u32 %v240, 16
      %v420 = vor.u32 %v417, %v418
      %v422 = vshrl.u32 %v241, 16
      %v424 = vrot.slane %v422, 7
      %v425 = vshll.u32 %v241, 16
      %v427 = vor.u32 %v424, %v425
      %v429 = vshrl.u32 %v242, 16
      %v431 = vrot.slane %v429, 7
      %v432 = vshll.u32 %v242, 16
      %v434 = vor.u32 %v431, %v432
      %v436 = vshrl.u32 %v243, 16
      %v438 = vrot.slane %v436, 7
      %v439 = vshll.u32 %v243, 16
      %v441 = vor.u32 %v438, %v439
      %v443 = vshrl.u32 %v244, 16
      %v445 = vrot.slane %v443, 7
      %v446 = vshll.u32 %v244, 16
      %v448 = vor.u32 %v445, %v446
      %v450 = vshrl.u32 %v245, 16
      %v452 = vrot.slane %v450, 7
      %v453 = vshll.u32 %v245, 16
      %v455 = vor.u32 %v452, %v453
      %s486 = scalar_lea.vmem [#allocation2], 8
      %vm487 = vcmask 23552
      %vm488 = vsmask.f32 7938
      %vm489 = vmand %vm487, %vm488
      %v490 = vld [vmem:[%s486] sm:$0xff]
      %v491 = vsel %vm489, %v252, %v490
      %492 = vst [vmem:[%s486] sm:$0xff] %v491
      %v493 = vld [vmem:[%s486 + $0x8] sm:$0xff]
      %v494 = vsel %vm489, %v259, %v493
      %495 = vst [vmem:[%s486 + $0x8] sm:$0xff] %v494
      %v496 = vld [vmem:[%s486 + $0x10] sm:$0xff]
      %v497 = vsel %vm489, %v266, %v496
      %498 = vst [vmem:[%s486 + $0x10] sm:$0xff] %v497
      %v499 = vld [vmem:[%s486 + $0x18] sm:$0xff]
      %v500 = vsel %vm489, %v273, %v499
      %501 = vst [vmem:[%s486 + $0x18] sm:$0xff] %v500
      %v502 = vld [vmem:[%s486 + $0x20] sm:$0xff]
      %v503 = vsel %vm489, %v280, %v502
      %504 = vst [vmem:[%s486 + $0x20] sm:$0xff] %v503
      %v505 = vld [vmem:[%s486 + $0x28] sm:$0xff]
      %v506 = vsel %vm489, %v287, %v505
      %507 = vst [vmem:[%s486 + $0x28] sm:$0xff] %v506
      %v508 = vld [vmem:[%s486 + $0x30] sm:$0xff]
      %v509 = vsel %vm489, %v294, %v508
      %510 = vst [vmem:[%s486 + $0x30] sm:$0xff] %v509
      %v511 = vld [vmem:[%s486 + $0x38] sm:$0xff]
      %v512 = vsel %vm489, %v301, %v511
      %513 = vst [vmem:[%s486 + $0x38] sm:$0xff] %v512
      %v514 = vld [vmem:[%s486 + $0x40] sm:$0xff]
      %v515 = vsel %vm489, %v308, %v514
      %516 = vst [vmem:[%s486 + $0x40] sm:$0xff] %v515
      %v517 = vld [vmem:[%s486 + $0x48] sm:$0xff]
      %v518 = vsel %vm489, %v315, %v517
      %519 = vst [vmem:[%s486 + $0x48] sm:$0xff] %v518
      %v520 = vld [vmem:[%s486 + $0x50] sm:$0xff]
      %v521 = vsel %vm489, %v322, %v520
      %522 = vst [vmem:[%s486 + $0x50] sm:$0xff] %v521
      %v523 = vld [vmem:[%s486 + $0x58] sm:$0xff]
      %v524 = vsel %vm489, %v329, %v523
      %525 = vst [vmem:[%s486 + $0x58] sm:$0xff] %v524
      %v526 = vld [vmem:[%s486 + $0x60] sm:$0xff]
      %v527 = vsel %vm489, %v336, %v526
      %528 = vst [vmem:[%s486 + $0x60] sm:$0xff] %v527
      %v529 = vld [vmem:[%s486 + $0x68] sm:$0xff]
      %v530 = vsel %vm489, %v343, %v529
      %531 = vst [vmem:[%s486 + $0x68] sm:$0xff] %v530
      %v532 = vld [vmem:[%s486 + $0x70] sm:$0xff]
      %v533 = vsel %vm489, %v350, %v532
      %534 = vst [vmem:[%s486 + $0x70] sm:$0xff] %v533
      %v535 = vld [vmem:[%s486 + $0x80] sm:$0xff]
      %v536 = vsel %vm489, %v357, %v535
      %537 = vst [vmem:[%s486 + $0x80] sm:$0xff] %v536
      %v538 = vld [vmem:[%s486 + $0x88] sm:$0xff]
      %v539 = vsel %vm489, %v364, %v538
      %540 = vst [vmem:[%s486 + $0x88] sm:$0xff] %v539
      %v541 = vld [vmem:[%s486 + $0x90] sm:$0xff]
      %v542 = vsel %vm489, %v371, %v541
      %543 = vst [vmem:[%s486 + $0x90] sm:$0xff] %v542
      %v544 = vld [vmem:[%s486 + $0x98] sm:$0xff]
      %v545 = vsel %vm489, %v378, %v544
      %546 = vst [vmem:[%s486 + $0x98] sm:$0xff] %v545
      %v547 = vld [vmem:[%s486 + $0xa0] sm:$0xff]
      %v548 = vsel %vm489, %v385, %v547
      %549 = vst [vmem:[%s486 + $0xa0] sm:$0xff] %v548
      %v550 = vld [vmem:[%s486 + $0xa8] sm:$0xff]
      %v551 = vsel %vm489, %v392, %v550
      %552 = vst [vmem:[%s486 + $0xa8] sm:$0xff] %v551
      %v553 = vld [vmem:[%s486 + $0xb0] sm:$0xff]
      %v554 = vsel %vm489, %v399, %v553
      %555 = vst [vmem:[%s486 + $0xb0] sm:$0xff] %v554
      %v556 = vld [vmem:[%s486 + $0xb8] sm:$0xff]
      %v557 = vsel %vm489, %v406, %v556
      %558 = vst [vmem:[%s486 + $0xb8] sm:$0xff] %v557
      %v559 = vld [vmem:[%s486 + $0xc0] sm:$0xff]
      %v560 = vsel %vm489, %v413, %v559
      %561 = vst [vmem:[%s486 + $0xc0] sm:$0xff] %v560
      %v562 = vld [vmem:[%s486 + $0xc8] sm:$0xff]
      %v563 = vsel %vm489, %v420, %v562
      %564 = vst [vmem:[%s486 + $0xc8] sm:$0xff] %v563
      %v565 = vld [vmem:[%s486 + $0xd0] sm:$0xff]
      %v566 = vsel %vm489, %v427, %v565
      %567 = vst [vmem:[%s486 + $0xd0] sm:$0xff] %v566
      %v568 = vld [vmem:[%s486 + $0xd8] sm:$0xff]
      %v569 = vsel %vm489, %v434, %v568
      %570 = vst [vmem:[%s486 + $0xd8] sm:$0xff] %v569
      %v571 = vld [vmem:[%s486 + $0xe0] sm:$0xff]
      %v572 = vsel %vm489, %v441, %v571
      %573 = vst [vmem:[%s486 + $0xe0] sm:$0xff] %v572
      %v574 = vld [vmem:[%s486 + $0xe8] sm:$0xff]
      %v575 = vsel %vm489, %v448, %v574
      %576 = vst [vmem:[%s486 + $0xe8] sm:$0xff] %v575
      %v577 = vld [vmem:[%s486 + $0xf0] sm:$0xff]
      %v578 = vsel %vm489, %v455, %v577
      %579 = vst [vmem:[%s486 + $0xf0] sm:$0xff] %v578
      %vm580 = vcmask 23552
      %581 = vst.msk [vmem:[#allocation2] sm:$0xff] %vm580, 0
      %582 = vst.msk [vmem:[#allocation2 + $0x80] sm:$0xff] %vm580, 0
      %vm583 = vcmask 16384
      %vm584 = vsmask.f32 256
      %vm585 = vmand %vm583, %vm584
      %v586 = vld [vmem:[#allocation2] sm:$0x1]
      %v587 = vsel %vm585, 0, %v586
      %588 = vst [vmem:[#allocation2] sm:$0x1] %v587
      %v589 = vld [vmem:[#allocation2 + $0x8] sm:$0x1]
      %v590 = vsel %vm585, 0, %v589
      %591 = vst [vmem:[#allocation2 + $0x8] sm:$0x1] %v590
      %v592 = vld [vmem:[#allocation2 + $0x10] sm:$0x1]
      %v593 = vsel %vm585, 0, %v592
      %594 = vst [vmem:[#allocation2 + $0x10] sm:$0x1] %v593
      %v595 = vld [vmem:[#allocation2 + $0x18] sm:$0x1]
      %v596 = vsel %vm585, 0, %v595
      %597 = vst [vmem:[#allocation2 + $0x18] sm:$0x1] %v596
      %v598 = vld [vmem:[#allocation2 + $0x20] sm:$0x1]
      %v599 = vsel %vm585, 0, %v598
      %600 = vst [vmem:[#allocation2 + $0x20] sm:$0x1] %v599
      %v601 = vld [vmem:[#allocation2 + $0x28] sm:$0x1]
      %v602 = vsel %vm585, 0, %v601
      %603 = vst [vmem:[#allocation2 + $0x28] sm:$0x1] %v602
      %v604 = vld [vmem:[#allocation2 + $0x30] sm:$0x1]
      %v605 = vsel %vm585, 0, %v604
      %606 = vst [vmem:[#allocation2 + $0x30] sm:$0x1] %v605
      %v607 = vld [vmem:[#allocation2 + $0x38] sm:$0x1]
      %v608 = vsel %vm585, 0, %v607
      %609 = vst [vmem:[#allocation2 + $0x38] sm:$0x1] %v608
      %v610 = vld [vmem:[#allocation2 + $0x40] sm:$0x1]
      %v611 = vsel %vm585, 0, %v610
      %612 = vst [vmem:[#allocation2 + $0x40] sm:$0x1] %v611
      %v613 = vld [vmem:[#allocation2 + $0x48] sm:$0x1]
      %v614 = vsel %vm585, 0, %v613
      %615 = vst [vmem:[#allocation2 + $0x48] sm:$0x1] %v614
      %v616 = vld [vmem:[#allocation2 + $0x50] sm:$0x1]
      %v617 = vsel %vm585, 0, %v616
      %618 = vst [vmem:[#allocation2 + $0x50] sm:$0x1] %v617
      %v619 = vld [vmem:[#allocation2 + $0x58] sm:$0x1]
      %v620 = vsel %vm585, 0, %v619
      %621 = vst [vmem:[#allocation2 + $0x58] sm:$0x1] %v620
      %v622 = vld [vmem:[#allocation2 + $0x60] sm:$0x1]
      %v623 = vsel %vm585, 0, %v622
      %624 = vst [vmem:[#allocation2 + $0x60] sm:$0x1] %v623
      %v625 = vld [vmem:[#allocation2 + $0x68] sm:$0x1]
      %v626 = vsel %vm585, 0, %v625
      %627 = vst [vmem:[#allocation2 + $0x68] sm:$0x1] %v626
      %v628 = vld [vmem:[#allocation2 + $0x70] sm:$0x1]
      %v629 = vsel %vm585, 0, %v628
      %630 = vst [vmem:[#allocation2 + $0x70] sm:$0x1] %v629
      %v631 = vld [vmem:[#allocation2 + $0x78] sm:$0x1]
      %v632 = vsel %vm585, 0, %v631
      %633 = vst [vmem:[#allocation2 + $0x78] sm:$0x1] %v632
      %v634 = vld [vmem:[#allocation2 + $0x80] sm:$0x1]
      %v635 = vsel %vm585, 0, %v634
      %636 = vst [vmem:[#allocation2 + $0x80] sm:$0x1] %v635
      %v637 = vld [vmem:[#allocation2 + $0x88] sm:$0x1]
      %v638 = vsel %vm585, 0, %v637
      %639 = vst [vmem:[#allocation2 + $0x88] sm:$0x1] %v638
      %v640 = vld [vmem:[#allocation2 + $0x90] sm:$0x1]
      %v641 = vsel %vm585, 0, %v640
      %642 = vst [vmem:[#allocation2 + $0x90] sm:$0x1] %v641
      %v643 = vld [vmem:[#allocation2 + $0x98] sm:$0x1]
      %v644 = vsel %vm585, 0, %v643
      %645 = vst [vmem:[#allocation2 + $0x98] sm:$0x1] %v644
      %v646 = vld [vmem:[#allocation2 + $0xa0] sm:$0x1]
      %v647 = vsel %vm585, 0, %v646
      %648 = vst [vmem:[#allocation2 + $0xa0] sm:$0x1] %v647
      %v649 = vld [vmem:[#allocation2 + $0xa8] sm:$0x1]
      %v650 = vsel %vm585, 0, %v649
      %651 = vst [vmem:[#allocation2 + $0xa8] sm:$0x1] %v650
      %v652 = vld [vmem:[#allocation2 + $0xb0] sm:$0x1]
      %v653 = vsel %vm585, 0, %v652
      %654 = vst [vmem:[#allocation2 + $0xb0] sm:$0x1] %v653
      %v655 = vld [vmem:[#allocation2 + $0xb8] sm:$0x1]
      %v656 = vsel %vm585, 0, %v655
      %657 = vst [vmem:[#allocation2 + $0xb8] sm:$0x1] %v656
      %v658 = vld [vmem:[#allocation2 + $0xc0] sm:$0x1]
      %v659 = vsel %vm585, 0, %v658
      %660 = vst [vmem:[#allocation2 + $0xc0] sm:$0x1] %v659
      %v661 = vld [vmem:[#allocation2 + $0xc8] sm:$0x1]
      %v662 = vsel %vm585, 0, %v661
      %663 = vst [vmem:[#allocation2 + $0xc8] sm:$0x1] %v662
      %v664 = vld [vmem:[#allocation2 + $0xd0] sm:$0x1]
      %v665 = vsel %vm585, 0, %v664
      %666 = vst [vmem:[#allocation2 + $0xd0] sm:$0x1] %v665
      %v667 = vld [vmem:[#allocation2 + $0xd8] sm:$0x1]
      %v668 = vsel %vm585, 0, %v667
      %669 = vst [vmem:[#allocation2 + $0xd8] sm:$0x1] %v668
      %v670 = vld [vmem:[#allocation2 + $0xe0] sm:$0x1]
      %v671 = vsel %vm585, 0, %v670
      %672 = vst [vmem:[#allocation2 + $0xe0] sm:$0x1] %v671
      %v673 = vld [vmem:[#allocation2 + $0xe8] sm:$0x1]
      %v674 = vsel %vm585, 0, %v673
      %675 = vst [vmem:[#allocation2 + $0xe8] sm:$0x1] %v674
      %v676 = vld [vmem:[#allocation2 + $0xf0] sm:$0x1]
      %v677 = vsel %vm585, 0, %v676
      %678 = vst [vmem:[#allocation2 + $0xf0] sm:$0x1] %v677
      %v679 = vld [vmem:[#allocation2 + $0xf8] sm:$0x1]
      %v680 = vsel %vm585, 0, %v679
      %681 = vst [vmem:[#allocation2 + $0xf8] sm:$0x1] %v680
      %682 = vrot.lane.b32.xlu0 %v216, 3
      %v683 = vpop.permute.xlu0 %682
      %684 = vrot.lane.b32.xlu0 %v217, 3
      %v685 = vpop.permute.xlu0 %684
      %686 = vrot.lane.b32.xlu0 %v218, 3
      %v687 = vpop.permute.xlu0 %686
      %688 = vrot.lane.b32.xlu0 %v219, 3
      %v689 = vpop.permute.xlu0 %688
      %690 = vrot.lane.b32.xlu0 %v220, 3
      %v691 = vpop.permute.xlu0 %690
      %692 = vrot.lane.b32.xlu0 %v221, 3
      %v693 = vpop.permute.xlu0 %692
      %694 = vrot.lane.b32.xlu0 %v222, 3
      %v695 = vpop.permute.xlu0 %694
      %696 = vrot.lane.b32.xlu0 %v223, 3
      %v697 = vpop.permute.xlu0 %696
      %698 = vrot.lane.b32.xlu0 %v224, 3
      %v699 = vpop.permute.xlu0 %698
      %700 = vrot.lane.b32.xlu0 %v225, 3
      %v701 = vpop.permute.xlu0 %700
      %702 = vrot.lane.b32.xlu0 %v226, 3
      %v703 = vpop.permute.xlu0 %702
      %704 = vrot.lane.b32.xlu0 %v227, 3
      %v705 = vpop.permute.xlu0 %704
      %706 = vrot.lane.b32.xlu0 %v228, 3
      %v707 = vpop.permute.xlu0 %706
      %708 = vrot.lane.b32.xlu0 %v229, 3
      %v709 = vpop.permute.xlu0 %708
      %710 = vrot.lane.b32.xlu0 %v230, 3
      %v711 = vpop.permute.xlu0 %710
      %712 = vrot.lane.b32.xlu0 %v231, 3
      %v713 = vpop.permute.xlu0 %712
      %714 = vrot.lane.b32.xlu0 %v232, 3
      %v715 = vpop.permute.xlu0 %714
      %716 = vrot.lane.b32.xlu0 %v233, 3
      %v717 = vpop.permute.xlu0 %716
      %718 = vrot.lane.b32.xlu0 %v234, 3
      %v719 = vpop.permute.xlu0 %718
      %720 = vrot.lane.b32.xlu0 %v235, 3
      %v721 = vpop.permute.xlu0 %720
      %722 = vrot.lane.b32.xlu0 %v236, 3
      %v723 = vpop.permute.xlu0 %722
      %724 = vrot.lane.b32.xlu0 %v237, 3
      %v725 = vpop.permute.xlu0 %724
      %726 = vrot.lane.b32.xlu0 %v238, 3
      %v727 = vpop.permute.xlu0 %726
      %728 = vrot.lane.b32.xlu0 %v239, 3
      %v729 = vpop.permute.xlu0 %728
      %730 = vrot.lane.b32.xlu0 %v240, 3
      %v731 = vpop.permute.xlu0 %730
      %732 = vrot.lane.b32.xlu0 %v241, 3
      %v733 = vpop.permute.xlu0 %732
      %734 = vrot.lane.b32.xlu0 %v242, 3
      %v735 = vpop.permute.xlu0 %734
      %736 = vrot.lane.b32.xlu0 %v243, 3
      %v737 = vpop.permute.xlu0 %736
      %738 = vrot.lane.b32.xlu0 %v244, 3
      %v739 = vpop.permute.xlu0 %738
      %740 = vrot.lane.b32.xlu0 %v245, 3
      %v741 = vpop.permute.xlu0 %740
      %vm772 = vcmask 48152
      %773 = vst.msk [vmem:[%s486] sm:$0xff] %vm772, %v683
      %774 = vst.msk [vmem:[%s486 + $0x8] sm:$0xff] %vm772, %v685
      %775 = vst.msk [vmem:[%s486 + $0x10] sm:$0xff] %vm772, %v687
      %776 = vst.msk [vmem:[%s486 + $0x18] sm:$0xff] %vm772, %v689
      %777 = vst.msk [vmem:[%s486 + $0x20] sm:$0xff] %vm772, %v691
      %778 = vst.msk [vmem:[%s486 + $0x28] sm:$0xff] %vm772, %v693
      %779 = vst.msk [vmem:[%s486 + $0x30] sm:$0xff] %vm772, %v695
      %780 = vst.msk [vmem:[%s486 + $0x38] sm:$0xff] %vm772, %v697
      %781 = vst.msk [vmem:[%s486 + $0x40] sm:$0xff] %vm772, %v699
      %782 = vst.msk [vmem:[%s486 + $0x48] sm:$0xff] %vm772, %v701
      %783 = vst.msk [vmem:[%s486 + $0x50] sm:$0xff] %vm772, %v703
      %784 = vst.msk [vmem:[%s486 + $0x58] sm:$0xff] %vm772, %v705
      %785 = vst.msk [vmem:[%s486 + $0x60] sm:$0xff] %vm772, %v707
      %786 = vst.msk [vmem:[%s486 + $0x68] sm:$0xff] %vm772, %v709
      %787 = vst.msk [vmem:[%s486 + $0x70] sm:$0xff] %vm772, %v711
      %788 = vst.msk [vmem:[%s486 + $0x80] sm:$0xff] %vm772, %v713
      %789 = vst.msk [vmem:[%s486 + $0x88] sm:$0xff] %vm772, %v715
      %790 = vst.msk [vmem:[%s486 + $0x90] sm:$0xff] %vm772, %v717
      %791 = vst.msk [vmem:[%s486 + $0x98] sm:$0xff] %vm772, %v719
      %792 = vst.msk [vmem:[%s486 + $0xa0] sm:$0xff] %vm772, %v721
      %793 = vst.msk [vmem:[%s486 + $0xa8] sm:$0xff] %vm772, %v723
      %794 = vst.msk [vmem:[%s486 + $0xb0] sm:$0xff] %vm772, %v725
      %795 = vst.msk [vmem:[%s486 + $0xb8] sm:$0xff] %vm772, %v727
      %796 = vst.msk [vmem:[%s486 + $0xc0] sm:$0xff] %vm772, %v729
      %797 = vst.msk [vmem:[%s486 + $0xc8] sm:$0xff] %vm772, %v731
      %798 = vst.msk [vmem:[%s486 + $0xd0] sm:$0xff] %vm772, %v733
      %799 = vst.msk [vmem:[%s486 + $0xd8] sm:$0xff] %vm772, %v735
      %800 = vst.msk [vmem:[%s486 + $0xe0] sm:$0xff] %vm772, %v737
      %801 = vst.msk [vmem:[%s486 + $0xe8] sm:$0xff] %vm772, %v739
      %802 = vst.msk [vmem:[%s486 + $0xf0] sm:$0xff] %vm772, %v741
      %803 = vst.msk [vmem:[#allocation2] sm:$0xff] %vm772, 0
      %804 = vst.msk [vmem:[#allocation2 + $0x80] sm:$0xff] %vm772, 0
      %v805 = vrot.slane %v250, 1
      %v806 = vor.u32 %v247, %v805
      %v807 = vrot.slane %v257, 1
      %v808 = vor.u32 %v254, %v807
      %v809 = vrot.slane %v264, 1
      %v810 = vor.u32 %v261, %v809
      %v811 = vrot.slane %v271, 1
      %v812 = vor.u32 %v268, %v811
      %v813 = vrot.slane %v278, 1
      %v814 = vor.u32 %v275, %v813
      %v815 = vrot.slane %v285, 1
      %v816 = vor.u32 %v282, %v815
      %v817 = vrot.slane %v292, 1
      %v818 = vor.u32 %v289, %v817
      %v819 = vrot.slane %v299, 1
      %v820 = vor.u32 %v296, %v819
      %v821 = vrot.slane %v306, 1
      %v822 = vor.u32 %v303, %v821
      %v823 = vrot.slane %v313, 1
      %v824 = vor.u32 %v310, %v823
      %v825 = vrot.slane %v320, 1
      %v826 = vor.u32 %v317, %v825
      %v827 = vrot.slane %v327, 1
      %v828 = vor.u32 %v324, %v827
      %v829 = vrot.slane %v334, 1
      %v830 = vor.u32 %v331, %v829
      %v831 = vrot.slane %v341, 1
      %v832 = vor.u32 %v338, %v831
      %v833 = vrot.slane %v348, 1
      %v834 = vor.u32 %v345, %v833
      %v835 = vrot.slane %v355, 1
      %v836 = vor.u32 %v352, %v835
      %v837 = vrot.slane %v362, 1
      %v838 = vor.u32 %v359, %v837
      %v839 = vrot.slane %v369, 1
      %v840 = vor.u32 %v366, %v839
      %v841 = vrot.slane %v376, 1
      %v842 = vor.u32 %v373, %v841
      %v843 = vrot.slane %v383, 1
      %v844 = vor.u32 %v380, %v843
      %v845 = vrot.slane %v390, 1
      %v846 = vor.u32 %v387, %v845
      %v847 = vrot.slane %v397, 1
      %v848 = vor.u32 %v394, %v847
      %v849 = vrot.slane %v404, 1
      %v850 = vor.u32 %v401, %v849
      %v851 = vrot.slane %v411, 1
      %v852 = vor.u32 %v408, %v851
      %v853 = vrot.slane %v418, 1
      %v854 = vor.u32 %v415, %v853
      %v855 = vrot.slane %v425, 1
      %v856 = vor.u32 %v422, %v855
      %v857 = vrot.slane %v432, 1
      %v858 = vor.u32 %v429, %v857
      %v859 = vrot.slane %v439, 1
      %v860 = vor.u32 %v436, %v859
      %v861 = vrot.slane %v446, 1
      %v862 = vor.u32 %v443, %v861
      %v863 = vrot.slane %v453, 1
      %v864 = vor.u32 %v450, %v863
      %865 = vrot.lane.b32.xlu0 %v806, 6
      %v866 = vpop.permute.xlu0 %865
      %867 = vrot.lane.b32.xlu0 %v808, 6
      %v868 = vpop.permute.xlu0 %867
      %869 = vrot.lane.b32.xlu0 %v810, 6
      %v870 = vpop.permute.xlu0 %869
      %871 = vrot.lane.b32.xlu0 %v812, 6
      %v872 = vpop.permute.xlu0 %871
      %873 = vrot.lane.b32.xlu0 %v814, 6
      %v874 = vpop.permute.xlu0 %873
      %875 = vrot.lane.b32.xlu0 %v816, 6
      %v876 = vpop.permute.xlu0 %875
      %877 = vrot.lane.b32.xlu0 %v818, 6
      %v878 = vpop.permute.xlu0 %877
      %879 = vrot.lane.b32.xlu0 %v820, 6
      %v880 = vpop.permute.xlu0 %879
      %881 = vrot.lane.b32.xlu0 %v822, 6
      %v882 = vpop.permute.xlu0 %881
      %883 = vrot.lane.b32.xlu0 %v824, 6
      %v884 = vpop.permute.xlu0 %883
      %885 = vrot.lane.b32.xlu0 %v826, 6
      %v886 = vpop.permute.xlu0 %885
      %887 = vrot.lane.b32.xlu0 %v828, 6
      %v888 = vpop.permute.xlu0 %887
      %889 = vrot.lane.b32.xlu0 %v830, 6
      %v890 = vpop.permute.xlu0 %889
      %891 = vrot.lane.b32.xlu0 %v832, 6
      %v892 = vpop.permute.xlu0 %891
      %893 = vrot.lane.b32.xlu0 %v834, 6
      %v894 = vpop.permute.xlu0 %893
      %895 = vrot.lane.b32.xlu0 %v836, 6
      %v896 = vpop.permute.xlu0 %895
      %897 = vrot.lane.b32.xlu0 %v838, 6
      %v898 = vpop.permute.xlu0 %897
      %899 = vrot.lane.b32.xlu0 %v840, 6
      %v900 = vpop.permute.xlu0 %899
      %901 = vrot.lane.b32.xlu0 %v842, 6
      %v902 = vpop.permute.xlu0 %901
      %903 = vrot.lane.b32.xlu0 %v844, 6
      %v904 = vpop.permute.xlu0 %903
      %905 = vrot.lane.b32.xlu0 %v846, 6
      %v906 = vpop.permute.xlu0 %905
      %907 = vrot.lane.b32.xlu0 %v848, 6
      %v908 = vpop.permute.xlu0 %907
      %909 = vrot.lane.b32.xlu0 %v850, 6
      %v910 = vpop.permute.xlu0 %909
      %911 = vrot.lane.b32.xlu0 %v852, 6
      %v912 = vpop.permute.xlu0 %911
      %913 = vrot.lane.b32.xlu0 %v854, 6
      %v914 = vpop.permute.xlu0 %913
      %915 = vrot.lane.b32.xlu0 %v856, 6
      %v916 = vpop.permute.xlu0 %915
      %917 = vrot.lane.b32.xlu0 %v858, 6
      %v918 = vpop.permute.xlu0 %917
      %919 = vrot.lane.b32.xlu0 %v860, 6
      %v920 = vpop.permute.xlu0 %919
      %921 = vrot.lane.b32.xlu0 %v862, 6
      %v922 = vpop.permute.xlu0 %921
      %923 = vrot.lane.b32.xlu0 %v864, 6
      %v924 = vpop.permute.xlu0 %923
      %vm955 = vcmask 72752
      %vm956 = vsmask.f32 7424
      %vm957 = vmand %vm955, %vm956
      %v958 = vld [vmem:[%s486] sm:$0xff]
      %v959 = vsel %vm957, %v866, %v958
      %960 = vst [vmem:[%s486] sm:$0xff] %v959
      %v961 = vld [vmem:[%s486 + $0x8] sm:$0xff]
      %v962 = vsel %vm957, %v868, %v961
      %963 = vst [vmem:[%s486 + $0x8] sm:$0xff] %v962
      %v964 = vld [vmem:[%s486 + $0x10] sm:$0xff]
      %v965 = vsel %vm957, %v870, %v964
      %966 = vst [vmem:[%s486 + $0x10] sm:$0xff] %v965
      %v967 = vld [vmem:[%s486 + $0x18] sm:$0xff]
      %v968 = vsel %vm957, %v872, %v967
      %969 = vst [vmem:[%s486 + $0x18] sm:$0xff] %v968
      %v970 = vld [vmem:[%s486 + $0x20] sm:$0xff]
      %v971 = vsel %vm957, %v874, %v970
      %972 = vst [vmem:[%s486 + $0x20] sm:$0xff] %v971
      %v973 = vld [vmem:[%s486 + $0x28] sm:$0xff]
      %v974 = vsel %vm957, %v876, %v973
      %975 = vst [vmem:[%s486 + $0x28] sm:$0xff] %v974
      %v976 = vld [vmem:[%s486 + $0x30] sm:$0xff]
      %v977 = vsel %vm957, %v878, %v976
      %978 = vst [vmem:[%s486 + $0x30] sm:$0xff] %v977
      %v979 = vld [vmem:[%s486 + $0x38] sm:$0xff]
      %v980 = vsel %vm957, %v880, %v979
      %981 = vst [vmem:[%s486 + $0x38] sm:$0xff] %v980
      %v982 = vld [vmem:[%s486 + $0x40] sm:$0xff]
      %v983 = vsel %vm957, %v882, %v982
      %984 = vst [vmem:[%s486 + $0x40] sm:$0xff] %v983
      %v985 = vld [vmem:[%s486 + $0x48] sm:$0xff]
      %v986 = vsel %vm957, %v884, %v985
      %987 = vst [vmem:[%s486 + $0x48] sm:$0xff] %v986
      %v988 = vld [vmem:[%s486 + $0x50] sm:$0xff]
      %v989 = vsel %vm957, %v886, %v988
      %990 = vst [vmem:[%s486 + $0x50] sm:$0xff] %v989
      %v991 = vld [vmem:[%s486 + $0x58] sm:$0xff]
      %v992 = vsel %vm957, %v888, %v991
      %993 = vst [vmem:[%s486 + $0x58] sm:$0xff] %v992
      %v994 = vld [vmem:[%s486 + $0x60] sm:$0xff]
      %v995 = vsel %vm957, %v890, %v994
      %996 = vst [vmem:[%s486 + $0x60] sm:$0xff] %v995
      %v997 = vld [vmem:[%s486 + $0x68] sm:$0xff]
      %v998 = vsel %vm957, %v892, %v997
      %999 = vst [vmem:[%s486 + $0x68] sm:$0xff] %v998
      %v1000 = vld [vmem:[%s486 + $0x70] sm:$0xff]
      %v1001 = vsel %vm957, %v894, %v1000
      %1002 = vst [vmem:[%s486 + $0x70] sm:$0xff] %v1001
      %v1003 = vld [vmem:[%s486 + $0x80] sm:$0xff]
      %v1004 = vsel %vm957, %v896, %v1003
      %1005 = vst [vmem:[%s486 + $0x80] sm:$0xff] %v1004
      %v1006 = vld [vmem:[%s486 + $0x88] sm:$0xff]
      %v1007 = vsel %vm957, %v898, %v1006
      %1008 = vst [vmem:[%s486 + $0x88] sm:$0xff] %v1007
      %v1009 = vld [vmem:[%s486 + $0x90] sm:$0xff]
      %v1010 = vsel %vm957, %v900, %v1009
      %1011 = vst [vmem:[%s486 + $0x90] sm:$0xff] %v1010
      %v1012 = vld [vmem:[%s486 + $0x98] sm:$0xff]
      %v1013 = vsel %vm957, %v902, %v1012
      %1014 = vst [vmem:[%s486 + $0x98] sm:$0xff] %v1013
      %v1015 = vld [vmem:[%s486 + $0xa0] sm:$0xff]
      %v1016 = vsel %vm957, %v904, %v1015
      %1017 = vst [vmem:[%s486 + $0xa0] sm:$0xff] %v1016
      %v1018 = vld [vmem:[%s486 + $0xa8] sm:$0xff]
      %v1019 = vsel %vm957, %v906, %v1018
      %1020 = vst [vmem:[%s486 + $0xa8] sm:$0xff] %v1019
      %v1021 = vld [vmem:[%s486 + $0xb0] sm:$0xff]
      %v1022 = vsel %vm957, %v908, %v1021
      %1023 = vst [vmem:[%s486 + $0xb0] sm:$0xff] %v1022
      %v1024 = vld [vmem:[%s486 + $0xb8] sm:$0xff]
      %v1025 = vsel %vm957, %v910, %v1024
      %1026 = vst [vmem:[%s486 + $0xb8] sm:$0xff] %v1025
      %v1027 = vld [vmem:[%s486 + $0xc0] sm:$0xff]
      %v1028 = vsel %vm957, %v912, %v1027
      %1029 = vst [vmem:[%s486 + $0xc0] sm:$0xff] %v1028
      %v1030 = vld [vmem:[%s486 + $0xc8] sm:$0xff]
      %v1031 = vsel %vm957, %v914, %v1030
      %1032 = vst [vmem:[%s486 + $0xc8] sm:$0xff] %v1031
      %v1033 = vld [vmem:[%s486 + $0xd0] sm:$0xff]
      %v1034 = vsel %vm957, %v916, %v1033
      %1035 = vst [vmem:[%s486 + $0xd0] sm:$0xff] %v1034
      %v1036 = vld [vmem:[%s486 + $0xd8] sm:$0xff]
      %v1037 = vsel %vm957, %v918, %v1036
      %1038 = vst [vmem:[%s486 + $0xd8] sm:$0xff] %v1037
      %v1039 = vld [vmem:[%s486 + $0xe0] sm:$0xff]
      %v1040 = vsel %vm957, %v920, %v1039
      %1041 = vst [vmem:[%s486 + $0xe0] sm:$0xff] %v1040
      %v1042 = vld [vmem:[%s486 + $0xe8] sm:$0xff]
      %v1043 = vsel %vm957, %v922, %v1042
      %1044 = vst [vmem:[%s486 + $0xe8] sm:$0xff] %v1043
      %v1045 = vld [vmem:[%s486 + $0xf0] sm:$0xff]
      %v1046 = vsel %vm957, %v924, %v1045
      %1047 = vst [vmem:[%s486 + $0xf0] sm:$0xff] %v1046
      %vm1048 = vcmask 72752
      %1049 = vst.msk [vmem:[#allocation2] sm:$0xff] %vm1048, 0
      %1050 = vst.msk [vmem:[#allocation2 + $0x80] sm:$0xff] %vm1048, 0
      %vm1051 = vcmask 72759
      %vm1052 = vsmask.f32 7966
      %vm1053 = vmand %vm1051, %vm1052
      %v1054 = vld [vmem:[#allocation2] sm:$0x80]
      %v1055 = vsel %vm1053, 0, %v1054
      %1056 = vst [vmem:[#allocation2] sm:$0x80] %v1055
      %v1057 = vld [vmem:[#allocation2 + $0x8] sm:$0x80]
      %v1058 = vsel %vm1053, 0, %v1057
      %1059 = vst [vmem:[#allocation2 + $0x8] sm:$0x80] %v1058
      %v1060 = vld [vmem:[#allocation2 + $0x10] sm:$0x80]
      %v1061 = vsel %vm1053, 0, %v1060
      %1062 = vst [vmem:[#allocation2 + $0x10] sm:$0x80] %v1061
      %v1063 = vld [vmem:[#allocation2 + $0x18] sm:$0x80]
      %v1064 = vsel %vm1053, 0, %v1063
      %1065 = vst [vmem:[#allocation2 + $0x18] sm:$0x80] %v1064
      %v1066 = vld [vmem:[#allocation2 + $0x20] sm:$0x80]
      %v1067 = vsel %vm1053, 0, %v1066
      %1068 = vst [vmem:[#allocation2 + $0x20] sm:$0x80] %v1067
      %v1069 = vld [vmem:[#allocation2 + $0x28] sm:$0x80]
      %v1070 = vsel %vm1053, 0, %v1069
      %1071 = vst [vmem:[#allocation2 + $0x28] sm:$0x80] %v1070
      %v1072 = vld [vmem:[#allocation2 + $0x30] sm:$0x80]
      %v1073 = vsel %vm1053, 0, %v1072
      %1074 = vst [vmem:[#allocation2 + $0x30] sm:$0x80] %v1073
      %v1075 = vld [vmem:[#allocation2 + $0x38] sm:$0x80]
      %v1076 = vsel %vm1053, 0, %v1075
      %1077 = vst [vmem:[#allocation2 + $0x38] sm:$0x80] %v1076
      %v1078 = vld [vmem:[#allocation2 + $0x40] sm:$0x80]
      %v1079 = vsel %vm1053, 0, %v1078
      %1080 = vst [vmem:[#allocation2 + $0x40] sm:$0x80] %v1079
      %v1081 = vld [vmem:[#allocation2 + $0x48] sm:$0x80]
      %v1082 = vsel %vm1053, 0, %v1081
      %1083 = vst [vmem:[#allocation2 + $0x48] sm:$0x80] %v1082
      %v1084 = vld [vmem:[#allocation2 + $0x50] sm:$0x80]
      %v1085 = vsel %vm1053, 0, %v1084
      %1086 = vst [vmem:[#allocation2 + $0x50] sm:$0x80] %v1085
      %v1087 = vld [vmem:[#allocation2 + $0x58] sm:$0x80]
      %v1088 = vsel %vm1053, 0, %v1087
      %1089 = vst [vmem:[#allocation2 + $0x58] sm:$0x80] %v1088
      %v1090 = vld [vmem:[#allocation2 + $0x60] sm:$0x80]
      %v1091 = vsel %vm1053, 0, %v1090
      %1092 = vst [vmem:[#allocation2 + $0x60] sm:$0x80] %v1091
      %v1093 = vld [vmem:[#allocation2 + $0x68] sm:$0x80]
      %v1094 = vsel %vm1053, 0, %v1093
      %1095 = vst [vmem:[#allocation2 + $0x68] sm:$0x80] %v1094
      %v1096 = vld [vmem:[#allocation2 + $0x70] sm:$0x80]
      %v1097 = vsel %vm1053, 0, %v1096
      %1098 = vst [vmem:[#allocation2 + $0x70] sm:$0x80] %v1097
      %v1099 = vld [vmem:[#allocation2 + $0x78] sm:$0x80]
      %v1100 = vsel %vm1053, 0, %v1099
      %1101 = vst [vmem:[#allocation2 + $0x78] sm:$0x80] %v1100
      %v1102 = vld [vmem:[#allocation2 + $0x80] sm:$0x80]
      %v1103 = vsel %vm1053, 0, %v1102
      %1104 = vst [vmem:[#allocation2 + $0x80] sm:$0x80] %v1103
      %v1105 = vld [vmem:[#allocation2 + $0x88] sm:$0x80]
      %v1106 = vsel %vm1053, 0, %v1105
      %1107 = vst [vmem:[#allocation2 + $0x88] sm:$0x80] %v1106
      %v1108 = vld [vmem:[#allocation2 + $0x90] sm:$0x80]
      %v1109 = vsel %vm1053, 0, %v1108
      %1110 = vst [vmem:[#allocation2 + $0x90] sm:$0x80] %v1109
      %v1111 = vld [vmem:[#allocation2 + $0x98] sm:$0x80]
      %v1112 = vsel %vm1053, 0, %v1111
      %1113 = vst [vmem:[#allocation2 + $0x98] sm:$0x80] %v1112
      %v1114 = vld [vmem:[#allocation2 + $0xa0] sm:$0x80]
      %v1115 = vsel %vm1053, 0, %v1114
      %1116 = vst [vmem:[#allocation2 + $0xa0] sm:$0x80] %v1115
      %v1117 = vld [vmem:[#allocation2 + $0xa8] sm:$0x80]
      %v1118 = vsel %vm1053, 0, %v1117
      %1119 = vst [vmem:[#allocation2 + $0xa8] sm:$0x80] %v1118
      %v1120 = vld [vmem:[#allocation2 + $0xb0] sm:$0x80]
      %v1121 = vsel %vm1053, 0, %v1120
      %1122 = vst [vmem:[#allocation2 + $0xb0] sm:$0x80] %v1121
      %v1123 = vld [vmem:[#allocation2 + $0xb8] sm:$0x80]
      %v1124 = vsel %vm1053, 0, %v1123
      %1125 = vst [vmem:[#allocation2 + $0xb8] sm:$0x80] %v1124
      %v1126 = vld [vmem:[#allocation2 + $0xc0] sm:$0x80]
      %v1127 = vsel %vm1053, 0, %v1126
      %1128 = vst [vmem:[#allocation2 + $0xc0] sm:$0x80] %v1127
      %v1129 = vld [vmem:[#allocation2 + $0xc8] sm:$0x80]
      %v1130 = vsel %vm1053, 0, %v1129
      %1131 = vst [vmem:[#allocation2 + $0xc8] sm:$0x80] %v1130
      %v1132 = vld [vmem:[#allocation2 + $0xd0] sm:$0x80]
      %v1133 = vsel %vm1053, 0, %v1132
      %1134 = vst [vmem:[#allocation2 + $0xd0] sm:$0x80] %v1133
      %v1135 = vld [vmem:[#allocation2 + $0xd8] sm:$0x80]
      %v1136 = vsel %vm1053, 0, %v1135
      %1137 = vst [vmem:[#allocation2 + $0xd8] sm:$0x80] %v1136
      %v1138 = vld [vmem:[#allocation2 + $0xe0] sm:$0x80]
      %v1139 = vsel %vm1053, 0, %v1138
      %1140 = vst [vmem:[#allocation2 + $0xe0] sm:$0x80] %v1139
      %v1141 = vld [vmem:[#allocation2 + $0xe8] sm:$0x80]
      %v1142 = vsel %vm1053, 0, %v1141
      %1143 = vst [vmem:[#allocation2 + $0xe8] sm:$0x80] %v1142
      %v1144 = vld [vmem:[#allocation2 + $0xf0] sm:$0x80]
      %v1145 = vsel %vm1053, 0, %v1144
      %1146 = vst [vmem:[#allocation2 + $0xf0] sm:$0x80] %v1145
      %v1147 = vld [vmem:[#allocation2 + $0xf8] sm:$0x80]
      %v1148 = vsel %vm1053, 0, %v1147
      %1149 = vst [vmem:[#allocation2 + $0xf8] sm:$0x80] %v1148
      %v1154 = vunpack.c.l.b16 %v62
      %v1155 = vunpack.c.l.b16 %v63
      %v1156 = vunpack.c.l.b16 %v94
      %v1157 = vunpack.c.l.b16 %v95
      %v1158 = vpack.c.b16 %v1155, %v1154
      %v1159 = vpack.c.b16 %v1157, %v1156
      %v1161 = vshrl.u32 %v1158, 16
      %v1163 = vrot.slane %v1161, 7
      %v1164 = vshll.u32 %v1158, 16
      %v1166 = vor.u32 %v1163, %v1164
      %v1168 = vshrl.u32 %v1159, 16
      %v1170 = vrot.slane %v1168, 7
      %v1171 = vshll.u32 %v1159, 16
      %v1173 = vor.u32 %v1170, %v1171
      %1174 = vrot.lane.b32.xlu0 %v252, 9
      %v1175 = vpop.permute.xlu0 %1174
      %1176 = vrot.lane.b32.xlu0 %v259, 9
      %v1177 = vpop.permute.xlu0 %1176
      %1178 = vrot.lane.b32.xlu0 %v266, 9
      %v1179 = vpop.permute.xlu0 %1178
      %1180 = vrot.lane.b32.xlu0 %v273, 9
      %v1181 = vpop.permute.xlu0 %1180
      %1182 = vrot.lane.b32.xlu0 %v280, 9
      %v1183 = vpop.permute.xlu0 %1182
      %1184 = vrot.lane.b32.xlu0 %v287, 9
      %v1185 = vpop.permute.xlu0 %1184
      %1186 = vrot.lane.b32.xlu0 %v294, 9
      %v1187 = vpop.permute.xlu0 %1186
      %1188 = vrot.lane.b32.xlu0 %v301, 9
      %v1189 = vpop.permute.xlu0 %1188
      %1190 = vrot.lane.b32.xlu0 %v308, 9
      %v1191 = vpop.permute.xlu0 %1190
      %1192 = vrot.lane.b32.xlu0 %v315, 9
      %v1193 = vpop.permute.xlu0 %1192
      %1194 = vrot.lane.b32.xlu0 %v322, 9
      %v1195 = vpop.permute.xlu0 %1194
      %1196 = vrot.lane.b32.xlu0 %v329, 9
      %v1197 = vpop.permute.xlu0 %1196
      %1198 = vrot.lane.b32.xlu0 %v336, 9
      %v1199 = vpop.permute.xlu0 %1198
      %1200 = vrot.lane.b32.xlu0 %v343, 9
      %v1201 = vpop.permute.xlu0 %1200
      %1202 = vrot.lane.b32.xlu0 %v350, 9
      %v1203 = vpop.permute.xlu0 %1202
      %1204 = vrot.lane.b32.xlu0 %v1166, 9
      %v1205 = vpop.permute.xlu0 %1204
      %1206 = vrot.lane.b32.xlu0 %v357, 9
      %v1207 = vpop.permute.xlu0 %1206
      %1208 = vrot.lane.b32.xlu0 %v364, 9
      %v1209 = vpop.permute.xlu0 %1208
      %1210 = vrot.lane.b32.xlu0 %v371, 9
      %v1211 = vpop.permute.xlu0 %1210
      %1212 = vrot.lane.b32.xlu0 %v378, 9
      %v1213 = vpop.permute.xlu0 %1212
      %1214 = vrot.lane.b32.xlu0 %v385, 9
      %v1215 = vpop.permute.xlu0 %1214
      %1216 = vrot.lane.b32.xlu0 %v392, 9
      %v1217 = vpop.permute.xlu0 %1216
      %1218 = vrot.lane.b32.xlu0 %v399, 9
      %v1219 = vpop.permute.xlu0 %1218
      %1220 = vrot.lane.b32.xlu0 %v406, 9
      %v1221 = vpop.permute.xlu0 %1220
      %1222 = vrot.lane.b32.xlu0 %v413, 9
      %v1223 = vpop.permute.xlu0 %1222
      %1224 = vrot.lane.b32.xlu0 %v420, 9
      %v1225 = vpop.permute.xlu0 %1224
      %1226 = vrot.lane.b32.xlu0 %v427, 9
      %v1227 = vpop.permute.xlu0 %1226
      %1228 = vrot.lane.b32.xlu0 %v434, 9
      %v1229 = vpop.permute.xlu0 %1228
      %1230 = vrot.lane.b32.xlu0 %v441, 9
      %v1231 = vpop.permute.xlu0 %1230
      %1232 = vrot.lane.b32.xlu0 %v448, 9
      %v1233 = vpop.permute.xlu0 %1232
      %1234 = vrot.lane.b32.xlu0 %v455, 9
      %v1235 = vpop.permute.xlu0 %1234
      %1236 = vrot.lane.b32.xlu0 %v1173, 9
      %v1237 = vpop.permute.xlu0 %1236
      %vm1270 = vcmask 97352
      %vm1271 = vmand %vm1270, %vm488
      %v1272 = vld [vmem:[#allocation2] sm:$0xff]
      %v1273 = vsel %vm1271, %v1175, %v1272
      %1274 = vst [vmem:[#allocation2] sm:$0xff] %v1273
      %v1275 = vld [vmem:[#allocation2 + $0x8] sm:$0xff]
      %v1276 = vsel %vm1271, %v1177, %v1275
      %1277 = vst [vmem:[#allocation2 + $0x8] sm:$0xff] %v1276
      %v1278 = vld [vmem:[#allocation2 + $0x10] sm:$0xff]
      %v1279 = vsel %vm1271, %v1179, %v1278
      %1280 = vst [vmem:[#allocation2 + $0x10] sm:$0xff] %v1279
      %v1281 = vld [vmem:[#allocation2 + $0x18] sm:$0xff]
      %v1282 = vsel %vm1271, %v1181, %v1281
      %1283 = vst [vmem:[#allocation2 + $0x18] sm:$0xff] %v1282
      %v1284 = vld [vmem:[#allocation2 + $0x20] sm:$0xff]
      %v1285 = vsel %vm1271, %v1183, %v1284
      %1286 = vst [vmem:[#allocation2 + $0x20] sm:$0xff] %v1285
      %v1287 = vld [vmem:[#allocation2 + $0x28] sm:$0xff]
      %v1288 = vsel %vm1271, %v1185, %v1287
      %1289 = vst [vmem:[#allocation2 + $0x28] sm:$0xff] %v1288
      %v1290 = vld [vmem:[#allocation2 + $0x30] sm:$0xff]
      %v1291 = vsel %vm1271, %v1187, %v1290
      %1292 = vst [vmem:[#allocation2 + $0x30] sm:$0xff] %v1291
      %v1293 = vld [vmem:[#allocation2 + $0x38] sm:$0xff]
      %v1294 = vsel %vm1271, %v1189, %v1293
      %1295 = vst [vmem:[#allocation2 + $0x38] sm:$0xff] %v1294
      %v1296 = vld [vmem:[#allocation2 + $0x40] sm:$0xff]
      %v1297 = vsel %vm1271, %v1191, %v1296
      %1298 = vst [vmem:[#allocation2 + $0x40] sm:$0xff] %v1297
      %v1299 = vld [vmem:[#allocation2 + $0x48] sm:$0xff]
      %v1300 = vsel %vm1271, %v1193, %v1299
      %1301 = vst [vmem:[#allocation2 + $0x48] sm:$0xff] %v1300
      %v1302 = vld [vmem:[#allocation2 + $0x50] sm:$0xff]
      %v1303 = vsel %vm1271, %v1195, %v1302
      %1304 = vst [vmem:[#allocation2 + $0x50] sm:$0xff] %v1303
      %v1305 = vld [vmem:[#allocation2 + $0x58] sm:$0xff]
      %v1306 = vsel %vm1271, %v1197, %v1305
      %1307 = vst [vmem:[#allocation2 + $0x58] sm:$0xff] %v1306
      %v1308 = vld [vmem:[#allocation2 + $0x60] sm:$0xff]
      %v1309 = vsel %vm1271, %v1199, %v1308
      %1310 = vst [vmem:[#allocation2 + $0x60] sm:$0xff] %v1309
      %v1311 = vld [vmem:[#allocation2 + $0x68] sm:$0xff]
      %v1312 = vsel %vm1271, %v1201, %v1311
      %1313 = vst [vmem:[#allocation2 + $0x68] sm:$0xff] %v1312
      %v1314 = vld [vmem:[#allocation2 + $0x70] sm:$0xff]
      %v1315 = vsel %vm1271, %v1203, %v1314
      %1316 = vst [vmem:[#allocation2 + $0x70] sm:$0xff] %v1315
      %v1317 = vld [vmem:[#allocation2 + $0x78] sm:$0xff]
      %v1318 = vsel %vm1271, %v1205, %v1317
      %1319 = vst [vmem:[#allocation2 + $0x78] sm:$0xff] %v1318
      %v1320 = vld [vmem:[#allocation2 + $0x80] sm:$0xff]
      %v1321 = vsel %vm1271, %v1207, %v1320
      %1322 = vst [vmem:[#allocation2 + $0x80] sm:$0xff] %v1321
      %v1323 = vld [vmem:[#allocation2 + $0x88] sm:$0xff]
      %v1324 = vsel %vm1271, %v1209, %v1323
      %1325 = vst [vmem:[#allocation2 + $0x88] sm:$0xff] %v1324
      %v1326 = vld [vmem:[#allocation2 + $0x90] sm:$0xff]
      %v1327 = vsel %vm1271, %v1211, %v1326
      %1328 = vst [vmem:[#allocation2 + $0x90] sm:$0xff] %v1327
      %v1329 = vld [vmem:[#allocation2 + $0x98] sm:$0xff]
      %v1330 = vsel %vm1271, %v1213, %v1329
      %1331 = vst [vmem:[#allocation2 + $0x98] sm:$0xff] %v1330
      %v1332 = vld [vmem:[#allocation2 + $0xa0] sm:$0xff]
      %v1333 = vsel %vm1271, %v1215, %v1332
      %1334 = vst [vmem:[#allocation2 + $0xa0] sm:$0xff] %v1333
      %v1335 = vld [vmem:[#allocation2 + $0xa8] sm:$0xff]
      %v1336 = vsel %vm1271, %v1217, %v1335
      %1337 = vst [vmem:[#allocation2 + $0xa8] sm:$0xff] %v1336
      %v1338 = vld [vmem:[#allocation2 + $0xb0] sm:$0xff]
      %v1339 = vsel %vm1271, %v1219, %v1338
      %1340 = vst [vmem:[#allocation2 + $0xb0] sm:$0xff] %v1339
      %v1341 = vld [vmem:[#allocation2 + $0xb8] sm:$0xff]
      %v1342 = vsel %vm1271, %v1221, %v1341
      %1343 = vst [vmem:[#allocation2 + $0xb8] sm:$0xff] %v1342
      %v1344 = vld [vmem:[#allocation2 + $0xc0] sm:$0xff]
      %v1345 = vsel %vm1271, %v1223, %v1344
      %1346 = vst [vmem:[#allocation2 + $0xc0] sm:$0xff] %v1345
      %v1347 = vld [vmem:[#allocation2 + $0xc8] sm:$0xff]
      %v1348 = vsel %vm1271, %v1225, %v1347
      %1349 = vst [vmem:[#allocation2 + $0xc8] sm:$0xff] %v1348
      %v1350 = vld [vmem:[#allocation2 + $0xd0] sm:$0xff]
      %v1351 = vsel %vm1271, %v1227, %v1350
      %1352 = vst [vmem:[#allocation2 + $0xd0] sm:$0xff] %v1351
      %v1353 = vld [vmem:[#allocation2 + $0xd8] sm:$0xff]
      %v1354 = vsel %vm1271, %v1229, %v1353
      %1355 = vst [vmem:[#allocation2 + $0xd8] sm:$0xff] %v1354
      %v1356 = vld [vmem:[#allocation2 + $0xe0] sm:$0xff]
      %v1357 = vsel %vm1271, %v1231, %v1356
      %1358 = vst [vmem:[#allocation2 + $0xe0] sm:$0xff] %v1357
      %v1359 = vld [vmem:[#allocation2 + $0xe8] sm:$0xff]
      %v1360 = vsel %vm1271, %v1233, %v1359
      %1361 = vst [vmem:[#allocation2 + $0xe8] sm:$0xff] %v1360
      %v1362 = vld [vmem:[#allocation2 + $0xf0] sm:$0xff]
      %v1363 = vsel %vm1271, %v1235, %v1362
      %1364 = vst [vmem:[#allocation2 + $0xf0] sm:$0xff] %v1363
      %v1365 = vld [vmem:[#allocation2 + $0xf8] sm:$0xff]
      %v1366 = vsel %vm1271, %v1237, %v1365
      %1367 = vst [vmem:[#allocation2 + $0xf8] sm:$0xff] %v1366
      %vm1368 = vcmask 90184
      %vm1369 = vmand %vm1368, %vm584
      %v1370 = vld [vmem:[#allocation2] sm:$0x1]
      %v1371 = vsel %vm1369, 0, %v1370
      %1372 = vst [vmem:[#allocation2] sm:$0x1] %v1371
      %v1373 = vld [vmem:[#allocation2 + $0x8] sm:$0x1]
      %v1374 = vsel %vm1369, 0, %v1373
      %1375 = vst [vmem:[#allocation2 + $0x8] sm:$0x1] %v1374
      %v1376 = vld [vmem:[#allocation2 + $0x10] sm:$0x1]
      %v1377 = vsel %vm1369, 0, %v1376
      %1378 = vst [vmem:[#allocation2 + $0x10] sm:$0x1] %v1377
      %v1379 = vld [vmem:[#allocation2 + $0x18] sm:$0x1]
      %v1380 = vsel %vm1369, 0, %v1379
      %1381 = vst [vmem:[#allocation2 + $0x18] sm:$0x1] %v1380
      %v1382 = vld [vmem:[#allocation2 + $0x20] sm:$0x1]
      %v1383 = vsel %vm1369, 0, %v1382
      %1384 = vst [vmem:[#allocation2 + $0x20] sm:$0x1] %v1383
      %v1385 = vld [vmem:[#allocation2 + $0x28] sm:$0x1]
      %v1386 = vsel %vm1369, 0, %v1385
      %1387 = vst [vmem:[#allocation2 + $0x28] sm:$0x1] %v1386
      %v1388 = vld [vmem:[#allocation2 + $0x30] sm:$0x1]
      %v1389 = vsel %vm1369, 0, %v1388
      %1390 = vst [vmem:[#allocation2 + $0x30] sm:$0x1] %v1389
      %v1391 = vld [vmem:[#allocation2 + $0x38] sm:$0x1]
      %v1392 = vsel %vm1369, 0, %v1391
      %1393 = vst [vmem:[#allocation2 + $0x38] sm:$0x1] %v1392
      %v1394 = vld [vmem:[#allocation2 + $0x40] sm:$0x1]
      %v1395 = vsel %vm1369, 0, %v1394
      %1396 = vst [vmem:[#allocation2 + $0x40] sm:$0x1] %v1395
      %v1397 = vld [vmem:[#allocation2 + $0x48] sm:$0x1]
      %v1398 = vsel %vm1369, 0, %v1397
      %1399 = vst [vmem:[#allocation2 + $0x48] sm:$0x1] %v1398
      %v1400 = vld [vmem:[#allocation2 + $0x50] sm:$0x1]
      %v1401 = vsel %vm1369, 0, %v1400
      %1402 = vst [vmem:[#allocation2 + $0x50] sm:$0x1] %v1401
      %v1403 = vld [vmem:[#allocation2 + $0x58] sm:$0x1]
      %v1404 = vsel %vm1369, 0, %v1403
      %1405 = vst [vmem:[#allocation2 + $0x58] sm:$0x1] %v1404
      %v1406 = vld [vmem:[#allocation2 + $0x60] sm:$0x1]
      %v1407 = vsel %vm1369, 0, %v1406
      %1408 = vst [vmem:[#allocation2 + $0x60] sm:$0x1] %v1407
      %v1409 = vld [vmem:[#allocation2 + $0x68] sm:$0x1]
      %v1410 = vsel %vm1369, 0, %v1409
      %1411 = vst [vmem:[#allocation2 + $0x68] sm:$0x1] %v1410
      %v1412 = vld [vmem:[#allocation2 + $0x70] sm:$0x1]
      %v1413 = vsel %vm1369, 0, %v1412
      %1414 = vst [vmem:[#allocation2 + $0x70] sm:$0x1] %v1413
      %v1415 = vld [vmem:[#allocation2 + $0x78] sm:$0x1]
      %v1416 = vsel %vm1369, 0, %v1415
      %1417 = vst [vmem:[#allocation2 + $0x78] sm:$0x1] %v1416
      %v1418 = vld [vmem:[#allocation2 + $0x80] sm:$0x1]
      %v1419 = vsel %vm1369, 0, %v1418
      %1420 = vst [vmem:[#allocation2 + $0x80] sm:$0x1] %v1419
      %v1421 = vld [vmem:[#allocation2 + $0x88] sm:$0x1]
      %v1422 = vsel %vm1369, 0, %v1421
      %1423 = vst [vmem:[#allocation2 + $0x88] sm:$0x1] %v1422
      %v1424 = vld [vmem:[#allocation2 + $0x90] sm:$0x1]
      %v1425 = vsel %vm1369, 0, %v1424
      %1426 = vst [vmem:[#allocation2 + $0x90] sm:$0x1] %v1425
      %v1427 = vld [vmem:[#allocation2 + $0x98] sm:$0x1]
      %v1428 = vsel %vm1369, 0, %v1427
      %1429 = vst [vmem:[#allocation2 + $0x98] sm:$0x1] %v1428
      %v1430 = vld [vmem:[#allocation2 + $0xa0] sm:$0x1]
      %v1431 = vsel %vm1369, 0, %v1430
      %1432 = vst [vmem:[#allocation2 + $0xa0] sm:$0x1] %v1431
      %v1433 = vld [vmem:[#allocation2 + $0xa8] sm:$0x1]
      %v1434 = vsel %vm1369, 0, %v1433
      %1435 = vst [vmem:[#allocation2 + $0xa8] sm:$0x1] %v1434
      %v1436 = vld [vmem:[#allocation2 + $0xb0] sm:$0x1]
      %v1437 = vsel %vm1369, 0, %v1436
      %1438 = vst [vmem:[#allocation2 + $0xb0] sm:$0x1] %v1437
      %v1439 = vld [vmem:[#allocation2 + $0xb8] sm:$0x1]
      %v1440 = vsel %vm1369, 0, %v1439
      %1441 = vst [vmem:[#allocation2 + $0xb8] sm:$0x1] %v1440
      %v1442 = vld [vmem:[#allocation2 + $0xc0] sm:$0x1]
      %v1443 = vsel %vm1369, 0, %v1442
      %1444 = vst [vmem:[#allocation2 + $0xc0] sm:$0x1] %v1443
      %v1445 = vld [vmem:[#allocation2 + $0xc8] sm:$0x1]
      %v1446 = vsel %vm1369, 0, %v1445
      %1447 = vst [vmem:[#allocation2 + $0xc8] sm:$0x1] %v1446
      %v1448 = vld [vmem:[#allocation2 + $0xd0] sm:$0x1]
      %v1449 = vsel %vm1369, 0, %v1448
      %1450 = vst [vmem:[#allocation2 + $0xd0] sm:$0x1] %v1449
      %v1451 = vld [vmem:[#allocation2 + $0xd8] sm:$0x1]
      %v1452 = vsel %vm1369, 0, %v1451
      %1453 = vst [vmem:[#allocation2 + $0xd8] sm:$0x1] %v1452
      %v1454 = vld [vmem:[#allocation2 + $0xe0] sm:$0x1]
      %v1455 = vsel %vm1369, 0, %v1454
      %1456 = vst [vmem:[#allocation2 + $0xe0] sm:$0x1] %v1455
      %v1457 = vld [vmem:[#allocation2 + $0xe8] sm:$0x1]
      %v1458 = vsel %vm1369, 0, %v1457
      %1459 = vst [vmem:[#allocation2 + $0xe8] sm:$0x1] %v1458
      %v1460 = vld [vmem:[#allocation2 + $0xf0] sm:$0x1]
      %v1461 = vsel %vm1369, 0, %v1460
      %1462 = vst [vmem:[#allocation2 + $0xf0] sm:$0x1] %v1461
      %v1463 = vld [vmem:[#allocation2 + $0xf8] sm:$0x1]
      %v1464 = vsel %vm1369, 0, %v1463
      %1465 = vst [vmem:[#allocation2 + $0xf8] sm:$0x1] %v1464
      %1466 = vrot.lane.b32.xlu0 %v216, 12
      %v1467 = vpop.permute.xlu0 %1466
      %1468 = vrot.lane.b32.xlu0 %v217, 12
      %v1469 = vpop.permute.xlu0 %1468
      %1470 = vrot.lane.b32.xlu0 %v218, 12
      %v1471 = vpop.permute.xlu0 %1470
      %1472 = vrot.lane.b32.xlu0 %v219, 12
      %v1473 = vpop.permute.xlu0 %1472
      %1474 = vrot.lane.b32.xlu0 %v220, 12
      %v1475 = vpop.permute.xlu0 %1474
      %1476 = vrot.lane.b32.xlu0 %v221, 12
      %v1477 = vpop.permute.xlu0 %1476
      %1478 = vrot.lane.b32.xlu0 %v222, 12
      %v1479 = vpop.permute.xlu0 %1478
      %1480 = vrot.lane.b32.xlu0 %v223, 12
      %v1481 = vpop.permute.xlu0 %1480
      %1482 = vrot.lane.b32.xlu0 %v224, 12
      %v1483 = vpop.permute.xlu0 %1482
      %1484 = vrot.lane.b32.xlu0 %v225, 12
      %v1485 = vpop.permute.xlu0 %1484
      %1486 = vrot.lane.b32.xlu0 %v226, 12
      %v1487 = vpop.permute.xlu0 %1486
      %1488 = vrot.lane.b32.xlu0 %v227, 12
      %v1489 = vpop.permute.xlu0 %1488
      %1490 = vrot.lane.b32.xlu0 %v228, 12
      %v1491 = vpop.permute.xlu0 %1490
      %1492 = vrot.lane.b32.xlu0 %v229, 12
      %v1493 = vpop.permute.xlu0 %1492
      %1494 = vrot.lane.b32.xlu0 %v230, 12
      %v1495 = vpop.permute.xlu0 %1494
      %1496 = vrot.lane.b32.xlu0 %v1158, 12
      %v1497 = vpop.permute.xlu0 %1496
      %1498 = vrot.lane.b32.xlu0 %v231, 12
      %v1499 = vpop.permute.xlu0 %1498
      %1500 = vrot.lane.b32.xlu0 %v232, 12
      %v1501 = vpop.permute.xlu0 %1500
      %1502 = vrot.lane.b32.xlu0 %v233, 12
      %v1503 = vpop.permute.xlu0 %1502
      %1504 = vrot.lane.b32.xlu0 %v234, 12
      %v1505 = vpop.permute.xlu0 %1504
      %1506 = vrot.lane.b32.xlu0 %v235, 12
      %v1507 = vpop.permute.xlu0 %1506
      %1508 = vrot.lane.b32.xlu0 %v236, 12
      %v1509 = vpop.permute.xlu0 %1508
      %1510 = vrot.lane.b32.xlu0 %v237, 12
      %v1511 = vpop.permute.xlu0 %1510
      %1512 = vrot.lane.b32.xlu0 %v238, 12
      %v1513 = vpop.permute.xlu0 %1512
      %1514 = vrot.lane.b32.xlu0 %v239, 12
      %v1515 = vpop.permute.xlu0 %1514
      %1516 = vrot.lane.b32.xlu0 %v240, 12
      %v1517 = vpop.permute.xlu0 %1516
      %1518 = vrot.lane.b32.xlu0 %v241, 12
      %v1519 = vpop.permute.xlu0 %1518
      %1520 = vrot.lane.b32.xlu0 %v242, 12
      %v1521 = vpop.permute.xlu0 %1520
      %1522 = vrot.lane.b32.xlu0 %v243, 12
      %v1523 = vpop.permute.xlu0 %1522
      %1524 = vrot.lane.b32.xlu0 %v244, 12
      %v1525 = vpop.permute.xlu0 %1524
      %1526 = vrot.lane.b32.xlu0 %v245, 12
      %v1527 = vpop.permute.xlu0 %1526
      %1528 = vrot.lane.b32.xlu0 %v1159, 12
      %v1529 = vpop.permute.xlu0 %1528
      %vm1562 = vcmask 121952
      %1563 = vst.msk [vmem:[#allocation2] sm:$0xff] %vm1562, %v1467
      %1564 = vst.msk [vmem:[#allocation2 + $0x8] sm:$0xff] %vm1562, %v1469
      %1565 = vst.msk [vmem:[#allocation2 + $0x10] sm:$0xff] %vm1562, %v1471
      %1566 = vst.msk [vmem:[#allocation2 + $0x18] sm:$0xff] %vm1562, %v1473
      %1567 = vst.msk [vmem:[#allocation2 + $0x20] sm:$0xff] %vm1562, %v1475
      %1568 = vst.msk [vmem:[#allocation2 + $0x28] sm:$0xff] %vm1562, %v1477
      %1569 = vst.msk [vmem:[#allocation2 + $0x30] sm:$0xff] %vm1562, %v1479
      %1570 = vst.msk [vmem:[#allocation2 + $0x38] sm:$0xff] %vm1562, %v1481
      %1571 = vst.msk [vmem:[#allocation2 + $0x40] sm:$0xff] %vm1562, %v1483
      %1572 = vst.msk [vmem:[#allocation2 + $0x48] sm:$0xff] %vm1562, %v1485
      %1573 = vst.msk [vmem:[#allocation2 + $0x50] sm:$0xff] %vm1562, %v1487
      %1574 = vst.msk [vmem:[#allocation2 + $0x58] sm:$0xff] %vm1562, %v1489
      %1575 = vst.msk [vmem:[#allocation2 + $0x60] sm:$0xff] %vm1562, %v1491
      %1576 = vst.msk [vmem:[#allocation2 + $0x68] sm:$0xff] %vm1562, %v1493
      %1577 = vst.msk [vmem:[#allocation2 + $0x70] sm:$0xff] %vm1562, %v1495
      %1578 = vst.msk [vmem:[#allocation2 + $0x78] sm:$0xff] %vm1562, %v1497
      %1579 = vst.msk [vmem:[#allocation2 + $0x80] sm:$0xff] %vm1562, %v1499
      %1580 = vst.msk [vmem:[#allocation2 + $0x88] sm:$0xff] %vm1562, %v1501
      %1581 = vst.msk [vmem:[#allocation2 + $0x90] sm:$0xff] %vm1562, %v1503
      %1582 = vst.msk [vmem:[#allocation2 + $0x98] sm:$0xff] %vm1562, %v1505
      %1583 = vst.msk [vmem:[#allocation2 + $0xa0] sm:$0xff] %vm1562, %v1507
      %1584 = vst.msk [vmem:[#allocation2 + $0xa8] sm:$0xff] %vm1562, %v1509
      %1585 = vst.msk [vmem:[#allocation2 + $0xb0] sm:$0xff] %vm1562, %v1511
      %1586 = vst.msk [vmem:[#allocation2 + $0xb8] sm:$0xff] %vm1562, %v1513
      %1587 = vst.msk [vmem:[#allocation2 + $0xc0] sm:$0xff] %vm1562, %v1515
      %1588 = vst.msk [vmem:[#allocation2 + $0xc8] sm:$0xff] %vm1562, %v1517
      %1589 = vst.msk [vmem:[#allocation2 + $0xd0] sm:$0xff] %vm1562, %v1519
      %1590 = vst.msk [vmem:[#allocation2 + $0xd8] sm:$0xff] %vm1562, %v1521
      %1591 = vst.msk [vmem:[#allocation2 + $0xe0] sm:$0xff] %vm1562, %v1523
      %1592 = vst.msk [vmem:[#allocation2 + $0xe8] sm:$0xff] %vm1562, %v1525
      %1593 = vst.msk [vmem:[#allocation2 + $0xf0] sm:$0xff] %vm1562, %v1527
      %1594 = vst.msk [vmem:[#allocation2 + $0xf8] sm:$0xff] %vm1562, %v1529
      %v1595 = vrot.slane %v1164, 1
      %v1596 = vor.u32 %v1161, %v1595
      %v1597 = vrot.slane %v1171, 1
      %v1598 = vor.u32 %v1168, %v1597
      %1599 = vrot.lane.b32.xlu0 %v806, 15
      %v1600 = vpop.permute.xlu0 %1599
      %1601 = vrot.lane.b32.xlu0 %v808, 15
      %v1602 = vpop.permute.xlu0 %1601
      %1603 = vrot.lane.b32.xlu0 %v810, 15
      %v1604 = vpop.permute.xlu0 %1603
      %1605 = vrot.lane.b32.xlu0 %v812, 15
      %v1606 = vpop.permute.xlu0 %1605
      %1607 = vrot.lane.b32.xlu0 %v814, 15
      %v1608 = vpop.permute.xlu0 %1607
      %1609 = vrot.lane.b32.xlu0 %v816, 15
      %v1610 = vpop.permute.xlu0 %1609
      %1611 = vrot.lane.b32.xlu0 %v818, 15
      %v1612 = vpop.permute.xlu0 %1611
      %1613 = vrot.lane.b32.xlu0 %v820, 15
      %v1614 = vpop.permute.xlu0 %1613
      %1615 = vrot.lane.b32.xlu0 %v822, 15
      %v1616 = vpop.permute.xlu0 %1615
      %1617 = vrot.lane.b32.xlu0 %v824, 15
      %v1618 = vpop.permute.xlu0 %1617
      %1619 = vrot.lane.b32.xlu0 %v826, 15
      %v1620 = vpop.permute.xlu0 %1619
      %1621 = vrot.lane.b32.xlu0 %v828, 15
      %v1622 = vpop.permute.xlu0 %1621
      %1623 = vrot.lane.b32.xlu0 %v830, 15
      %v1624 = vpop.permute.xlu0 %1623
      %1625 = vrot.lane.b32.xlu0 %v832, 15
      %v1626 = vpop.permute.xlu0 %1625
      %1627 = vrot.lane.b32.xlu0 %v834, 15
      %v1628 = vpop.permute.xlu0 %1627
      %1629 = vrot.lane.b32.xlu0 %v1596, 15
      %v1630 = vpop.permute.xlu0 %1629
      %1631 = vrot.lane.b32.xlu0 %v836, 15
      %v1632 = vpop.permute.xlu0 %1631
      %1633 = vrot.lane.b32.xlu0 %v838, 15
      %v1634 = vpop.permute.xlu0 %1633
      %1635 = vrot.lane.b32.xlu0 %v840, 15
      %v1636 = vpop.permute.xlu0 %1635
      %1637 = vrot.lane.b32.xlu0 %v842, 15
      %v1638 = vpop.permute.xlu0 %1637
      %1639 = vrot.lane.b32.xlu0 %v844, 15
      %v1640 = vpop.permute.xlu0 %1639
      %1641 = vrot.lane.b32.xlu0 %v846, 15
      %v1642 = vpop.permute.xlu0 %1641
      %1643 = vrot.lane.b32.xlu0 %v848, 15
      %v1644 = vpop.permute.xlu0 %1643
      %1645 = vrot.lane.b32.xlu0 %v850, 15
      %v1646 = vpop.permute.xlu0 %1645
      %1647 = vrot.lane.b32.xlu0 %v852, 15
      %v1648 = vpop.permute.xlu0 %1647
      %1649 = vrot.lane.b32.xlu0 %v854, 15
      %v1650 = vpop.permute.xlu0 %1649
      %1651 = vrot.lane.b32.xlu0 %v856, 15
      %v1652 = vpop.permute.xlu0 %1651
      %1653 = vrot.lane.b32.xlu0 %v858, 15
      %v1654 = vpop.permute.xlu0 %1653
      %1655 = vrot.lane.b32.xlu0 %v860, 15
      %v1656 = vpop.permute.xlu0 %1655
      %1657 = vrot.lane.b32.xlu0 %v862, 15
      %v1658 = vpop.permute.xlu0 %1657
      %1659 = vrot.lane.b32.xlu0 %v864, 15
      %v1660 = vpop.permute.xlu0 %1659
      %1661 = vrot.lane.b32.xlu0 %v1598, 15
      %v1662 = vpop.permute.xlu0 %1661
      %vm1695 = vcmask 146552
      %vm1696 = vmand %vm1695, %vm956
      %v1697 = vld [vmem:[#allocation2] sm:$0xff]
      %v1698 = vsel %vm1696, %v1600, %v1697
      %1699 = vst [vmem:[#allocation2] sm:$0xff] %v1698
      %v1700 = vld [vmem:[#allocation2 + $0x8] sm:$0xff]
      %v1701 = vsel %vm1696, %v1602, %v1700
      %1702 = vst [vmem:[#allocation2 + $0x8] sm:$0xff] %v1701
      %v1703 = vld [vmem:[#allocation2 + $0x10] sm:$0xff]
      %v1704 = vsel %vm1696, %v1604, %v1703
      %1705 = vst [vmem:[#allocation2 + $0x10] sm:$0xff] %v1704
      %v1706 = vld [vmem:[#allocation2 + $0x18] sm:$0xff]
      %v1707 = vsel %vm1696, %v1606, %v1706
      %1708 = vst [vmem:[#allocation2 + $0x18] sm:$0xff] %v1707
      %v1709 = vld [vmem:[#allocation2 + $0x20] sm:$0xff]
      %v1710 = vsel %vm1696, %v1608, %v1709
      %1711 = vst [vmem:[#allocation2 + $0x20] sm:$0xff] %v1710
      %v1712 = vld [vmem:[#allocation2 + $0x28] sm:$0xff]
      %v1713 = vsel %vm1696, %v1610, %v1712
      %1714 = vst [vmem:[#allocation2 + $0x28] sm:$0xff] %v1713
      %v1715 = vld [vmem:[#allocation2 + $0x30] sm:$0xff]
      %v1716 = vsel %vm1696, %v1612, %v1715
      %1717 = vst [vmem:[#allocation2 + $0x30] sm:$0xff] %v1716
      %v1718 = vld [vmem:[#allocation2 + $0x38] sm:$0xff]
      %v1719 = vsel %vm1696, %v1614, %v1718
      %1720 = vst [vmem:[#allocation2 + $0x38] sm:$0xff] %v1719
      %v1721 = vld [vmem:[#allocation2 + $0x40] sm:$0xff]
      %v1722 = vsel %vm1696, %v1616, %v1721
      %1723 = vst [vmem:[#allocation2 + $0x40] sm:$0xff] %v1722
      %v1724 = vld [vmem:[#allocation2 + $0x48] sm:$0xff]
      %v1725 = vsel %vm1696, %v1618, %v1724
      %1726 = vst [vmem:[#allocation2 + $0x48] sm:$0xff] %v1725
      %v1727 = vld [vmem:[#allocation2 + $0x50] sm:$0xff]
      %v1728 = vsel %vm1696, %v1620, %v1727
      %1729 = vst [vmem:[#allocation2 + $0x50] sm:$0xff] %v1728
      %v1730 = vld [vmem:[#allocation2 + $0x58] sm:$0xff]
      %v1731 = vsel %vm1696, %v1622, %v1730
      %1732 = vst [vmem:[#allocation2 + $0x58] sm:$0xff] %v1731
      %v1733 = vld [vmem:[#allocation2 + $0x60] sm:$0xff]
      %v1734 = vsel %vm1696, %v1624, %v1733
      %1735 = vst [vmem:[#allocation2 + $0x60] sm:$0xff] %v1734
      %v1736 = vld [vmem:[#allocation2 + $0x68] sm:$0xff]
      %v1737 = vsel %vm1696, %v1626, %v1736
      %1738 = vst [vmem:[#allocation2 + $0x68] sm:$0xff] %v1737
      %v1739 = vld [vmem:[#allocation2 + $0x70] sm:$0xff]
      %v1740 = vsel %vm1696, %v1628, %v1739
      %1741 = vst [vmem:[#allocation2 + $0x70] sm:$0xff] %v1740
      %v1742 = vld [vmem:[#allocation2 + $0x78] sm:$0xff]
      %v1743 = vsel %vm1696, %v1630, %v1742
      %1744 = vst [vmem:[#allocation2 + $0x78] sm:$0xff] %v1743
      %v1745 = vld [vmem:[#allocation2 + $0x80] sm:$0xff]
      %v1746 = vsel %vm1696, %v1632, %v1745
      %1747 = vst [vmem:[#allocation2 + $0x80] sm:$0xff] %v1746
      %v1748 = vld [vmem:[#allocation2 + $0x88] sm:$0xff]
      %v1749 = vsel %vm1696, %v1634, %v1748
      %1750 = vst [vmem:[#allocation2 + $0x88] sm:$0xff] %v1749
      %v1751 = vld [vmem:[#allocation2 + $0x90] sm:$0xff]
      %v1752 = vsel %vm1696, %v1636, %v1751
      %1753 = vst [vmem:[#allocation2 + $0x90] sm:$0xff] %v1752
      %v1754 = vld [vmem:[#allocation2 + $0x98] sm:$0xff]
      %v1755 = vsel %vm1696, %v1638, %v1754
      %1756 = vst [vmem:[#allocation2 + $0x98] sm:$0xff] %v1755
      %v1757 = vld [vmem:[#allocation2 + $0xa0] sm:$0xff]
      %v1758 = vsel %vm1696, %v1640, %v1757
      %1759 = vst [vmem:[#allocation2 + $0xa0] sm:$0xff] %v1758
      %v1760 = vld [vmem:[#allocation2 + $0xa8] sm:$0xff]
      %v1761 = vsel %vm1696, %v1642, %v1760
      %1762 = vst [vmem:[#allocation2 + $0xa8] sm:$0xff] %v1761
      %v1763 = vld [vmem:[#allocation2 + $0xb0] sm:$0xff]
      %v1764 = vsel %vm1696, %v1644, %v1763
      %1765 = vst [vmem:[#allocation2 + $0xb0] sm:$0xff] %v1764
      %v1766 = vld [vmem:[#allocation2 + $0xb8] sm:$0xff]
      %v1767 = vsel %vm1696, %v1646, %v1766
      %1768 = vst [vmem:[#allocation2 + $0xb8] sm:$0xff] %v1767
      %v1769 = vld [vmem:[#allocation2 + $0xc0] sm:$0xff]
      %v1770 = vsel %vm1696, %v1648, %v1769
      %1771 = vst [vmem:[#allocation2 + $0xc0] sm:$0xff] %v1770
      %v1772 = vld [vmem:[#allocation2 + $0xc8] sm:$0xff]
      %v1773 = vsel %vm1696, %v1650, %v1772
      %1774 = vst [vmem:[#allocation2 + $0xc8] sm:$0xff] %v1773
      %v1775 = vld [vmem:[#allocation2 + $0xd0] sm:$0xff]
      %v1776 = vsel %vm1696, %v1652, %v1775
      %1777 = vst [vmem:[#allocation2 + $0xd0] sm:$0xff] %v1776
      %v1778 = vld [vmem:[#allocation2 + $0xd8] sm:$0xff]
      %v1779 = vsel %vm1696, %v1654, %v1778
      %1780 = vst [vmem:[#allocation2 + $0xd8] sm:$0xff] %v1779
      %v1781 = vld [vmem:[#allocation2 + $0xe0] sm:$0xff]
      %v1782 = vsel %vm1696, %v1656, %v1781
      %1783 = vst [vmem:[#allocation2 + $0xe0] sm:$0xff] %v1782
      %v1784 = vld [vmem:[#allocation2 + $0xe8] sm:$0xff]
      %v1785 = vsel %vm1696, %v1658, %v1784
      %1786 = vst [vmem:[#allocation2 + $0xe8] sm:$0xff] %v1785
      %v1787 = vld [vmem:[#allocation2 + $0xf0] sm:$0xff]
      %v1788 = vsel %vm1696, %v1660, %v1787
      %1789 = vst [vmem:[#allocation2 + $0xf0] sm:$0xff] %v1788
      %v1790 = vld [vmem:[#allocation2 + $0xf8] sm:$0xff]
      %v1791 = vsel %vm1696, %v1662, %v1790
      %1792 = vst [vmem:[#allocation2 + $0xf8] sm:$0xff] %v1791
      %vm1793 = vcmask 146559
      %vm1794 = vmand %vm1793, %vm1052
      %v1795 = vld [vmem:[#allocation2] sm:$0x80]
      %v1796 = vsel %vm1794, 0, %v1795
      %1797 = vst [vmem:[#allocation2] sm:$0x80] %v1796
      %v1798 = vld [vmem:[#allocation2 + $0x8] sm:$0x80]
      %v1799 = vsel %vm1794, 0, %v1798
      %1800 = vst [vmem:[#allocation2 + $0x8] sm:$0x80] %v1799
      %v1801 = vld [vmem:[#allocation2 + $0x10] sm:$0x80]
      %v1802 = vsel %vm1794, 0, %v1801
      %1803 = vst [vmem:[#allocation2 + $0x10] sm:$0x80] %v1802
      %v1804 = vld [vmem:[#allocation2 + $0x18] sm:$0x80]
      %v1805 = vsel %vm1794, 0, %v1804
      %1806 = vst [vmem:[#allocation2 + $0x18] sm:$0x80] %v1805
      %v1807 = vld [vmem:[#allocation2 + $0x20] sm:$0x80]
      %v1808 = vsel %vm1794, 0, %v1807
      %1809 = vst [vmem:[#allocation2 + $0x20] sm:$0x80] %v1808
      %v1810 = vld [vmem:[#allocation2 + $0x28] sm:$0x80]
      %v1811 = vsel %vm1794, 0, %v1810
      %1812 = vst [vmem:[#allocation2 + $0x28] sm:$0x80] %v1811
      %v1813 = vld [vmem:[#allocation2 + $0x30] sm:$0x80]
      %v1814 = vsel %vm1794, 0, %v1813
      %1815 = vst [vmem:[#allocation2 + $0x30] sm:$0x80] %v1814
      %v1816 = vld [vmem:[#allocation2 + $0x38] sm:$0x80]
      %v1817 = vsel %vm1794, 0, %v1816
      %1818 = vst [vmem:[#allocation2 + $0x38] sm:$0x80] %v1817
      %v1819 = vld [vmem:[#allocation2 + $0x40] sm:$0x80]
      %v1820 = vsel %vm1794, 0, %v1819
      %1821 = vst [vmem:[#allocation2 + $0x40] sm:$0x80] %v1820
      %v1822 = vld [vmem:[#allocation2 + $0x48] sm:$0x80]
      %v1823 = vsel %vm1794, 0, %v1822
      %1824 = vst [vmem:[#allocation2 + $0x48] sm:$0x80] %v1823
      %v1825 = vld [vmem:[#allocation2 + $0x50] sm:$0x80]
      %v1826 = vsel %vm1794, 0, %v1825
      %1827 = vst [vmem:[#allocation2 + $0x50] sm:$0x80] %v1826
      %v1828 = vld [vmem:[#allocation2 + $0x58] sm:$0x80]
      %v1829 = vsel %vm1794, 0, %v1828
      %1830 = vst [vmem:[#allocation2 + $0x58] sm:$0x80] %v1829
      %v1831 = vld [vmem:[#allocation2 + $0x60] sm:$0x80]
      %v1832 = vsel %vm1794, 0, %v1831
      %1833 = vst [vmem:[#allocation2 + $0x60] sm:$0x80] %v1832
      %v1834 = vld [vmem:[#allocation2 + $0x68] sm:$0x80]
      %v1835 = vsel %vm1794, 0, %v1834
      %1836 = vst [vmem:[#allocation2 + $0x68] sm:$0x80] %v1835
      %v1837 = vld [vmem:[#allocation2 + $0x70] sm:$0x80]
      %v1838 = vsel %vm1794, 0, %v1837
      %1839 = vst [vmem:[#allocation2 + $0x70] sm:$0x80] %v1838
      %v1840 = vld [vmem:[#allocation2 + $0x78] sm:$0x80]
      %v1841 = vsel %vm1794, 0, %v1840
      %1842 = vst [vmem:[#allocation2 + $0x78] sm:$0x80] %v1841
      %v1843 = vld [vmem:[#allocation2 + $0x80] sm:$0x80]
      %v1844 = vsel %vm1794, 0, %v1843
      %1845 = vst [vmem:[#allocation2 + $0x80] sm:$0x80] %v1844
      %v1846 = vld [vmem:[#allocation2 + $0x88] sm:$0x80]
      %v1847 = vsel %vm1794, 0, %v1846
      %1848 = vst [vmem:[#allocation2 + $0x88] sm:$0x80] %v1847
      %v1849 = vld [vmem:[#allocation2 + $0x90] sm:$0x80]
      %v1850 = vsel %vm1794, 0, %v1849
      %1851 = vst [vmem:[#allocation2 + $0x90] sm:$0x80] %v1850
      %v1852 = vld [vmem:[#allocation2 + $0x98] sm:$0x80]
      %v1853 = vsel %vm1794, 0, %v1852
      %1854 = vst [vmem:[#allocation2 + $0x98] sm:$0x80] %v1853
      %v1855 = vld [vmem:[#allocation2 + $0xa0] sm:$0x80]
      %v1856 = vsel %vm1794, 0, %v1855
      %1857 = vst [vmem:[#allocation2 + $0xa0] sm:$0x80] %v1856
      %v1858 = vld [vmem:[#allocation2 + $0xa8] sm:$0x80]
      %v1859 = vsel %vm1794, 0, %v1858
      %1860 = vst [vmem:[#allocation2 + $0xa8] sm:$0x80] %v1859
      %v1861 = vld [vmem:[#allocation2 + $0xb0] sm:$0x80]
      %v1862 = vsel %vm1794, 0, %v1861
      %1863 = vst [vmem:[#allocation2 + $0xb0] sm:$0x80] %v1862
      %v1864 = vld [vmem:[#allocation2 + $0xb8] sm:$0x80]
      %v1865 = vsel %vm1794, 0, %v1864
      %1866 = vst [vmem:[#allocation2 + $0xb8] sm:$0x80] %v1865
      %v1867 = vld [vmem:[#allocation2 + $0xc0] sm:$0x80]
      %v1868 = vsel %vm1794, 0, %v1867
      %1869 = vst [vmem:[#allocation2 + $0xc0] sm:$0x80] %v1868
      %v1870 = vld [vmem:[#allocation2 + $0xc8] sm:$0x80]
      %v1871 = vsel %vm1794, 0, %v1870
      %1872 = vst [vmem:[#allocation2 + $0xc8] sm:$0x80] %v1871
      %v1873 = vld [vmem:[#allocation2 + $0xd0] sm:$0x80]
      %v1874 = vsel %vm1794, 0, %v1873
      %1875 = vst [vmem:[#allocation2 + $0xd0] sm:$0x80] %v1874
      %v1876 = vld [vmem:[#allocation2 + $0xd8] sm:$0x80]
      %v1877 = vsel %vm1794, 0, %v1876
      %1878 = vst [vmem:[#allocation2 + $0xd8] sm:$0x80] %v1877
      %v1879 = vld [vmem:[#allocation2 + $0xe0] sm:$0x80]
      %v1880 = vsel %vm1794, 0, %v1879
      %1881 = vst [vmem:[#allocation2 + $0xe0] sm:$0x80] %v1880
      %v1882 = vld [vmem:[#allocation2 + $0xe8] sm:$0x80]
      %v1883 = vsel %vm1794, 0, %v1882
      %1884 = vst [vmem:[#allocation2 + $0xe8] sm:$0x80] %v1883
      %v1885 = vld [vmem:[#allocation2 + $0xf0] sm:$0x80]
      %v1886 = vsel %vm1794, 0, %v1885
      %1887 = vst [vmem:[#allocation2 + $0xf0] sm:$0x80] %v1886
      %v1888 = vld [vmem:[#allocation2 + $0xf8] sm:$0x80]
      %v1889 = vsel %vm1794, 0, %v1888
      %1890 = vst [vmem:[#allocation2 + $0xf8] sm:$0x80] %v1889
      %1891 = vrot.lane.b32.xlu0 %v259, 18
      %v1892 = vpop.permute.xlu0 %1891
      %1893 = vrot.lane.b32.xlu0 %v266, 18
      %v1894 = vpop.permute.xlu0 %1893
      %1895 = vrot.lane.b32.xlu0 %v273, 18
      %v1896 = vpop.permute.xlu0 %1895
      %1897 = vrot.lane.b32.xlu0 %v280, 18
      %v1898 = vpop.permute.xlu0 %1897
      %1899 = vrot.lane.b32.xlu0 %v287, 18
      %v1900 = vpop.permute.xlu0 %1899
      %1901 = vrot.lane.b32.xlu0 %v294, 18
      %v1902 = vpop.permute.xlu0 %1901
      %1903 = vrot.lane.b32.xlu0 %v301, 18
      %v1904 = vpop.permute.xlu0 %1903
      %1905 = vrot.lane.b32.xlu0 %v308, 18
      %v1906 = vpop.permute.xlu0 %1905
      %1907 = vrot.lane.b32.xlu0 %v315, 18
      %v1908 = vpop.permute.xlu0 %1907
      %1909 = vrot.lane.b32.xlu0 %v322, 18
      %v1910 = vpop.permute.xlu0 %1909
      %1911 = vrot.lane.b32.xlu0 %v329, 18
      %v1912 = vpop.permute.xlu0 %1911
      %1913 = vrot.lane.b32.xlu0 %v336, 18
      %v1914 = vpop.permute.xlu0 %1913
      %1915 = vrot.lane.b32.xlu0 %v343, 18
      %v1916 = vpop.permute.xlu0 %1915
      %1917 = vrot.lane.b32.xlu0 %v350, 18
      %v1918 = vpop.permute.xlu0 %1917
      %1919 = vrot.lane.b32.xlu0 %v1166, 18
      %v1920 = vpop.permute.xlu0 %1919
      %1921 = vrot.lane.b32.xlu0 %v364, 18
      %v1922 = vpop.permute.xlu0 %1921
      %1923 = vrot.lane.b32.xlu0 %v371, 18
      %v1924 = vpop.permute.xlu0 %1923
      %1925 = vrot.lane.b32.xlu0 %v378, 18
      %v1926 = vpop.permute.xlu0 %1925
      %1927 = vrot.lane.b32.xlu0 %v385, 18
      %v1928 = vpop.permute.xlu0 %1927
      %1929 = vrot.lane.b32.xlu0 %v392, 18
      %v1930 = vpop.permute.xlu0 %1929
      %1931 = vrot.lane.b32.xlu0 %v399, 18
      %v1932 = vpop.permute.xlu0 %1931
      %1933 = vrot.lane.b32.xlu0 %v406, 18
      %v1934 = vpop.permute.xlu0 %1933
      %1935 = vrot.lane.b32.xlu0 %v413, 18
      %v1936 = vpop.permute.xlu0 %1935
      %1937 = vrot.lane.b32.xlu0 %v420, 18
      %v1938 = vpop.permute.xlu0 %1937
      %1939 = vrot.lane.b32.xlu0 %v427, 18
      %v1940 = vpop.permute.xlu0 %1939
      %1941 = vrot.lane.b32.xlu0 %v434, 18
      %v1942 = vpop.permute.xlu0 %1941
      %1943 = vrot.lane.b32.xlu0 %v441, 18
      %v1944 = vpop.permute.xlu0 %1943
      %1945 = vrot.lane.b32.xlu0 %v448, 18
      %v1946 = vpop.permute.xlu0 %1945
      %1947 = vrot.lane.b32.xlu0 %v455, 18
      %v1948 = vpop.permute.xlu0 %1947
      %1949 = vrot.lane.b32.xlu0 %v1173, 18
      %v1950 = vpop.permute.xlu0 %1949
      %vm1981 = vcmask 171152
      %vm1982 = vmand %vm1981, %vm488
      %v1983 = vld [vmem:[#allocation2] sm:$0xff]
      %v1984 = vsel %vm1982, %v1892, %v1983
      %1985 = vst [vmem:[#allocation2] sm:$0xff] %v1984
      %v1986 = vld [vmem:[#allocation2 + $0x8] sm:$0xff]
      %v1987 = vsel %vm1982, %v1894, %v1986
      %1988 = vst [vmem:[#allocation2 + $0x8] sm:$0xff] %v1987
      %v1989 = vld [vmem:[#allocation2 + $0x10] sm:$0xff]
      %v1990 = vsel %vm1982, %v1896, %v1989
      %1991 = vst [vmem:[#allocation2 + $0x10] sm:$0xff] %v1990
      %v1992 = vld [vmem:[#allocation2 + $0x18] sm:$0xff]
      %v1993 = vsel %vm1982, %v1898, %v1992
      %1994 = vst [vmem:[#allocation2 + $0x18] sm:$0xff] %v1993
      %v1995 = vld [vmem:[#allocation2 + $0x20] sm:$0xff]
      %v1996 = vsel %vm1982, %v1900, %v1995
      %1997 = vst [vmem:[#allocation2 + $0x20] sm:$0xff] %v1996
      %v1998 = vld [vmem:[#allocation2 + $0x28] sm:$0xff]
      %v1999 = vsel %vm1982, %v1902, %v1998
      %2000 = vst [vmem:[#allocation2 + $0x28] sm:$0xff] %v1999
      %v2001 = vld [vmem:[#allocation2 + $0x30] sm:$0xff]
      %v2002 = vsel %vm1982, %v1904, %v2001
      %2003 = vst [vmem:[#allocation2 + $0x30] sm:$0xff] %v2002
      %v2004 = vld [vmem:[#allocation2 + $0x38] sm:$0xff]
      %v2005 = vsel %vm1982, %v1906, %v2004
      %2006 = vst [vmem:[#allocation2 + $0x38] sm:$0xff] %v2005
      %v2007 = vld [vmem:[#allocation2 + $0x40] sm:$0xff]
      %v2008 = vsel %vm1982, %v1908, %v2007
      %2009 = vst [vmem:[#allocation2 + $0x40] sm:$0xff] %v2008
      %v2010 = vld [vmem:[#allocation2 + $0x48] sm:$0xff]
      %v2011 = vsel %vm1982, %v1910, %v2010
      %2012 = vst [vmem:[#allocation2 + $0x48] sm:$0xff] %v2011
      %v2013 = vld [vmem:[#allocation2 + $0x50] sm:$0xff]
      %v2014 = vsel %vm1982, %v1912, %v2013
      %2015 = vst [vmem:[#allocation2 + $0x50] sm:$0xff] %v2014
      %v2016 = vld [vmem:[#allocation2 + $0x58] sm:$0xff]
      %v2017 = vsel %vm1982, %v1914, %v2016
      %2018 = vst [vmem:[#allocation2 + $0x58] sm:$0xff] %v2017
      %v2019 = vld [vmem:[#allocation2 + $0x60] sm:$0xff]
      %v2020 = vsel %vm1982, %v1916, %v2019
      %2021 = vst [vmem:[#allocation2 + $0x60] sm:$0xff] %v2020
      %v2022 = vld [vmem:[#allocation2 + $0x68] sm:$0xff]
      %v2023 = vsel %vm1982, %v1918, %v2022
      %2024 = vst [vmem:[#allocation2 + $0x68] sm:$0xff] %v2023
      %v2025 = vld [vmem:[#allocation2 + $0x70] sm:$0xff]
      %v2026 = vsel %vm1982, %v1920, %v2025
      %2027 = vst [vmem:[#allocation2 + $0x70] sm:$0xff] %v2026
      %v2028 = vld [vmem:[#allocation2 + $0x80] sm:$0xff]
      %v2029 = vsel %vm1982, %v1922, %v2028
      %2030 = vst [vmem:[#allocation2 + $0x80] sm:$0xff] %v2029
      %v2031 = vld [vmem:[#allocation2 + $0x88] sm:$0xff]
      %v2032 = vsel %vm1982, %v1924, %v2031
      %2033 = vst [vmem:[#allocation2 + $0x88] sm:$0xff] %v2032
      %v2034 = vld [vmem:[#allocation2 + $0x90] sm:$0xff]
      %v2035 = vsel %vm1982, %v1926, %v2034
      %2036 = vst [vmem:[#allocation2 + $0x90] sm:$0xff] %v2035
      %v2037 = vld [vmem:[#allocation2 + $0x98] sm:$0xff]
      %v2038 = vsel %vm1982, %v1928, %v2037
      %2039 = vst [vmem:[#allocation2 + $0x98] sm:$0xff] %v2038
      %v2040 = vld [vmem:[#allocation2 + $0xa0] sm:$0xff]
      %v2041 = vsel %vm1982, %v1930, %v2040
      %2042 = vst [vmem:[#allocation2 + $0xa0] sm:$0xff] %v2041
      %v2043 = vld [vmem:[#allocation2 + $0xa8] sm:$0xff]
      %v2044 = vsel %vm1982, %v1932, %v2043
      %2045 = vst [vmem:[#allocation2 + $0xa8] sm:$0xff] %v2044
      %v2046 = vld [vmem:[#allocation2 + $0xb0] sm:$0xff]
      %v2047 = vsel %vm1982, %v1934, %v2046
      %2048 = vst [vmem:[#allocation2 + $0xb0] sm:$0xff] %v2047
      %v2049 = vld [vmem:[#allocation2 + $0xb8] sm:$0xff]
      %v2050 = vsel %vm1982, %v1936, %v2049
      %2051 = vst [vmem:[#allocation2 + $0xb8] sm:$0xff] %v2050
      %v2052 = vld [vmem:[#allocation2 + $0xc0] sm:$0xff]
      %v2053 = vsel %vm1982, %v1938, %v2052
      %2054 = vst [vmem:[#allocation2 + $0xc0] sm:$0xff] %v2053
      %v2055 = vld [vmem:[#allocation2 + $0xc8] sm:$0xff]
      %v2056 = vsel %vm1982, %v1940, %v2055
      %2057 = vst [vmem:[#allocation2 + $0xc8] sm:$0xff] %v2056
      %v2058 = vld [vmem:[#allocation2 + $0xd0] sm:$0xff]
      %v2059 = vsel %vm1982, %v1942, %v2058
      %2060 = vst [vmem:[#allocation2 + $0xd0] sm:$0xff] %v2059
      %v2061 = vld [vmem:[#allocation2 + $0xd8] sm:$0xff]
      %v2062 = vsel %vm1982, %v1944, %v2061
      %2063 = vst [vmem:[#allocation2 + $0xd8] sm:$0xff] %v2062
      %v2064 = vld [vmem:[#allocation2 + $0xe0] sm:$0xff]
      %v2065 = vsel %vm1982, %v1946, %v2064
      %2066 = vst [vmem:[#allocation2 + $0xe0] sm:$0xff] %v2065
      %v2067 = vld [vmem:[#allocation2 + $0xe8] sm:$0xff]
      %v2068 = vsel %vm1982, %v1948, %v2067
      %2069 = vst [vmem:[#allocation2 + $0xe8] sm:$0xff] %v2068
      %v2070 = vld [vmem:[#allocation2 + $0xf0] sm:$0xff]
      %v2071 = vsel %vm1982, %v1950, %v2070
      %2072 = vst [vmem:[#allocation2 + $0xf0] sm:$0xff] %v2071
      %s2073 = scalar_lea.vmem [#allocation2], 120
      %vm2074 = vcmask 171152
      %2075 = vst.msk [vmem:[%s2073] sm:$0xff] %vm2074, 0
      %2076 = vst.msk [vmem:[%s2073 + $0x80] sm:$0xff] %vm2074, 0
      %vm2077 = vcmask 163984
      %vm2078 = vmand %vm2077, %vm584
      %v2079 = vld [vmem:[#allocation2] sm:$0x1]
      %v2080 = vsel %vm2078, 0, %v2079
      %2081 = vst [vmem:[#allocation2] sm:$0x1] %v2080
      %v2082 = vld [vmem:[#allocation2 + $0x8] sm:$0x1]
      %v2083 = vsel %vm2078, 0, %v2082
      %2084 = vst [vmem:[#allocation2 + $0x8] sm:$0x1] %v2083
      %v2085 = vld [vmem:[#allocation2 + $0x10] sm:$0x1]
      %v2086 = vsel %vm2078, 0, %v2085
      %2087 = vst [vmem:[#allocation2 + $0x10] sm:$0x1] %v2086
      %v2088 = vld [vmem:[#allocation2 + $0x18] sm:$0x1]
      %v2089 = vsel %vm2078, 0, %v2088
      %2090 = vst [vmem:[#allocation2 + $0x18] sm:$0x1] %v2089
      %v2091 = vld [vmem:[#allocation2 + $0x20] sm:$0x1]
      %v2092 = vsel %vm2078, 0, %v2091
      %2093 = vst [vmem:[#allocation2 + $0x20] sm:$0x1] %v2092
      %v2094 = vld [vmem:[#allocation2 + $0x28] sm:$0x1]
      %v2095 = vsel %vm2078, 0, %v2094
      %2096 = vst [vmem:[#allocation2 + $0x28] sm:$0x1] %v2095
      %v2097 = vld [vmem:[#allocation2 + $0x30] sm:$0x1]
      %v2098 = vsel %vm2078, 0, %v2097
      %2099 = vst [vmem:[#allocation2 + $0x30] sm:$0x1] %v2098
      %v2100 = vld [vmem:[#allocation2 + $0x38] sm:$0x1]
      %v2101 = vsel %vm2078, 0, %v2100
      %2102 = vst [vmem:[#allocation2 + $0x38] sm:$0x1] %v2101
      %v2103 = vld [vmem:[#allocation2 + $0x40] sm:$0x1]
      %v2104 = vsel %vm2078, 0, %v2103
      %2105 = vst [vmem:[#allocation2 + $0x40] sm:$0x1] %v2104
      %v2106 = vld [vmem:[#allocation2 + $0x48] sm:$0x1]
      %v2107 = vsel %vm2078, 0, %v2106
      %2108 = vst [vmem:[#allocation2 + $0x48] sm:$0x1] %v2107
      %v2109 = vld [vmem:[#allocation2 + $0x50] sm:$0x1]
      %v2110 = vsel %vm2078, 0, %v2109
      %2111 = vst [vmem:[#allocation2 + $0x50] sm:$0x1] %v2110
      %v2112 = vld [vmem:[#allocation2 + $0x58] sm:$0x1]
      %v2113 = vsel %vm2078, 0, %v2112
      %2114 = vst [vmem:[#allocation2 + $0x58] sm:$0x1] %v2113
      %v2115 = vld [vmem:[#allocation2 + $0x60] sm:$0x1]
      %v2116 = vsel %vm2078, 0, %v2115
      %2117 = vst [vmem:[#allocation2 + $0x60] sm:$0x1] %v2116
      %v2118 = vld [vmem:[#allocation2 + $0x68] sm:$0x1]
      %v2119 = vsel %vm2078, 0, %v2118
      %2120 = vst [vmem:[#allocation2 + $0x68] sm:$0x1] %v2119
      %v2121 = vld [vmem:[#allocation2 + $0x70] sm:$0x1]
      %v2122 = vsel %vm2078, 0, %v2121
      %2123 = vst [vmem:[#allocation2 + $0x70] sm:$0x1] %v2122
      %v2124 = vld [vmem:[#allocation2 + $0x78] sm:$0x1]
      %v2125 = vsel %vm2078, 0, %v2124
      %2126 = vst [vmem:[#allocation2 + $0x78] sm:$0x1] %v2125
      %v2127 = vld [vmem:[#allocation2 + $0x80] sm:$0x1]
      %v2128 = vsel %vm2078, 0, %v2127
      %2129 = vst [vmem:[#allocation2 + $0x80] sm:$0x1] %v2128
      %v2130 = vld [vmem:[#allocation2 + $0x88] sm:$0x1]
      %v2131 = vsel %vm2078, 0, %v2130
      %2132 = vst [vmem:[#allocation2 + $0x88] sm:$0x1] %v2131
      %v2133 = vld [vmem:[#allocation2 + $0x90] sm:$0x1]
      %v2134 = vsel %vm2078, 0, %v2133
      %2135 = vst [vmem:[#allocation2 + $0x90] sm:$0x1] %v2134
      %v2136 = vld [vmem:[#allocation2 + $0x98] sm:$0x1]
      %v2137 = vsel %vm2078, 0, %v2136
      %2138 = vst [vmem:[#allocation2 + $0x98] sm:$0x1] %v2137
      %v2139 = vld [vmem:[#allocation2 + $0xa0] sm:$0x1]
      %v2140 = vsel %vm2078, 0, %v2139
      %2141 = vst [vmem:[#allocation2 + $0xa0] sm:$0x1] %v2140
      %v2142 = vld [vmem:[#allocation2 + $0xa8] sm:$0x1]
      %v2143 = vsel %vm2078, 0, %v2142
      %2144 = vst [vmem:[#allocation2 + $0xa8] sm:$0x1] %v2143
      %v2145 = vld [vmem:[#allocation2 + $0xb0] sm:$0x1]
      %v2146 = vsel %vm2078, 0, %v2145
      %2147 = vst [vmem:[#allocation2 + $0xb0] sm:$0x1] %v2146
      %v2148 = vld [vmem:[#allocation2 + $0xb8] sm:$0x1]
      %v2149 = vsel %vm2078, 0, %v2148
      %2150 = vst [vmem:[#allocation2 + $0xb8] sm:$0x1] %v2149
      %v2151 = vld [vmem:[#allocation2 + $0xc0] sm:$0x1]
      %v2152 = vsel %vm2078, 0, %v2151
      %2153 = vst [vmem:[#allocation2 + $0xc0] sm:$0x1] %v2152
      %v2154 = vld [vmem:[#allocation2 + $0xc8] sm:$0x1]
      %v2155 = vsel %vm2078, 0, %v2154
      %2156 = vst [vmem:[#allocation2 + $0xc8] sm:$0x1] %v2155
      %v2157 = vld [vmem:[#allocation2 + $0xd0] sm:$0x1]
      %v2158 = vsel %vm2078, 0, %v2157
      %2159 = vst [vmem:[#allocation2 + $0xd0] sm:$0x1] %v2158
      %v2160 = vld [vmem:[#allocation2 + $0xd8] sm:$0x1]
      %v2161 = vsel %vm2078, 0, %v2160
      %2162 = vst [vmem:[#allocation2 + $0xd8] sm:$0x1] %v2161
      %v2163 = vld [vmem:[#allocation2 + $0xe0] sm:$0x1]
      %v2164 = vsel %vm2078, 0, %v2163
      %2165 = vst [vmem:[#allocation2 + $0xe0] sm:$0x1] %v2164
      %v2166 = vld [vmem:[#allocation2 + $0xe8] sm:$0x1]
      %v2167 = vsel %vm2078, 0, %v2166
      %2168 = vst [vmem:[#allocation2 + $0xe8] sm:$0x1] %v2167
      %v2169 = vld [vmem:[#allocation2 + $0xf0] sm:$0x1]
      %v2170 = vsel %vm2078, 0, %v2169
      %2171 = vst [vmem:[#allocation2 + $0xf0] sm:$0x1] %v2170
      %v2172 = vld [vmem:[#allocation2 + $0xf8] sm:$0x1]
      %v2173 = vsel %vm2078, 0, %v2172
      %2174 = vst [vmem:[#allocation2 + $0xf8] sm:$0x1] %v2173
      %2175 = vrot.lane.b32.xlu0 %v217, 21
      %v2176 = vpop.permute.xlu0 %2175
      %2177 = vrot.lane.b32.xlu0 %v218, 21
      %v2178 = vpop.permute.xlu0 %2177
      %2179 = vrot.lane.b32.xlu0 %v219, 21
      %v2180 = vpop.permute.xlu0 %2179
      %2181 = vrot.lane.b32.xlu0 %v220, 21
      %v2182 = vpop.permute.xlu0 %2181
      %2183 = vrot.lane.b32.xlu0 %v221, 21
      %v2184 = vpop.permute.xlu0 %2183
      %2185 = vrot.lane.b32.xlu0 %v222, 21
      %v2186 = vpop.permute.xlu0 %2185
      %2187 = vrot.lane.b32.xlu0 %v223, 21
      %v2188 = vpop.permute.xlu0 %2187
      %2189 = vrot.lane.b32.xlu0 %v224, 21
      %v2190 = vpop.permute.xlu0 %2189
      %2191 = vrot.lane.b32.xlu0 %v225, 21
      %v2192 = vpop.permute.xlu0 %2191
      %2193 = vrot.lane.b32.xlu0 %v226, 21
      %v2194 = vpop.permute.xlu0 %2193
      %2195 = vrot.lane.b32.xlu0 %v227, 21
      %v2196 = vpop.permute.xlu0 %2195
      %2197 = vrot.lane.b32.xlu0 %v228, 21
      %v2198 = vpop.permute.xlu0 %2197
      %2199 = vrot.lane.b32.xlu0 %v229, 21
      %v2200 = vpop.permute.xlu0 %2199
      %2201 = vrot.lane.b32.xlu0 %v230, 21
      %v2202 = vpop.permute.xlu0 %2201
      %2203 = vrot.lane.b32.xlu0 %v1158, 21
      %v2204 = vpop.permute.xlu0 %2203
      %2205 = vrot.lane.b32.xlu0 %v232, 21
      %v2206 = vpop.permute.xlu0 %2205
      %2207 = vrot.lane.b32.xlu0 %v233, 21
      %v2208 = vpop.permute.xlu0 %2207
      %2209 = vrot.lane.b32.xlu0 %v234, 21
      %v2210 = vpop.permute.xlu0 %2209
      %2211 = vrot.lane.b32.xlu0 %v235, 21
      %v2212 = vpop.permute.xlu0 %2211
      %2213 = vrot.lane.b32.xlu0 %v236, 21
      %v2214 = vpop.permute.xlu0 %2213
      %2215 = vrot.lane.b32.xlu0 %v237, 21
      %v2216 = vpop.permute.xlu0 %2215
      %2217 = vrot.lane.b32.xlu0 %v238, 21
      %v2218 = vpop.permute.xlu0 %2217
      %2219 = vrot.lane.b32.xlu0 %v239, 21
      %v2220 = vpop.permute.xlu0 %2219
      %2221 = vrot.lane.b32.xlu0 %v240, 21
      %v2222 = vpop.permute.xlu0 %2221
      %2223 = vrot.lane.b32.xlu0 %v241, 21
      %v2224 = vpop.permute.xlu0 %2223
      %2225 = vrot.lane.b32.xlu0 %v242, 21
      %v2226 = vpop.permute.xlu0 %2225
      %2227 = vrot.lane.b32.xlu0 %v243, 21
      %v2228 = vpop.permute.xlu0 %2227
      %2229 = vrot.lane.b32.xlu0 %v244, 21
      %v2230 = vpop.permute.xlu0 %2229
      %2231 = vrot.lane.b32.xlu0 %v245, 21
      %v2232 = vpop.permute.xlu0 %2231
      %2233 = vrot.lane.b32.xlu0 %v1159, 21
      %v2234 = vpop.permute.xlu0 %2233
      %vm2265 = vcmask 195752
      %2266 = vst.msk [vmem:[#allocation2] sm:$0xff] %vm2265, %v2176
      %2267 = vst.msk [vmem:[#allocation2 + $0x8] sm:$0xff] %vm2265, %v2178
      %2268 = vst.msk [vmem:[#allocation2 + $0x10] sm:$0xff] %vm2265, %v2180
      %2269 = vst.msk [vmem:[#allocation2 + $0x18] sm:$0xff] %vm2265, %v2182
      %2270 = vst.msk [vmem:[#allocation2 + $0x20] sm:$0xff] %vm2265, %v2184
      %2271 = vst.msk [vmem:[#allocation2 + $0x28] sm:$0xff] %vm2265, %v2186
      %2272 = vst.msk [vmem:[#allocation2 + $0x30] sm:$0xff] %vm2265, %v2188
      %2273 = vst.msk [vmem:[#allocation2 + $0x38] sm:$0xff] %vm2265, %v2190
      %2274 = vst.msk [vmem:[#allocation2 + $0x40] sm:$0xff] %vm2265, %v2192
      %2275 = vst.msk [vmem:[#allocation2 + $0x48] sm:$0xff] %vm2265, %v2194
      %2276 = vst.msk [vmem:[#allocation2 + $0x50] sm:$0xff] %vm2265, %v2196
      %2277 = vst.msk [vmem:[#allocation2 + $0x58] sm:$0xff] %vm2265, %v2198
      %2278 = vst.msk [vmem:[#allocation2 + $0x60] sm:$0xff] %vm2265, %v2200
      %2279 = vst.msk [vmem:[#allocation2 + $0x68] sm:$0xff] %vm2265, %v2202
      %2280 = vst.msk [vmem:[#allocation2 + $0x70] sm:$0xff] %vm2265, %v2204
      %2281 = vst.msk [vmem:[#allocation2 + $0x80] sm:$0xff] %vm2265, %v2206
      %2282 = vst.msk [vmem:[#allocation2 + $0x88] sm:$0xff] %vm2265, %v2208
      %2283 = vst.msk [vmem:[#allocation2 + $0x90] sm:$0xff] %vm2265, %v2210
      %2284 = vst.msk [vmem:[#allocation2 + $0x98] sm:$0xff] %vm2265, %v2212
      %2285 = vst.msk [vmem:[#allocation2 + $0xa0] sm:$0xff] %vm2265, %v2214
      %2286 = vst.msk [vmem:[#allocation2 + $0xa8] sm:$0xff] %vm2265, %v2216
      %2287 = vst.msk [vmem:[#allocation2 + $0xb0] sm:$0xff] %vm2265, %v2218
      %2288 = vst.msk [vmem:[#allocation2 + $0xb8] sm:$0xff] %vm2265, %v2220
      %2289 = vst.msk [vmem:[#allocation2 + $0xc0] sm:$0xff] %vm2265, %v2222
      %2290 = vst.msk [vmem:[#allocation2 + $0xc8] sm:$0xff] %vm2265, %v2224
      %2291 = vst.msk [vmem:[#allocation2 + $0xd0] sm:$0xff] %vm2265, %v2226
      %2292 = vst.msk [vmem:[#allocation2 + $0xd8] sm:$0xff] %vm2265, %v2228
      %2293 = vst.msk [vmem:[#allocation2 + $0xe0] sm:$0xff] %vm2265, %v2230
      %2294 = vst.msk [vmem:[#allocation2 + $0xe8] sm:$0xff] %vm2265, %v2232
      %2295 = vst.msk [vmem:[#allocation2 + $0xf0] sm:$0xff] %vm2265, %v2234
      %2296 = vst.msk [vmem:[%s2073] sm:$0xff] %vm2265, 0
      %2297 = vst.msk [vmem:[%s2073 + $0x80] sm:$0xff] %vm2265, 0
      %2298 = vrot.lane.b32.xlu0 %v808, 24
      %v2299 = vpop.permute.xlu0 %2298
      %2300 = vrot.lane.b32.xlu0 %v810, 24
      %v2301 = vpop.permute.xlu0 %2300
      %2302 = vrot.lane.b32.xlu0 %v812, 24
      %v2303 = vpop.permute.xlu0 %2302
      %2304 = vrot.lane.b32.xlu0 %v814, 24
      %v2305 = vpop.permute.xlu0 %2304
      %2306 = vrot.lane.b32.xlu0 %v816, 24
      %v2307 = vpop.permute.xlu0 %2306
      %2308 = vrot.lane.b32.xlu0 %v818, 24
      %v2309 = vpop.permute.xlu0 %2308
      %2310 = vrot.lane.b32.xlu0 %v820, 24
      %v2311 = vpop.permute.xlu0 %2310
      %2312 = vrot.lane.b32.xlu0 %v822, 24
      %v2313 = vpop.permute.xlu0 %2312
      %2314 = vrot.lane.b32.xlu0 %v824, 24
      %v2315 = vpop.permute.xlu0 %2314
      %2316 = vrot.lane.b32.xlu0 %v826, 24
      %v2317 = vpop.permute.xlu0 %2316
      %2318 = vrot.lane.b32.xlu0 %v828, 24
      %v2319 = vpop.permute.xlu0 %2318
      %2320 = vrot.lane.b32.xlu0 %v830, 24
      %v2321 = vpop.permute.xlu0 %2320
      %2322 = vrot.lane.b32.xlu0 %v832, 24
      %v2323 = vpop.permute.xlu0 %2322
      %2324 = vrot.lane.b32.xlu0 %v834, 24
      %v2325 = vpop.permute.xlu0 %2324
      %2326 = vrot.lane.b32.xlu0 %v1596, 24
      %v2327 = vpop.permute.xlu0 %2326
      %2328 = vrot.lane.b32.xlu0 %v838, 24
      %v2329 = vpop.permute.xlu0 %2328
      %2330 = vrot.lane.b32.xlu0 %v840, 24
      %v2331 = vpop.permute.xlu0 %2330
      %2332 = vrot.lane.b32.xlu0 %v842, 24
      %v2333 = vpop.permute.xlu0 %2332
      %2334 = vrot.lane.b32.xlu0 %v844, 24
      %v2335 = vpop.permute.xlu0 %2334
      %2336 = vrot.lane.b32.xlu0 %v846, 24
      %v2337 = vpop.permute.xlu0 %2336
      %2338 = vrot.lane.b32.xlu0 %v848, 24
      %v2339 = vpop.permute.xlu0 %2338
      %2340 = vrot.lane.b32.xlu0 %v850, 24
      %v2341 = vpop.permute.xlu0 %2340
      %2342 = vrot.lane.b32.xlu0 %v852, 24
      %v2343 = vpop.permute.xlu0 %2342
      %2344 = vrot.lane.b32.xlu0 %v854, 24
      %v2345 = vpop.permute.xlu0 %2344
      %2346 = vrot.lane.b32.xlu0 %v856, 24
      %v2347 = vpop.permute.xlu0 %2346
      %2348 = vrot.lane.b32.xlu0 %v858, 24
      %v2349 = vpop.permute.xlu0 %2348
      %2350 = vrot.lane.b32.xlu0 %v860, 24
      %v2351 = vpop.permute.xlu0 %2350
      %2352 = vrot.lane.b32.xlu0 %v862, 24
      %v2353 = vpop.permute.xlu0 %2352
      %2354 = vrot.lane.b32.xlu0 %v864, 24
      %v2355 = vpop.permute.xlu0 %2354
      %2356 = vrot.lane.b32.xlu0 %v1598, 24
      %v2357 = vpop.permute.xlu0 %2356
      %vm2388 = vcmask 220352
      %vm2389 = vmand %vm2388, %vm956
      %v2390 = vld [vmem:[#allocation2] sm:$0xff]
      %v2391 = vsel %vm2389, %v2299, %v2390
      %2392 = vst [vmem:[#allocation2] sm:$0xff] %v2391
      %v2393 = vld [vmem:[#allocation2 + $0x8] sm:$0xff]
      %v2394 = vsel %vm2389, %v2301, %v2393
      %2395 = vst [vmem:[#allocation2 + $0x8] sm:$0xff] %v2394
      %v2396 = vld [vmem:[#allocation2 + $0x10] sm:$0xff]
      %v2397 = vsel %vm2389, %v2303, %v2396
      %2398 = vst [vmem:[#allocation2 + $0x10] sm:$0xff] %v2397
      %v2399 = vld [vmem:[#allocation2 + $0x18] sm:$0xff]
      %v2400 = vsel %vm2389, %v2305, %v2399
      %2401 = vst [vmem:[#allocation2 + $0x18] sm:$0xff] %v2400
      %v2402 = vld [vmem:[#allocation2 + $0x20] sm:$0xff]
      %v2403 = vsel %vm2389, %v2307, %v2402
      %2404 = vst [vmem:[#allocation2 + $0x20] sm:$0xff] %v2403
      %v2405 = vld [vmem:[#allocation2 + $0x28] sm:$0xff]
      %v2406 = vsel %vm2389, %v2309, %v2405
      %2407 = vst [vmem:[#allocation2 + $0x28] sm:$0xff] %v2406
      %v2408 = vld [vmem:[#allocation2 + $0x30] sm:$0xff]
      %v2409 = vsel %vm2389, %v2311, %v2408
      %2410 = vst [vmem:[#allocation2 + $0x30] sm:$0xff] %v2409
      %v2411 = vld [vmem:[#allocation2 + $0x38] sm:$0xff]
      %v2412 = vsel %vm2389, %v2313, %v2411
      %2413 = vst [vmem:[#allocation2 + $0x38] sm:$0xff] %v2412
      %v2414 = vld [vmem:[#allocation2 + $0x40] sm:$0xff]
      %v2415 = vsel %vm2389, %v2315, %v2414
      %2416 = vst [vmem:[#allocation2 + $0x40] sm:$0xff] %v2415
      %v2417 = vld [vmem:[#allocation2 + $0x48] sm:$0xff]
      %v2418 = vsel %vm2389, %v2317, %v2417
      %2419 = vst [vmem:[#allocation2 + $0x48] sm:$0xff] %v2418
      %v2420 = vld [vmem:[#allocation2 + $0x50] sm:$0xff]
      %v2421 = vsel %vm2389, %v2319, %v2420
      %2422 = vst [vmem:[#allocation2 + $0x50] sm:$0xff] %v2421
      %v2423 = vld [vmem:[#allocation2 + $0x58] sm:$0xff]
      %v2424 = vsel %vm2389, %v2321, %v2423
      %2425 = vst [vmem:[#allocation2 + $0x58] sm:$0xff] %v2424
      %v2426 = vld [vmem:[#allocation2 + $0x60] sm:$0xff]
      %v2427 = vsel %vm2389, %v2323, %v2426
      %2428 = vst [vmem:[#allocation2 + $0x60] sm:$0xff] %v2427
      %v2429 = vld [vmem:[#allocation2 + $0x68] sm:$0xff]
      %v2430 = vsel %vm2389, %v2325, %v2429
      %2431 = vst [vmem:[#allocation2 + $0x68] sm:$0xff] %v2430
      %v2432 = vld [vmem:[#allocation2 + $0x70] sm:$0xff]
      %v2433 = vsel %vm2389, %v2327, %v2432
      %2434 = vst [vmem:[#allocation2 + $0x70] sm:$0xff] %v2433
      %v2435 = vld [vmem:[#allocation2 + $0x80] sm:$0xff]
      %v2436 = vsel %vm2389, %v2329, %v2435
      %2437 = vst [vmem:[#allocation2 + $0x80] sm:$0xff] %v2436
      %v2438 = vld [vmem:[#allocation2 + $0x88] sm:$0xff]
      %v2439 = vsel %vm2389, %v2331, %v2438
      %2440 = vst [vmem:[#allocation2 + $0x88] sm:$0xff] %v2439
      %v2441 = vld [vmem:[#allocation2 + $0x90] sm:$0xff]
      %v2442 = vsel %vm2389, %v2333, %v2441
      %2443 = vst [vmem:[#allocation2 + $0x90] sm:$0xff] %v2442
      %v2444 = vld [vmem:[#allocation2 + $0x98] sm:$0xff]
      %v2445 = vsel %vm2389, %v2335, %v2444
      %2446 = vst [vmem:[#allocation2 + $0x98] sm:$0xff] %v2445
      %v2447 = vld [vmem:[#allocation2 + $0xa0] sm:$0xff]
      %v2448 = vsel %vm2389, %v2337, %v2447
      %2449 = vst [vmem:[#allocation2 + $0xa0] sm:$0xff] %v2448
      %v2450 = vld [vmem:[#allocation2 + $0xa8] sm:$0xff]
      %v2451 = vsel %vm2389, %v2339, %v2450
      %2452 = vst [vmem:[#allocation2 + $0xa8] sm:$0xff] %v2451
      %v2453 = vld [vmem:[#allocation2 + $0xb0] sm:$0xff]
      %v2454 = vsel %vm2389, %v2341, %v2453
      %2455 = vst [vmem:[#allocation2 + $0xb0] sm:$0xff] %v2454
      %v2456 = vld [vmem:[#allocation2 + $0xb8] sm:$0xff]
      %v2457 = vsel %vm2389, %v2343, %v2456
      %2458 = vst [vmem:[#allocation2 + $0xb8] sm:$0xff] %v2457
      %v2459 = vld [vmem:[#allocation2 + $0xc0] sm:$0xff]
      %v2460 = vsel %vm2389, %v2345, %v2459
      %2461 = vst [vmem:[#allocation2 + $0xc0] sm:$0xff] %v2460
      %v2462 = vld [vmem:[#allocation2 + $0xc8] sm:$0xff]
      %v2463 = vsel %vm2389, %v2347, %v2462
      %2464 = vst [vmem:[#allocation2 + $0xc8] sm:$0xff] %v2463
      %v2465 = vld [vmem:[#allocation2 + $0xd0] sm:$0xff]
      %v2466 = vsel %vm2389, %v2349, %v2465
      %2467 = vst [vmem:[#allocation2 + $0xd0] sm:$0xff] %v2466
      %v2468 = vld [vmem:[#allocation2 + $0xd8] sm:$0xff]
      %v2469 = vsel %vm2389, %v2351, %v2468
      %2470 = vst [vmem:[#allocation2 + $0xd8] sm:$0xff] %v2469
      %v2471 = vld [vmem:[#allocation2 + $0xe0] sm:$0xff]
      %v2472 = vsel %vm2389, %v2353, %v2471
      %2473 = vst [vmem:[#allocation2 + $0xe0] sm:$0xff] %v2472
      %v2474 = vld [vmem:[#allocation2 + $0xe8] sm:$0xff]
      %v2475 = vsel %vm2389, %v2355, %v2474
      %2476 = vst [vmem:[#allocation2 + $0xe8] sm:$0xff] %v2475
      %v2477 = vld [vmem:[#allocation2 + $0xf0] sm:$0xff]
      %v2478 = vsel %vm2389, %v2357, %v2477
      %2479 = vst [vmem:[#allocation2 + $0xf0] sm:$0xff] %v2478
      %vm2480 = vcmask 220352
      %2481 = vst.msk [vmem:[%s2073] sm:$0xff] %vm2480, 0
      %2482 = vst.msk [vmem:[%s2073 + $0x80] sm:$0xff] %vm2480, 0
      %vm2483 = vcmask 220359
      %vm2484 = vmand %vm2483, %vm1052
      %v2485 = vld [vmem:[#allocation2] sm:$0x80]
      %v2486 = vsel %vm2484, 0, %v2485
      %2487 = vst [vmem:[#allocation2] sm:$0x80] %v2486
      %v2488 = vld [vmem:[#allocation2 + $0x8] sm:$0x80]
      %v2489 = vsel %vm2484, 0, %v2488
      %2490 = vst [vmem:[#allocation2 + $0x8] sm:$0x80] %v2489
      %v2491 = vld [vmem:[#allocation2 + $0x10] sm:$0x80]
      %v2492 = vsel %vm2484, 0, %v2491
      %2493 = vst [vmem:[#allocation2 + $0x10] sm:$0x80] %v2492
      %v2494 = vld [vmem:[#allocation2 + $0x18] sm:$0x80]
      %v2495 = vsel %vm2484, 0, %v2494
      %2496 = vst [vmem:[#allocation2 + $0x18] sm:$0x80] %v2495
      %v2497 = vld [vmem:[#allocation2 + $0x20] sm:$0x80]
      %v2498 = vsel %vm2484, 0, %v2497
      %2499 = vst [vmem:[#allocation2 + $0x20] sm:$0x80] %v2498
      %v2500 = vld [vmem:[#allocation2 + $0x28] sm:$0x80]
      %v2501 = vsel %vm2484, 0, %v2500
      %2502 = vst [vmem:[#allocation2 + $0x28] sm:$0x80] %v2501
      %v2503 = vld [vmem:[#allocation2 + $0x30] sm:$0x80]
      %v2504 = vsel %vm2484, 0, %v2503
      %2505 = vst [vmem:[#allocation2 + $0x30] sm:$0x80] %v2504
      %v2506 = vld [vmem:[#allocation2 + $0x38] sm:$0x80]
      %v2507 = vsel %vm2484, 0, %v2506
      %2508 = vst [vmem:[#allocation2 + $0x38] sm:$0x80] %v2507
      %v2509 = vld [vmem:[#allocation2 + $0x40] sm:$0x80]
      %v2510 = vsel %vm2484, 0, %v2509
      %2511 = vst [vmem:[#allocation2 + $0x40] sm:$0x80] %v2510
      %v2512 = vld [vmem:[#allocation2 + $0x48] sm:$0x80]
      %v2513 = vsel %vm2484, 0, %v2512
      %2514 = vst [vmem:[#allocation2 + $0x48] sm:$0x80] %v2513
      %v2515 = vld [vmem:[#allocation2 + $0x50] sm:$0x80]
      %v2516 = vsel %vm2484, 0, %v2515
      %2517 = vst [vmem:[#allocation2 + $0x50] sm:$0x80] %v2516
      %v2518 = vld [vmem:[#allocation2 + $0x58] sm:$0x80]
      %v2519 = vsel %vm2484, 0, %v2518
      %2520 = vst [vmem:[#allocation2 + $0x58] sm:$0x80] %v2519
      %v2521 = vld [vmem:[#allocation2 + $0x60] sm:$0x80]
      %v2522 = vsel %vm2484, 0, %v2521
      %2523 = vst [vmem:[#allocation2 + $0x60] sm:$0x80] %v2522
      %v2524 = vld [vmem:[#allocation2 + $0x68] sm:$0x80]
      %v2525 = vsel %vm2484, 0, %v2524
      %2526 = vst [vmem:[#allocation2 + $0x68] sm:$0x80] %v2525
      %v2527 = vld [vmem:[#allocation2 + $0x70] sm:$0x80]
      %v2528 = vsel %vm2484, 0, %v2527
      %2529 = vst [vmem:[#allocation2 + $0x70] sm:$0x80] %v2528
      %v2530 = vld [vmem:[#allocation2 + $0x78] sm:$0x80]
      %v2531 = vsel %vm2484, 0, %v2530
      %2532 = vst [vmem:[#allocation2 + $0x78] sm:$0x80] %v2531
      %v2533 = vld [vmem:[#allocation2 + $0x80] sm:$0x80]
      %v2534 = vsel %vm2484, 0, %v2533
      %2535 = vst [vmem:[#allocation2 + $0x80] sm:$0x80] %v2534
      %v2536 = vld [vmem:[#allocation2 + $0x88] sm:$0x80]
      %v2537 = vsel %vm2484, 0, %v2536
      %2538 = vst [vmem:[#allocation2 + $0x88] sm:$0x80] %v2537
      %v2539 = vld [vmem:[#allocation2 + $0x90] sm:$0x80]
      %v2540 = vsel %vm2484, 0, %v2539
      %2541 = vst [vmem:[#allocation2 + $0x90] sm:$0x80] %v2540
      %v2542 = vld [vmem:[#allocation2 + $0x98] sm:$0x80]
      %v2543 = vsel %vm2484, 0, %v2542
      %2544 = vst [vmem:[#allocation2 + $0x98] sm:$0x80] %v2543
      %v2545 = vld [vmem:[#allocation2 + $0xa0] sm:$0x80]
      %v2546 = vsel %vm2484, 0, %v2545
      %2547 = vst [vmem:[#allocation2 + $0xa0] sm:$0x80] %v2546
      %v2548 = vld [vmem:[#allocation2 + $0xa8] sm:$0x80]
      %v2549 = vsel %vm2484, 0, %v2548
      %2550 = vst [vmem:[#allocation2 + $0xa8] sm:$0x80] %v2549
      %v2551 = vld [vmem:[#allocation2 + $0xb0] sm:$0x80]
      %v2552 = vsel %vm2484, 0, %v2551
      %2553 = vst [vmem:[#allocation2 + $0xb0] sm:$0x80] %v2552
      %v2554 = vld [vmem:[#allocation2 + $0xb8] sm:$0x80]
      %v2555 = vsel %vm2484, 0, %v2554
      %2556 = vst [vmem:[#allocation2 + $0xb8] sm:$0x80] %v2555
      %v2557 = vld [vmem:[#allocation2 + $0xc0] sm:$0x80]
      %v2558 = vsel %vm2484, 0, %v2557
      %2559 = vst [vmem:[#allocation2 + $0xc0] sm:$0x80] %v2558
      %v2560 = vld [vmem:[#allocation2 + $0xc8] sm:$0x80]
      %v2561 = vsel %vm2484, 0, %v2560
      %2562 = vst [vmem:[#allocation2 + $0xc8] sm:$0x80] %v2561
      %v2563 = vld [vmem:[#allocation2 + $0xd0] sm:$0x80]
      %v2564 = vsel %vm2484, 0, %v2563
      %2565 = vst [vmem:[#allocation2 + $0xd0] sm:$0x80] %v2564
      %v2566 = vld [vmem:[#allocation2 + $0xd8] sm:$0x80]
      %v2567 = vsel %vm2484, 0, %v2566
      %2568 = vst [vmem:[#allocation2 + $0xd8] sm:$0x80] %v2567
      %v2569 = vld [vmem:[#allocation2 + $0xe0] sm:$0x80]
      %v2570 = vsel %vm2484, 0, %v2569
      %2571 = vst [vmem:[#allocation2 + $0xe0] sm:$0x80] %v2570
      %v2572 = vld [vmem:[#allocation2 + $0xe8] sm:$0x80]
      %v2573 = vsel %vm2484, 0, %v2572
      %2574 = vst [vmem:[#allocation2 + $0xe8] sm:$0x80] %v2573
      %v2575 = vld [vmem:[#allocation2 + $0xf0] sm:$0x80]
      %v2576 = vsel %vm2484, 0, %v2575
      %2577 = vst [vmem:[#allocation2 + $0xf0] sm:$0x80] %v2576
      %v2578 = vld [vmem:[#allocation2 + $0xf8] sm:$0x80]
      %v2579 = vsel %vm2484, 0, %v2578
      %2580 = vst [vmem:[#allocation2 + $0xf8] sm:$0x80] %v2579
      %v2581 = vld [vmem:[#allocation2] sm:$0xff]
      %v2582 = vld [vmem:[#allocation2 + $0x8] sm:$0xff]
      %v2583 = vld [vmem:[#allocation2 + $0x10] sm:$0xff]
      %v2584 = vld [vmem:[#allocation2 + $0x18] sm:$0xff]
      %v2585 = vld [vmem:[#allocation2 + $0x20] sm:$0xff]
      %v2586 = vld [vmem:[#allocation2 + $0x28] sm:$0xff]
      %v2587 = vld [vmem:[#allocation2 + $0x30] sm:$0xff]
      %v2588 = vld [vmem:[#allocation2 + $0x38] sm:$0xff]
      %v2589 = vld [vmem:[#allocation2 + $0x40] sm:$0xff]
      %v2590 = vld [vmem:[#allocation2 + $0x48] sm:$0xff]
      %v2591 = vld [vmem:[#allocation2 + $0x50] sm:$0xff]
      %v2592 = vld [vmem:[#allocation2 + $0x58] sm:$0xff]
      %v2593 = vld [vmem:[#allocation2 + $0x60] sm:$0xff]
      %v2594 = vld [vmem:[#allocation2 + $0x68] sm:$0xff]
      %v2595 = vld [vmem:[#allocation2 + $0x70] sm:$0xff]
      %v2596 = vld [vmem:[#allocation2 + $0x78] sm:$0xff]
      %v2597 = vld [vmem:[#allocation2 + $0x80] sm:$0xff]
      %v2598 = vld [vmem:[#allocation2 + $0x88] sm:$0xff]
      %v2599 = vld [vmem:[#allocation2 + $0x90] sm:$0xff]
      %v2600 = vld [vmem:[#allocation2 + $0x98] sm:$0xff]
      %v2601 = vld [vmem:[#allocation2 + $0xa0] sm:$0xff]
      %v2602 = vld [vmem:[#allocation2 + $0xa8] sm:$0xff]
      %v2603 = vld [vmem:[#allocation2 + $0xb0] sm:$0xff]
      %v2604 = vld [vmem:[#allocation2 + $0xb8] sm:$0xff]
      %v2605 = vld [vmem:[#allocation2 + $0xc0] sm:$0xff]
      %v2606 = vld [vmem:[#allocation2 + $0xc8] sm:$0xff]
      %v2607 = vld [vmem:[#allocation2 + $0xd0] sm:$0xff]
      %v2608 = vld [vmem:[#allocation2 + $0xd8] sm:$0xff]
      %v2609 = vld [vmem:[#allocation2 + $0xe0] sm:$0xff]
      %v2610 = vld [vmem:[#allocation2 + $0xe8] sm:$0xff]
      %v2611 = vld [vmem:[#allocation2 + $0xf0] sm:$0xff]
      %v2612 = vld [vmem:[#allocation2 + $0xf8] sm:$0xff]
      %v2613 = vld [vmem:[%s1] sm:$0xf]
      %v2614 = vld [vmem:[%s1 + $0x4] sm:$0xf]
      %v2615 = vld [vmem:[%s1 + $0x8] sm:$0xf]
      %v2616 = vld [vmem:[%s1 + $0xc] sm:$0x3]
      %v2621 = vunpack.c.l.b16 %v2613
      %v2622 = vunpack.c.l.b16 %v2614
      %v2623 = vunpack.c.l.b16 %v2615
      %v2624 = vunpack.c.l.b16 %v2616
      %v2625 = vpack.c.b16 %v2622, %v2621
      %v2626 = vpack.c.b16 %v2624, %v2623
      %vm2628 = vcmask 220160
      %v2630 = vsel %vm2628, %v2581, 0
      %v2633 = vsel %vm2628, %v2582, 0
      %v2636 = vsel %vm2628, %v2583, 0
      %v2639 = vsel %vm2628, %v2584, 0
      %v2642 = vsel %vm2628, %v2585, 0
      %v2645 = vsel %vm2628, %v2586, 0
      %v2648 = vsel %vm2628, %v2587, 0
      %v2651 = vsel %vm2628, %v2588, 0
      %v2654 = vsel %vm2628, %v2589, 0
      %v2657 = vsel %vm2628, %v2590, 0
      %v2660 = vsel %vm2628, %v2591, 0
      %v2663 = vsel %vm2628, %v2592, 0
      %v2666 = vsel %vm2628, %v2593, 0
      %v2669 = vsel %vm2628, %v2594, 0
      %v2672 = vsel %vm2628, %v2595, 0
      %v2675 = vsel %vm2628, %v2596, 0
      %v2678 = vsel %vm2628, %v2597, 0
      %v2681 = vsel %vm2628, %v2598, 0
      %v2684 = vsel %vm2628, %v2599, 0
      %v2687 = vsel %vm2628, %v2600, 0
      %v2690 = vsel %vm2628, %v2601, 0
      %v2693 = vsel %vm2628, %v2602, 0
      %v2696 = vsel %vm2628, %v2603, 0
      %v2699 = vsel %vm2628, %v2604, 0
      %v2702 = vsel %vm2628, %v2605, 0
      %v2705 = vsel %vm2628, %v2606, 0
      %v2708 = vsel %vm2628, %v2607, 0
      %v2711 = vsel %vm2628, %v2608, 0
      %v2714 = vsel %vm2628, %v2609, 0
      %v2717 = vsel %vm2628, %v2610, 0
      %v2720 = vsel %vm2628, %v2611, 0
      %v2723 = vsel %vm2628, %v2612, 0
      %vm2725 = vcmask 1044480
      %vm2726 = vcmask 1045504
      %v2727 = vsel %vm2725, 4294967295, 65535
      %v2728 = vsel %vm2726, %v2727, 0
      %v2730 = vand.u32 %v2626, %v2728
      %2732 = vmatprep.subr.bf16.mxu0 0
      %2733 = vmatpush1.bf16.msra.mxu0 %v2625
      %2734 = vmatprep.subr.bf16.mxu0 0
      %2735 = vmatpush1.bf16.msra.mxu0 %v2730
      %2736 = vmatprep.subr.bf16.mxu0 0
      %2737 = vmatpush1.bf16.msra.mxu0 0
      %2738 = vmatprep.subr.bf16.mxu0 0
      %2739 = vmatpush1.bf16.msra.mxu0 0
      %2740 = vmatprep.subr.bf16.mxu0 0
      %2741 = vmatpush1.bf16.msra.mxu0 0
      %2742 = vmatprep.subr.bf16.mxu0 0
      %2743 = vmatpush1.bf16.msra.mxu0 0
      %2744 = vmatprep.subr.bf16.mxu0 0
      %2745 = vmatpush1.bf16.msra.mxu0 0
      %2746 = vmatprep.subr.bf16.mxu0 0
      %2747 = vmatpush1.bf16.msra.mxu0 0
      %2748 = vmatprep.subr.bf16.mxu0 0
      %2749 = vmatpush1.bf16.msra.mxu0 0
      %2750 = vmatprep.subr.bf16.mxu0 0
      %2751 = vmatpush1.bf16.msra.mxu0 0
      %2752 = vmatprep.subr.bf16.mxu0 0
      %2753 = vmatpush1.bf16.msra.mxu0 0
      %2754 = vmatprep.subr.bf16.mxu0 0
      %2755 = vmatpush1.bf16.msra.mxu0 0
      %2756 = vmatprep.subr.bf16.mxu0 0
      %2757 = vmatpush1.bf16.msra.mxu0 0
      %2758 = vmatprep.subr.bf16.mxu0 0
      %2759 = vmatpush1.bf16.msra.mxu0 0
      %2760 = vmatprep.subr.bf16.mxu0 0
      %2761 = vmatpush1.bf16.msra.mxu0 0
      %2762 = vmatprep.subr.bf16.mxu0 0
      %2763 = vmatpush1.bf16.msra.mxu0 0
      %2764 = vmatprep.mubr.bf16.mxu0 0
      %2765 = vmatmul.mubr.bf16.gmra.mrb[0].mxu0 %v2630
      %v2766 = vpop.f32.mrb[0].mxu0
      %v2767 = vadd.f32 0.0, %v2766
      %v2768 = vpop.f32.mrb[0].mxu0
      %v2769 = vpop.f32.mrb[0].mxu0
      %v2770 = vadd.f32 0.0, %v2769
      %v2771 = vpop.f32.mrb[0].mxu0
      %2772 = vmatprep.mubr.bf16.mxu0 0
      %2773 = vmatmul.mubr.bf16.gmra.mrb[0].mxu0 %v2633
      %v2774 = vpop.f32.mrb[0].mxu0
      %v2775 = vadd.f32 0.0, %v2774
      %v2776 = vpop.f32.mrb[0].mxu0
      %v2777 = vpop.f32.mrb[0].mxu0
      %v2778 = vadd.f32 0.0, %v2777
      %v2779 = vpop.f32.mrb[0].mxu0
      %2780 = vmatprep.mubr.bf16.mxu0 0
      %2781 = vmatmul.mubr.bf16.gmra.mrb[0].mxu0 %v2636
      %v2782 = vpop.f32.mrb[0].mxu0
      %v2783 = vadd.f32 0.0, %v2782
      %v2784 = vpop.f32.mrb[0].mxu0
      %v2785 = vpop.f32.mrb[0].mxu0
      %v2786 = vadd.f32 0.0, %v2785
      %v2787 = vpop.f32.mrb[0].mxu0
      %2788 = vmatprep.mubr.bf16.mxu0 0
      %2789 = vmatmul.mubr.bf16.gmra.mrb[0].mxu0 %v2639
      %v2790 = vpop.f32.mrb[0].mxu0
      %v2791 = vadd.f32 0.0, %v2790
      %v2792 = vpop.f32.mrb[0].mxu0
      %v2793 = vpop.f32.mrb[0].mxu0
      %v2794 = vadd.f32 0.0, %v2793
      %v2795 = vpop.f32.mrb[0].mxu0
      %2796 = vmatprep.mubr.bf16.mxu0 0
      %2797 = vmatmul.mubr.bf16.gmra.mrb[0].mxu0 %v2642
      %v2798 = vpop.f32.mrb[0].mxu0
      %v2799 = vadd.f32 0.0, %v2798
      %v2800 = vpop.f32.mrb[0].mxu0
      %v2801 = vpop.f32.mrb[0].mxu0
      %v2802 = vadd.f32 0.0, %v2801
      %v2803 = vpop.f32.mrb[0].mxu0
      %2804 = vmatprep.mubr.bf16.mxu0 0
      %2805 = vmatmul.mubr.bf16.gmra.mrb[0].mxu0 %v2645
      %v2806 = vpop.f32.mrb[0].mxu0
      %v2807 = vadd.f32 0.0, %v2806
      %v2808 = vpop.f32.mrb[0].mxu0
      %v2809 = vpop.f32.mrb[0].mxu0
      %v2810 = vadd.f32 0.0, %v2809
      %v2811 = vpop.f32.mrb[0].mxu0
      %2812 = vmatprep.mubr.bf16.mxu0 0
      %2813 = vmatmul.mubr.bf16.gmra.mrb[0].mxu0 %v2648
      %v2814 = vpop.f32.mrb[0].mxu0
      %v2815 = vadd.f32 0.0, %v2814
      %v2816 = vpop.f32.mrb[0].mxu0
      %v2817 = vpop.f32.mrb[0].mxu0
      %v2818 = vadd.f32 0.0, %v2817
      %v2819 = vpop.f32.mrb[0].mxu0
      %2820 = vmatprep.mubr.bf16.mxu0 0
      %2821 = vmatmul.mubr.bf16.gmra.mrb[0].mxu0 %v2651
      %v2822 = vpop.f32.mrb[0].mxu0
      %v2823 = vadd.f32 0.0, %v2822
      %v2824 = vpop.f32.mrb[0].mxu0
      %v2825 = vpop.f32.mrb[0].mxu0
      %v2826 = vadd.f32 0.0, %v2825
      %v2827 = vpop.f32.mrb[0].mxu0
      %2828 = vmatprep.mubr.bf16.mxu0 0
      %2829 = vmatmul.mubr.bf16.gmra.mrb[0].mxu0 %v2654
      %v2830 = vpop.f32.mrb[0].mxu0
      %v2831 = vadd.f32 0.0, %v2830
      %v2832 = vpop.f32.mrb[0].mxu0
      %v2833 = vpop.f32.mrb[0].mxu0
      %v2834 = vadd.f32 0.0, %v2833
      %v2835 = vpop.f32.mrb[0].mxu0
      %2836 = vmatprep.mubr.bf16.mxu0 0
      %2837 = vmatmul.mubr.bf16.gmra.mrb[0].mxu0 %v2657
      %v2838 = vpop.f32.mrb[0].mxu0
      %v2839 = vadd.f32 0.0, %v2838
      %v2840 = vpop.f32.mrb[0].mxu0
      %v2841 = vpop.f32.mrb[0].mxu0
      %v2842 = vadd.f32 0.0, %v2841
      %v2843 = vpop.f32.mrb[0].mxu0
      %2844 = vmatprep.mubr.bf16.mxu0 0
      %2845 = vmatmul.mubr.bf16.gmra.mrb[0].mxu0 %v2660
      %v2846 = vpop.f32.mrb[0].mxu0
      %v2847 = vadd.f32 0.0, %v2846
      %v2848 = vpop.f32.mrb[0].mxu0
      %v2849 = vpop.f32.mrb[0].mxu0
      %v2850 = vadd.f32 0.0, %v2849
      %v2851 = vpop.f32.mrb[0].mxu0
      %2852 = vmatprep.mubr.bf16.mxu0 0
      %2853 = vmatmul.mubr.bf16.gmra.mrb[0].mxu0 %v2663
      %v2854 = vpop.f32.mrb[0].mxu0
      %v2855 = vadd.f32 0.0, %v2854
      %v2856 = vpop.f32.mrb[0].mxu0
      %v2857 = vpop.f32.mrb[0].mxu0
      %v2858 = vadd.f32 0.0, %v2857
      %v2859 = vpop.f32.mrb[0].mxu0
      %2860 = vmatprep.mubr.bf16.mxu0 0
      %2861 = vmatmul.mubr.bf16.gmra.mrb[0].mxu0 %v2666
      %v2862 = vpop.f32.mrb[0].mxu0
      %v2863 = vadd.f32 0.0, %v2862
      %v2864 = vpop.f32.mrb[0].mxu0
      %v2865 = vpop.f32.mrb[0].mxu0
      %v2866 = vadd.f32 0.0, %v2865
      %v2867 = vpop.f32.mrb[0].mxu0
      %2868 = vmatprep.mubr.bf16.mxu0 0
      %2869 = vmatmul.mubr.bf16.gmra.mrb[0].mxu0 %v2669
      %v2870 = vpop.f32.mrb[0].mxu0
      %v2871 = vadd.f32 0.0, %v2870
      %v2872 = vpop.f32.mrb[0].mxu0
      %v2873 = vpop.f32.mrb[0].mxu0
      %v2874 = vadd.f32 0.0, %v2873
      %v2875 = vpop.f32.mrb[0].mxu0
      %2876 = vmatprep.mubr.bf16.mxu0 0
      %2877 = vmatmul.mubr.bf16.gmra.mrb[0].mxu0 %v2672
      %v2878 = vpop.f32.mrb[0].mxu0
      %v2879 = vadd.f32 0.0, %v2878
      %v2880 = vpop.f32.mrb[0].mxu0
      %v2881 = vpop.f32.mrb[0].mxu0
      %v2882 = vadd.f32 0.0, %v2881
      %v2883 = vpop.f32.mrb[0].mxu0
      %2884 = vmatprep.mubr.bf16.mxu0 0
      %2885 = vmatmul.mubr.bf16.gmra.mrb[0].mxu0 %v2675
      %v2886 = vpop.f32.mrb[0].mxu0
      %v2887 = vadd.f32 0.0, %v2886
      %v2888 = vpop.f32.mrb[0].mxu0
      %v2889 = vpop.f32.mrb[0].mxu0
      %v2890 = vadd.f32 0.0, %v2889
      %v2891 = vpop.f32.mrb[0].mxu0
      %2892 = vmatprep.mubr.bf16.mxu0 0
      %2893 = vmatmul.mubr.bf16.gmra.mrb[0].mxu0 %v2678
      %v2894 = vpop.f32.mrb[0].mxu0
      %v2895 = vadd.f32 0.0, %v2894
      %v2896 = vpop.f32.mrb[0].mxu0
      %v2897 = vpop.f32.mrb[0].mxu0
      %v2898 = vadd.f32 0.0, %v2897
      %v2899 = vpop.f32.mrb[0].mxu0
      %2900 = vmatprep.mubr.bf16.mxu0 0
      %2901 = vmatmul.mubr.bf16.gmra.mrb[0].mxu0 %v2681
      %v2902 = vpop.f32.mrb[0].mxu0
      %v2903 = vadd.f32 0.0, %v2902
      %v2904 = vpop.f32.mrb[0].mxu0
      %v2905 = vpop.f32.mrb[0].mxu0
      %v2906 = vadd.f32 0.0, %v2905
      %v2907 = vpop.f32.mrb[0].mxu0
      %2908 = vmatprep.mubr.bf16.mxu0 0
      %2909 = vmatmul.mubr.bf16.gmra.mrb[0].mxu0 %v2684
      %v2910 = vpop.f32.mrb[0].mxu0
      %v2911 = vadd.f32 0.0, %v2910
      %v2912 = vpop.f32.mrb[0].mxu0
      %v2913 = vpop.f32.mrb[0].mxu0
      %v2914 = vadd.f32 0.0, %v2913
      %v2915 = vpop.f32.mrb[0].mxu0
      %2916 = vmatprep.mubr.bf16.mxu0 0
      %2917 = vmatmul.mubr.bf16.gmra.mrb[0].mxu0 %v2687
      %v2918 = vpop.f32.mrb[0].mxu0
      %v2919 = vadd.f32 0.0, %v2918
      %v2920 = vpop.f32.mrb[0].mxu0
      %v2921 = vpop.f32.mrb[0].mxu0
      %v2922 = vadd.f32 0.0, %v2921
      %v2923 = vpop.f32.mrb[0].mxu0
      %2924 = vmatprep.mubr.bf16.mxu0 0
      %2925 = vmatmul.mubr.bf16.gmra.mrb[0].mxu0 %v2690
      %v2926 = vpop.f32.mrb[0].mxu0
      %v2927 = vadd.f32 0.0, %v2926
      %v2928 = vpop.f32.mrb[0].mxu0
      %v2929 = vpop.f32.mrb[0].mxu0
      %v2930 = vadd.f32 0.0, %v2929
      %v2931 = vpop.f32.mrb[0].mxu0
      %2932 = vmatprep.mubr.bf16.mxu0 0
      %2933 = vmatmul.mubr.bf16.gmra.mrb[0].mxu0 %v2693
      %v2934 = vpop.f32.mrb[0].mxu0
      %v2935 = vadd.f32 0.0, %v2934
      %v2936 = vpop.f32.mrb[0].mxu0
      %v2937 = vpop.f32.mrb[0].mxu0
      %v2938 = vadd.f32 0.0, %v2937
      %v2939 = vpop.f32.mrb[0].mxu0
      %2940 = vmatprep.mubr.bf16.mxu0 0
      %2941 = vmatmul.mubr.bf16.gmra.mrb[0].mxu0 %v2696
      %v2942 = vpop.f32.mrb[0].mxu0
      %v2943 = vadd.f32 0.0, %v2942
      %v2944 = vpop.f32.mrb[0].mxu0
      %v2945 = vpop.f32.mrb[0].mxu0
      %v2946 = vadd.f32 0.0, %v2945
      %v2947 = vpop.f32.mrb[0].mxu0
      %2948 = vmatprep.mubr.bf16.mxu0 0
      %2949 = vmatmul.mubr.bf16.gmra.mrb[0].mxu0 %v2699
      %v2950 = vpop.f32.mrb[0].mxu0
      %v2951 = vadd.f32 0.0, %v2950
      %v2952 = vpop.f32.mrb[0].mxu0
      %v2953 = vpop.f32.mrb[0].mxu0
      %v2954 = vadd.f32 0.0, %v2953
      %v2955 = vpop.f32.mrb[0].mxu0
      %2956 = vmatprep.mubr.bf16.mxu0 0
      %2957 = vmatmul.mubr.bf16.gmra.mrb[0].mxu0 %v2702
      %v2958 = vpop.f32.mrb[0].mxu0
      %v2959 = vadd.f32 0.0, %v2958
      %v2960 = vpop.f32.mrb[0].mxu0
      %v2961 = vpop.f32.mrb[0].mxu0
      %v2962 = vadd.f32 0.0, %v2961
      %v2963 = vpop.f32.mrb[0].mxu0
      %2964 = vmatprep.mubr.bf16.mxu0 0
      %2965 = vmatmul.mubr.bf16.gmra.mrb[0].mxu0 %v2705
      %v2966 = vpop.f32.mrb[0].mxu0
      %v2967 = vadd.f32 0.0, %v2966
      %v2968 = vpop.f32.mrb[0].mxu0
      %v2969 = vpop.f32.mrb[0].mxu0
      %v2970 = vadd.f32 0.0, %v2969
      %v2971 = vpop.f32.mrb[0].mxu0
      %2972 = vmatprep.mubr.bf16.mxu0 0
      %2973 = vmatmul.mubr.bf16.gmra.mrb[0].mxu0 %v2708
      %v2974 = vpop.f32.mrb[0].mxu0
      %v2975 = vadd.f32 0.0, %v2974
      %v2976 = vpop.f32.mrb[0].mxu0
      %v2977 = vpop.f32.mrb[0].mxu0
      %v2978 = vadd.f32 0.0, %v2977
      %v2979 = vpop.f32.mrb[0].mxu0
      %2980 = vmatprep.mubr.bf16.mxu0 0
      %2981 = vmatmul.mubr.bf16.gmra.mrb[0].mxu0 %v2711
      %v2982 = vpop.f32.mrb[0].mxu0
      %v2983 = vadd.f32 0.0, %v2982
      %v2984 = vpop.f32.mrb[0].mxu0
      %v2985 = vpop.f32.mrb[0].mxu0
      %v2986 = vadd.f32 0.0, %v2985
      %v2987 = vpop.f32.mrb[0].mxu0
      %2988 = vmatprep.mubr.bf16.mxu0 0
      %2989 = vmatmul.mubr.bf16.gmra.mrb[0].mxu0 %v2714
      %v2990 = vpop.f32.mrb[0].mxu0
      %v2991 = vadd.f32 0.0, %v2990
      %v2992 = vpop.f32.mrb[0].mxu0
      %v2993 = vpop.f32.mrb[0].mxu0
      %v2994 = vadd.f32 0.0, %v2993
      %v2995 = vpop.f32.mrb[0].mxu0
      %2996 = vmatprep.mubr.bf16.mxu0 0
      %2997 = vmatmul.mubr.bf16.gmra.mrb[0].mxu0 %v2717
      %v2998 = vpop.f32.mrb[0].mxu0
      %v2999 = vadd.f32 0.0, %v2998
      %v3000 = vpop.f32.mrb[0].mxu0
      %v3001 = vpop.f32.mrb[0].mxu0
      %v3002 = vadd.f32 0.0, %v3001
      %v3003 = vpop.f32.mrb[0].mxu0
      %3004 = vmatprep.mubr.bf16.mxu0 0
      %3005 = vmatmul.mubr.bf16.gmra.mrb[0].mxu0 %v2720
      %v3006 = vpop.f32.mrb[0].mxu0
      %v3007 = vadd.f32 0.0, %v3006
      %v3008 = vpop.f32.mrb[0].mxu0
      %v3009 = vpop.f32.mrb[0].mxu0
      %v3010 = vadd.f32 0.0, %v3009
      %v3011 = vpop.f32.mrb[0].mxu0
      %3012 = vmatprep.mubr.bf16.mxu0 0
      %3013 = vmatmul.mubr.bf16.gmra.mrb[0].mxu0 %v2723
      %v3014 = vpop.f32.mrb[0].mxu0
      %v3015 = vadd.f32 0.0, %v3014
      %v3016 = vpop.f32.mrb[0].mxu0
      %v3017 = vpop.f32.mrb[0].mxu0
      %v3018 = vadd.f32 0.0, %v3017
      %v3019 = vpop.f32.mrb[0].mxu0
      %3020 = vdwg.mxu0
      %v3021 = vld [vmem:[%s2] sm:$0x1]
      %v3023 = vlaneseq
      %v3024 = vshrl.u32 %v3023, 7
      %v3025 = vsub.s32 0, %v3024
      %v3026 = vrot.slane %v3021, %v3025
      %v3028 = vmul.f32 %v2767, %v3026
      %v3029 = vmul.f32 %v2770, %v3026
      %v3030 = vmul.f32 %v2775, %v3026
      %v3031 = vmul.f32 %v2778, %v3026
      %v3032 = vmul.f32 %v2783, %v3026
      %v3033 = vmul.f32 %v2786, %v3026
      %v3034 = vmul.f32 %v2791, %v3026
      %v3035 = vmul.f32 %v2794, %v3026
      %v3036 = vmul.f32 %v2799, %v3026
      %v3037 = vmul.f32 %v2802, %v3026
      %v3038 = vmul.f32 %v2807, %v3026
      %v3039 = vmul.f32 %v2810, %v3026
      %v3040 = vmul.f32 %v2815, %v3026
      %v3041 = vmul.f32 %v2818, %v3026
      %v3042 = vmul.f32 %v2823, %v3026
      %v3043 = vmul.f32 %v2826, %v3026
      %v3044 = vmul.f32 %v2831, %v3026
      %v3045 = vmul.f32 %v2834, %v3026
      %v3046 = vmul.f32 %v2839, %v3026
      %v3047 = vmul.f32 %v2842, %v3026
      %v3048 = vmul.f32 %v2847, %v3026
      %v3049 = vmul.f32 %v2850, %v3026
      %v3050 = vmul.f32 %v2855, %v3026
      %v3051 = vmul.f32 %v2858, %v3026
      %v3052 = vmul.f32 %v2863, %v3026
      %v3053 = vmul.f32 %v2866, %v3026
      %v3054 = vmul.f32 %v2871, %v3026
      %v3055 = vmul.f32 %v2874, %v3026
      %v3056 = vmul.f32 %v2879, %v3026
      %v3057 = vmul.f32 %v2882, %v3026
      %v3058 = vmul.f32 %v2887, %v3026
      %v3059 = vmul.f32 %v2890, %v3026
      %v3060 = vmul.f32 %v2895, %v3026
      %v3061 = vmul.f32 %v2898, %v3026
      %v3062 = vmul.f32 %v2903, %v3026
      %v3063 = vmul.f32 %v2906, %v3026
      %v3064 = vmul.f32 %v2911, %v3026
      %v3065 = vmul.f32 %v2914, %v3026
      %v3066 = vmul.f32 %v2919, %v3026
      %v3067 = vmul.f32 %v2922, %v3026
      %v3068 = vmul.f32 %v2927, %v3026
      %v3069 = vmul.f32 %v2930, %v3026
      %v3070 = vmul.f32 %v2935, %v3026
      %v3071 = vmul.f32 %v2938, %v3026
      %v3072 = vmul.f32 %v2943, %v3026
      %v3073 = vmul.f32 %v2946, %v3026
      %v3074 = vmul.f32 %v2951, %v3026
      %v3075 = vmul.f32 %v2954, %v3026
      %v3076 = vmul.f32 %v2959, %v3026
      %v3077 = vmul.f32 %v2962, %v3026
      %v3078 = vmul.f32 %v2967, %v3026
      %v3079 = vmul.f32 %v2970, %v3026
      %v3080 = vmul.f32 %v2975, %v3026
      %v3081 = vmul.f32 %v2978, %v3026
      %v3082 = vmul.f32 %v2983, %v3026
      %v3083 = vmul.f32 %v2986, %v3026
      %v3084 = vmul.f32 %v2991, %v3026
      %v3085 = vmul.f32 %v2994, %v3026
      %v3086 = vmul.f32 %v2999, %v3026
      %v3087 = vmul.f32 %v3002, %v3026
      %v3088 = vmul.f32 %v3007, %v3026
      %v3089 = vmul.f32 %v3010, %v3026
      %v3090 = vmul.f32 %v3015, %v3026
      %v3091 = vmul.f32 %v3018, %v3026
      %v3092 = vld [vmem:[%s3] sm:$0x1]
      %v3094 = vlaneseq
      %v3095 = vshrl.u32 %v3094, 7
      %v3096 = vsub.s32 0, %v3095
      %v3097 = vrot.slane %v3092, %v3096
      %v3099 = vadd.f32 %v3028, %v3097
      %v3100 = vadd.f32 %v3029, %v3097
      %v3101 = vadd.f32 %v3030, %v3097
      %v3102 = vadd.f32 %v3031, %v3097
      %v3103 = vadd.f32 %v3032, %v3097
      %v3104 = vadd.f32 %v3033, %v3097
      %v3105 = vadd.f32 %v3034, %v3097
      %v3106 = vadd.f32 %v3035, %v3097
      %v3107 = vadd.f32 %v3036, %v3097
      %v3108 = vadd.f32 %v3037, %v3097
      %v3109 = vadd.f32 %v3038, %v3097
      %v3110 = vadd.f32 %v3039, %v3097
      %v3111 = vadd.f32 %v3040, %v3097
      %v3112 = vadd.f32 %v3041, %v3097
      %v3113 = vadd.f32 %v3042, %v3097
      %v3114 = vadd.f32 %v3043, %v3097
      %v3115 = vadd.f32 %v3044, %v3097
      %v3116 = vadd.f32 %v3045, %v3097
      %v3117 = vadd.f32 %v3046, %v3097
      %v3118 = vadd.f32 %v3047, %v3097
      %v3119 = vadd.f32 %v3048, %v3097
      %v3120 = vadd.f32 %v3049, %v3097
      %v3121 = vadd.f32 %v3050, %v3097
      %v3122 = vadd.f32 %v3051, %v3097
      %v3123 = vadd.f32 %v3052, %v3097
      %v3124 = vadd.f32 %v3053, %v3097
      %v3125 = vadd.f32 %v3054, %v3097
      %v3126 = vadd.f32 %v3055, %v3097
      %v3127 = vadd.f32 %v3056, %v3097
      %v3128 = vadd.f32 %v3057, %v3097
      %v3129 = vadd.f32 %v3058, %v3097
      %v3130 = vadd.f32 %v3059, %v3097
      %v3131 = vadd.f32 %v3060, %v3097
      %v3132 = vadd.f32 %v3061, %v3097
      %v3133 = vadd.f32 %v3062, %v3097
      %v3134 = vadd.f32 %v3063, %v3097
      %v3135 = vadd.f32 %v3064, %v3097
      %v3136 = vadd.f32 %v3065, %v3097
      %v3137 = vadd.f32 %v3066, %v3097
      %v3138 = vadd.f32 %v3067, %v3097
      %v3139 = vadd.f32 %v3068, %v3097
      %v3140 = vadd.f32 %v3069, %v3097
      %v3141 = vadd.f32 %v3070, %v3097
      %v3142 = vadd.f32 %v3071, %v3097
      %v3143 = vadd.f32 %v3072, %v3097
      %v3144 = vadd.f32 %v3073, %v3097
      %v3145 = vadd.f32 %v3074, %v3097
      %v3146 = vadd.f32 %v3075, %v3097
      %v3147 = vadd.f32 %v3076, %v3097
      %v3148 = vadd.f32 %v3077, %v3097
      %v3149 = vadd.f32 %v3078, %v3097
      %v3150 = vadd.f32 %v3079, %v3097
      %v3151 = vadd.f32 %v3080, %v3097
      %v3152 = vadd.f32 %v3081, %v3097
      %v3153 = vadd.f32 %v3082, %v3097
      %v3154 = vadd.f32 %v3083, %v3097
      %v3155 = vadd.f32 %v3084, %v3097
      %v3156 = vadd.f32 %v3085, %v3097
      %v3157 = vadd.f32 %v3086, %v3097
      %v3158 = vadd.f32 %v3087, %v3097
      %v3159 = vadd.f32 %v3088, %v3097
      %v3160 = vadd.f32 %v3089, %v3097
      %v3161 = vadd.f32 %v3090, %v3097
      %v3162 = vadd.f32 %v3091, %v3097
      %v3163 = vmax.f32 %v3099, 0.0
      %v3164 = vmax.f32 %v3100, 0.0
      %v3165 = vmax.f32 %v3101, 0.0
      %v3166 = vmax.f32 %v3102, 0.0
      %v3167 = vmax.f32 %v3103, 0.0
      %v3168 = vmax.f32 %v3104, 0.0
      %v3169 = vmax.f32 %v3105, 0.0
      %v3170 = vmax.f32 %v3106, 0.0
      %v3171 = vmax.f32 %v3107, 0.0
      %v3172 = vmax.f32 %v3108, 0.0
      %v3173 = vmax.f32 %v3109, 0.0
      %v3174 = vmax.f32 %v3110, 0.0
      %v3175 = vmax.f32 %v3111, 0.0
      %v3176 = vmax.f32 %v3112, 0.0
      %v3177 = vmax.f32 %v3113, 0.0
      %v3178 = vmax.f32 %v3114, 0.0
      %v3179 = vmax.f32 %v3115, 0.0
      %v3180 = vmax.f32 %v3116, 0.0
      %v3181 = vmax.f32 %v3117, 0.0
      %v3182 = vmax.f32 %v3118, 0.0
      %v3183 = vmax.f32 %v3119, 0.0
      %v3184 = vmax.f32 %v3120, 0.0
      %v3185 = vmax.f32 %v3121, 0.0
      %v3186 = vmax.f32 %v3122, 0.0
      %v3187 = vmax.f32 %v3123, 0.0
      %v3188 = vmax.f32 %v3124, 0.0
      %v3189 = vmax.f32 %v3125, 0.0
      %v3190 = vmax.f32 %v3126, 0.0
      %v3191 = vmax.f32 %v3127, 0.0
      %v3192 = vmax.f32 %v3128, 0.0
      %v3193 = vmax.f32 %v3129, 0.0
      %v3194 = vmax.f32 %v3130, 0.0
      %v3195 = vmax.f32 %v3131, 0.0
      %v3196 = vmax.f32 %v3132, 0.0
      %v3197 = vmax.f32 %v3133, 0.0
      %v3198 = vmax.f32 %v3134, 0.0
      %v3199 = vmax.f32 %v3135, 0.0
      %v3200 = vmax.f32 %v3136, 0.0
      %v3201 = vmax.f32 %v3137, 0.0
      %v3202 = vmax.f32 %v3138, 0.0
      %v3203 = vmax.f32 %v3139, 0.0
      %v3204 = vmax.f32 %v3140, 0.0
      %v3205 = vmax.f32 %v3141, 0.0
      %v3206 = vmax.f32 %v3142, 0.0
      %v3207 = vmax.f32 %v3143, 0.0
      %v3208 = vmax.f32 %v3144, 0.0
      %v3209 = vmax.f32 %v3145, 0.0
      %v3210 = vmax.f32 %v3146, 0.0
      %v3211 = vmax.f32 %v3147, 0.0
      %v3212 = vmax.f32 %v3148, 0.0
      %v3213 = vmax.f32 %v3149, 0.0
      %v3214 = vmax.f32 %v3150, 0.0
      %v3215 = vmax.f32 %v3151, 0.0
      %v3216 = vmax.f32 %v3152, 0.0
      %v3217 = vmax.f32 %v3153, 0.0
      %v3218 = vmax.f32 %v3154, 0.0
      %v3219 = vmax.f32 %v3155, 0.0
      %v3220 = vmax.f32 %v3156, 0.0
      %v3221 = vmax.f32 %v3157, 0.0
      %v3222 = vmax.f32 %v3158, 0.0
      %v3223 = vmax.f32 %v3159, 0.0
      %v3224 = vmax.f32 %v3160, 0.0
      %v3225 = vmax.f32 %v3161, 0.0
      %v3226 = vmax.f32 %v3162, 0.0
      %v3227 = vpack.c.bf16 %v3164, %v3163
      %v3228 = vpack.c.bf16 %v3166, %v3165
      %v3229 = vpack.c.bf16 %v3168, %v3167
      %v3230 = vpack.c.bf16 %v3170, %v3169
      %v3231 = vpack.c.bf16 %v3172, %v3171
      %v3232 = vpack.c.bf16 %v3174, %v3173
      %v3233 = vpack.c.bf16 %v3176, %v3175
      %v3234 = vpack.c.bf16 %v3178, %v3177
      %v3235 = vpack.c.bf16 %v3180, %v3179
      %v3236 = vpack.c.bf16 %v3182, %v3181
      %v3237 = vpack.c.bf16 %v3184, %v3183
      %v3238 = vpack.c.bf16 %v3186, %v3185
      %v3239 = vpack.c.bf16 %v3188, %v3187
      %v3240 = vpack.c.bf16 %v3190, %v3189
      %v3241 = vpack.c.bf16 %v3192, %v3191
      %v3242 = vpack.c.bf16 %v3194, %v3193
      %v3243 = vpack.c.bf16 %v3196, %v3195
      %v3244 = vpack.c.bf16 %v3198, %v3197
      %v3245 = vpack.c.bf16 %v3200, %v3199
      %v3246 = vpack.c.bf16 %v3202, %v3201
      %v3247 = vpack.c.bf16 %v3204, %v3203
      %v3248 = vpack.c.bf16 %v3206, %v3205
      %v3249 = vpack.c.bf16 %v3208, %v3207
      %v3250 = vpack.c.bf16 %v3210, %v3209
      %v3251 = vpack.c.bf16 %v3212, %v3211
      %v3252 = vpack.c.bf16 %v3214, %v3213
      %v3253 = vpack.c.bf16 %v3216, %v3215
      %v3254 = vpack.c.bf16 %v3218, %v3217
      %v3255 = vpack.c.bf16 %v3220, %v3219
      %v3256 = vpack.c.bf16 %v3222, %v3221
      %v3257 = vpack.c.bf16 %v3224, %v3223
      %v3258 = vpack.c.bf16 %v3226, %v3225
      %vm3259 = vcmask 523264
      %3260 = vst.msk [vmem:[#allocation3] sm:$0xff] %vm3259, 0
      %3261 = vst.msk [vmem:[#allocation3 + $0x90] sm:$0xff] %vm3259, 0
      %3262 = vst.msk [vmem:[#allocation3 + $0x120] sm:$0xff] %vm3259, 0
      %3263 = vst.msk [vmem:[#allocation3 + $0x1b0] sm:$0xff] %vm3259, 0
      %3264 = vst.msk [vmem:[#allocation3 + $0x240] sm:$0xff] %vm3259, 0
      %3265 = vst.msk [vmem:[#allocation3 + $0x2d0] sm:$0xff] %vm3259, 0
      %s3266 = scalar_lea.vmem [#allocation3], 136
      %3267 = vst.msk [vmem:[%s3266] sm:$0xff] %vm3259, 0
      %3268 = vst.msk [vmem:[%s3266 + $0x90] sm:$0xff] %vm3259, 0
      %3269 = vst.msk [vmem:[%s3266 + $0x120] sm:$0xff] %vm3259, 0
      %3270 = vst.msk [vmem:[%s3266 + $0x1b0] sm:$0xff] %vm3259, 0
      %3271 = vst.msk [vmem:[%s3266 + $0x240] sm:$0xff] %vm3259, 0
      %3272 = vst.msk [vmem:[%s3266 + $0x2d0] sm:$0xff] %vm3259, 0
      %s3273 = scalar_lea.vmem [#allocation3], 296
      %3274 = vst.msk [vmem:[%s3273] sm:$0xff] %vm3259, %v3227
      %3275 = vst.msk [vmem:[%s3273 + $0x8] sm:$0xff] %vm3259, %v3228
      %3276 = vst.msk [vmem:[%s3273 + $0x10] sm:$0xff] %vm3259, %v3229
      %3277 = vst.msk [vmem:[%s3273 + $0x18] sm:$0xff] %vm3259, %v3230
      %3278 = vst.msk [vmem:[%s3273 + $0x20] sm:$0xff] %vm3259, %v3231
      %3279 = vst.msk [vmem:[%s3273 + $0x28] sm:$0xff] %vm3259, %v3232
      %3280 = vst.msk [vmem:[%s3273 + $0x30] sm:$0xff] %vm3259, %v3233
      %3281 = vst.msk [vmem:[%s3273 + $0x38] sm:$0xff] %vm3259, %v3234
      %3282 = vst.msk [vmem:[%s3273 + $0x40] sm:$0xff] %vm3259, %v3235
      %3283 = vst.msk [vmem:[%s3273 + $0x48] sm:$0xff] %vm3259, %v3236
      %3284 = vst.msk [vmem:[%s3273 + $0x50] sm:$0xff] %vm3259, %v3237
      %3285 = vst.msk [vmem:[%s3273 + $0x58] sm:$0xff] %vm3259, %v3238
      %3286 = vst.msk [vmem:[%s3273 + $0x60] sm:$0xff] %vm3259, %v3239
      %3287 = vst.msk [vmem:[%s3273 + $0x68] sm:$0xff] %vm3259, %v3240
      %3288 = vst.msk [vmem:[%s3273 + $0x70] sm:$0xff] %vm3259, %v3241
      %3289 = vst.msk [vmem:[%s3273 + $0x78] sm:$0xff] %vm3259, %v3242
      %3290 = vst.msk [vmem:[%s3273 + $0x90] sm:$0xff] %vm3259, %v3243
      %3291 = vst.msk [vmem:[%s3273 + $0x98] sm:$0xff] %vm3259, %v3244
      %3292 = vst.msk [vmem:[%s3273 + $0xa0] sm:$0xff] %vm3259, %v3245
      %3293 = vst.msk [vmem:[%s3273 + $0xa8] sm:$0xff] %vm3259, %v3246
      %3294 = vst.msk [vmem:[%s3273 + $0xb0] sm:$0xff] %vm3259, %v3247
      %3295 = vst.msk [vmem:[%s3273 + $0xb8] sm:$0xff] %vm3259, %v3248
      %3296 = vst.msk [vmem:[%s3273 + $0xc0] sm:$0xff] %vm3259, %v3249
      %3297 = vst.msk [vmem:[%s3273 + $0xc8] sm:$0xff] %vm3259, %v3250
      %3298 = vst.msk [vmem:[%s3273 + $0xd0] sm:$0xff] %vm3259, %v3251
      %3299 = vst.msk [vmem:[%s3273 + $0xd8] sm:$0xff] %vm3259, %v3252
      %3300 = vst.msk [vmem:[%s3273 + $0xe0] sm:$0xff] %vm3259, %v3253
      %3301 = vst.msk [vmem:[%s3273 + $0xe8] sm:$0xff] %vm3259, %v3254
      %3302 = vst.msk [vmem:[%s3273 + $0xf0] sm:$0xff] %vm3259, %v3255
      %3303 = vst.msk [vmem:[%s3273 + $0xf8] sm:$0xff] %vm3259, %v3256
      %3304 = vst.msk [vmem:[%s3273 + $0x100] sm:$0xff] %vm3259, %v3257
      %3305 = vst.msk [vmem:[%s3273 + $0x108] sm:$0xff] %vm3259, %v3258
      %v3307 = vshrl.u32 %v3227, 16
      %v3309 = vrot.slane %v3307, 7
      %v3310 = vshll.u32 %v3227, 16
      %v3312 = vor.u32 %v3309, %v3310
      %v3314 = vshrl.u32 %v3228, 16
      %v3316 = vrot.slane %v3314, 7
      %v3317 = vshll.u32 %v3228, 16
      %v3319 = vor.u32 %v3316, %v3317
      %v3321 = vshrl.u32 %v3229, 16
      %v3323 = vrot.slane %v3321, 7
      %v3324 = vshll.u32 %v3229, 16
      %v3326 = vor.u32 %v3323, %v3324
      %v3328 = vshrl.u32 %v3230, 16
      %v3330 = vrot.slane %v3328, 7
      %v3331 = vshll.u32 %v3230, 16
      %v3333 = vor.u32 %v3330, %v3331
      %v3335 = vshrl.u32 %v3231, 16
      %v3337 = vrot.slane %v3335, 7
      %v3338 = vshll.u32 %v3231, 16
      %v3340 = vor.u32 %v3337, %v3338
      %v3342 = vshrl.u32 %v3232, 16
      %v3344 = vrot.slane %v3342, 7
      %v3345 = vshll.u32 %v3232, 16
      %v3347 = vor.u32 %v3344, %v3345
      %v3349 = vshrl.u32 %v3233, 16
      %v3351 = vrot.slane %v3349, 7
      %v3352 = vshll.u32 %v3233, 16
      %v3354 = vor.u32 %v3351, %v3352
      %v3356 = vshrl.u32 %v3234, 16
      %v3358 = vrot.slane %v3356, 7
      %v3359 = vshll.u32 %v3234, 16
      %v3361 = vor.u32 %v3358, %v3359
      %v3363 = vshrl.u32 %v3235, 16
      %v3365 = vrot.slane %v3363, 7
      %v3366 = vshll.u32 %v3235, 16
      %v3368 = vor.u32 %v3365, %v3366
      %v3370 = vshrl.u32 %v3236, 16
      %v3372 = vrot.slane %v3370, 7
      %v3373 = vshll.u32 %v3236, 16
      %v3375 = vor.u32 %v3372, %v3373
      %v3377 = vshrl.u32 %v3237, 16
      %v3379 = vrot.slane %v3377, 7
      %v3380 = vshll.u32 %v3237, 16
      %v3382 = vor.u32 %v3379, %v3380
      %v3384 = vshrl.u32 %v3238, 16
      %v3386 = vrot.slane %v3384, 7
      %v3387 = vshll.u32 %v3238, 16
      %v3389 = vor.u32 %v3386, %v3387
      %v3391 = vshrl.u32 %v3239, 16
      %v3393 = vrot.slane %v3391, 7
      %v3394 = vshll.u32 %v3239, 16
      %v3396 = vor.u32 %v3393, %v3394
      %v3398 = vshrl.u32 %v3240, 16
      %v3400 = vrot.slane %v3398, 7
      %v3401 = vshll.u32 %v3240, 16
      %v3403 = vor.u32 %v3400, %v3401
      %v3405 = vshrl.u32 %v3241, 16
      %v3407 = vrot.slane %v3405, 7
      %v3408 = vshll.u32 %v3241, 16
      %v3410 = vor.u32 %v3407, %v3408
      %v3412 = vshrl.u32 %v3242, 16
      %v3414 = vrot.slane %v3412, 7
      %v3415 = vshll.u32 %v3242, 16
      %v3417 = vor.u32 %v3414, %v3415
      %v3419 = vshrl.u32 %v3243, 16
      %v3421 = vrot.slane %v3419, 7
      %v3422 = vshll.u32 %v3243, 16
      %v3424 = vor.u32 %v3421, %v3422
      %v3426 = vshrl.u32 %v3244, 16
      %v3428 = vrot.slane %v3426, 7
      %v3429 = vshll.u32 %v3244, 16
      %v3431 = vor.u32 %v3428, %v3429
      %v3433 = vshrl.u32 %v3245, 16
      %v3435 = vrot.slane %v3433, 7
      %v3436 = vshll.u32 %v3245, 16
      %v3438 = vor.u32 %v3435, %v3436
      %v3440 = vshrl.u32 %v3246, 16
      %v3442 = vrot.slane %v3440, 7
      %v3443 = vshll.u32 %v3246, 16
      %v3445 = vor.u32 %v3442, %v3443
      %v3447 = vshrl.u32 %v3247, 16
      %v3449 = vrot.slane %v3447, 7
      %v3450 = vshll.u32 %v3247, 16
      %v3452 = vor.u32 %v3449, %v3450
      %v3454 = vshrl.u32 %v3248, 16
      %v3456 = vrot.slane %v3454, 7
      %v3457 = vshll.u32 %v3248, 16
      %v3459 = vor.u32 %v3456, %v3457
      %v3461 = vshrl.u32 %v3249, 16
      %v3463 = vrot.slane %v3461, 7
      %v3464 = vshll.u32 %v3249, 16
      %v3466 = vor.u32 %v3463, %v3464
      %v3468 = vshrl.u32 %v3250, 16
      %v3470 = vrot.slane %v3468, 7
      %v3471 = vshll.u32 %v3250, 16
      %v3473 = vor.u32 %v3470, %v3471
      %v3475 = vshrl.u32 %v3251, 16
      %v3477 = vrot.slane %v3475, 7
      %v3478 = vshll.u32 %v3251, 16
      %v3480 = vor.u32 %v3477, %v3478
      %v3482 = vshrl.u32 %v3252, 16
      %v3484 = vrot.slane %v3482, 7
      %v3485 = vshll.u32 %v3252, 16
      %v3487 = vor.u32 %v3484, %v3485
      %v3489 = vshrl.u32 %v3253, 16
      %v3491 = vrot.slane %v3489, 7
      %v3492 = vshll.u32 %v3253, 16
      %v3494 = vor.u32 %v3491, %v3492
      %v3496 = vshrl.u32 %v3254, 16
      %v3498 = vrot.slane %v3496, 7
      %v3499 = vshll.u32 %v3254, 16
      %v3501 = vor.u32 %v3498, %v3499
      %v3503 = vshrl.u32 %v3255, 16
      %v3505 = vrot.slane %v3503, 7
      %v3506 = vshll.u32 %v3255, 16
      %v3508 = vor.u32 %v3505, %v3506
      %v3510 = vshrl.u32 %v3256, 16
      %v3512 = vrot.slane %v3510, 7
      %v3513 = vshll.u32 %v3256, 16
      %v3515 = vor.u32 %v3512, %v3513
      %v3517 = vshrl.u32 %v3257, 16
      %v3519 = vrot.slane %v3517, 7
      %v3520 = vshll.u32 %v3257, 16
      %v3522 = vor.u32 %v3519, %v3520
      %v3524 = vshrl.u32 %v3258, 16
      %v3526 = vrot.slane %v3524, 7
      %v3527 = vshll.u32 %v3258, 16
      %v3529 = vor.u32 %v3526, %v3527
      %s3562 = scalar_lea.vmem [#allocation3], 8
      %vm3563 = vcmask 523264
      %vm3564 = vmand %vm3563, %vm488
      %v3565 = vld [vmem:[%s3562] sm:$0xff]
      %v3566 = vsel %vm3564, %v3312, %v3565
      %3567 = vst [vmem:[%s3562] sm:$0xff] %v3566
      %v3568 = vld [vmem:[%s3562 + $0x8] sm:$0xff]
      %v3569 = vsel %vm3564, %v3319, %v3568
      %3570 = vst [vmem:[%s3562 + $0x8] sm:$0xff] %v3569
      %v3571 = vld [vmem:[%s3562 + $0x10] sm:$0xff]
      %v3572 = vsel %vm3564, %v3326, %v3571
      %3573 = vst [vmem:[%s3562 + $0x10] sm:$0xff] %v3572
      %v3574 = vld [vmem:[%s3562 + $0x18] sm:$0xff]
      %v3575 = vsel %vm3564, %v3333, %v3574
      %3576 = vst [vmem:[%s3562 + $0x18] sm:$0xff] %v3575
      %v3577 = vld [vmem:[%s3562 + $0x20] sm:$0xff]
      %v3578 = vsel %vm3564, %v3340, %v3577
      %3579 = vst [vmem:[%s3562 + $0x20] sm:$0xff] %v3578
      %v3580 = vld [vmem:[%s3562 + $0x28] sm:$0xff]
      %v3581 = vsel %vm3564, %v3347, %v3580
      %3582 = vst [vmem:[%s3562 + $0x28] sm:$0xff] %v3581
      %v3583 = vld [vmem:[%s3562 + $0x30] sm:$0xff]
      %v3584 = vsel %vm3564, %v3354, %v3583
      %3585 = vst [vmem:[%s3562 + $0x30] sm:$0xff] %v3584
      %v3586 = vld [vmem:[%s3562 + $0x38] sm:$0xff]
      %v3587 = vsel %vm3564, %v3361, %v3586
      %3588 = vst [vmem:[%s3562 + $0x38] sm:$0xff] %v3587
      %v3589 = vld [vmem:[%s3562 + $0x40] sm:$0xff]
      %v3590 = vsel %vm3564, %v3368, %v3589
      %3591 = vst [vmem:[%s3562 + $0x40] sm:$0xff] %v3590
      %v3592 = vld [vmem:[%s3562 + $0x48] sm:$0xff]
      %v3593 = vsel %vm3564, %v3375, %v3592
      %3594 = vst [vmem:[%s3562 + $0x48] sm:$0xff] %v3593
      %v3595 = vld [vmem:[%s3562 + $0x50] sm:$0xff]
      %v3596 = vsel %vm3564, %v3382, %v3595
      %3597 = vst [vmem:[%s3562 + $0x50] sm:$0xff] %v3596
      %v3598 = vld [vmem:[%s3562 + $0x58] sm:$0xff]
      %v3599 = vsel %vm3564, %v3389, %v3598
      %3600 = vst [vmem:[%s3562 + $0x58] sm:$0xff] %v3599
      %v3601 = vld [vmem:[%s3562 + $0x60] sm:$0xff]
      %v3602 = vsel %vm3564, %v3396, %v3601
      %3603 = vst [vmem:[%s3562 + $0x60] sm:$0xff] %v3602
      %v3604 = vld [vmem:[%s3562 + $0x68] sm:$0xff]
      %v3605 = vsel %vm3564, %v3403, %v3604
      %3606 = vst [vmem:[%s3562 + $0x68] sm:$0xff] %v3605
      %v3607 = vld [vmem:[%s3562 + $0x70] sm:$0xff]
      %v3608 = vsel %vm3564, %v3410, %v3607
      %3609 = vst [vmem:[%s3562 + $0x70] sm:$0xff] %v3608
      %v3610 = vld [vmem:[%s3562 + $0x78] sm:$0xff]
      %v3611 = vsel %vm3564, %v3417, %v3610
      %3612 = vst [vmem:[%s3562 + $0x78] sm:$0xff] %v3611
      %v3613 = vld [vmem:[%s3562 + $0x90] sm:$0xff]
      %v3614 = vsel %vm3564, %v3424, %v3613
      %3615 = vst [vmem:[%s3562 + $0x90] sm:$0xff] %v3614
      %v3616 = vld [vmem:[%s3562 + $0x98] sm:$0xff]
      %v3617 = vsel %vm3564, %v3431, %v3616
      %3618 = vst [vmem:[%s3562 + $0x98] sm:$0xff] %v3617
      %v3619 = vld [vmem:[%s3562 + $0xa0] sm:$0xff]
      %v3620 = vsel %vm3564, %v3438, %v3619
      %3621 = vst [vmem:[%s3562 + $0xa0] sm:$0xff] %v3620
      %v3622 = vld [vmem:[%s3562 + $0xa8] sm:$0xff]
      %v3623 = vsel %vm3564, %v3445, %v3622
      %3624 = vst [vmem:[%s3562 + $0xa8] sm:$0xff] %v3623
      %v3625 = vld [vmem:[%s3562 + $0xb0] sm:$0xff]
      %v3626 = vsel %vm3564, %v3452, %v3625
      %3627 = vst [vmem:[%s3562 + $0xb0] sm:$0xff] %v3626
      %v3628 = vld [vmem:[%s3562 + $0xb8] sm:$0xff]
      %v3629 = vsel %vm3564, %v3459, %v3628
      %3630 = vst [vmem:[%s3562 + $0xb8] sm:$0xff] %v3629
      %v3631 = vld [vmem:[%s3562 + $0xc0] sm:$0xff]
      %v3632 = vsel %vm3564, %v3466, %v3631
      %3633 = vst [vmem:[%s3562 + $0xc0] sm:$0xff] %v3632
      %v3634 = vld [vmem:[%s3562 + $0xc8] sm:$0xff]
      %v3635 = vsel %vm3564, %v3473, %v3634
      %3636 = vst [vmem:[%s3562 + $0xc8] sm:$0xff] %v3635
      %v3637 = vld [vmem:[%s3562 + $0xd0] sm:$0xff]
      %v3638 = vsel %vm3564, %v3480, %v3637
      %3639 = vst [vmem:[%s3562 + $0xd0] sm:$0xff] %v3638
      %v3640 = vld [vmem:[%s3562 + $0xd8] sm:$0xff]
      %v3641 = vsel %vm3564, %v3487, %v3640
      %3642 = vst [vmem:[%s3562 + $0xd8] sm:$0xff] %v3641
      %v3643 = vld [vmem:[%s3562 + $0xe0] sm:$0xff]
      %v3644 = vsel %vm3564, %v3494, %v3643
      %3645 = vst [vmem:[%s3562 + $0xe0] sm:$0xff] %v3644
      %v3646 = vld [vmem:[%s3562 + $0xe8] sm:$0xff]
      %v3647 = vsel %vm3564, %v3501, %v3646
      %3648 = vst [vmem:[%s3562 + $0xe8] sm:$0xff] %v3647
      %v3649 = vld [vmem:[%s3562 + $0xf0] sm:$0xff]
      %v3650 = vsel %vm3564, %v3508, %v3649
      %3651 = vst [vmem:[%s3562 + $0xf0] sm:$0xff] %v3650
      %v3652 = vld [vmem:[%s3562 + $0xf8] sm:$0xff]
      %v3653 = vsel %vm3564, %v3515, %v3652
      %3654 = vst [vmem:[%s3562 + $0xf8] sm:$0xff] %v3653
      %v3655 = vld [vmem:[%s3562 + $0x100] sm:$0xff]
      %v3656 = vsel %vm3564, %v3522, %v3655
      %3657 = vst [vmem:[%s3562 + $0x100] sm:$0xff] %v3656
      %v3658 = vld [vmem:[%s3562 + $0x108] sm:$0xff]
      %v3659 = vsel %vm3564, %v3529, %v3658
      %3660 = vst [vmem:[%s3562 + $0x108] sm:$0xff] %v3659
      %v3661 = vrot.slane %v3310, 1
      %v3662 = vor.u32 %v3307, %v3661
      %v3663 = vrot.slane %v3317, 1
      %v3664 = vor.u32 %v3314, %v3663
      %v3665 = vrot.slane %v3324, 1
      %v3666 = vor.u32 %v3321, %v3665
      %v3667 = vrot.slane %v3331, 1
      %v3668 = vor.u32 %v3328, %v3667
      %v3669 = vrot.slane %v3338, 1
      %v3670 = vor.u32 %v3335, %v3669
      %v3671 = vrot.slane %v3345, 1
      %v3672 = vor.u32 %v3342, %v3671
      %v3673 = vrot.slane %v3352, 1
      %v3674 = vor.u32 %v3349, %v3673
      %v3675 = vrot.slane %v3359, 1
      %v3676 = vor.u32 %v3356, %v3675
      %v3677 = vrot.slane %v3366, 1
      %v3678 = vor.u32 %v3363, %v3677
      %v3679 = vrot.slane %v3373, 1
      %v3680 = vor.u32 %v3370, %v3679
      %v3681 = vrot.slane %v3380, 1
      %v3682 = vor.u32 %v3377, %v3681
      %v3683 = vrot.slane %v3387, 1
      %v3684 = vor.u32 %v3384, %v3683
      %v3685 = vrot.slane %v3394, 1
      %v3686 = vor.u32 %v3391, %v3685
      %v3687 = vrot.slane %v3401, 1
      %v3688 = vor.u32 %v3398, %v3687
      %v3689 = vrot.slane %v3408, 1
      %v3690 = vor.u32 %v3405, %v3689
      %v3691 = vrot.slane %v3415, 1
      %v3692 = vor.u32 %v3412, %v3691
      %v3693 = vrot.slane %v3422, 1
      %v3694 = vor.u32 %v3419, %v3693
      %v3695 = vrot.slane %v3429, 1
      %v3696 = vor.u32 %v3426, %v3695
      %v3697 = vrot.slane %v3436, 1
      %v3698 = vor.u32 %v3433, %v3697
      %v3699 = vrot.slane %v3443, 1
      %v3700 = vor.u32 %v3440, %v3699
      %v3701 = vrot.slane %v3450, 1
      %v3702 = vor.u32 %v3447, %v3701
      %v3703 = vrot.slane %v3457, 1
      %v3704 = vor.u32 %v3454, %v3703
      %v3705 = vrot.slane %v3464, 1
      %v3706 = vor.u32 %v3461, %v3705
      %v3707 = vrot.slane %v3471, 1
      %v3708 = vor.u32 %v3468, %v3707
      %v3709 = vrot.slane %v3478, 1
      %v3710 = vor.u32 %v3475, %v3709
      %v3711 = vrot.slane %v3485, 1
      %v3712 = vor.u32 %v3482, %v3711
      %v3713 = vrot.slane %v3492, 1
      %v3714 = vor.u32 %v3489, %v3713
      %v3715 = vrot.slane %v3499, 1
      %v3716 = vor.u32 %v3496, %v3715
      %v3717 = vrot.slane %v3506, 1
      %v3718 = vor.u32 %v3503, %v3717
      %v3719 = vrot.slane %v3513, 1
      %v3720 = vor.u32 %v3510, %v3719
      %v3721 = vrot.slane %v3520, 1
      %v3722 = vor.u32 %v3517, %v3721
      %v3723 = vrot.slane %v3527, 1
      %v3724 = vor.u32 %v3524, %v3723
      %s3757 = scalar_lea.vmem [#allocation3], 584
      %vm3758 = vmand %vm3563, %vm956
      %v3759 = vld [vmem:[%s3757] sm:$0xff]
      %v3760 = vsel %vm3758, %v3662, %v3759
      %3761 = vst [vmem:[%s3757] sm:$0xff] %v3760
      %v3762 = vld [vmem:[%s3757 + $0x8] sm:$0xff]
      %v3763 = vsel %vm3758, %v3664, %v3762
      %3764 = vst [vmem:[%s3757 + $0x8] sm:$0xff] %v3763
      %v3765 = vld [vmem:[%s3757 + $0x10] sm:$0xff]
      %v3766 = vsel %vm3758, %v3666, %v3765
      %3767 = vst [vmem:[%s3757 + $0x10] sm:$0xff] %v3766
      %v3768 = vld [vmem:[%s3757 + $0x18] sm:$0xff]
      %v3769 = vsel %vm3758, %v3668, %v3768
      %3770 = vst [vmem:[%s3757 + $0x18] sm:$0xff] %v3769
      %v3771 = vld [vmem:[%s3757 + $0x20] sm:$0xff]
      %v3772 = vsel %vm3758, %v3670, %v3771
      %3773 = vst [vmem:[%s3757 + $0x20] sm:$0xff] %v3772
      %v3774 = vld [vmem:[%s3757 + $0x28] sm:$0xff]
      %v3775 = vsel %vm3758, %v3672, %v3774
      %3776 = vst [vmem:[%s3757 + $0x28] sm:$0xff] %v3775
      %v3777 = vld [vmem:[%s3757 + $0x30] sm:$0xff]
      %v3778 = vsel %vm3758, %v3674, %v3777
      %3779 = vst [vmem:[%s3757 + $0x30] sm:$0xff] %v3778
      %v3780 = vld [vmem:[%s3757 + $0x38] sm:$0xff]
      %v3781 = vsel %vm3758, %v3676, %v3780
      %3782 = vst [vmem:[%s3757 + $0x38] sm:$0xff] %v3781
      %v3783 = vld [vmem:[%s3757 + $0x40] sm:$0xff]
      %v3784 = vsel %vm3758, %v3678, %v3783
      %3785 = vst [vmem:[%s3757 + $0x40] sm:$0xff] %v3784
      %v3786 = vld [vmem:[%s3757 + $0x48] sm:$0xff]
      %v3787 = vsel %vm3758, %v3680, %v3786
      %3788 = vst [vmem:[%s3757 + $0x48] sm:$0xff] %v3787
      %v3789 = vld [vmem:[%s3757 + $0x50] sm:$0xff]
      %v3790 = vsel %vm3758, %v3682, %v3789
      %3791 = vst [vmem:[%s3757 + $0x50] sm:$0xff] %v3790
      %v3792 = vld [vmem:[%s3757 + $0x58] sm:$0xff]
      %v3793 = vsel %vm3758, %v3684, %v3792
      %3794 = vst [vmem:[%s3757 + $0x58] sm:$0xff] %v3793
      %v3795 = vld [vmem:[%s3757 + $0x60] sm:$0xff]
      %v3796 = vsel %vm3758, %v3686, %v3795
      %3797 = vst [vmem:[%s3757 + $0x60] sm:$0xff] %v3796
      %v3798 = vld [vmem:[%s3757 + $0x68] sm:$0xff]
      %v3799 = vsel %vm3758, %v3688, %v3798
      %3800 = vst [vmem:[%s3757 + $0x68] sm:$0xff] %v3799
      %v3801 = vld [vmem:[%s3757 + $0x70] sm:$0xff]
      %v3802 = vsel %vm3758, %v3690, %v3801
      %3803 = vst [vmem:[%s3757 + $0x70] sm:$0xff] %v3802
      %v3804 = vld [vmem:[%s3757 + $0x78] sm:$0xff]
      %v3805 = vsel %vm3758, %v3692, %v3804
      %3806 = vst [vmem:[%s3757 + $0x78] sm:$0xff] %v3805
      %v3807 = vld [vmem:[%s3757 + $0x90] sm:$0xff]
      %v3808 = vsel %vm3758, %v3694, %v3807
      %3809 = vst [vmem:[%s3757 + $0x90] sm:$0xff] %v3808
      %v3810 = vld [vmem:[%s3757 + $0x98] sm:$0xff]
      %v3811 = vsel %vm3758, %v3696, %v3810
      %3812 = vst [vmem:[%s3757 + $0x98] sm:$0xff] %v3811
      %v3813 = vld [vmem:[%s3757 + $0xa0] sm:$0xff]
      %v3814 = vsel %vm3758, %v3698, %v3813
      %3815 = vst [vmem:[%s3757 + $0xa0] sm:$0xff] %v3814
      %v3816 = vld [vmem:[%s3757 + $0xa8] sm:$0xff]
      %v3817 = vsel %vm3758, %v3700, %v3816
      %3818 = vst [vmem:[%s3757 + $0xa8] sm:$0xff] %v3817
      %v3819 = vld [vmem:[%s3757 + $0xb0] sm:$0xff]
      %v3820 = vsel %vm3758, %v3702, %v3819
      %3821 = vst [vmem:[%s3757 + $0xb0] sm:$0xff] %v3820
      %v3822 = vld [vmem:[%s3757 + $0xb8] sm:$0xff]
      %v3823 = vsel %vm3758, %v3704, %v3822
      %3824 = vst [vmem:[%s3757 + $0xb8] sm:$0xff] %v3823
      %v3825 = vld [vmem:[%s3757 + $0xc0] sm:$0xff]
      %v3826 = vsel %vm3758, %v3706, %v3825
      %3827 = vst [vmem:[%s3757 + $0xc0] sm:$0xff] %v3826
      %v3828 = vld [vmem:[%s3757 + $0xc8] sm:$0xff]
      %v3829 = vsel %vm3758, %v3708, %v3828
      %3830 = vst [vmem:[%s3757 + $0xc8] sm:$0xff] %v3829
      %v3831 = vld [vmem:[%s3757 + $0xd0] sm:$0xff]
      %v3832 = vsel %vm3758, %v3710, %v3831
      %3833 = vst [vmem:[%s3757 + $0xd0] sm:$0xff] %v3832
      %v3834 = vld [vmem:[%s3757 + $0xd8] sm:$0xff]
      %v3835 = vsel %vm3758, %v3712, %v3834
      %3836 = vst [vmem:[%s3757 + $0xd8] sm:$0xff] %v3835
      %v3837 = vld [vmem:[%s3757 + $0xe0] sm:$0xff]
      %v3838 = vsel %vm3758, %v3714, %v3837
      %3839 = vst [vmem:[%s3757 + $0xe0] sm:$0xff] %v3838
      %v3840 = vld [vmem:[%s3757 + $0xe8] sm:$0xff]
      %v3841 = vsel %vm3758, %v3716, %v3840
      %3842 = vst [vmem:[%s3757 + $0xe8] sm:$0xff] %v3841
      %v3843 = vld [vmem:[%s3757 + $0xf0] sm:$0xff]
      %v3844 = vsel %vm3758, %v3718, %v3843
      %3845 = vst [vmem:[%s3757 + $0xf0] sm:$0xff] %v3844
      %v3846 = vld [vmem:[%s3757 + $0xf8] sm:$0xff]
      %v3847 = vsel %vm3758, %v3720, %v3846
      %3848 = vst [vmem:[%s3757 + $0xf8] sm:$0xff] %v3847
      %v3849 = vld [vmem:[%s3757 + $0x100] sm:$0xff]
      %v3850 = vsel %vm3758, %v3722, %v3849
      %3851 = vst [vmem:[%s3757 + $0x100] sm:$0xff] %v3850
      %v3852 = vld [vmem:[%s3757 + $0x108] sm:$0xff]
      %v3853 = vsel %vm3758, %v3724, %v3852
      %3854 = vst [vmem:[%s3757 + $0x108] sm:$0xff] %v3853
      %vm3855 = vcmask 516096
      %vm3856 = vmand %vm3855, %vm584
      %v3857 = vld [vmem:[%s3562] sm:$0x1]
      %v3858 = vsel %vm3856, 0, %v3857
      %3859 = vst [vmem:[%s3562] sm:$0x1] %v3858
      %v3860 = vld [vmem:[%s3562 + $0x8] sm:$0x1]
      %v3861 = vsel %vm3856, 0, %v3860
      %3862 = vst [vmem:[%s3562 + $0x8] sm:$0x1] %v3861
      %v3863 = vld [vmem:[%s3562 + $0x10] sm:$0x1]
      %v3864 = vsel %vm3856, 0, %v3863
      %3865 = vst [vmem:[%s3562 + $0x10] sm:$0x1] %v3864
      %v3866 = vld [vmem:[%s3562 + $0x18] sm:$0x1]
      %v3867 = vsel %vm3856, 0, %v3866
      %3868 = vst [vmem:[%s3562 + $0x18] sm:$0x1] %v3867
      %v3869 = vld [vmem:[%s3562 + $0x20] sm:$0x1]
      %v3870 = vsel %vm3856, 0, %v3869
      %3871 = vst [vmem:[%s3562 + $0x20] sm:$0x1] %v3870
      %v3872 = vld [vmem:[%s3562 + $0x28] sm:$0x1]
      %v3873 = vsel %vm3856, 0, %v3872
      %3874 = vst [vmem:[%s3562 + $0x28] sm:$0x1] %v3873
      %v3875 = vld [vmem:[%s3562 + $0x30] sm:$0x1]
      %v3876 = vsel %vm3856, 0, %v3875
      %3877 = vst [vmem:[%s3562 + $0x30] sm:$0x1] %v3876
      %v3878 = vld [vmem:[%s3562 + $0x38] sm:$0x1]
      %v3879 = vsel %vm3856, 0, %v3878
      %3880 = vst [vmem:[%s3562 + $0x38] sm:$0x1] %v3879
      %v3881 = vld [vmem:[%s3562 + $0x40] sm:$0x1]
      %v3882 = vsel %vm3856, 0, %v3881
      %3883 = vst [vmem:[%s3562 + $0x40] sm:$0x1] %v3882
      %v3884 = vld [vmem:[%s3562 + $0x48] sm:$0x1]
      %v3885 = vsel %vm3856, 0, %v3884
      %3886 = vst [vmem:[%s3562 + $0x48] sm:$0x1] %v3885
      %v3887 = vld [vmem:[%s3562 + $0x50] sm:$0x1]
      %v3888 = vsel %vm3856, 0, %v3887
      %3889 = vst [vmem:[%s3562 + $0x50] sm:$0x1] %v3888
      %v3890 = vld [vmem:[%s3562 + $0x58] sm:$0x1]
      %v3891 = vsel %vm3856, 0, %v3890
      %3892 = vst [vmem:[%s3562 + $0x58] sm:$0x1] %v3891
      %v3893 = vld [vmem:[%s3562 + $0x60] sm:$0x1]
      %v3894 = vsel %vm3856, 0, %v3893
      %3895 = vst [vmem:[%s3562 + $0x60] sm:$0x1] %v3894
      %v3896 = vld [vmem:[%s3562 + $0x68] sm:$0x1]
      %v3897 = vsel %vm3856, 0, %v3896
      %3898 = vst [vmem:[%s3562 + $0x68] sm:$0x1] %v3897
      %v3899 = vld [vmem:[%s3562 + $0x70] sm:$0x1]
      %v3900 = vsel %vm3856, 0, %v3899
      %3901 = vst [vmem:[%s3562 + $0x70] sm:$0x1] %v3900
      %v3902 = vld [vmem:[%s3562 + $0x78] sm:$0x1]
      %v3903 = vsel %vm3856, 0, %v3902
      %3904 = vst [vmem:[%s3562 + $0x78] sm:$0x1] %v3903
      %v3905 = vld [vmem:[%s3562 + $0x90] sm:$0x1]
      %v3906 = vsel %vm3856, 0, %v3905
      %3907 = vst [vmem:[%s3562 + $0x90] sm:$0x1] %v3906
      %v3908 = vld [vmem:[%s3562 + $0x98] sm:$0x1]
      %v3909 = vsel %vm3856, 0, %v3908
      %3910 = vst [vmem:[%s3562 + $0x98] sm:$0x1] %v3909
      %v3911 = vld [vmem:[%s3562 + $0xa0] sm:$0x1]
      %v3912 = vsel %vm3856, 0, %v3911
      %3913 = vst [vmem:[%s3562 + $0xa0] sm:$0x1] %v3912
      %v3914 = vld [vmem:[%s3562 + $0xa8] sm:$0x1]
      %v3915 = vsel %vm3856, 0, %v3914
      %3916 = vst [vmem:[%s3562 + $0xa8] sm:$0x1] %v3915
      %v3917 = vld [vmem:[%s3562 + $0xb0] sm:$0x1]
      %v3918 = vsel %vm3856, 0, %v3917
      %3919 = vst [vmem:[%s3562 + $0xb0] sm:$0x1] %v3918
      %v3920 = vld [vmem:[%s3562 + $0xb8] sm:$0x1]
      %v3921 = vsel %vm3856, 0, %v3920
      %3922 = vst [vmem:[%s3562 + $0xb8] sm:$0x1] %v3921
      %v3923 = vld [vmem:[%s3562 + $0xc0] sm:$0x1]
      %v3924 = vsel %vm3856, 0, %v3923
      %3925 = vst [vmem:[%s3562 + $0xc0] sm:$0x1] %v3924
      %v3926 = vld [vmem:[%s3562 + $0xc8] sm:$0x1]
      %v3927 = vsel %vm3856, 0, %v3926
      %3928 = vst [vmem:[%s3562 + $0xc8] sm:$0x1] %v3927
      %v3929 = vld [vmem:[%s3562 + $0xd0] sm:$0x1]
      %v3930 = vsel %vm3856, 0, %v3929
      %3931 = vst [vmem:[%s3562 + $0xd0] sm:$0x1] %v3930
      %v3932 = vld [vmem:[%s3562 + $0xd8] sm:$0x1]
      %v3933 = vsel %vm3856, 0, %v3932
      %3934 = vst [vmem:[%s3562 + $0xd8] sm:$0x1] %v3933
      %v3935 = vld [vmem:[%s3562 + $0xe0] sm:$0x1]
      %v3936 = vsel %vm3856, 0, %v3935
      %3937 = vst [vmem:[%s3562 + $0xe0] sm:$0x1] %v3936
      %v3938 = vld [vmem:[%s3562 + $0xe8] sm:$0x1]
      %v3939 = vsel %vm3856, 0, %v3938
      %3940 = vst [vmem:[%s3562 + $0xe8] sm:$0x1] %v3939
      %v3941 = vld [vmem:[%s3562 + $0xf0] sm:$0x1]
      %v3942 = vsel %vm3856, 0, %v3941
      %3943 = vst [vmem:[%s3562 + $0xf0] sm:$0x1] %v3942
      %v3944 = vld [vmem:[%s3562 + $0xf8] sm:$0x1]
      %v3945 = vsel %vm3856, 0, %v3944
      %3946 = vst [vmem:[%s3562 + $0xf8] sm:$0x1] %v3945
      %v3947 = vld [vmem:[%s3562 + $0x100] sm:$0x1]
      %v3948 = vsel %vm3856, 0, %v3947
      %3949 = vst [vmem:[%s3562 + $0x100] sm:$0x1] %v3948
      %v3950 = vld [vmem:[%s3562 + $0x108] sm:$0x1]
      %v3951 = vsel %vm3856, 0, %v3950
      %3952 = vst [vmem:[%s3562 + $0x108] sm:$0x1] %v3951
      %vm3953 = vcmask 523271
      %vm3954 = vmand %vm3953, %vm1052
      %v3955 = vld [vmem:[%s3757] sm:$0x80]
      %v3956 = vsel %vm3954, 0, %v3955
      %3957 = vst [vmem:[%s3757] sm:$0x80] %v3956
      %v3958 = vld [vmem:[%s3757 + $0x8] sm:$0x80]
      %v3959 = vsel %vm3954, 0, %v3958
      %3960 = vst [vmem:[%s3757 + $0x8] sm:$0x80] %v3959
      %v3961 = vld [vmem:[%s3757 + $0x10] sm:$0x80]
      %v3962 = vsel %vm3954, 0, %v3961
      %3963 = vst [vmem:[%s3757 + $0x10] sm:$0x80] %v3962
      %v3964 = vld [vmem:[%s3757 + $0x18] sm:$0x80]
      %v3965 = vsel %vm3954, 0, %v3964
      %3966 = vst [vmem:[%s3757 + $0x18] sm:$0x80] %v3965
      %v3967 = vld [vmem:[%s3757 + $0x20] sm:$0x80]
      %v3968 = vsel %vm3954, 0, %v3967
      %3969 = vst [vmem:[%s3757 + $0x20] sm:$0x80] %v3968
      %v3970 = vld [vmem:[%s3757 + $0x28] sm:$0x80]
      %v3971 = vsel %vm3954, 0, %v3970
      %3972 = vst [vmem:[%s3757 + $0x28] sm:$0x80] %v3971
      %v3973 = vld [vmem:[%s3757 + $0x30] sm:$0x80]
      %v3974 = vsel %vm3954, 0, %v3973
      %3975 = vst [vmem:[%s3757 + $0x30] sm:$0x80] %v3974
      %v3976 = vld [vmem:[%s3757 + $0x38] sm:$0x80]
      %v3977 = vsel %vm3954, 0, %v3976
      %3978 = vst [vmem:[%s3757 + $0x38] sm:$0x80] %v3977
      %v3979 = vld [vmem:[%s3757 + $0x40] sm:$0x80]
      %v3980 = vsel %vm3954, 0, %v3979
      %3981 = vst [vmem:[%s3757 + $0x40] sm:$0x80] %v3980
      %v3982 = vld [vmem:[%s3757 + $0x48] sm:$0x80]
      %v3983 = vsel %vm3954, 0, %v3982
      %3984 = vst [vmem:[%s3757 + $0x48] sm:$0x80] %v3983
      %v3985 = vld [vmem:[%s3757 + $0x50] sm:$0x80]
      %v3986 = vsel %vm3954, 0, %v3985
      %3987 = vst [vmem:[%s3757 + $0x50] sm:$0x80] %v3986
      %v3988 = vld [vmem:[%s3757 + $0x58] sm:$0x80]
      %v3989 = vsel %vm3954, 0, %v3988
      %3990 = vst [vmem:[%s3757 + $0x58] sm:$0x80] %v3989
      %v3991 = vld [vmem:[%s3757 + $0x60] sm:$0x80]
      %v3992 = vsel %vm3954, 0, %v3991
      %3993 = vst [vmem:[%s3757 + $0x60] sm:$0x80] %v3992
      %v3994 = vld [vmem:[%s3757 + $0x68] sm:$0x80]
      %v3995 = vsel %vm3954, 0, %v3994
      %3996 = vst [vmem:[%s3757 + $0x68] sm:$0x80] %v3995
      %v3997 = vld [vmem:[%s3757 + $0x70] sm:$0x80]
      %v3998 = vsel %vm3954, 0, %v3997
      %3999 = vst [vmem:[%s3757 + $0x70] sm:$0x80] %v3998
      %v4000 = vld [vmem:[%s3757 + $0x78] sm:$0x80]
      %v4001 = vsel %vm3954, 0, %v4000
      %4002 = vst [vmem:[%s3757 + $0x78] sm:$0x80] %v4001
      %v4003 = vld [vmem:[%s3757 + $0x90] sm:$0x80]
      %v4004 = vsel %vm3954, 0, %v4003
      %4005 = vst [vmem:[%s3757 + $0x90] sm:$0x80] %v4004
      %v4006 = vld [vmem:[%s3757 + $0x98] sm:$0x80]
      %v4007 = vsel %vm3954, 0, %v4006
      %4008 = vst [vmem:[%s3757 + $0x98] sm:$0x80] %v4007
      %v4009 = vld [vmem:[%s3757 + $0xa0] sm:$0x80]
      %v4010 = vsel %vm3954, 0, %v4009
      %4011 = vst [vmem:[%s3757 + $0xa0] sm:$0x80] %v4010
      %v4012 = vld [vmem:[%s3757 + $0xa8] sm:$0x80]
      %v4013 = vsel %vm3954, 0, %v4012
      %4014 = vst [vmem:[%s3757 + $0xa8] sm:$0x80] %v4013
      %v4015 = vld [vmem:[%s3757 + $0xb0] sm:$0x80]
      %v4016 = vsel %vm3954, 0, %v4015
      %4017 = vst [vmem:[%s3757 + $0xb0] sm:$0x80] %v4016
      %v4018 = vld [vmem:[%s3757 + $0xb8] sm:$0x80]
      %v4019 = vsel %vm3954, 0, %v4018
      %4020 = vst [vmem:[%s3757 + $0xb8] sm:$0x80] %v4019
      %v4021 = vld [vmem:[%s3757 + $0xc0] sm:$0x80]
      %v4022 = vsel %vm3954, 0, %v4021
      %4023 = vst [vmem:[%s3757 + $0xc0] sm:$0x80] %v4022
      %v4024 = vld [vmem:[%s3757 + $0xc8] sm:$0x80]
      %v4025 = vsel %vm3954, 0, %v4024
      %4026 = vst [vmem:[%s3757 + $0xc8] sm:$0x80] %v4025
      %v4027 = vld [vmem:[%s3757 + $0xd0] sm:$0x80]
      %v4028 = vsel %vm3954, 0, %v4027
      %4029 = vst [vmem:[%s3757 + $0xd0] sm:$0x80] %v4028
      %v4030 = vld [vmem:[%s3757 + $0xd8] sm:$0x80]
      %v4031 = vsel %vm3954, 0, %v4030
      %4032 = vst [vmem:[%s3757 + $0xd8] sm:$0x80] %v4031
      %v4033 = vld [vmem:[%s3757 + $0xe0] sm:$0x80]
      %v4034 = vsel %vm3954, 0, %v4033
      %4035 = vst [vmem:[%s3757 + $0xe0] sm:$0x80] %v4034
      %v4036 = vld [vmem:[%s3757 + $0xe8] sm:$0x80]
      %v4037 = vsel %vm3954, 0, %v4036
      %4038 = vst [vmem:[%s3757 + $0xe8] sm:$0x80] %v4037
      %v4039 = vld [vmem:[%s3757 + $0xf0] sm:$0x80]
      %v4040 = vsel %vm3954, 0, %v4039
      %4041 = vst [vmem:[%s3757 + $0xf0] sm:$0x80] %v4040
      %v4042 = vld [vmem:[%s3757 + $0xf8] sm:$0x80]
      %v4043 = vsel %vm3954, 0, %v4042
      %4044 = vst [vmem:[%s3757 + $0xf8] sm:$0x80] %v4043
      %v4045 = vld [vmem:[%s3757 + $0x100] sm:$0x80]
      %v4046 = vsel %vm3954, 0, %v4045
      %4047 = vst [vmem:[%s3757 + $0x100] sm:$0x80] %v4046
      %v4048 = vld [vmem:[%s3757 + $0x108] sm:$0x80]
      %v4049 = vsel %vm3954, 0, %v4048
      %4050 = vst [vmem:[%s3757 + $0x108] sm:$0x80] %v4049
    $region33: #{tpu_custom_call.1} parent=1 // pred_fallthru
      _
    %v4051 = vld [vmem:[#allocation3] sm:$0xff]
    %v4052 = vld [vmem:[#allocation3 + $0x8] sm:$0xff]
    %v4053 = vld [vmem:[#allocation3 + $0x10] sm:$0xff]
    %v4054 = vld [vmem:[#allocation3 + $0x18] sm:$0xff]
    %v4055 = vld [vmem:[#allocation3 + $0x20] sm:$0xff]
    %v4056 = vld [vmem:[#allocation3 + $0x28] sm:$0xff]
    %v4057 = vld [vmem:[#allocation3 + $0x30] sm:$0xff]
    %v4058 = vld [vmem:[#allocation3 + $0x38] sm:$0xff]
    %v4059 = vld [vmem:[#allocation3 + $0x40] sm:$0xff]
    %v4060 = vld [vmem:[#allocation3 + $0x48] sm:$0xff]
    %v4061 = vld [vmem:[#allocation3 + $0x50] sm:$0xff]
    %v4062 = vld [vmem:[#allocation3 + $0x58] sm:$0xff]
    %v4063 = vld [vmem:[#allocation3 + $0x60] sm:$0xff]
    %v4064 = vld [vmem:[#allocation3 + $0x68] sm:$0xff]
    %v4065 = vld [vmem:[#allocation3 + $0x70] sm:$0xff]
    %v4066 = vld [vmem:[#allocation3 + $0x78] sm:$0xff]
    %v4067 = vld [vmem:[#allocation3 + $0x80] sm:$0xff]
    %v4068 = vld [vmem:[#allocation3 + $0x88] sm:$0xff]
    %v4069 = vld [vmem:[#allocation3 + $0x90] sm:$0xff]
    %v4070 = vld [vmem:[#allocation3 + $0x98] sm:$0xff]
    %v4071 = vld [vmem:[#allocation3 + $0xa0] sm:$0xff]
    %v4072 = vld [vmem:[#allocation3 + $0xa8] sm:$0xff]
    %v4073 = vld [vmem:[#allocation3 + $0xb0] sm:$0xff]
    %v4074 = vld [vmem:[#allocation3 + $0xb8] sm:$0xff]
    %v4075 = vld [vmem:[#allocation3 + $0xc0] sm:$0xff]
    %v4076 = vld [vmem:[#allocation3 + $0xc8] sm:$0xff]
    %v4077 = vld [vmem:[#allocation3 + $0xd0] sm:$0xff]
    %v4078 = vld [vmem:[#allocation3 + $0xd8] sm:$0xff]
    %v4079 = vld [vmem:[#allocation3 + $0xe0] sm:$0xff]
    %v4080 = vld [vmem:[#allocation3 + $0xe8] sm:$0xff]
    %v4081 = vld [vmem:[#allocation3 + $0xf0] sm:$0xff]
    %v4082 = vld [vmem:[#allocation3 + $0xf8] sm:$0xff]
    %v4083 = vld [vmem:[#allocation3 + $0x100] sm:$0xff]
    %v4084 = vld [vmem:[#allocation3 + $0x108] sm:$0xff]
    %v4085 = vld [vmem:[#allocation3 + $0x110] sm:$0xff]
    %v4086 = vld [vmem:[#allocation3 + $0x118] sm:$0xff]
    %v4087 = vld [vmem:[%s4] sm:$0xf]
    %v4088 = vld [vmem:[%s4 + $0x4] sm:$0xf]
    %v4089 = vld [vmem:[%s4 + $0x8] sm:$0xf]
    %v4090 = vld [vmem:[%s4 + $0xc] sm:$0xf]
    %v4091 = vld [vmem:[%s4 + $0x10] sm:$0xf]
    %v4092 = vld [vmem:[%s4 + $0x14] sm:$0xf]
    %v4093 = vld [vmem:[%s4 + $0x18] sm:$0xf]
    %v4094 = vld [vmem:[%s4 + $0x1c] sm:$0xf]
    %v4103 = vunpack.c.l.b16 %v4087
    %v4104 = vunpack.c.l.b16 %v4088
    %v4105 = vunpack.c.l.b16 %v4089
    %v4106 = vunpack.c.l.b16 %v4090
    %v4107 = vunpack.c.l.b16 %v4091
    %v4108 = vunpack.c.l.b16 %v4092
    %v4109 = vunpack.c.l.b16 %v4093
    %v4110 = vunpack.c.l.b16 %v4094
    %v4111 = vpack.c.b16 %v4104, %v4103
    %v4112 = vpack.c.b16 %v4106, %v4105
    %v4113 = vpack.c.b16 %v4108, %v4107
    %v4114 = vpack.c.b16 %v4110, %v4109
    %vm4119 = vcmask 523264
    %v4121 = vsel %vm4119, %v4051, 0
    %v4124 = vsel %vm4119, %v4052, 0
    %v4127 = vsel %vm4119, %v4053, 0
    %v4130 = vsel %vm4119, %v4054, 0
    %v4133 = vsel %vm4119, %v4055, 0
    %v4136 = vsel %vm4119, %v4056, 0
    %v4139 = vsel %vm4119, %v4057, 0
    %v4142 = vsel %vm4119, %v4058, 0
    %v4145 = vsel %vm4119, %v4059, 0
    %v4148 = vsel %vm4119, %v4060, 0
    %v4151 = vsel %vm4119, %v4061, 0
    %v4154 = vsel %vm4119, %v4062, 0
    %v4157 = vsel %vm4119, %v4063, 0
    %v4160 = vsel %vm4119, %v4064, 0
    %v4163 = vsel %vm4119, %v4065, 0
    %v4166 = vsel %vm4119, %v4066, 0
    %v4169 = vsel %vm4119, %v4067, 0
    %v4172 = vsel %vm4119, %v4068, 0
    %v4175 = vsel %vm4119, %v4069, 0
    %v4178 = vsel %vm4119, %v4070, 0
    %v4181 = vsel %vm4119, %v4071, 0
    %v4184 = vsel %vm4119, %v4072, 0
    %v4187 = vsel %vm4119, %v4073, 0
    %v4190 = vsel %vm4119, %v4074, 0
    %v4193 = vsel %vm4119, %v4075, 0
    %v4196 = vsel %vm4119, %v4076, 0
    %v4199 = vsel %vm4119, %v4077, 0
    %v4202 = vsel %vm4119, %v4078, 0
    %v4205 = vsel %vm4119, %v4079, 0
    %v4208 = vsel %vm4119, %v4080, 0
    %v4211 = vsel %vm4119, %v4081, 0
    %v4214 = vsel %vm4119, %v4082, 0
    %v4217 = vsel %vm4119, %v4083, 0
    %v4220 = vsel %vm4119, %v4084, 0
    %v4223 = vsel %vm4119, %v4085, 0
    %v4226 = vsel %vm4119, %v4086, 0
    %4228 = vmatprep.subr.bf16.mxu0 0
    %4229 = vmatpush1.bf16.msra.mxu0 %v4111
    %4230 = vmatprep.subr.bf16.mxu0 0
    %4231 = vmatpush1.bf16.msra.mxu0 %v4112
    %4232 = vmatprep.subr.bf16.mxu0 0
    %4233 = vmatpush1.bf16.msra.mxu0 %v4113
    %4234 = vmatprep.subr.bf16.mxu0 0
    %4235 = vmatpush1.bf16.msra.mxu0 %v4114
    %4236 = vmatprep.subr.bf16.mxu0 0
    %4237 = vmatpush1.bf16.msra.mxu0 0
    %4238 = vmatprep.subr.bf16.mxu0 0
    %4239 = vmatpush1.bf16.msra.mxu0 0
    %4240 = vmatprep.subr.bf16.mxu0 0
    %4241 = vmatpush1.bf16.msra.mxu0 0
    %4242 = vmatprep.subr.bf16.mxu0 0
    %4243 = vmatpush1.bf16.msra.mxu0 0
    %4244 = vmatprep.subr.bf16.mxu0 0
    %4245 = vmatpush1.bf16.msra.mxu0 0
    %4246 = vmatprep.subr.bf16.mxu0 0
    %4247 = vmatpush1.bf16.msra.mxu0 0
    %4248 = vmatprep.subr.bf16.mxu0 0
    %4249 = vmatpush1.bf16.msra.mxu0 0
    %4250 = vmatprep.subr.bf16.mxu0 0
    %4251 = vmatpush1.bf16.msra.mxu0 0
    %4252 = vmatprep.subr.bf16.mxu0 0
    %4253 = vmatpush1.bf16.msra.mxu0 0
    %4254 = vmatprep.subr.bf16.mxu0 0
    %4255 = vmatpush1.bf16.msra.mxu0 0
    %4256 = vmatprep.subr.bf16.mxu0 0
    %4257 = vmatpush1.bf16.msra.mxu0 0
    %4258 = vmatprep.subr.bf16.mxu0 0
    %4259 = vmatpush1.bf16.msra.mxu0 0
    %4260 = vmatprep.mubr.bf16.mxu0 0
    %4261 = vmatmul.mubr.bf16.gmra.mrb[0].mxu0 %v4121
    %v4262 = vpop.f32.mrb[0].mxu0
    %v4263 = vadd.f32 0.0, %v4262
    %v4264 = vpop.f32.mrb[0].mxu0
    %v4265 = vpop.f32.mrb[0].mxu0
    %v4266 = vadd.f32 0.0, %v4265
    %v4267 = vpop.f32.mrb[0].mxu0
    %4268 = vmatprep.mubr.bf16.mxu0 0
    %4269 = vmatmul.mubr.bf16.gmra.mrb[0].mxu0 %v4124
    %v4270 = vpop.f32.mrb[0].mxu0
    %v4271 = vadd.f32 0.0, %v4270
    %v4272 = vpop.f32.mrb[0].mxu0
    %v4273 = vpop.f32.mrb[0].mxu0
    %v4274 = vadd.f32 0.0, %v4273
    %v4275 = vpop.f32.mrb[0].mxu0
    %4276 = vmatprep.mubr.bf16.mxu0 0
    %4277 = vmatmul.mubr.bf16.gmra.mrb[0].mxu0 %v4127
    %v4278 = vpop.f32.mrb[0].mxu0
    %v4279 = vadd.f32 0.0, %v4278
    %v4280 = vpop.f32.mrb[0].mxu0
    %v4281 = vpop.f32.mrb[0].mxu0
    %v4282 = vadd.f32 0.0, %v4281
    %v4283 = vpop.f32.mrb[0].mxu0
    %4284 = vmatprep.mubr.bf16.mxu0 0
    %4285 = vmatmul.mubr.bf16.gmra.mrb[0].mxu0 %v4130
    %v4286 = vpop.f32.mrb[0].mxu0
    %v4287 = vadd.f32 0.0, %v4286
    %v4288 = vpop.f32.mrb[0].mxu0
    %v4289 = vpop.f32.mrb[0].mxu0
    %v4290 = vadd.f32 0.0, %v4289
    %v4291 = vpop.f32.mrb[0].mxu0
    %4292 = vmatprep.mubr.bf16.mxu0 0
    %4293 = vmatmul.mubr.bf16.gmra.mrb[0].mxu0 %v4133
    %v4294 = vpop.f32.mrb[0].mxu0
    %v4295 = vadd.f32 0.0, %v4294
    %v4296 = vpop.f32.mrb[0].mxu0
    %v4297 = vpop.f32.mrb[0].mxu0
    %v4298 = vadd.f32 0.0, %v4297
    %v4299 = vpop.f32.mrb[0].mxu0
    %4300 = vmatprep.mubr.bf16.mxu0 0
    %4301 = vmatmul.mubr.bf16.gmra.mrb[0].mxu0 %v4136
    %v4302 = vpop.f32.mrb[0].mxu0
    %v4303 = vadd.f32 0.0, %v4302
    %v4304 = vpop.f32.mrb[0].mxu0
    %v4305 = vpop.f32.mrb[0].mxu0
    %v4306 = vadd.f32 0.0, %v4305
    %v4307 = vpop.f32.mrb[0].mxu0
    %4308 = vmatprep.mubr.bf16.mxu0 0
    %4309 = vmatmul.mubr.bf16.gmra.mrb[0].mxu0 %v4139
    %v4310 = vpop.f32.mrb[0].mxu0
    %v4311 = vadd.f32 0.0, %v4310
    %v4312 = vpop.f32.mrb[0].mxu0
    %v4313 = vpop.f32.mrb[0].mxu0
    %v4314 = vadd.f32 0.0, %v4313
    %v4315 = vpop.f32.mrb[0].mxu0
    %4316 = vmatprep.mubr.bf16.mxu0 0
    %4317 = vmatmul.mubr.bf16.gmra.mrb[0].mxu0 %v4142
    %v4318 = vpop.f32.mrb[0].mxu0
    %v4319 = vadd.f32 0.0, %v4318
    %v4320 = vpop.f32.mrb[0].mxu0
    %v4321 = vpop.f32.mrb[0].mxu0
    %v4322 = vadd.f32 0.0, %v4321
    %v4323 = vpop.f32.mrb[0].mxu0
    %4324 = vmatprep.mubr.bf16.mxu0 0
    %4325 = vmatmul.mubr.bf16.gmra.mrb[0].mxu0 %v4145
    %v4326 = vpop.f32.mrb[0].mxu0
    %v4327 = vadd.f32 0.0, %v4326
    %v4328 = vpop.f32.mrb[0].mxu0
    %v4329 = vpop.f32.mrb[0].mxu0
    %v4330 = vadd.f32 0.0, %v4329
    %v4331 = vpop.f32.mrb[0].mxu0
    %4332 = vmatprep.mubr.bf16.mxu0 0
    %4333 = vmatmul.mubr.bf16.gmra.mrb[0].mxu0 %v4148
    %v4334 = vpop.f32.mrb[0].mxu0
    %v4335 = vadd.f32 0.0, %v4334
    %v4336 = vpop.f32.mrb[0].mxu0
    %v4337 = vpop.f32.mrb[0].mxu0
    %v4338 = vadd.f32 0.0, %v4337
    %v4339 = vpop.f32.mrb[0].mxu0
    %4340 = vmatprep.mubr.bf16.mxu0 0
    %4341 = vmatmul.mubr.bf16.gmra.mrb[0].mxu0 %v4151
    %v4342 = vpop.f32.mrb[0].mxu0
    %v4343 = vadd.f32 0.0, %v4342
    %v4344 = vpop.f32.mrb[0].mxu0
    %v4345 = vpop.f32.mrb[0].mxu0
    %v4346 = vadd.f32 0.0, %v4345
    %v4347 = vpop.f32.mrb[0].mxu0
    %4348 = vmatprep.mubr.bf16.mxu0 0
    %4349 = vmatmul.mubr.bf16.gmra.mrb[0].mxu0 %v4154
    %v4350 = vpop.f32.mrb[0].mxu0
    %v4351 = vadd.f32 0.0, %v4350
    %v4352 = vpop.f32.mrb[0].mxu0
    %v4353 = vpop.f32.mrb[0].mxu0
    %v4354 = vadd.f32 0.0, %v4353
    %v4355 = vpop.f32.mrb[0].mxu0
    %4356 = vmatprep.mubr.bf16.mxu0 0
    %4357 = vmatmul.mubr.bf16.gmra.mrb[0].mxu0 %v4157
    %v4358 = vpop.f32.mrb[0].mxu0
    %v4359 = vadd.f32 0.0, %v4358
    %v4360 = vpop.f32.mrb[0].mxu0
    %v4361 = vpop.f32.mrb[0].mxu0
    %v4362 = vadd.f32 0.0, %v4361
    %v4363 = vpop.f32.mrb[0].mxu0
    %4364 = vmatprep.mubr.bf16.mxu0 0
    %4365 = vmatmul.mubr.bf16.gmra.mrb[0].mxu0 %v4160
    %v4366 = vpop.f32.mrb[0].mxu0
    %v4367 = vadd.f32 0.0, %v4366
    %v4368 = vpop.f32.mrb[0].mxu0
    %v4369 = vpop.f32.mrb[0].mxu0
    %v4370 = vadd.f32 0.0, %v4369
    %v4371 = vpop.f32.mrb[0].mxu0
    %4372 = vmatprep.mubr.bf16.mxu0 0
    %4373 = vmatmul.mubr.bf16.gmra.mrb[0].mxu0 %v4163
    %v4374 = vpop.f32.mrb[0].mxu0
    %v4375 = vadd.f32 0.0, %v4374
    %v4376 = vpop.f32.mrb[0].mxu0
    %v4377 = vpop.f32.mrb[0].mxu0
    %v4378 = vadd.f32 0.0, %v4377
    %v4379 = vpop.f32.mrb[0].mxu0
    %4380 = vmatprep.mubr.bf16.mxu0 0
    %4381 = vmatmul.mubr.bf16.gmra.mrb[0].mxu0 %v4166
    %v4382 = vpop.f32.mrb[0].mxu0
    %v4383 = vadd.f32 0.0, %v4382
    %v4384 = vpop.f32.mrb[0].mxu0
    %v4385 = vpop.f32.mrb[0].mxu0
    %v4386 = vadd.f32 0.0, %v4385
    %v4387 = vpop.f32.mrb[0].mxu0
    %4388 = vmatprep.mubr.bf16.mxu0 0
    %4389 = vmatmul.mubr.bf16.gmra.mrb[0].mxu0 %v4169
    %v4390 = vpop.f32.mrb[0].mxu0
    %v4391 = vpop.f32.mrb[0].mxu0
    %v4392 = vpop.f32.mrb[0].mxu0
    %v4393 = vpop.f32.mrb[0].mxu0
    %4394 = vmatprep.mubr.bf16.mxu0 0
    %4395 = vmatmul.mubr.bf16.gmra.mrb[0].mxu0 %v4172
    %v4396 = vpop.f32.mrb[0].mxu0
    %v4397 = vpop.f32.mrb[0].mxu0
    %v4398 = vpop.f32.mrb[0].mxu0
    %v4399 = vpop.f32.mrb[0].mxu0
    %4400 = vmatprep.mubr.bf16.mxu0 0
    %4401 = vmatmul.mubr.bf16.gmra.mrb[0].mxu0 %v4175
    %v4402 = vpop.f32.mrb[0].mxu0
    %v4403 = vadd.f32 0.0, %v4402
    %v4404 = vpop.f32.mrb[0].mxu0
    %v4405 = vpop.f32.mrb[0].mxu0
    %v4406 = vadd.f32 0.0, %v4405
    %v4407 = vpop.f32.mrb[0].mxu0
    %4408 = vmatprep.mubr.bf16.mxu0 0
    %4409 = vmatmul.mubr.bf16.gmra.mrb[0].mxu0 %v4178
    %v4410 = vpop.f32.mrb[0].mxu0
    %v4411 = vadd.f32 0.0, %v4410
    %v4412 = vpop.f32.mrb[0].mxu0
    %v4413 = vpop.f32.mrb[0].mxu0
    %v4414 = vadd.f32 0.0, %v4413
    %v4415 = vpop.f32.mrb[0].mxu0
    %4416 = vmatprep.mubr.bf16.mxu0 0
    %4417 = vmatmul.mubr.bf16.gmra.mrb[0].mxu0 %v4181
    %v4418 = vpop.f32.mrb[0].mxu0
    %v4419 = vadd.f32 0.0, %v4418
    %v4420 = vpop.f32.mrb[0].mxu0
    %v4421 = vpop.f32.mrb[0].mxu0
    %v4422 = vadd.f32 0.0, %v4421
    %v4423 = vpop.f32.mrb[0].mxu0
    %4424 = vmatprep.mubr.bf16.mxu0 0
    %4425 = vmatmul.mubr.bf16.gmra.mrb[0].mxu0 %v4184
    %v4426 = vpop.f32.mrb[0].mxu0
    %v4427 = vadd.f32 0.0, %v4426
    %v4428 = vpop.f32.mrb[0].mxu0
    %v4429 = vpop.f32.mrb[0].mxu0
    %v4430 = vadd.f32 0.0, %v4429
    %v4431 = vpop.f32.mrb[0].mxu0
    %4432 = vmatprep.mubr.bf16.mxu0 0
    %4433 = vmatmul.mubr.bf16.gmra.mrb[0].mxu0 %v4187
    %v4434 = vpop.f32.mrb[0].mxu0
    %v4435 = vadd.f32 0.0, %v4434
    %v4436 = vpop.f32.mrb[0].mxu0
    %v4437 = vpop.f32.mrb[0].mxu0
    %v4438 = vadd.f32 0.0, %v4437
    %v4439 = vpop.f32.mrb[0].mxu0
    %4440 = vmatprep.mubr.bf16.mxu0 0
    %4441 = vmatmul.mubr.bf16.gmra.mrb[0].mxu0 %v4190
    %v4442 = vpop.f32.mrb[0].mxu0
    %v4443 = vadd.f32 0.0, %v4442
    %v4444 = vpop.f32.mrb[0].mxu0
    %v4445 = vpop.f32.mrb[0].mxu0
    %v4446 = vadd.f32 0.0, %v4445
    %v4447 = vpop.f32.mrb[0].mxu0
    %4448 = vmatprep.mubr.bf16.mxu0 0
    %4449 = vmatmul.mubr.bf16.gmra.mrb[0].mxu0 %v4193
    %v4450 = vpop.f32.mrb[0].mxu0
    %v4451 = vadd.f32 0.0, %v4450
    %v4452 = vpop.f32.mrb[0].mxu0
    %v4453 = vpop.f32.mrb[0].mxu0
    %v4454 = vadd.f32 0.0, %v4453
    %v4455 = vpop.f32.mrb[0].mxu0
    %4456 = vmatprep.mubr.bf16.mxu0 0
    %4457 = vmatmul.mubr.bf16.gmra.mrb[0].mxu0 %v4196
    %v4458 = vpop.f32.mrb[0].mxu0
    %v4459 = vadd.f32 0.0, %v4458
    %v4460 = vpop.f32.mrb[0].mxu0
    %v4461 = vpop.f32.mrb[0].mxu0
    %v4462 = vadd.f32 0.0, %v4461
    %v4463 = vpop.f32.mrb[0].mxu0
    %4464 = vmatprep.mubr.bf16.mxu0 0
    %4465 = vmatmul.mubr.bf16.gmra.mrb[0].mxu0 %v4199
    %v4466 = vpop.f32.mrb[0].mxu0
    %v4467 = vadd.f32 0.0, %v4466
    %v4468 = vpop.f32.mrb[0].mxu0
    %v4469 = vpop.f32.mrb[0].mxu0
    %v4470 = vadd.f32 0.0, %v4469
    %v4471 = vpop.f32.mrb[0].mxu0
    %4472 = vmatprep.mubr.bf16.mxu0 0
    %4473 = vmatmul.mubr.bf16.gmra.mrb[0].mxu0 %v4202
    %v4474 = vpop.f32.mrb[0].mxu0
    %v4475 = vadd.f32 0.0, %v4474
    %v4476 = vpop.f32.mrb[0].mxu0
    %v4477 = vpop.f32.mrb[0].mxu0
    %v4478 = vadd.f32 0.0, %v4477
    %v4479 = vpop.f32.mrb[0].mxu0
    %4480 = vmatprep.mubr.bf16.mxu0 0
    %4481 = vmatmul.mubr.bf16.gmra.mrb[0].mxu0 %v4205
    %v4482 = vpop.f32.mrb[0].mxu0
    %v4483 = vadd.f32 0.0, %v4482
    %v4484 = vpop.f32.mrb[0].mxu0
    %v4485 = vpop.f32.mrb[0].mxu0
    %v4486 = vadd.f32 0.0, %v4485
    %v4487 = vpop.f32.mrb[0].mxu0
    %4488 = vmatprep.mubr.bf16.mxu0 0
    %4489 = vmatmul.mubr.bf16.gmra.mrb[0].mxu0 %v4208
    %v4490 = vpop.f32.mrb[0].mxu0
    %v4491 = vadd.f32 0.0, %v4490
    %v4492 = vpop.f32.mrb[0].mxu0
    %v4493 = vpop.f32.mrb[0].mxu0
    %v4494 = vadd.f32 0.0, %v4493
    %v4495 = vpop.f32.mrb[0].mxu0
    %4496 = vmatprep.mubr.bf16.mxu0 0
    %4497 = vmatmul.mubr.bf16.gmra.mrb[0].mxu0 %v4211
    %v4498 = vpop.f32.mrb[0].mxu0
    %v4499 = vadd.f32 0.0, %v4498
    %v4500 = vpop.f32.mrb[0].mxu0
    %v4501 = vpop.f32.mrb[0].mxu0
    %v4502 = vadd.f32 0.0, %v4501
    %v4503 = vpop.f32.mrb[0].mxu0
    %4504 = vmatprep.mubr.bf16.mxu0 0
    %4505 = vmatmul.mubr.bf16.gmra.mrb[0].mxu0 %v4214
    %v4506 = vpop.f32.mrb[0].mxu0
    %v4507 = vadd.f32 0.0, %v4506
    %v4508 = vpop.f32.mrb[0].mxu0
    %v4509 = vpop.f32.mrb[0].mxu0
    %v4510 = vadd.f32 0.0, %v4509
    %v4511 = vpop.f32.mrb[0].mxu0
    %4512 = vmatprep.mubr.bf16.mxu0 0
    %4513 = vmatmul.mubr.bf16.gmra.mrb[0].mxu0 %v4217
    %v4514 = vpop.f32.mrb[0].mxu0
    %v4515 = vadd.f32 0.0, %v4514
    %v4516 = vpop.f32.mrb[0].mxu0
    %v4517 = vpop.f32.mrb[0].mxu0
    %v4518 = vadd.f32 0.0, %v4517
    %v4519 = vpop.f32.mrb[0].mxu0
    %4520 = vmatprep.mubr.bf16.mxu0 0
    %4521 = vmatmul.mubr.bf16.gmra.mrb[0].mxu0 %v4220
    %v4522 = vpop.f32.mrb[0].mxu0
    %v4523 = vadd.f32 0.0, %v4522
    %v4524 = vpop.f32.mrb[0].mxu0
    %v4525 = vpop.f32.mrb[0].mxu0
    %v4526 = vadd.f32 0.0, %v4525
    %v4527 = vpop.f32.mrb[0].mxu0
    %4528 = vmatprep.mubr.bf16.mxu0 0
    %4529 = vmatmul.mubr.bf16.gmra.mrb[0].mxu0 %v4223
    %v4530 = vpop.f32.mrb[0].mxu0
    %v4531 = vpop.f32.mrb[0].mxu0
    %v4532 = vpop.f32.mrb[0].mxu0
    %v4533 = vpop.f32.mrb[0].mxu0
    %4534 = vmatprep.mubr.bf16.mxu0 0
    %4535 = vmatmul.mubr.bf16.gmra.mrb[0].mxu0 %v4226
    %v4536 = vpop.f32.mrb[0].mxu0
    %v4537 = vpop.f32.mrb[0].mxu0
    %v4538 = vpop.f32.mrb[0].mxu0
    %v4539 = vpop.f32.mrb[0].mxu0
    %4540 = vdwg.mxu0
    %v4541 = vadd.f32 %v4263, 0.0
    %v4542 = vadd.f32 %v4266, 0.0
    %v4543 = vadd.f32 %v4271, 0.0
    %v4544 = vadd.f32 %v4274, 0.0
    %v4545 = vadd.f32 %v4279, 0.0
    %v4546 = vadd.f32 %v4282, 0.0
    %v4547 = vadd.f32 %v4287, 0.0
    %v4548 = vadd.f32 %v4290, 0.0
    %v4549 = vadd.f32 %v4295, 0.0
    %v4550 = vadd.f32 %v4298, 0.0
    %v4551 = vadd.f32 %v4303, 0.0
    %v4552 = vadd.f32 %v4306, 0.0
    %v4553 = vadd.f32 %v4311, 0.0
    %v4554 = vadd.f32 %v4314, 0.0
    %v4555 = vadd.f32 %v4319, 0.0
    %v4556 = vadd.f32 %v4322, 0.0
    %v4557 = vadd.f32 %v4327, 0.0
    %v4558 = vadd.f32 %v4330, 0.0
    %v4559 = vadd.f32 %v4335, 0.0
    %v4560 = vadd.f32 %v4338, 0.0
    %v4561 = vadd.f32 %v4343, 0.0
    %v4562 = vadd.f32 %v4346, 0.0
    %v4563 = vadd.f32 %v4351, 0.0
    %v4564 = vadd.f32 %v4354, 0.0
    %v4565 = vadd.f32 %v4359, 0.0
    %v4566 = vadd.f32 %v4362, 0.0
    %v4567 = vadd.f32 %v4367, 0.0
    %v4568 = vadd.f32 %v4370, 0.0
    %v4569 = vadd.f32 %v4375, 0.0
    %v4570 = vadd.f32 %v4378, 0.0
    %v4571 = vadd.f32 %v4383, 0.0
    %v4572 = vadd.f32 %v4386, 0.0
    %v4573 = vadd.f32 %v4403, 0.0
    %v4574 = vadd.f32 %v4406, 0.0
    %v4575 = vadd.f32 %v4411, 0.0
    %v4576 = vadd.f32 %v4414, 0.0
    %v4577 = vadd.f32 %v4419, 0.0
    %v4578 = vadd.f32 %v4422, 0.0
    %v4579 = vadd.f32 %v4427, 0.0
    %v4580 = vadd.f32 %v4430, 0.0
    %v4581 = vadd.f32 %v4435, 0.0
    %v4582 = vadd.f32 %v4438, 0.0
    %v4583 = vadd.f32 %v4443, 0.0
    %v4584 = vadd.f32 %v4446, 0.0
    %v4585 = vadd.f32 %v4451, 0.0
    %v4586 = vadd.f32 %v4454, 0.0
    %v4587 = vadd.f32 %v4459, 0.0
    %v4588 = vadd.f32 %v4462, 0.0
    %v4589 = vadd.f32 %v4467, 0.0
    %v4590 = vadd.f32 %v4470, 0.0
    %v4591 = vadd.f32 %v4475, 0.0
    %v4592 = vadd.f32 %v4478, 0.0
    %v4593 = vadd.f32 %v4483, 0.0
    %v4594 = vadd.f32 %v4486, 0.0
    %v4595 = vadd.f32 %v4491, 0.0
    %v4596 = vadd.f32 %v4494, 0.0
    %v4597 = vadd.f32 %v4499, 0.0
    %v4598 = vadd.f32 %v4502, 0.0
    %v4599 = vadd.f32 %v4507, 0.0
    %v4600 = vadd.f32 %v4510, 0.0
    %v4601 = vadd.f32 %v4515, 0.0
    %v4602 = vadd.f32 %v4518, 0.0
    %v4603 = vadd.f32 %v4523, 0.0
    %v4604 = vadd.f32 %v4526, 0.0
    %s4605 = scalar_lea.vmem %s4, 96
    %v4606 = vld [vmem:[%s4605] sm:$0xf]
    %v4607 = vld [vmem:[%s4605 + $0x4] sm:$0xf]
    %v4608 = vld [vmem:[%s4605 + $0x8] sm:$0xf]
    %v4609 = vld [vmem:[%s4605 + $0xc] sm:$0xf]
    %v4610 = vld [vmem:[%s4605 + $0x10] sm:$0xf]
    %v4611 = vld [vmem:[%s4605 + $0x14] sm:$0xf]
    %v4612 = vld [vmem:[%s4605 + $0x18] sm:$0xf]
    %v4613 = vld [vmem:[%s4605 + $0x1c] sm:$0xf]
    %v4622 = vunpack.c.l.b16 %v4606
    %v4623 = vunpack.c.l.b16 %v4607
    %v4624 = vunpack.c.l.b16 %v4608
    %v4625 = vunpack.c.l.b16 %v4609
    %v4626 = vunpack.c.l.b16 %v4610
    %v4627 = vunpack.c.l.b16 %v4611
    %v4628 = vunpack.c.l.b16 %v4612
    %v4629 = vunpack.c.l.b16 %v4613
    %v4630 = vpack.c.b16 %v4623, %v4622
    %v4631 = vpack.c.b16 %v4625, %v4624
    %v4632 = vpack.c.b16 %v4627, %v4626
    %v4633 = vpack.c.b16 %v4629, %v4628
    %4638 = vmatprep.subr.bf16.mxu0 0
    %4639 = vmatpush1.bf16.msra.mxu0 %v4630
    %4640 = vmatprep.subr.bf16.mxu0 0
    %4641 = vmatpush1.bf16.msra.mxu0 %v4631
    %4642 = vmatprep.subr.bf16.mxu0 0
    %4643 = vmatpush1.bf16.msra.mxu0 %v4632
    %4644 = vmatprep.subr.bf16.mxu0 0
    %4645 = vmatpush1.bf16.msra.mxu0 %v4633
    %4646 = vmatprep.subr.bf16.mxu0 0
    %4647 = vmatpush1.bf16.msra.mxu0 0
    %4648 = vmatprep.subr.bf16.mxu0 0
    %4649 = vmatpush1.bf16.msra.mxu0 0
    %4650 = vmatprep.subr.bf16.mxu0 0
    %4651 = vmatpush1.bf16.msra.mxu0 0
    %4652 = vmatprep.subr.bf16.mxu0 0
    %4653 = vmatpush1.bf16.msra.mxu0 0
    %4654 = vmatprep.subr.bf16.mxu0 0
    %4655 = vmatpush1.bf16.msra.mxu0 0
    %4656 = vmatprep.subr.bf16.mxu0 0
    %4657 = vmatpush1.bf16.msra.mxu0 0
    %4658 = vmatprep.subr.bf16.mxu0 0
    %4659 = vmatpush1.bf16.msra.mxu0 0
    %4660 = vmatprep.subr.bf16.mxu0 0
    %4661 = vmatpush1.bf16.msra.mxu0 0
    %4662 = vmatprep.subr.bf16.mxu0 0
    %4663 = vmatpush1.bf16.msra.mxu0 0
    %4664 = vmatprep.subr.bf16.mxu0 0
    %4665 = vmatpush1.bf16.msra.mxu0 0
    %4666 = vmatprep.subr.bf16.mxu0 0
    %4667 = vmatpush1.bf16.msra.mxu0 0
    %4668 = vmatprep.subr.bf16.mxu0 0
    %4669 = vmatpush1.bf16.msra.mxu0 0
    %4670 = vmatprep.mubr.bf16.mxu0 0
    %4671 = vmatmul.mubr.bf16.gmra.mrb[0].mxu0 %v4121
    %v4672 = vpop.f32.mrb[0].mxu0
    %v4673 = vpop.f32.mrb[0].mxu0
    %v4674 = vpop.f32.mrb[0].mxu0
    %v4675 = vpop.f32.mrb[0].mxu0
    %4676 = vmatprep.mubr.bf16.mxu0 0
    %4677 = vmatmul.mubr.bf16.gmra.mrb[0].mxu0 %v4124
    %v4678 = vpop.f32.mrb[0].mxu0
    %v4679 = vadd.f32 0.0, %v4678
    %v4680 = vpop.f32.mrb[0].mxu0
    %v4681 = vpop.f32.mrb[0].mxu0
    %v4682 = vadd.f32 0.0, %v4681
    %v4683 = vpop.f32.mrb[0].mxu0
    %4684 = vmatprep.mubr.bf16.mxu0 0
    %4685 = vmatmul.mubr.bf16.gmra.mrb[0].mxu0 %v4127
    %v4686 = vpop.f32.mrb[0].mxu0
    %v4687 = vadd.f32 0.0, %v4686
    %v4688 = vpop.f32.mrb[0].mxu0
    %v4689 = vpop.f32.mrb[0].mxu0
    %v4690 = vadd.f32 0.0, %v4689
    %v4691 = vpop.f32.mrb[0].mxu0
    %4692 = vmatprep.mubr.bf16.mxu0 0
    %4693 = vmatmul.mubr.bf16.gmra.mrb[0].mxu0 %v4130
    %v4694 = vpop.f32.mrb[0].mxu0
    %v4695 = vadd.f32 0.0, %v4694
    %v4696 = vpop.f32.mrb[0].mxu0
    %v4697 = vpop.f32.mrb[0].mxu0
    %v4698 = vadd.f32 0.0, %v4697
    %v4699 = vpop.f32.mrb[0].mxu0
    %4700 = vmatprep.mubr.bf16.mxu0 0
    %4701 = vmatmul.mubr.bf16.gmra.mrb[0].mxu0 %v4133
    %v4702 = vpop.f32.mrb[0].mxu0
    %v4703 = vadd.f32 0.0, %v4702
    %v4704 = vpop.f32.mrb[0].mxu0
    %v4705 = vpop.f32.mrb[0].mxu0
    %v4706 = vadd.f32 0.0, %v4705
    %v4707 = vpop.f32.mrb[0].mxu0
    %4708 = vmatprep.mubr.bf16.mxu0 0
    %4709 = vmatmul.mubr.bf16.gmra.mrb[0].mxu0 %v4136
    %v4710 = vpop.f32.mrb[0].mxu0
    %v4711 = vadd.f32 0.0, %v4710
    %v4712 = vpop.f32.mrb[0].mxu0
    %v4713 = vpop.f32.mrb[0].mxu0
    %v4714 = vadd.f32 0.0, %v4713
    %v4715 = vpop.f32.mrb[0].mxu0
    %4716 = vmatprep.mubr.bf16.mxu0 0
    %4717 = vmatmul.mubr.bf16.gmra.mrb[0].mxu0 %v4139
    %v4718 = vpop.f32.mrb[0].mxu0
    %v4719 = vadd.f32 0.0, %v4718
    %v4720 = vpop.f32.mrb[0].mxu0
    %v4721 = vpop.f32.mrb[0].mxu0
    %v4722 = vadd.f32 0.0, %v4721
    %v4723 = vpop.f32.mrb[0].mxu0
    %4724 = vmatprep.mubr.bf16.mxu0 0
    %4725 = vmatmul.mubr.bf16.gmra.mrb[0].mxu0 %v4142
    %v4726 = vpop.f32.mrb[0].mxu0
    %v4727 = vadd.f32 0.0, %v4726
    %v4728 = vpop.f32.mrb[0].mxu0
    %v4729 = vpop.f32.mrb[0].mxu0
    %v4730 = vadd.f32 0.0, %v4729
    %v4731 = vpop.f32.mrb[0].mxu0
    %4732 = vmatprep.mubr.bf16.mxu0 0
    %4733 = vmatmul.mubr.bf16.gmra.mrb[0].mxu0 %v4145
    %v4734 = vpop.f32.mrb[0].mxu0
    %v4735 = vadd.f32 0.0, %v4734
    %v4736 = vpop.f32.mrb[0].mxu0
    %v4737 = vpop.f32.mrb[0].mxu0
    %v4738 = vadd.f32 0.0, %v4737
    %v4739 = vpop.f32.mrb[0].mxu0
    %4740 = vmatprep.mubr.bf16.mxu0 0
    %4741 = vmatmul.mubr.bf16.gmra.mrb[0].mxu0 %v4148
    %v4742 = vpop.f32.mrb[0].mxu0
    %v4743 = vadd.f32 0.0, %v4742
    %v4744 = vpop.f32.mrb[0].mxu0
    %v4745 = vpop.f32.mrb[0].mxu0
    %v4746 = vadd.f32 0.0, %v4745
    %v4747 = vpop.f32.mrb[0].mxu0
    %4748 = vmatprep.mubr.bf16.mxu0 0
    %4749 = vmatmul.mubr.bf16.gmra.mrb[0].mxu0 %v4151
    %v4750 = vpop.f32.mrb[0].mxu0
    %v4751 = vadd.f32 0.0, %v4750
    %v4752 = vpop.f32.mrb[0].mxu0
    %v4753 = vpop.f32.mrb[0].mxu0
    %v4754 = vadd.f32 0.0, %v4753
    %v4755 = vpop.f32.mrb[0].mxu0
    %4756 = vmatprep.mubr.bf16.mxu0 0
    %4757 = vmatmul.mubr.bf16.gmra.mrb[0].mxu0 %v4154
    %v4758 = vpop.f32.mrb[0].mxu0
    %v4759 = vadd.f32 0.0, %v4758
    %v4760 = vpop.f32.mrb[0].mxu0
    %v4761 = vpop.f32.mrb[0].mxu0
    %v4762 = vadd.f32 0.0, %v4761
    %v4763 = vpop.f32.mrb[0].mxu0
    %4764 = vmatprep.mubr.bf16.mxu0 0
    %4765 = vmatmul.mubr.bf16.gmra.mrb[0].mxu0 %v4157
    %v4766 = vpop.f32.mrb[0].mxu0
    %v4767 = vadd.f32 0.0, %v4766
    %v4768 = vpop.f32.mrb[0].mxu0
    %v4769 = vpop.f32.mrb[0].mxu0
    %v4770 = vadd.f32 0.0, %v4769
    %v4771 = vpop.f32.mrb[0].mxu0
    %4772 = vmatprep.mubr.bf16.mxu0 0
    %4773 = vmatmul.mubr.bf16.gmra.mrb[0].mxu0 %v4160
    %v4774 = vpop.f32.mrb[0].mxu0
    %v4775 = vadd.f32 0.0, %v4774
    %v4776 = vpop.f32.mrb[0].mxu0
    %v4777 = vpop.f32.mrb[0].mxu0
    %v4778 = vadd.f32 0.0, %v4777
    %v4779 = vpop.f32.mrb[0].mxu0
    %4780 = vmatprep.mubr.bf16.mxu0 0
    %4781 = vmatmul.mubr.bf16.gmra.mrb[0].mxu0 %v4163
    %v4782 = vpop.f32.mrb[0].mxu0
    %v4783 = vadd.f32 0.0, %v4782
    %v4784 = vpop.f32.mrb[0].mxu0
    %v4785 = vpop.f32.mrb[0].mxu0
    %v4786 = vadd.f32 0.0, %v4785
    %v4787 = vpop.f32.mrb[0].mxu0
    %4788 = vmatprep.mubr.bf16.mxu0 0
    %4789 = vmatmul.mubr.bf16.gmra.mrb[0].mxu0 %v4166
    %v4790 = vpop.f32.mrb[0].mxu0
    %v4791 = vadd.f32 0.0, %v4790
    %v4792 = vpop.f32.mrb[0].mxu0
    %v4793 = vpop.f32.mrb[0].mxu0
    %v4794 = vadd.f32 0.0, %v4793
    %v4795 = vpop.f32.mrb[0].mxu0
    %4796 = vmatprep.mubr.bf16.mxu0 0
    %4797 = vmatmul.mubr.bf16.gmra.mrb[0].mxu0 %v4169
    %v4798 = vpop.f32.mrb[0].mxu0
    %v4799 = vadd.f32 0.0, %v4798
    %v4800 = vpop.f32.mrb[0].mxu0
    %v4801 = vpop.f32.mrb[0].mxu0
    %v4802 = vadd.f32 0.0, %v4801
    %v4803 = vpop.f32.mrb[0].mxu0
    %4804 = vmatprep.mubr.bf16.mxu0 0
    %4805 = vmatmul.mubr.bf16.gmra.mrb[0].mxu0 %v4172
    %v4806 = vpop.f32.mrb[0].mxu0
    %v4807 = vpop.f32.mrb[0].mxu0
    %v4808 = vpop.f32.mrb[0].mxu0
    %v4809 = vpop.f32.mrb[0].mxu0
    %4810 = vmatprep.mubr.bf16.mxu0 0
    %4811 = vmatmul.mubr.bf16.gmra.mrb[0].mxu0 %v4175
    %v4812 = vpop.f32.mrb[0].mxu0
    %v4813 = vpop.f32.mrb[0].mxu0
    %v4814 = vpop.f32.mrb[0].mxu0
    %v4815 = vpop.f32.mrb[0].mxu0
    %4816 = vmatprep.mubr.bf16.mxu0 0
    %4817 = vmatmul.mubr.bf16.gmra.mrb[0].mxu0 %v4178
    %v4818 = vpop.f32.mrb[0].mxu0
    %v4819 = vadd.f32 0.0, %v4818
    %v4820 = vpop.f32.mrb[0].mxu0
    %v4821 = vpop.f32.mrb[0].mxu0
    %v4822 = vadd.f32 0.0, %v4821
    %v4823 = vpop.f32.mrb[0].mxu0
    %4824 = vmatprep.mubr.bf16.mxu0 0
    %4825 = vmatmul.mubr.bf16.gmra.mrb[0].mxu0 %v4181
    %v4826 = vpop.f32.mrb[0].mxu0
    %v4827 = vadd.f32 0.0, %v4826
    %v4828 = vpop.f32.mrb[0].mxu0
    %v4829 = vpop.f32.mrb[0].mxu0
    %v4830 = vadd.f32 0.0, %v4829
    %v4831 = vpop.f32.mrb[0].mxu0
    %4832 = vmatprep.mubr.bf16.mxu0 0
    %4833 = vmatmul.mubr.bf16.gmra.mrb[0].mxu0 %v4184
    %v4834 = vpop.f32.mrb[0].mxu0
    %v4835 = vadd.f32 0.0, %v4834
    %v4836 = vpop.f32.mrb[0].mxu0
    %v4837 = vpop.f32.mrb[0].mxu0
    %v4838 = vadd.f32 0.0, %v4837
    %v4839 = vpop.f32.mrb[0].mxu0
    %4840 = vmatprep.mubr.bf16.mxu0 0
    %4841 = vmatmul.mubr.bf16.gmra.mrb[0].mxu0 %v4187
    %v4842 = vpop.f32.mrb[0].mxu0
    %v4843 = vadd.f32 0.0, %v4842
    %v4844 = vpop.f32.mrb[0].mxu0
    %v4845 = vpop.f32.mrb[0].mxu0
    %v4846 = vadd.f32 0.0, %v4845
    %v4847 = vpop.f32.mrb[0].mxu0
    %4848 = vmatprep.mubr.bf16.mxu0 0
    %4849 = vmatmul.mubr.bf16.gmra.mrb[0].mxu0 %v4190
    %v4850 = vpop.f32.mrb[0].mxu0
    %v4851 = vadd.f32 0.0, %v4850
    %v4852 = vpop.f32.mrb[0].mxu0
    %v4853 = vpop.f32.mrb[0].mxu0
    %v4854 = vadd.f32 0.0, %v4853
    %v4855 = vpop.f32.mrb[0].mxu0
    %4856 = vmatprep.mubr.bf16.mxu0 0
    %4857 = vmatmul.mubr.bf16.gmra.mrb[0].mxu0 %v4193
    %v4858 = vpop.f32.mrb[0].mxu0
    %v4859 = vadd.f32 0.0, %v4858
    %v4860 = vpop.f32.mrb[0].mxu0
    %v4861 = vpop.f32.mrb[0].mxu0
    %v4862 = vadd.f32 0.0, %v4861
    %v4863 = vpop.f32.mrb[0].mxu0
    %4864 = vmatprep.mubr.bf16.mxu0 0
    %4865 = vmatmul.mubr.bf16.gmra.mrb[0].mxu0 %v4196
    %v4866 = vpop.f32.mrb[0].mxu0
    %v4867 = vadd.f32 0.0, %v4866
    %v4868 = vpop.f32.mrb[0].mxu0
    %v4869 = vpop.f32.mrb[0].mxu0
    %v4870 = vadd.f32 0.0, %v4869
    %v4871 = vpop.f32.mrb[0].mxu0
    %4872 = vmatprep.mubr.bf16.mxu0 0
    %4873 = vmatmul.mubr.bf16.gmra.mrb[0].mxu0 %v4199
    %v4874 = vpop.f32.mrb[0].mxu0
    %v4875 = vadd.f32 0.0, %v4874
    %v4876 = vpop.f32.mrb[0].mxu0
    %v4877 = vpop.f32.mrb[0].mxu0
    %v4878 = vadd.f32 0.0, %v4877
    %v4879 = vpop.f32.mrb[0].mxu0
    %4880 = vmatprep.mubr.bf16.mxu0 0
    %4881 = vmatmul.mubr.bf16.gmra.mrb[0].mxu0 %v4202
    %v4882 = vpop.f32.mrb[0].mxu0
    %v4883 = vadd.f32 0.0, %v4882
    %v4884 = vpop.f32.mrb[0].mxu0
    %v4885 = vpop.f32.mrb[0].mxu0
    %v4886 = vadd.f32 0.0, %v4885
    %v4887 = vpop.f32.mrb[0].mxu0
    %4888 = vmatprep.mubr.bf16.mxu0 0
    %4889 = vmatmul.mubr.bf16.gmra.mrb[0].mxu0 %v4205
    %v4890 = vpop.f32.mrb[0].mxu0
    %v4891 = vadd.f32 0.0, %v4890
    %v4892 = vpop.f32.mrb[0].mxu0
    %v4893 = vpop.f32.mrb[0].mxu0
    %v4894 = vadd.f32 0.0, %v4893
    %v4895 = vpop.f32.mrb[0].mxu0
    %4896 = vmatprep.mubr.bf16.mxu0 0
    %4897 = vmatmul.mubr.bf16.gmra.mrb[0].mxu0 %v4208
    %v4898 = vpop.f32.mrb[0].mxu0
    %v4899 = vadd.f32 0.0, %v4898
    %v4900 = vpop.f32.mrb[0].mxu0
    %v4901 = vpop.f32.mrb[0].mxu0
    %v4902 = vadd.f32 0.0, %v4901
    %v4903 = vpop.f32.mrb[0].mxu0
    %4904 = vmatprep.mubr.bf16.mxu0 0
    %4905 = vmatmul.mubr.bf16.gmra.mrb[0].mxu0 %v4211
    %v4906 = vpop.f32.mrb[0].mxu0
    %v4907 = vadd.f32 0.0, %v4906
    %v4908 = vpop.f32.mrb[0].mxu0
    %v4909 = vpop.f32.mrb[0].mxu0
    %v4910 = vadd.f32 0.0, %v4909
    %v4911 = vpop.f32.mrb[0].mxu0
    %4912 = vmatprep.mubr.bf16.mxu0 0
    %4913 = vmatmul.mubr.bf16.gmra.mrb[0].mxu0 %v4214
    %v4914 = vpop.f32.mrb[0].mxu0
    %v4915 = vadd.f32 0.0, %v4914
    %v4916 = vpop.f32.mrb[0].mxu0
    %v4917 = vpop.f32.mrb[0].mxu0
    %v4918 = vadd.f32 0.0, %v4917
    %v4919 = vpop.f32.mrb[0].mxu0
    %4920 = vmatprep.mubr.bf16.mxu0 0
    %4921 = vmatmul.mubr.bf16.gmra.mrb[0].mxu0 %v4217
    %v4922 = vpop.f32.mrb[0].mxu0
    %v4923 = vadd.f32 0.0, %v4922
    %v4924 = vpop.f32.mrb[0].mxu0
    %v4925 = vpop.f32.mrb[0].mxu0
    %v4926 = vadd.f32 0.0, %v4925
    %v4927 = vpop.f32.mrb[0].mxu0
    %4928 = vmatprep.mubr.bf16.mxu0 0
    %4929 = vmatmul.mubr.bf16.gmra.mrb[0].mxu0 %v4220
    %v4930 = vpop.f32.mrb[0].mxu0
    %v4931 = vadd.f32 0.0, %v4930
    %v4932 = vpop.f32.mrb[0].mxu0
    %v4933 = vpop.f32.mrb[0].mxu0
    %v4934 = vadd.f32 0.0, %v4933
    %v4935 = vpop.f32.mrb[0].mxu0
    %4936 = vmatprep.mubr.bf16.mxu0 0
    %4937 = vmatmul.mubr.bf16.gmra.mrb[0].mxu0 %v4223
    %v4938 = vpop.f32.mrb[0].mxu0
    %v4939 = vadd.f32 0.0, %v4938
    %v4940 = vpop.f32.mrb[0].mxu0
    %v4941 = vpop.f32.mrb[0].mxu0
    %v4942 = vadd.f32 0.0, %v4941
    %v4943 = vpop.f32.mrb[0].mxu0
    %4944 = vmatprep.mubr.bf16.mxu0 0
    %4945 = vmatmul.mubr.bf16.gmra.mrb[0].mxu0 %v4226
    %v4946 = vpop.f32.mrb[0].mxu0
    %v4947 = vpop.f32.mrb[0].mxu0
    %v4948 = vpop.f32.mrb[0].mxu0
    %v4949 = vpop.f32.mrb[0].mxu0
    %4950 = vdwg.mxu0
    %v4951 = vadd.f32 %v4541, %v4679
    %v4952 = vadd.f32 %v4542, %v4682
    %v4953 = vadd.f32 %v4543, %v4687
    %v4954 = vadd.f32 %v4544, %v4690
    %v4955 = vadd.f32 %v4545, %v4695
    %v4956 = vadd.f32 %v4546, %v4698
    %v4957 = vadd.f32 %v4547, %v4703
    %v4958 = vadd.f32 %v4548, %v4706
    %v4959 = vadd.f32 %v4549, %v4711
    %v4960 = vadd.f32 %v4550, %v4714
    %v4961 = vadd.f32 %v4551, %v4719
    %v4962 = vadd.f32 %v4552, %v4722
    %v4963 = vadd.f32 %v4553, %v4727
    %v4964 = vadd.f32 %v4554, %v4730
    %v4965 = vadd.f32 %v4555, %v4735
    %v4966 = vadd.f32 %v4556, %v4738
    %v4967 = vadd.f32 %v4557, %v4743
    %v4968 = vadd.f32 %v4558, %v4746
    %v4969 = vadd.f32 %v4559, %v4751
    %v4970 = vadd.f32 %v4560, %v4754
    %v4971 = vadd.f32 %v4561, %v4759
    %v4972 = vadd.f32 %v4562, %v4762
    %v4973 = vadd.f32 %v4563, %v4767
    %v4974 = vadd.f32 %v4564, %v4770
    %v4975 = vadd.f32 %v4565, %v4775
    %v4976 = vadd.f32 %v4566, %v4778
    %v4977 = vadd.f32 %v4567, %v4783
    %v4978 = vadd.f32 %v4568, %v4786
    %v4979 = vadd.f32 %v4569, %v4791
    %v4980 = vadd.f32 %v4570, %v4794
    %v4981 = vadd.f32 %v4571, %v4799
    %v4982 = vadd.f32 %v4572, %v4802
    %v4983 = vadd.f32 %v4573, %v4819
    %v4984 = vadd.f32 %v4574, %v4822
    %v4985 = vadd.f32 %v4575, %v4827
    %v4986 = vadd.f32 %v4576, %v4830
    %v4987 = vadd.f32 %v4577, %v4835
    %v4988 = vadd.f32 %v4578, %v4838
    %v4989 = vadd.f32 %v4579, %v4843
    %v4990 = vadd.f32 %v4580, %v4846
    %v4991 = vadd.f32 %v4581, %v4851
    %v4992 = vadd.f32 %v4582, %v4854
    %v4993 = vadd.f32 %v4583, %v4859
    %v4994 = vadd.f32 %v4584, %v4862
    %v4995 = vadd.f32 %v4585, %v4867
    %v4996 = vadd.f32 %v4586, %v4870
    %v4997 = vadd.f32 %v4587, %v4875
    %v4998 = vadd.f32 %v4588, %v4878
    %v4999 = vadd.f32 %v4589, %v4883
    %v5000 = vadd.f32 %v4590, %v4886
    %v5001 = vadd.f32 %v4591, %v4891
    %v5002 = vadd.f32 %v4592, %v4894
    %v5003 = vadd.f32 %v4593, %v4899
    %v5004 = vadd.f32 %v4594, %v4902
    %v5005 = vadd.f32 %v4595, %v4907
    %v5006 = vadd.f32 %v4596, %v4910
    %v5007 = vadd.f32 %v4597, %v4915
    %v5008 = vadd.f32 %v4598, %v4918
    %v5009 = vadd.f32 %v4599, %v4923
    %v5010 = vadd.f32 %v4600, %v4926
    %v5011 = vadd.f32 %v4601, %v4931
    %v5012 = vadd.f32 %v4602, %v4934
    %v5013 = vadd.f32 %v4603, %v4939
    %v5014 = vadd.f32 %v4604, %v4942
    %s5015 = scalar_lea.vmem %s4, 192
    %v5016 = vld [vmem:[%s5015] sm:$0xf]
    %v5017 = vld [vmem:[%s5015 + $0x4] sm:$0xf]
    %v5018 = vld [vmem:[%s5015 + $0x8] sm:$0xf]
    %v5019 = vld [vmem:[%s5015 + $0xc] sm:$0xf]
    %v5020 = vld [vmem:[%s5015 + $0x10] sm:$0xf]
    %v5021 = vld [vmem:[%s5015 + $0x14] sm:$0xf]
    %v5022 = vld [vmem:[%s5015 + $0x18] sm:$0xf]
    %v5023 = vld [vmem:[%s5015 + $0x1c] sm:$0xf]
    %v5032 = vunpack.c.l.b16 %v5016
    %v5033 = vunpack.c.l.b16 %v5017
    %v5034 = vunpack.c.l.b16 %v5018
    %v5035 = vunpack.c.l.b16 %v5019
    %v5036 = vunpack.c.l.b16 %v5020
    %v5037 = vunpack.c.l.b16 %v5021
    %v5038 = vunpack.c.l.b16 %v5022
    %v5039 = vunpack.c.l.b16 %v5023
    %v5040 = vpack.c.b16 %v5033, %v5032
    %v5041 = vpack.c.b16 %v5035, %v5034
    %v5042 = vpack.c.b16 %v5037, %v5036
    %v5043 = vpack.c.b16 %v5039, %v5038
    %5048 = vmatprep.subr.bf16.mxu0 0
    %5049 = vmatpush1.bf16.msra.mxu0 %v5040
    %5050 = vmatprep.subr.bf16.mxu0 0
    %5051 = vmatpush1.bf16.msra.mxu0 %v5041
    %5052 = vmatprep.subr.bf16.mxu0 0
    %5053 = vmatpush1.bf16.msra.mxu0 %v5042
    %5054 = vmatprep.subr.bf16.mxu0 0
    %5055 = vmatpush1.bf16.msra.mxu0 %v5043
    %5056 = vmatprep.subr.bf16.mxu0 0
    %5057 = vmatpush1.bf16.msra.mxu0 0
    %5058 = vmatprep.subr.bf16.mxu0 0
    %5059 = vmatpush1.bf16.msra.mxu0 0
    %5060 = vmatprep.subr.bf16.mxu0 0
    %5061 = vmatpush1.bf16.msra.mxu0 0
    %5062 = vmatprep.subr.bf16.mxu0 0
    %5063 = vmatpush1.bf16.msra.mxu0 0
    %5064 = vmatprep.subr.bf16.mxu0 0
    %5065 = vmatpush1.bf16.msra.mxu0 0
    %5066 = vmatprep.subr.bf16.mxu0 0
    %5067 = vmatpush1.bf16.msra.mxu0 0
    %5068 = vmatprep.subr.bf16.mxu0 0
    %5069 = vmatpush1.bf16.msra.mxu0 0
    %5070 = vmatprep.subr.bf16.mxu0 0
    %5071 = vmatpush1.bf16.msra.mxu0 0
    %5072 = vmatprep.subr.bf16.mxu0 0
    %5073 = vmatpush1.bf16.msra.mxu0 0
    %5074 = vmatprep.subr.bf16.mxu0 0
    %5075 = vmatpush1.bf16.msra.mxu0 0
    %5076 = vmatprep.subr.bf16.mxu0 0
    %5077 = vmatpush1.bf16.msra.mxu0 0
    %5078 = vmatprep.subr.bf16.mxu0 0
    %5079 = vmatpush1.bf16.msra.mxu0 0
    %5080 = vmatprep.mubr.bf16.mxu0 0
    %5081 = vmatmul.mubr.bf16.gmra.mrb[0].mxu0 %v4121
    %v5082 = vpop.f32.mrb[0].mxu0
    %v5083 = vpop.f32.mrb[0].mxu0
    %v5084 = vpop.f32.mrb[0].mxu0
    %v5085 = vpop.f32.mrb[0].mxu0
    %5086 = vmatprep.mubr.bf16.mxu0 0
    %5087 = vmatmul.mubr.bf16.gmra.mrb[0].mxu0 %v4124
    %v5088 = vpop.f32.mrb[0].mxu0
    %v5089 = vpop.f32.mrb[0].mxu0
    %v5090 = vpop.f32.mrb[0].mxu0
    %v5091 = vpop.f32.mrb[0].mxu0
    %5092 = vmatprep.mubr.bf16.mxu0 0
    %5093 = vmatmul.mubr.bf16.gmra.mrb[0].mxu0 %v4127
    %v5094 = vpop.f32.mrb[0].mxu0
    %v5095 = vadd.f32 0.0, %v5094
    %v5096 = vpop.f32.mrb[0].mxu0
    %v5097 = vpop.f32.mrb[0].mxu0
    %v5098 = vadd.f32 0.0, %v5097
    %v5099 = vpop.f32.mrb[0].mxu0
    %5100 = vmatprep.mubr.bf16.mxu0 0
    %5101 = vmatmul.mubr.bf16.gmra.mrb[0].mxu0 %v4130
    %v5102 = vpop.f32.mrb[0].mxu0
    %v5103 = vadd.f32 0.0, %v5102
    %v5104 = vpop.f32.mrb[0].mxu0
    %v5105 = vpop.f32.mrb[0].mxu0
    %v5106 = vadd.f32 0.0, %v5105
    %v5107 = vpop.f32.mrb[0].mxu0
    %5108 = vmatprep.mubr.bf16.mxu0 0
    %5109 = vmatmul.mubr.bf16.gmra.mrb[0].mxu0 %v4133
    %v5110 = vpop.f32.mrb[0].mxu0
    %v5111 = vadd.f32 0.0, %v5110
    %v5112 = vpop.f32.mrb[0].mxu0
    %v5113 = vpop.f32.mrb[0].mxu0
    %v5114 = vadd.f32 0.0, %v5113
    %v5115 = vpop.f32.mrb[0].mxu0
    %5116 = vmatprep.mubr.bf16.mxu0 0
    %5117 = vmatmul.mubr.bf16.gmra.mrb[0].mxu0 %v4136
    %v5118 = vpop.f32.mrb[0].mxu0
    %v5119 = vadd.f32 0.0, %v5118
    %v5120 = vpop.f32.mrb[0].mxu0
    %v5121 = vpop.f32.mrb[0].mxu0
    %v5122 = vadd.f32 0.0, %v5121
    %v5123 = vpop.f32.mrb[0].mxu0
    %5124 = vmatprep.mubr.bf16.mxu0 0
    %5125 = vmatmul.mubr.bf16.gmra.mrb[0].mxu0 %v4139
    %v5126 = vpop.f32.mrb[0].mxu0
    %v5127 = vadd.f32 0.0, %v5126
    %v5128 = vpop.f32.mrb[0].mxu0
    %v5129 = vpop.f32.mrb[0].mxu0
    %v5130 = vadd.f32 0.0, %v5129
    %v5131 = vpop.f32.mrb[0].mxu0
    %5132 = vmatprep.mubr.bf16.mxu0 0
    %5133 = vmatmul.mubr.bf16.gmra.mrb[0].mxu0 %v4142
    %v5134 = vpop.f32.mrb[0].mxu0
    %v5135 = vadd.f32 0.0, %v5134
    %v5136 = vpop.f32.mrb[0].mxu0
    %v5137 = vpop.f32.mrb[0].mxu0
    %v5138 = vadd.f32 0.0, %v5137
    %v5139 = vpop.f32.mrb[0].mxu0
    %5140 = vmatprep.mubr.bf16.mxu0 0
    %5141 = vmatmul.mubr.bf16.gmra.mrb[0].mxu0 %v4145
    %v5142 = vpop.f32.mrb[0].mxu0
    %v5143 = vadd.f32 0.0, %v5142
    %v5144 = vpop.f32.mrb[0].mxu0
    %v5145 = vpop.f32.mrb[0].mxu0
    %v5146 = vadd.f32 0.0, %v5145
    %v5147 = vpop.f32.mrb[0].mxu0
    %5148 = vmatprep.mubr.bf16.mxu0 0
    %5149 = vmatmul.mubr.bf16.gmra.mrb[0].mxu0 %v4148
    %v5150 = vpop.f32.mrb[0].mxu0
    %v5151 = vadd.f32 0.0, %v5150
    %v5152 = vpop.f32.mrb[0].mxu0
    %v5153 = vpop.f32.mrb[0].mxu0
    %v5154 = vadd.f32 0.0, %v5153
    %v5155 = vpop.f32.mrb[0].mxu0
    %5156 = vmatprep.mubr.bf16.mxu0 0
    %5157 = vmatmul.mubr.bf16.gmra.mrb[0].mxu0 %v4151
    %v5158 = vpop.f32.mrb[0].mxu0
    %v5159 = vadd.f32 0.0, %v5158
    %v5160 = vpop.f32.mrb[0].mxu0
    %v5161 = vpop.f32.mrb[0].mxu0
    %v5162 = vadd.f32 0.0, %v5161
    %v5163 = vpop.f32.mrb[0].mxu0
    %5164 = vmatprep.mubr.bf16.mxu0 0
    %5165 = vmatmul.mubr.bf16.gmra.mrb[0].mxu0 %v4154
    %v5166 = vpop.f32.mrb[0].mxu0
    %v5167 = vadd.f32 0.0, %v5166
    %v5168 = vpop.f32.mrb[0].mxu0
    %v5169 = vpop.f32.mrb[0].mxu0
    %v5170 = vadd.f32 0.0, %v5169
    %v5171 = vpop.f32.mrb[0].mxu0
    %5172 = vmatprep.mubr.bf16.mxu0 0
    %5173 = vmatmul.mubr.bf16.gmra.mrb[0].mxu0 %v4157
    %v5174 = vpop.f32.mrb[0].mxu0
    %v5175 = vadd.f32 0.0, %v5174
    %v5176 = vpop.f32.mrb[0].mxu0
    %v5177 = vpop.f32.mrb[0].mxu0
    %v5178 = vadd.f32 0.0, %v5177
    %v5179 = vpop.f32.mrb[0].mxu0
    %5180 = vmatprep.mubr.bf16.mxu0 0
    %5181 = vmatmul.mubr.bf16.gmra.mrb[0].mxu0 %v4160
    %v5182 = vpop.f32.mrb[0].mxu0
    %v5183 = vadd.f32 0.0, %v5182
    %v5184 = vpop.f32.mrb[0].mxu0
    %v5185 = vpop.f32.mrb[0].mxu0
    %v5186 = vadd.f32 0.0, %v5185
    %v5187 = vpop.f32.mrb[0].mxu0
    %5188 = vmatprep.mubr.bf16.mxu0 0
    %5189 = vmatmul.mubr.bf16.gmra.mrb[0].mxu0 %v4163
    %v5190 = vpop.f32.mrb[0].mxu0
    %v5191 = vadd.f32 0.0, %v5190
    %v5192 = vpop.f32.mrb[0].mxu0
    %v5193 = vpop.f32.mrb[0].mxu0
    %v5194 = vadd.f32 0.0, %v5193
    %v5195 = vpop.f32.mrb[0].mxu0
    %5196 = vmatprep.mubr.bf16.mxu0 0
    %5197 = vmatmul.mubr.bf16.gmra.mrb[0].mxu0 %v4166
    %v5198 = vpop.f32.mrb[0].mxu0
    %v5199 = vadd.f32 0.0, %v5198
    %v5200 = vpop.f32.mrb[0].mxu0
    %v5201 = vpop.f32.mrb[0].mxu0
    %v5202 = vadd.f32 0.0, %v5201
    %v5203 = vpop.f32.mrb[0].mxu0
    %5204 = vmatprep.mubr.bf16.mxu0 0
    %5205 = vmatmul.mubr.bf16.gmra.mrb[0].mxu0 %v4169
    %v5206 = vpop.f32.mrb[0].mxu0
    %v5207 = vadd.f32 0.0, %v5206
    %v5208 = vpop.f32.mrb[0].mxu0
    %v5209 = vpop.f32.mrb[0].mxu0
    %v5210 = vadd.f32 0.0, %v5209
    %v5211 = vpop.f32.mrb[0].mxu0
    %5212 = vmatprep.mubr.bf16.mxu0 0
    %5213 = vmatmul.mubr.bf16.gmra.mrb[0].mxu0 %v4172
    %v5214 = vpop.f32.mrb[0].mxu0
    %v5215 = vadd.f32 0.0, %v5214
    %v5216 = vpop.f32.mrb[0].mxu0
    %v5217 = vpop.f32.mrb[0].mxu0
    %v5218 = vadd.f32 0.0, %v5217
    %v5219 = vpop.f32.mrb[0].mxu0
    %5220 = vmatprep.mubr.bf16.mxu0 0
    %5221 = vmatmul.mubr.bf16.gmra.mrb[0].mxu0 %v4175
    %v5222 = vpop.f32.mrb[0].mxu0
    %v5223 = vpop.f32.mrb[0].mxu0
    %v5224 = vpop.f32.mrb[0].mxu0
    %v5225 = vpop.f32.mrb[0].mxu0
    %5226 = vmatprep.mubr.bf16.mxu0 0
    %5227 = vmatmul.mubr.bf16.gmra.mrb[0].mxu0 %v4178
    %v5228 = vpop.f32.mrb[0].mxu0
    %v5229 = vpop.f32.mrb[0].mxu0
    %v5230 = vpop.f32.mrb[0].mxu0
    %v5231 = vpop.f32.mrb[0].mxu0
    %5232 = vmatprep.mubr.bf16.mxu0 0
    %5233 = vmatmul.mubr.bf16.gmra.mrb[0].mxu0 %v4181
    %v5234 = vpop.f32.mrb[0].mxu0
    %v5235 = vadd.f32 0.0, %v5234
    %v5236 = vpop.f32.mrb[0].mxu0
    %v5237 = vpop.f32.mrb[0].mxu0
    %v5238 = vadd.f32 0.0, %v5237
    %v5239 = vpop.f32.mrb[0].mxu0
    %5240 = vmatprep.mubr.bf16.mxu0 0
    %5241 = vmatmul.mubr.bf16.gmra.mrb[0].mxu0 %v4184
    %v5242 = vpop.f32.mrb[0].mxu0
    %v5243 = vadd.f32 0.0, %v5242
    %v5244 = vpop.f32.mrb[0].mxu0
    %v5245 = vpop.f32.mrb[0].mxu0
    %v5246 = vadd.f32 0.0, %v5245
    %v5247 = vpop.f32.mrb[0].mxu0
    %5248 = vmatprep.mubr.bf16.mxu0 0
    %5249 = vmatmul.mubr.bf16.gmra.mrb[0].mxu0 %v4187
    %v5250 = vpop.f32.mrb[0].mxu0
    %v5251 = vadd.f32 0.0, %v5250
    %v5252 = vpop.f32.mrb[0].mxu0
    %v5253 = vpop.f32.mrb[0].mxu0
    %v5254 = vadd.f32 0.0, %v5253
    %v5255 = vpop.f32.mrb[0].mxu0
    %5256 = vmatprep.mubr.bf16.mxu0 0
    %5257 = vmatmul.mubr.bf16.gmra.mrb[0].mxu0 %v4190
    %v5258 = vpop.f32.mrb[0].mxu0
    %v5259 = vadd.f32 0.0, %v5258
    %v5260 = vpop.f32.mrb[0].mxu0
    %v5261 = vpop.f32.mrb[0].mxu0
    %v5262 = vadd.f32 0.0, %v5261
    %v5263 = vpop.f32.mrb[0].mxu0
    %5264 = vmatprep.mubr.bf16.mxu0 0
    %5265 = vmatmul.mubr.bf16.gmra.mrb[0].mxu0 %v4193
    %v5266 = vpop.f32.mrb[0].mxu0
    %v5267 = vadd.f32 0.0, %v5266
    %v5268 = vpop.f32.mrb[0].mxu0
    %v5269 = vpop.f32.mrb[0].mxu0
    %v5270 = vadd.f32 0.0, %v5269
    %v5271 = vpop.f32.mrb[0].mxu0
    %5272 = vmatprep.mubr.bf16.mxu0 0
    %5273 = vmatmul.mubr.bf16.gmra.mrb[0].mxu0 %v4196
    %v5274 = vpop.f32.mrb[0].mxu0
    %v5275 = vadd.f32 0.0, %v5274
    %v5276 = vpop.f32.mrb[0].mxu0
    %v5277 = vpop.f32.mrb[0].mxu0
    %v5278 = vadd.f32 0.0, %v5277
    %v5279 = vpop.f32.mrb[0].mxu0
    %5280 = vmatprep.mubr.bf16.mxu0 0
    %5281 = vmatmul.mubr.bf16.gmra.mrb[0].mxu0 %v4199
    %v5282 = vpop.f32.mrb[0].mxu0
    %v5283 = vadd.f32 0.0, %v5282
    %v5284 = vpop.f32.mrb[0].mxu0
    %v5285 = vpop.f32.mrb[0].mxu0
    %v5286 = vadd.f32 0.0, %v5285
    %v5287 = vpop.f32.mrb[0].mxu0
    %5288 = vmatprep.mubr.bf16.mxu0 0
    %5289 = vmatmul.mubr.bf16.gmra.mrb[0].mxu0 %v4202
    %v5290 = vpop.f32.mrb[0].mxu0
    %v5291 = vadd.f32 0.0, %v5290
    %v5292 = vpop.f32.mrb[0].mxu0
    %v5293 = vpop.f32.mrb[0].mxu0
    %v5294 = vadd.f32 0.0, %v5293
    %v5295 = vpop.f32.mrb[0].mxu0
    %5296 = vmatprep.mubr.bf16.mxu0 0
    %5297 = vmatmul.mubr.bf16.gmra.mrb[0].mxu0 %v4205
    %v5298 = vpop.f32.mrb[0].mxu0
    %v5299 = vadd.f32 0.0, %v5298
    %v5300 = vpop.f32.mrb[0].mxu0
    %v5301 = vpop.f32.mrb[0].mxu0
    %v5302 = vadd.f32 0.0, %v5301
    %v5303 = vpop.f32.mrb[0].mxu0
    %5304 = vmatprep.mubr.bf16.mxu0 0
    %5305 = vmatmul.mubr.bf16.gmra.mrb[0].mxu0 %v4208
    %v5306 = vpop.f32.mrb[0].mxu0
    %v5307 = vadd.f32 0.0, %v5306
    %v5308 = vpop.f32.mrb[0].mxu0
    %v5309 = vpop.f32.mrb[0].mxu0
    %v5310 = vadd.f32 0.0, %v5309
    %v5311 = vpop.f32.mrb[0].mxu0
    %5312 = vmatprep.mubr.bf16.mxu0 0
    %5313 = vmatmul.mubr.bf16.gmra.mrb[0].mxu0 %v4211
    %v5314 = vpop.f32.mrb[0].mxu0
    %v5315 = vadd.f32 0.0, %v5314
    %v5316 = vpop.f32.mrb[0].mxu0
    %v5317 = vpop.f32.mrb[0].mxu0
    %v5318 = vadd.f32 0.0, %v5317
    %v5319 = vpop.f32.mrb[0].mxu0
    %5320 = vmatprep.mubr.bf16.mxu0 0
    %5321 = vmatmul.mubr.bf16.gmra.mrb[0].mxu0 %v4214
    %v5322 = vpop.f32.mrb[0].mxu0
    %v5323 = vadd.f32 0.0, %v5322
    %v5324 = vpop.f32.mrb[0].mxu0
    %v5325 = vpop.f32.mrb[0].mxu0
    %v5326 = vadd.f32 0.0, %v5325
    %v5327 = vpop.f32.mrb[0].mxu0
    %5328 = vmatprep.mubr.bf16.mxu0 0
    %5329 = vmatmul.mubr.bf16.gmra.mrb[0].mxu0 %v4217
    %v5330 = vpop.f32.mrb[0].mxu0
    %v5331 = vadd.f32 0.0, %v5330
    %v5332 = vpop.f32.mrb[0].mxu0
    %v5333 = vpop.f32.mrb[0].mxu0
    %v5334 = vadd.f32 0.0, %v5333
    %v5335 = vpop.f32.mrb[0].mxu0
    %5336 = vmatprep.mubr.bf16.mxu0 0
    %5337 = vmatmul.mubr.bf16.gmra.mrb[0].mxu0 %v4220
    %v5338 = vpop.f32.mrb[0].mxu0
    %v5339 = vadd.f32 0.0, %v5338
    %v5340 = vpop.f32.mrb[0].mxu0
    %v5341 = vpop.f32.mrb[0].mxu0
    %v5342 = vadd.f32 0.0, %v5341
    %v5343 = vpop.f32.mrb[0].mxu0
    %5344 = vmatprep.mubr.bf16.mxu0 0
    %5345 = vmatmul.mubr.bf16.gmra.mrb[0].mxu0 %v4223
    %v5346 = vpop.f32.mrb[0].mxu0
    %v5347 = vadd.f32 0.0, %v5346
    %v5348 = vpop.f32.mrb[0].mxu0
    %v5349 = vpop.f32.mrb[0].mxu0
    %v5350 = vadd.f32 0.0, %v5349
    %v5351 = vpop.f32.mrb[0].mxu0
    %5352 = vmatprep.mubr.bf16.mxu0 0
    %5353 = vmatmul.mubr.bf16.gmra.mrb[0].mxu0 %v4226
    %v5354 = vpop.f32.mrb[0].mxu0
    %v5355 = vadd.f32 0.0, %v5354
    %v5356 = vpop.f32.mrb[0].mxu0
    %v5357 = vpop.f32.mrb[0].mxu0
    %v5358 = vadd.f32 0.0, %v5357
    %v5359 = vpop.f32.mrb[0].mxu0
    %5360 = vdwg.mxu0
    %v5361 = vadd.f32 %v4951, %v5095
    %v5362 = vadd.f32 %v4952, %v5098
    %v5363 = vadd.f32 %v4953, %v5103
    %v5364 = vadd.f32 %v4954, %v5106
    %v5365 = vadd.f32 %v4955, %v5111
    %v5366 = vadd.f32 %v4956, %v5114
    %v5367 = vadd.f32 %v4957, %v5119
    %v5368 = vadd.f32 %v4958, %v5122
    %v5369 = vadd.f32 %v4959, %v5127
    %v5370 = vadd.f32 %v4960, %v5130
    %v5371 = vadd.f32 %v4961, %v5135
    %v5372 = vadd.f32 %v4962, %v5138
    %v5373 = vadd.f32 %v4963, %v5143
    %v5374 = vadd.f32 %v4964, %v5146
    %v5375 = vadd.f32 %v4965, %v5151
    %v5376 = vadd.f32 %v4966, %v5154
    %v5377 = vadd.f32 %v4967, %v5159
    %v5378 = vadd.f32 %v4968, %v5162
    %v5379 = vadd.f32 %v4969, %v5167
    %v5380 = vadd.f32 %v4970, %v5170
    %v5381 = vadd.f32 %v4971, %v5175
    %v5382 = vadd.f32 %v4972, %v5178
    %v5383 = vadd.f32 %v4973, %v5183
    %v5384 = vadd.f32 %v4974, %v5186
    %v5385 = vadd.f32 %v4975, %v5191
    %v5386 = vadd.f32 %v4976, %v5194
    %v5387 = vadd.f32 %v4977, %v5199
    %v5388 = vadd.f32 %v4978, %v5202
    %v5389 = vadd.f32 %v4979, %v5207
    %v5390 = vadd.f32 %v4980, %v5210
    %v5391 = vadd.f32 %v4981, %v5215
    %v5392 = vadd.f32 %v4982, %v5218
    %v5393 = vadd.f32 %v4983, %v5235
    %v5394 = vadd.f32 %v4984, %v5238
    %v5395 = vadd.f32 %v4985, %v5243
    %v5396 = vadd.f32 %v4986, %v5246
    %v5397 = vadd.f32 %v4987, %v5251
    %v5398 = vadd.f32 %v4988, %v5254
    %v5399 = vadd.f32 %v4989, %v5259
    %v5400 = vadd.f32 %v4990, %v5262
    %v5401 = vadd.f32 %v4991, %v5267
    %v5402 = vadd.f32 %v4992, %v5270
    %v5403 = vadd.f32 %v4993, %v5275
    %v5404 = vadd.f32 %v4994, %v5278
    %v5405 = vadd.f32 %v4995, %v5283
    %v5406 = vadd.f32 %v4996, %v5286
    %v5407 = vadd.f32 %v4997, %v5291
    %v5408 = vadd.f32 %v4998, %v5294
    %v5409 = vadd.f32 %v4999, %v5299
    %v5410 = vadd.f32 %v5000, %v5302
    %v5411 = vadd.f32 %v5001, %v5307
    %v5412 = vadd.f32 %v5002, %v5310
    %v5413 = vadd.f32 %v5003, %v5315
    %v5414 = vadd.f32 %v5004, %v5318
    %v5415 = vadd.f32 %v5005, %v5323
    %v5416 = vadd.f32 %v5006, %v5326
    %v5417 = vadd.f32 %v5007, %v5331
    %v5418 = vadd.f32 %v5008, %v5334
    %v5419 = vadd.f32 %v5009, %v5339
    %v5420 = vadd.f32 %v5010, %v5342
    %v5421 = vadd.f32 %v5011, %v5347
    %v5422 = vadd.f32 %v5012, %v5350
    %v5423 = vadd.f32 %v5013, %v5355
    %v5424 = vadd.f32 %v5014, %v5358
    %s5425 = scalar_lea.vmem [#allocation3], 288
    %v5426 = vld [vmem:[%s5425] sm:$0xff]
    %v5427 = vld [vmem:[%s5425 + $0x8] sm:$0xff]
    %v5428 = vld [vmem:[%s5425 + $0x10] sm:$0xff]
    %v5429 = vld [vmem:[%s5425 + $0x18] sm:$0xff]
    %v5430 = vld [vmem:[%s5425 + $0x20] sm:$0xff]
    %v5431 = vld [vmem:[%s5425 + $0x28] sm:$0xff]
    %v5432 = vld [vmem:[%s5425 + $0x30] sm:$0xff]
    %v5433 = vld [vmem:[%s5425 + $0x38] sm:$0xff]
    %v5434 = vld [vmem:[%s5425 + $0x40] sm:$0xff]
    %v5435 = vld [vmem:[%s5425 + $0x48] sm:$0xff]
    %v5436 = vld [vmem:[%s5425 + $0x50] sm:$0xff]
    %v5437 = vld [vmem:[%s5425 + $0x58] sm:$0xff]
    %v5438 = vld [vmem:[%s5425 + $0x60] sm:$0xff]
    %v5439 = vld [vmem:[%s5425 + $0x68] sm:$0xff]
    %v5440 = vld [vmem:[%s5425 + $0x70] sm:$0xff]
    %v5441 = vld [vmem:[%s5425 + $0x78] sm:$0xff]
    %v5442 = vld [vmem:[%s5425 + $0x80] sm:$0xff]
    %v5443 = vld [vmem:[%s5425 + $0x88] sm:$0xff]
    %v5444 = vld [vmem:[%s5425 + $0x90] sm:$0xff]
    %v5445 = vld [vmem:[%s5425 + $0x98] sm:$0xff]
    %v5446 = vld [vmem:[%s5425 + $0xa0] sm:$0xff]
    %v5447 = vld [vmem:[%s5425 + $0xa8] sm:$0xff]
    %v5448 = vld [vmem:[%s5425 + $0xb0] sm:$0xff]
    %v5449 = vld [vmem:[%s5425 + $0xb8] sm:$0xff]
    %v5450 = vld [vmem:[%s5425 + $0xc0] sm:$0xff]
    %v5451 = vld [vmem:[%s5425 + $0xc8] sm:$0xff]
    %v5452 = vld [vmem:[%s5425 + $0xd0] sm:$0xff]
    %v5453 = vld [vmem:[%s5425 + $0xd8] sm:$0xff]
    %v5454 = vld [vmem:[%s5425 + $0xe0] sm:$0xff]
    %v5455 = vld [vmem:[%s5425 + $0xe8] sm:$0xff]
    %v5456 = vld [vmem:[%s5425 + $0xf0] sm:$0xff]
    %v5457 = vld [vmem:[%s5425 + $0xf8] sm:$0xff]
    %v5458 = vld [vmem:[%s5425 + $0x100] sm:$0xff]
    %v5459 = vld [vmem:[%s5425 + $0x108] sm:$0xff]
    %v5460 = vld [vmem:[%s5425 + $0x110] sm:$0xff]
    %v5461 = vld [vmem:[%s5425 + $0x118] sm:$0xff]
    %s5462 = scalar_lea.vmem %s4, 32
    %v5463 = vld [vmem:[%s5462] sm:$0xf]
    %v5464 = vld [vmem:[%s5462 + $0x4] sm:$0xf]
    %v5465 = vld [vmem:[%s5462 + $0x8] sm:$0xf]
    %v5466 = vld [vmem:[%s5462 + $0xc] sm:$0xf]
    %v5467 = vld [vmem:[%s5462 + $0x10] sm:$0xf]
    %v5468 = vld [vmem:[%s5462 + $0x14] sm:$0xf]
    %v5469 = vld [vmem:[%s5462 + $0x18] sm:$0xf]
    %v5470 = vld [vmem:[%s5462 + $0x1c] sm:$0xf]
    %v5479 = vunpack.c.l.b16 %v5463
    %v5480 = vunpack.c.l.b16 %v5464
    %v5481 = vunpack.c.l.b16 %v5465
    %v5482 = vunpack.c.l.b16 %v5466
    %v5483 = vunpack.c.l.b16 %v5467
    %v5484 = vunpack.c.l.b16 %v5468
    %v5485 = vunpack.c.l.b16 %v5469
    %v5486 = vunpack.c.l.b16 %v5470
    %v5487 = vpack.c.b16 %v5480, %v5479
    %v5488 = vpack.c.b16 %v5482, %v5481
    %v5489 = vpack.c.b16 %v5484, %v5483
    %v5490 = vpack.c.b16 %v5486, %v5485
    %v5496 = vsel %vm4119, %v5426, 0
    %v5499 = vsel %vm4119, %v5427, 0
    %v5502 = vsel %vm4119, %v5428, 0
    %v5505 = vsel %vm4119, %v5429, 0
    %v5508 = vsel %vm4119, %v5430, 0
    %v5511 = vsel %vm4119, %v5431, 0
    %v5514 = vsel %vm4119, %v5432, 0
    %v5517 = vsel %vm4119, %v5433, 0
    %v5520 = vsel %vm4119, %v5434, 0
    %v5523 = vsel %vm4119, %v5435, 0
    %v5526 = vsel %vm4119, %v5436, 0
    %v5529 = vsel %vm4119, %v5437, 0
    %v5532 = vsel %vm4119, %v5438, 0
    %v5535 = vsel %vm4119, %v5439, 0
    %v5538 = vsel %vm4119, %v5440, 0
    %v5541 = vsel %vm4119, %v5441, 0
    %v5544 = vsel %vm4119, %v5442, 0
    %v5547 = vsel %vm4119, %v5443, 0
    %v5550 = vsel %vm4119, %v5444, 0
    %v5553 = vsel %vm4119, %v5445, 0
    %v5556 = vsel %vm4119, %v5446, 0
    %v5559 = vsel %vm4119, %v5447, 0
    %v5562 = vsel %vm4119, %v5448, 0
    %v5565 = vsel %vm4119, %v5449, 0
    %v5568 = vsel %vm4119, %v5450, 0
    %v5571 = vsel %vm4119, %v5451, 0
    %v5574 = vsel %vm4119, %v5452, 0
    %v5577 = vsel %vm4119, %v5453, 0
    %v5580 = vsel %vm4119, %v5454, 0
    %v5583 = vsel %vm4119, %v5455, 0
    %v5586 = vsel %vm4119, %v5456, 0
    %v5589 = vsel %vm4119, %v5457, 0
    %v5592 = vsel %vm4119, %v5458, 0
    %v5595 = vsel %vm4119, %v5459, 0
    %v5598 = vsel %vm4119, %v5460, 0
    %v5601 = vsel %vm4119, %v5461, 0
    %5603 = vmatprep.subr.bf16.mxu0 0
    %5604 = vmatpush1.bf16.msra.mxu0 %v5487
    %5605 = vmatprep.subr.bf16.mxu0 0
    %5606 = vmatpush1.bf16.msra.mxu0 %v5488
    %5607 = vmatprep.subr.bf16.mxu0 0
    %5608 = vmatpush1.bf16.msra.mxu0 %v5489
    %5609 = vmatprep.subr.bf16.mxu0 0
    %5610 = vmatpush1.bf16.msra.mxu0 %v5490
    %5611 = vmatprep.subr.bf16.mxu0 0
    %5612 = vmatpush1.bf16.msra.mxu0 0
    %5613 = vmatprep.subr.bf16.mxu0 0
    %5614 = vmatpush1.bf16.msra.mxu0 0
    %5615 = vmatprep.subr.bf16.mxu0 0
    %5616 = vmatpush1.bf16.msra.mxu0 0
    %5617 = vmatprep.subr.bf16.mxu0 0
    %5618 = vmatpush1.bf16.msra.mxu0 0
    %5619 = vmatprep.subr.bf16.mxu0 0
    %5620 = vmatpush1.bf16.msra.mxu0 0
    %5621 = vmatprep.subr.bf16.mxu0 0
    %5622 = vmatpush1.bf16.msra.mxu0 0
    %5623 = vmatprep.subr.bf16.mxu0 0
    %5624 = vmatpush1.bf16.msra.mxu0 0
    %5625 = vmatprep.subr.bf16.mxu0 0
    %5626 = vmatpush1.bf16.msra.mxu0 0
    %5627 = vmatprep.subr.bf16.mxu0 0
    %5628 = vmatpush1.bf16.msra.mxu0 0
    %5629 = vmatprep.subr.bf16.mxu0 0
    %5630 = vmatpush1.bf16.msra.mxu0 0
    %5631 = vmatprep.subr.bf16.mxu0 0
    %5632 = vmatpush1.bf16.msra.mxu0 0
    %5633 = vmatprep.subr.bf16.mxu0 0
    %5634 = vmatpush1.bf16.msra.mxu0 0
    %5635 = vmatprep.mubr.bf16.mxu0 0
    %5636 = vmatmul.mubr.bf16.gmra.mrb[0].mxu0 %v5496
    %v5637 = vpop.f32.mrb[0].mxu0
    %v5638 = vadd.f32 0.0, %v5637
    %v5639 = vpop.f32.mrb[0].mxu0
    %v5640 = vpop.f32.mrb[0].mxu0
    %v5641 = vadd.f32 0.0, %v5640
    %v5642 = vpop.f32.mrb[0].mxu0
    %5643 = vmatprep.mubr.bf16.mxu0 0
    %5644 = vmatmul.mubr.bf16.gmra.mrb[0].mxu0 %v5499
    %v5645 = vpop.f32.mrb[0].mxu0
    %v5646 = vadd.f32 0.0, %v5645
    %v5647 = vpop.f32.mrb[0].mxu0
    %v5648 = vpop.f32.mrb[0].mxu0
    %v5649 = vadd.f32 0.0, %v5648
    %v5650 = vpop.f32.mrb[0].mxu0
    %5651 = vmatprep.mubr.bf16.mxu0 0
    %5652 = vmatmul.mubr.bf16.gmra.mrb[0].mxu0 %v5502
    %v5653 = vpop.f32.mrb[0].mxu0
    %v5654 = vadd.f32 0.0, %v5653
    %v5655 = vpop.f32.mrb[0].mxu0
    %v5656 = vpop.f32.mrb[0].mxu0
    %v5657 = vadd.f32 0.0, %v5656
    %v5658 = vpop.f32.mrb[0].mxu0
    %5659 = vmatprep.mubr.bf16.mxu0 0
    %5660 = vmatmul.mubr.bf16.gmra.mrb[0].mxu0 %v5505
    %v5661 = vpop.f32.mrb[0].mxu0
    %v5662 = vadd.f32 0.0, %v5661
    %v5663 = vpop.f32.mrb[0].mxu0
    %v5664 = vpop.f32.mrb[0].mxu0
    %v5665 = vadd.f32 0.0, %v5664
    %v5666 = vpop.f32.mrb[0].mxu0
    %5667 = vmatprep.mubr.bf16.mxu0 0
    %5668 = vmatmul.mubr.bf16.gmra.mrb[0].mxu0 %v5508
    %v5669 = vpop.f32.mrb[0].mxu0
    %v5670 = vadd.f32 0.0, %v5669
    %v5671 = vpop.f32.mrb[0].mxu0
    %v5672 = vpop.f32.mrb[0].mxu0
    %v5673 = vadd.f32 0.0, %v5672
    %v5674 = vpop.f32.mrb[0].mxu0
    %5675 = vmatprep.mubr.bf16.mxu0 0
    %5676 = vmatmul.mubr.bf16.gmra.mrb[0].mxu0 %v5511
    %v5677 = vpop.f32.mrb[0].mxu0
    %v5678 = vadd.f32 0.0, %v5677
    %v5679 = vpop.f32.mrb[0].mxu0
    %v5680 = vpop.f32.mrb[0].mxu0
    %v5681 = vadd.f32 0.0, %v5680
    %v5682 = vpop.f32.mrb[0].mxu0
    %5683 = vmatprep.mubr.bf16.mxu0 0
    %5684 = vmatmul.mubr.bf16.gmra.mrb[0].mxu0 %v5514
    %v5685 = vpop.f32.mrb[0].mxu0
    %v5686 = vadd.f32 0.0, %v5685
    %v5687 = vpop.f32.mrb[0].mxu0
    %v5688 = vpop.f32.mrb[0].mxu0
    %v5689 = vadd.f32 0.0, %v5688
    %v5690 = vpop.f32.mrb[0].mxu0
    %5691 = vmatprep.mubr.bf16.mxu0 0
    %5692 = vmatmul.mubr.bf16.gmra.mrb[0].mxu0 %v5517
    %v5693 = vpop.f32.mrb[0].mxu0
    %v5694 = vadd.f32 0.0, %v5693
    %v5695 = vpop.f32.mrb[0].mxu0
    %v5696 = vpop.f32.mrb[0].mxu0
    %v5697 = vadd.f32 0.0, %v5696
    %v5698 = vpop.f32.mrb[0].mxu0
    %5699 = vmatprep.mubr.bf16.mxu0 0
    %5700 = vmatmul.mubr.bf16.gmra.mrb[0].mxu0 %v5520
    %v5701 = vpop.f32.mrb[0].mxu0
    %v5702 = vadd.f32 0.0, %v5701
    %v5703 = vpop.f32.mrb[0].mxu0
    %v5704 = vpop.f32.mrb[0].mxu0
    %v5705 = vadd.f32 0.0, %v5704
    %v5706 = vpop.f32.mrb[0].mxu0
    %5707 = vmatprep.mubr.bf16.mxu0 0
    %5708 = vmatmul.mubr.bf16.gmra.mrb[0].mxu0 %v5523
    %v5709 = vpop.f32.mrb[0].mxu0
    %v5710 = vadd.f32 0.0, %v5709
    %v5711 = vpop.f32.mrb[0].mxu0
    %v5712 = vpop.f32.mrb[0].mxu0
    %v5713 = vadd.f32 0.0, %v5712
    %v5714 = vpop.f32.mrb[0].mxu0
    %5715 = vmatprep.mubr.bf16.mxu0 0
    %5716 = vmatmul.mubr.bf16.gmra.mrb[0].mxu0 %v5526
    %v5717 = vpop.f32.mrb[0].mxu0
    %v5718 = vadd.f32 0.0, %v5717
    %v5719 = vpop.f32.mrb[0].mxu0
    %v5720 = vpop.f32.mrb[0].mxu0
    %v5721 = vadd.f32 0.0, %v5720
    %v5722 = vpop.f32.mrb[0].mxu0
    %5723 = vmatprep.mubr.bf16.mxu0 0
    %5724 = vmatmul.mubr.bf16.gmra.mrb[0].mxu0 %v5529
    %v5725 = vpop.f32.mrb[0].mxu0
    %v5726 = vadd.f32 0.0, %v5725
    %v5727 = vpop.f32.mrb[0].mxu0
    %v5728 = vpop.f32.mrb[0].mxu0
    %v5729 = vadd.f32 0.0, %v5728
    %v5730 = vpop.f32.mrb[0].mxu0
    %5731 = vmatprep.mubr.bf16.mxu0 0
    %5732 = vmatmul.mubr.bf16.gmra.mrb[0].mxu0 %v5532
    %v5733 = vpop.f32.mrb[0].mxu0
    %v5734 = vadd.f32 0.0, %v5733
    %v5735 = vpop.f32.mrb[0].mxu0
    %v5736 = vpop.f32.mrb[0].mxu0
    %v5737 = vadd.f32 0.0, %v5736
    %v5738 = vpop.f32.mrb[0].mxu0
    %5739 = vmatprep.mubr.bf16.mxu0 0
    %5740 = vmatmul.mubr.bf16.gmra.mrb[0].mxu0 %v5535
    %v5741 = vpop.f32.mrb[0].mxu0
    %v5742 = vadd.f32 0.0, %v5741
    %v5743 = vpop.f32.mrb[0].mxu0
    %v5744 = vpop.f32.mrb[0].mxu0
    %v5745 = vadd.f32 0.0, %v5744
    %v5746 = vpop.f32.mrb[0].mxu0
    %5747 = vmatprep.mubr.bf16.mxu0 0
    %5748 = vmatmul.mubr.bf16.gmra.mrb[0].mxu0 %v5538
    %v5749 = vpop.f32.mrb[0].mxu0
    %v5750 = vadd.f32 0.0, %v5749
    %v5751 = vpop.f32.mrb[0].mxu0
    %v5752 = vpop.f32.mrb[0].mxu0
    %v5753 = vadd.f32 0.0, %v5752
    %v5754 = vpop.f32.mrb[0].mxu0
    %5755 = vmatprep.mubr.bf16.mxu0 0
    %5756 = vmatmul.mubr.bf16.gmra.mrb[0].mxu0 %v5541
    %v5757 = vpop.f32.mrb[0].mxu0
    %v5758 = vadd.f32 0.0, %v5757
    %v5759 = vpop.f32.mrb[0].mxu0
    %v5760 = vpop.f32.mrb[0].mxu0
    %v5761 = vadd.f32 0.0, %v5760
    %v5762 = vpop.f32.mrb[0].mxu0
    %5763 = vmatprep.mubr.bf16.mxu0 0
    %5764 = vmatmul.mubr.bf16.gmra.mrb[0].mxu0 %v5544
    %v5765 = vpop.f32.mrb[0].mxu0
    %v5766 = vpop.f32.mrb[0].mxu0
    %v5767 = vpop.f32.mrb[0].mxu0
    %v5768 = vpop.f32.mrb[0].mxu0
    %5769 = vmatprep.mubr.bf16.mxu0 0
    %5770 = vmatmul.mubr.bf16.gmra.mrb[0].mxu0 %v5547
    %v5771 = vpop.f32.mrb[0].mxu0
    %v5772 = vpop.f32.mrb[0].mxu0
    %v5773 = vpop.f32.mrb[0].mxu0
    %v5774 = vpop.f32.mrb[0].mxu0
    %5775 = vmatprep.mubr.bf16.mxu0 0
    %5776 = vmatmul.mubr.bf16.gmra.mrb[0].mxu0 %v5550
    %v5777 = vpop.f32.mrb[0].mxu0
    %v5778 = vadd.f32 0.0, %v5777
    %v5779 = vpop.f32.mrb[0].mxu0
    %v5780 = vpop.f32.mrb[0].mxu0
    %v5781 = vadd.f32 0.0, %v5780
    %v5782 = vpop.f32.mrb[0].mxu0
    %5783 = vmatprep.mubr.bf16.mxu0 0
    %5784 = vmatmul.mubr.bf16.gmra.mrb[0].mxu0 %v5553
    %v5785 = vpop.f32.mrb[0].mxu0
    %v5786 = vadd.f32 0.0, %v5785
    %v5787 = vpop.f32.mrb[0].mxu0
    %v5788 = vpop.f32.mrb[0].mxu0
    %v5789 = vadd.f32 0.0, %v5788
    %v5790 = vpop.f32.mrb[0].mxu0
    %5791 = vmatprep.mubr.bf16.mxu0 0
    %5792 = vmatmul.mubr.bf16.gmra.mrb[0].mxu0 %v5556
    %v5793 = vpop.f32.mrb[0].mxu0
    %v5794 = vadd.f32 0.0, %v5793
    %v5795 = vpop.f32.mrb[0].mxu0
    %v5796 = vpop.f32.mrb[0].mxu0
    %v5797 = vadd.f32 0.0, %v5796
    %v5798 = vpop.f32.mrb[0].mxu0
    %5799 = vmatprep.mubr.bf16.mxu0 0
    %5800 = vmatmul.mubr.bf16.gmra.mrb[0].mxu0 %v5559
    %v5801 = vpop.f32.mrb[0].mxu0
    %v5802 = vadd.f32 0.0, %v5801
    %v5803 = vpop.f32.mrb[0].mxu0
    %v5804 = vpop.f32.mrb[0].mxu0
    %v5805 = vadd.f32 0.0, %v5804
    %v5806 = vpop.f32.mrb[0].mxu0
    %5807 = vmatprep.mubr.bf16.mxu0 0
    %5808 = vmatmul.mubr.bf16.gmra.mrb[0].mxu0 %v5562
    %v5809 = vpop.f32.mrb[0].mxu0
    %v5810 = vadd.f32 0.0, %v5809
    %v5811 = vpop.f32.mrb[0].mxu0
    %v5812 = vpop.f32.mrb[0].mxu0
    %v5813 = vadd.f32 0.0, %v5812
    %v5814 = vpop.f32.mrb[0].mxu0
    %5815 = vmatprep.mubr.bf16.mxu0 0
    %5816 = vmatmul.mubr.bf16.gmra.mrb[0].mxu0 %v5565
    %v5817 = vpop.f32.mrb[0].mxu0
    %v5818 = vadd.f32 0.0, %v5817
    %v5819 = vpop.f32.mrb[0].mxu0
    %v5820 = vpop.f32.mrb[0].mxu0
    %v5821 = vadd.f32 0.0, %v5820
    %v5822 = vpop.f32.mrb[0].mxu0
    %5823 = vmatprep.mubr.bf16.mxu0 0
    %5824 = vmatmul.mubr.bf16.gmra.mrb[0].mxu0 %v5568
    %v5825 = vpop.f32.mrb[0].mxu0
    %v5826 = vadd.f32 0.0, %v5825
    %v5827 = vpop.f32.mrb[0].mxu0
    %v5828 = vpop.f32.mrb[0].mxu0
    %v5829 = vadd.f32 0.0, %v5828
    %v5830 = vpop.f32.mrb[0].mxu0
    %5831 = vmatprep.mubr.bf16.mxu0 0
    %5832 = vmatmul.mubr.bf16.gmra.mrb[0].mxu0 %v5571
    %v5833 = vpop.f32.mrb[0].mxu0
    %v5834 = vadd.f32 0.0, %v5833
    %v5835 = vpop.f32.mrb[0].mxu0
    %v5836 = vpop.f32.mrb[0].mxu0
    %v5837 = vadd.f32 0.0, %v5836
    %v5838 = vpop.f32.mrb[0].mxu0
    %5839 = vmatprep.mubr.bf16.mxu0 0
    %5840 = vmatmul.mubr.bf16.gmra.mrb[0].mxu0 %v5574
    %v5841 = vpop.f32.mrb[0].mxu0
    %v5842 = vadd.f32 0.0, %v5841
    %v5843 = vpop.f32.mrb[0].mxu0
    %v5844 = vpop.f32.mrb[0].mxu0
    %v5845 = vadd.f32 0.0, %v5844
    %v5846 = vpop.f32.mrb[0].mxu0
    %5847 = vmatprep.mubr.bf16.mxu0 0
    %5848 = vmatmul.mubr.bf16.gmra.mrb[0].mxu0 %v5577
    %v5849 = vpop.f32.mrb[0].mxu0
    %v5850 = vadd.f32 0.0, %v5849
    %v5851 = vpop.f32.mrb[0].mxu0
    %v5852 = vpop.f32.mrb[0].mxu0
    %v5853 = vadd.f32 0.0, %v5852
    %v5854 = vpop.f32.mrb[0].mxu0
    %5855 = vmatprep.mubr.bf16.mxu0 0
    %5856 = vmatmul.mubr.bf16.gmra.mrb[0].mxu0 %v5580
    %v5857 = vpop.f32.mrb[0].mxu0
    %v5858 = vadd.f32 0.0, %v5857
    %v5859 = vpop.f32.mrb[0].mxu0
    %v5860 = vpop.f32.mrb[0].mxu0
    %v5861 = vadd.f32 0.0, %v5860
    %v5862 = vpop.f32.mrb[0].mxu0
    %5863 = vmatprep.mubr.bf16.mxu0 0
    %5864 = vmatmul.mubr.bf16.gmra.mrb[0].mxu0 %v5583
    %v5865 = vpop.f32.mrb[0].mxu0
    %v5866 = vadd.f32 0.0, %v5865
    %v5867 = vpop.f32.mrb[0].mxu0
    %v5868 = vpop.f32.mrb[0].mxu0
    %v5869 = vadd.f32 0.0, %v5868
    %v5870 = vpop.f32.mrb[0].mxu0
    %5871 = vmatprep.mubr.bf16.mxu0 0
    %5872 = vmatmul.mubr.bf16.gmra.mrb[0].mxu0 %v5586
    %v5873 = vpop.f32.mrb[0].mxu0
    %v5874 = vadd.f32 0.0, %v5873
    %v5875 = vpop.f32.mrb[0].mxu0
    %v5876 = vpop.f32.mrb[0].mxu0
    %v5877 = vadd.f32 0.0, %v5876
    %v5878 = vpop.f32.mrb[0].mxu0
    %5879 = vmatprep.mubr.bf16.mxu0 0
    %5880 = vmatmul.mubr.bf16.gmra.mrb[0].mxu0 %v5589
    %v5881 = vpop.f32.mrb[0].mxu0
    %v5882 = vadd.f32 0.0, %v5881
    %v5883 = vpop.f32.mrb[0].mxu0
    %v5884 = vpop.f32.mrb[0].mxu0
    %v5885 = vadd.f32 0.0, %v5884
    %v5886 = vpop.f32.mrb[0].mxu0
    %5887 = vmatprep.mubr.bf16.mxu0 0
    %5888 = vmatmul.mubr.bf16.gmra.mrb[0].mxu0 %v5592
    %v5889 = vpop.f32.mrb[0].mxu0
    %v5890 = vadd.f32 0.0, %v5889
    %v5891 = vpop.f32.mrb[0].mxu0
    %v5892 = vpop.f32.mrb[0].mxu0
    %v5893 = vadd.f32 0.0, %v5892
    %v5894 = vpop.f32.mrb[0].mxu0
    %5895 = vmatprep.mubr.bf16.mxu0 0
    %5896 = vmatmul.mubr.bf16.gmra.mrb[0].mxu0 %v5595
    %v5897 = vpop.f32.mrb[0].mxu0
    %v5898 = vadd.f32 0.0, %v5897
    %v5899 = vpop.f32.mrb[0].mxu0
    %v5900 = vpop.f32.mrb[0].mxu0
    %v5901 = vadd.f32 0.0, %v5900
    %v5902 = vpop.f32.mrb[0].mxu0
    %5903 = vmatprep.mubr.bf16.mxu0 0
    %5904 = vmatmul.mubr.bf16.gmra.mrb[0].mxu0 %v5598
    %v5905 = vpop.f32.mrb[0].mxu0
    %v5906 = vpop.f32.mrb[0].mxu0
    %v5907 = vpop.f32.mrb[0].mxu0
    %v5908 = vpop.f32.mrb[0].mxu0
    %5909 = vmatprep.mubr.bf16.mxu0 0
    %5910 = vmatmul.mubr.bf16.gmra.mrb[0].mxu0 %v5601
    %v5911 = vpop.f32.mrb[0].mxu0
    %v5912 = vpop.f32.mrb[0].mxu0
    %v5913 = vpop.f32.mrb[0].mxu0
    %v5914 = vpop.f32.mrb[0].mxu0
    %5915 = vdwg.mxu0
    %v5916 = vadd.f32 %v5361, %v5638
    %v5917 = vadd.f32 %v5362, %v5641
    %v5918 = vadd.f32 %v5363, %v5646
    %v5919 = vadd.f32 %v5364, %v5649
    %v5920 = vadd.f32 %v5365, %v5654
    %v5921 = vadd.f32 %v5366, %v5657
    %v5922 = vadd.f32 %v5367, %v5662
    %v5923 = vadd.f32 %v5368, %v5665
    %v5924 = vadd.f32 %v5369, %v5670
    %v5925 = vadd.f32 %v5370, %v5673
    %v5926 = vadd.f32 %v5371, %v5678
    %v5927 = vadd.f32 %v5372, %v5681
    %v5928 = vadd.f32 %v5373, %v5686
    %v5929 = vadd.f32 %v5374, %v5689
    %v5930 = vadd.f32 %v5375, %v5694
    %v5931 = vadd.f32 %v5376, %v5697
    %v5932 = vadd.f32 %v5377, %v5702
    %v5933 = vadd.f32 %v5378, %v5705
    %v5934 = vadd.f32 %v5379, %v5710
    %v5935 = vadd.f32 %v5380, %v5713
    %v5936 = vadd.f32 %v5381, %v5718
    %v5937 = vadd.f32 %v5382, %v5721
    %v5938 = vadd.f32 %v5383, %v5726
    %v5939 = vadd.f32 %v5384, %v5729
    %v5940 = vadd.f32 %v5385, %v5734
    %v5941 = vadd.f32 %v5386, %v5737
    %v5942 = vadd.f32 %v5387, %v5742
    %v5943 = vadd.f32 %v5388, %v5745
    %v5944 = vadd.f32 %v5389, %v5750
    %v5945 = vadd.f32 %v5390, %v5753
    %v5946 = vadd.f32 %v5391, %v5758
    %v5947 = vadd.f32 %v5392, %v5761
    %v5948 = vadd.f32 %v5393, %v5778
    %v5949 = vadd.f32 %v5394, %v5781
    %v5950 = vadd.f32 %v5395, %v5786
    %v5951 = vadd.f32 %v5396, %v5789
    %v5952 = vadd.f32 %v5397, %v5794
    %v5953 = vadd.f32 %v5398, %v5797
    %v5954 = vadd.f32 %v5399, %v5802
    %v5955 = vadd.f32 %v5400, %v5805
    %v5956 = vadd.f32 %v5401, %v5810
    %v5957 = vadd.f32 %v5402, %v5813
    %v5958 = vadd.f32 %v5403, %v5818
    %v5959 = vadd.f32 %v5404, %v5821
    %v5960 = vadd.f32 %v5405, %v5826
    %v5961 = vadd.f32 %v5406, %v5829
    %v5962 = vadd.f32 %v5407, %v5834
    %v5963 = vadd.f32 %v5408, %v5837
    %v5964 = vadd.f32 %v5409, %v5842
    %v5965 = vadd.f32 %v5410, %v5845
    %v5966 = vadd.f32 %v5411, %v5850
    %v5967 = vadd.f32 %v5412, %v5853
    %v5968 = vadd.f32 %v5413, %v5858
    %v5969 = vadd.f32 %v5414, %v5861
    %v5970 = vadd.f32 %v5415, %v5866
    %v5971 = vadd.f32 %v5416, %v5869
    %v5972 = vadd.f32 %v5417, %v5874
    %v5973 = vadd.f32 %v5418, %v5877
    %v5974 = vadd.f32 %v5419, %v5882
    %v5975 = vadd.f32 %v5420, %v5885
    %v5976 = vadd.f32 %v5421, %v5890
    %v5977 = vadd.f32 %v5422, %v5893
    %v5978 = vadd.f32 %v5423, %v5898
    %v5979 = vadd.f32 %v5424, %v5901
    %s5980 = scalar_lea.vmem %s4, 128
    %v5981 = vld [vmem:[%s5980] sm:$0xf]
    %v5982 = vld [vmem:[%s5980 + $0x4] sm:$0xf]
    %v5983 = vld [vmem:[%s5980 + $0x8] sm:$0xf]
    %v5984 = vld [vmem:[%s5980 + $0xc] sm:$0xf]
    %v5985 = vld [vmem:[%s5980 + $0x10] sm:$0xf]
    %v5986 = vld [vmem:[%s5980 + $0x14] sm:$0xf]
    %v5987 = vld [vmem:[%s5980 + $0x18] sm:$0xf]
    %v5988 = vld [vmem:[%s5980 + $0x1c] sm:$0xf]
    %v5997 = vunpack.c.l.b16 %v5981
    %v5998 = vunpack.c.l.b16 %v5982
    %v5999 = vunpack.c.l.b16 %v5983
    %v6000 = vunpack.c.l.b16 %v5984
    %v6001 = vunpack.c.l.b16 %v5985
    %v6002 = vunpack.c.l.b16 %v5986
    %v6003 = vunpack.c.l.b16 %v5987
    %v6004 = vunpack.c.l.b16 %v5988
    %v6005 = vpack.c.b16 %v5998, %v5997
    %v6006 = vpack.c.b16 %v6000, %v5999
    %v6007 = vpack.c.b16 %v6002, %v6001
    %v6008 = vpack.c.b16 %v6004, %v6003
    %6013 = vmatprep.subr.bf16.mxu0 0
    %6014 = vmatpush1.bf16.msra.mxu0 %v6005
    %6015 = vmatprep.subr.bf16.mxu0 0
    %6016 = vmatpush1.bf16.msra.mxu0 %v6006
    %6017 = vmatprep.subr.bf16.mxu0 0
    %6018 = vmatpush1.bf16.msra.mxu0 %v6007
    %6019 = vmatprep.subr.bf16.mxu0 0
    %6020 = vmatpush1.bf16.msra.mxu0 %v6008
    %6021 = vmatprep.subr.bf16.mxu0 0
    %6022 = vmatpush1.bf16.msra.mxu0 0
    %6023 = vmatprep.subr.bf16.mxu0 0
    %6024 = vmatpush1.bf16.msra.mxu0 0
    %6025 = vmatprep.subr.bf16.mxu0 0
    %6026 = vmatpush1.bf16.msra.mxu0 0
    %6027 = vmatprep.subr.bf16.mxu0 0
    %6028 = vmatpush1.bf16.msra.mxu0 0
    %6029 = vmatprep.subr.bf16.mxu0 0
    %6030 = vmatpush1.bf16.msra.mxu0 0
    %6031 = vmatprep.subr.bf16.mxu0 0
    %6032 = vmatpush1.bf16.msra.mxu0 0
    %6033 = vmatprep.subr.bf16.mxu0 0
    %6034 = vmatpush1.bf16.msra.mxu0 0
    %6035 = vmatprep.subr.bf16.mxu0 0
    %6036 = vmatpush1.bf16.msra.mxu0 0
    %6037 = vmatprep.subr.bf16.mxu0 0
    %6038 = vmatpush1.bf16.msra.mxu0 0
    %6039 = vmatprep.subr.bf16.mxu0 0
    %6040 = vmatpush1.bf16.msra.mxu0 0
    %6041 = vmatprep.subr.bf16.mxu0 0
    %6042 = vmatpush1.bf16.msra.mxu0 0
    %6043 = vmatprep.subr.bf16.mxu0 0
    %6044 = vmatpush1.bf16.msra.mxu0 0
    %6045 = vmatprep.mubr.bf16.mxu0 0
    %6046 = vmatmul.mubr.bf16.gmra.mrb[0].mxu0 %v5496
    %v6047 = vpop.f32.mrb[0].mxu0
    %v6048 = vpop.f32.mrb[0].mxu0
    %v6049 = vpop.f32.mrb[0].mxu0
    %v6050 = vpop.f32.mrb[0].mxu0
    %6051 = vmatprep.mubr.bf16.mxu0 0
    %6052 = vmatmul.mubr.bf16.gmra.mrb[0].mxu0 %v5499
    %v6053 = vpop.f32.mrb[0].mxu0
    %v6054 = vadd.f32 0.0, %v6053
    %v6055 = vpop.f32.mrb[0].mxu0
    %v6056 = vpop.f32.mrb[0].mxu0
    %v6057 = vadd.f32 0.0, %v6056
    %v6058 = vpop.f32.mrb[0].mxu0
    %6059 = vmatprep.mubr.bf16.mxu0 0
    %6060 = vmatmul.mubr.bf16.gmra.mrb[0].mxu0 %v5502
    %v6061 = vpop.f32.mrb[0].mxu0
    %v6062 = vadd.f32 0.0, %v6061
    %v6063 = vpop.f32.mrb[0].mxu0
    %v6064 = vpop.f32.mrb[0].mxu0
    %v6065 = vadd.f32 0.0, %v6064
    %v6066 = vpop.f32.mrb[0].mxu0
    %6067 = vmatprep.mubr.bf16.mxu0 0
    %6068 = vmatmul.mubr.bf16.gmra.mrb[0].mxu0 %v5505
    %v6069 = vpop.f32.mrb[0].mxu0
    %v6070 = vadd.f32 0.0, %v6069
    %v6071 = vpop.f32.mrb[0].mxu0
    %v6072 = vpop.f32.mrb[0].mxu0
    %v6073 = vadd.f32 0.0, %v6072
    %v6074 = vpop.f32.mrb[0].mxu0
    %6075 = vmatprep.mubr.bf16.mxu0 0
    %6076 = vmatmul.mubr.bf16.gmra.mrb[0].mxu0 %v5508
    %v6077 = vpop.f32.mrb[0].mxu0
    %v6078 = vadd.f32 0.0, %v6077
    %v6079 = vpop.f32.mrb[0].mxu0
    %v6080 = vpop.f32.mrb[0].mxu0
    %v6081 = vadd.f32 0.0, %v6080
    %v6082 = vpop.f32.mrb[0].mxu0
    %6083 = vmatprep.mubr.bf16.mxu0 0
    %6084 = vmatmul.mubr.bf16.gmra.mrb[0].mxu0 %v5511
    %v6085 = vpop.f32.mrb[0].mxu0
    %v6086 = vadd.f32 0.0, %v6085
    %v6087 = vpop.f32.mrb[0].mxu0
    %v6088 = vpop.f32.mrb[0].mxu0
    %v6089 = vadd.f32 0.0, %v6088
    %v6090 = vpop.f32.mrb[0].mxu0
    %6091 = vmatprep.mubr.bf16.mxu0 0
    %6092 = vmatmul.mubr.bf16.gmra.mrb[0].mxu0 %v5514
    %v6093 = vpop.f32.mrb[0].mxu0
    %v6094 = vadd.f32 0.0, %v6093
    %v6095 = vpop.f32.mrb[0].mxu0
    %v6096 = vpop.f32.mrb[0].mxu0
    %v6097 = vadd.f32 0.0, %v6096
    %v6098 = vpop.f32.mrb[0].mxu0
    %6099 = vmatprep.mubr.bf16.mxu0 0
    %6100 = vmatmul.mubr.bf16.gmra.mrb[0].mxu0 %v5517
    %v6101 = vpop.f32.mrb[0].mxu0
    %v6102 = vadd.f32 0.0, %v6101
    %v6103 = vpop.f32.mrb[0].mxu0
    %v6104 = vpop.f32.mrb[0].mxu0
    %v6105 = vadd.f32 0.0, %v6104
    %v6106 = vpop.f32.mrb[0].mxu0
    %6107 = vmatprep.mubr.bf16.mxu0 0
    %6108 = vmatmul.mubr.bf16.gmra.mrb[0].mxu0 %v5520
    %v6109 = vpop.f32.mrb[0].mxu0
    %v6110 = vadd.f32 0.0, %v6109
    %v6111 = vpop.f32.mrb[0].mxu0
    %v6112 = vpop.f32.mrb[0].mxu0
    %v6113 = vadd.f32 0.0, %v6112
    %v6114 = vpop.f32.mrb[0].mxu0
    %6115 = vmatprep.mubr.bf16.mxu0 0
    %6116 = vmatmul.mubr.bf16.gmra.mrb[0].mxu0 %v5523
    %v6117 = vpop.f32.mrb[0].mxu0
    %v6118 = vadd.f32 0.0, %v6117
    %v6119 = vpop.f32.mrb[0].mxu0
    %v6120 = vpop.f32.mrb[0].mxu0
    %v6121 = vadd.f32 0.0, %v6120
    %v6122 = vpop.f32.mrb[0].mxu0
    %6123 = vmatprep.mubr.bf16.mxu0 0
    %6124 = vmatmul.mubr.bf16.gmra.mrb[0].mxu0 %v5526
    %v6125 = vpop.f32.mrb[0].mxu0
    %v6126 = vadd.f32 0.0, %v6125
    %v6127 = vpop.f32.mrb[0].mxu0
    %v6128 = vpop.f32.mrb[0].mxu0
    %v6129 = vadd.f32 0.0, %v6128
    %v6130 = vpop.f32.mrb[0].mxu0
    %6131 = vmatprep.mubr.bf16.mxu0 0
    %6132 = vmatmul.mubr.bf16.gmra.mrb[0].mxu0 %v5529
    %v6133 = vpop.f32.mrb[0].mxu0
    %v6134 = vadd.f32 0.0, %v6133
    %v6135 = vpop.f32.mrb[0].mxu0
    %v6136 = vpop.f32.mrb[0].mxu0
    %v6137 = vadd.f32 0.0, %v6136
    %v6138 = vpop.f32.mrb[0].mxu0
    %6139 = vmatprep.mubr.bf16.mxu0 0
    %6140 = vmatmul.mubr.bf16.gmra.mrb[0].mxu0 %v5532
    %v6141 = vpop.f32.mrb[0].mxu0
    %v6142 = vadd.f32 0.0, %v6141
    %v6143 = vpop.f32.mrb[0].mxu0
    %v6144 = vpop.f32.mrb[0].mxu0
    %v6145 = vadd.f32 0.0, %v6144
    %v6146 = vpop.f32.mrb[0].mxu0
    %6147 = vmatprep.mubr.bf16.mxu0 0
    %6148 = vmatmul.mubr.bf16.gmra.mrb[0].mxu0 %v5535
    %v6149 = vpop.f32.mrb[0].mxu0
    %v6150 = vadd.f32 0.0, %v6149
    %v6151 = vpop.f32.mrb[0].mxu0
    %v6152 = vpop.f32.mrb[0].mxu0
    %v6153 = vadd.f32 0.0, %v6152
    %v6154 = vpop.f32.mrb[0].mxu0
    %6155 = vmatprep.mubr.bf16.mxu0 0
    %6156 = vmatmul.mubr.bf16.gmra.mrb[0].mxu0 %v5538
    %v6157 = vpop.f32.mrb[0].mxu0
    %v6158 = vadd.f32 0.0, %v6157
    %v6159 = vpop.f32.mrb[0].mxu0
    %v6160 = vpop.f32.mrb[0].mxu0
    %v6161 = vadd.f32 0.0, %v6160
    %v6162 = vpop.f32.mrb[0].mxu0
    %6163 = vmatprep.mubr.bf16.mxu0 0
    %6164 = vmatmul.mubr.bf16.gmra.mrb[0].mxu0 %v5541
    %v6165 = vpop.f32.mrb[0].mxu0
    %v6166 = vadd.f32 0.0, %v6165
    %v6167 = vpop.f32.mrb[0].mxu0
    %v6168 = vpop.f32.mrb[0].mxu0
    %v6169 = vadd.f32 0.0, %v6168
    %v6170 = vpop.f32.mrb[0].mxu0
    %6171 = vmatprep.mubr.bf16.mxu0 0
    %6172 = vmatmul.mubr.bf16.gmra.mrb[0].mxu0 %v5544
    %v6173 = vpop.f32.mrb[0].mxu0
    %v6174 = vadd.f32 0.0, %v6173
    %v6175 = vpop.f32.mrb[0].mxu0
    %v6176 = vpop.f32.mrb[0].mxu0
    %v6177 = vadd.f32 0.0, %v6176
    %v6178 = vpop.f32.mrb[0].mxu0
    %6179 = vmatprep.mubr.bf16.mxu0 0
    %6180 = vmatmul.mubr.bf16.gmra.mrb[0].mxu0 %v5547
    %v6181 = vpop.f32.mrb[0].mxu0
    %v6182 = vpop.f32.mrb[0].mxu0
    %v6183 = vpop.f32.mrb[0].mxu0
    %v6184 = vpop.f32.mrb[0].mxu0
    %6185 = vmatprep.mubr.bf16.mxu0 0
    %6186 = vmatmul.mubr.bf16.gmra.mrb[0].mxu0 %v5550
    %v6187 = vpop.f32.mrb[0].mxu0
    %v6188 = vpop.f32.mrb[0].mxu0
    %v6189 = vpop.f32.mrb[0].mxu0
    %v6190 = vpop.f32.mrb[0].mxu0
    %6191 = vmatprep.mubr.bf16.mxu0 0
    %6192 = vmatmul.mubr.bf16.gmra.mrb[0].mxu0 %v5553
    %v6193 = vpop.f32.mrb[0].mxu0
    %v6194 = vadd.f32 0.0, %v6193
    %v6195 = vpop.f32.mrb[0].mxu0
    %v6196 = vpop.f32.mrb[0].mxu0
    %v6197 = vadd.f32 0.0, %v6196
    %v6198 = vpop.f32.mrb[0].mxu0
    %6199 = vmatprep.mubr.bf16.mxu0 0
    %6200 = vmatmul.mubr.bf16.gmra.mrb[0].mxu0 %v5556
    %v6201 = vpop.f32.mrb[0].mxu0
    %v6202 = vadd.f32 0.0, %v6201
    %v6203 = vpop.f32.mrb[0].mxu0
    %v6204 = vpop.f32.mrb[0].mxu0
    %v6205 = vadd.f32 0.0, %v6204
    %v6206 = vpop.f32.mrb[0].mxu0
    %6207 = vmatprep.mubr.bf16.mxu0 0
    %6208 = vmatmul.mubr.bf16.gmra.mrb[0].mxu0 %v5559
    %v6209 = vpop.f32.mrb[0].mxu0
    %v6210 = vadd.f32 0.0, %v6209
    %v6211 = vpop.f32.mrb[0].mxu0
    %v6212 = vpop.f32.mrb[0].mxu0
    %v6213 = vadd.f32 0.0, %v6212
    %v6214 = vpop.f32.mrb[0].mxu0
    %6215 = vmatprep.mubr.bf16.mxu0 0
    %6216 = vmatmul.mubr.bf16.gmra.mrb[0].mxu0 %v5562
    %v6217 = vpop.f32.mrb[0].mxu0
    %v6218 = vadd.f32 0.0, %v6217
    %v6219 = vpop.f32.mrb[0].mxu0
    %v6220 = vpop.f32.mrb[0].mxu0
    %v6221 = vadd.f32 0.0, %v6220
    %v6222 = vpop.f32.mrb[0].mxu0
    %6223 = vmatprep.mubr.bf16.mxu0 0
    %6224 = vmatmul.mubr.bf16.gmra.mrb[0].mxu0 %v5565
    %v6225 = vpop.f32.mrb[0].mxu0
    %v6226 = vadd.f32 0.0, %v6225
    %v6227 = vpop.f32.mrb[0].mxu0
    %v6228 = vpop.f32.mrb[0].mxu0
    %v6229 = vadd.f32 0.0, %v6228
    %v6230 = vpop.f32.mrb[0].mxu0
    %6231 = vmatprep.mubr.bf16.mxu0 0
    %6232 = vmatmul.mubr.bf16.gmra.mrb[0].mxu0 %v5568
    %v6233 = vpop.f32.mrb[0].mxu0
    %v6234 = vadd.f32 0.0, %v6233
    %v6235 = vpop.f32.mrb[0].mxu0
    %v6236 = vpop.f32.mrb[0].mxu0
    %v6237 = vadd.f32 0.0, %v6236
    %v6238 = vpop.f32.mrb[0].mxu0
    %6239 = vmatprep.mubr.bf16.mxu0 0
    %6240 = vmatmul.mubr.bf16.gmra.mrb[0].mxu0 %v5571
    %v6241 = vpop.f32.mrb[0].mxu0
    %v6242 = vadd.f32 0.0, %v6241
    %v6243 = vpop.f32.mrb[0].mxu0
    %v6244 = vpop.f32.mrb[0].mxu0
    %v6245 = vadd.f32 0.0, %v6244
    %v6246 = vpop.f32.mrb[0].mxu0
    %6247 = vmatprep.mubr.bf16.mxu0 0
    %6248 = vmatmul.mubr.bf16.gmra.mrb[0].mxu0 %v5574
    %v6249 = vpop.f32.mrb[0].mxu0
    %v6250 = vadd.f32 0.0, %v6249
    %v6251 = vpop.f32.mrb[0].mxu0
    %v6252 = vpop.f32.mrb[0].mxu0
    %v6253 = vadd.f32 0.0, %v6252
    %v6254 = vpop.f32.mrb[0].mxu0
    %6255 = vmatprep.mubr.bf16.mxu0 0
    %6256 = vmatmul.mubr.bf16.gmra.mrb[0].mxu0 %v5577
    %v6257 = vpop.f32.mrb[0].mxu0
    %v6258 = vadd.f32 0.0, %v6257
    %v6259 = vpop.f32.mrb[0].mxu0
    %v6260 = vpop.f32.mrb[0].mxu0
    %v6261 = vadd.f32 0.0, %v6260
    %v6262 = vpop.f32.mrb[0].mxu0
    %6263 = vmatprep.mubr.bf16.mxu0 0
    %6264 = vmatmul.mubr.bf16.gmra.mrb[0].mxu0 %v5580
    %v6265 = vpop.f32.mrb[0].mxu0
    %v6266 = vadd.f32 0.0, %v6265
    %v6267 = vpop.f32.mrb[0].mxu0
    %v6268 = vpop.f32.mrb[0].mxu0
    %v6269 = vadd.f32 0.0, %v6268
    %v6270 = vpop.f32.mrb[0].mxu0
    %6271 = vmatprep.mubr.bf16.mxu0 0
    %6272 = vmatmul.mubr.bf16.gmra.mrb[0].mxu0 %v5583
    %v6273 = vpop.f32.mrb[0].mxu0
    %v6274 = vadd.f32 0.0, %v6273
    %v6275 = vpop.f32.mrb[0].mxu0
    %v6276 = vpop.f32.mrb[0].mxu0
    %v6277 = vadd.f32 0.0, %v6276
    %v6278 = vpop.f32.mrb[0].mxu0
    %6279 = vmatprep.mubr.bf16.mxu0 0
    %6280 = vmatmul.mubr.bf16.gmra.mrb[0].mxu0 %v5586
    %v6281 = vpop.f32.mrb[0].mxu0
    %v6282 = vadd.f32 0.0, %v6281
    %v6283 = vpop.f32.mrb[0].mxu0
    %v6284 = vpop.f32.mrb[0].mxu0
    %v6285 = vadd.f32 0.0, %v6284
    %v6286 = vpop.f32.mrb[0].mxu0
    %6287 = vmatprep.mubr.bf16.mxu0 0
    %6288 = vmatmul.mubr.bf16.gmra.mrb[0].mxu0 %v5589
    %v6289 = vpop.f32.mrb[0].mxu0
    %v6290 = vadd.f32 0.0, %v6289
    %v6291 = vpop.f32.mrb[0].mxu0
    %v6292 = vpop.f32.mrb[0].mxu0
    %v6293 = vadd.f32 0.0, %v6292
    %v6294 = vpop.f32.mrb[0].mxu0
    %6295 = vmatprep.mubr.bf16.mxu0 0
    %6296 = vmatmul.mubr.bf16.gmra.mrb[0].mxu0 %v5592
    %v6297 = vpop.f32.mrb[0].mxu0
    %v6298 = vadd.f32 0.0, %v6297
    %v6299 = vpop.f32.mrb[0].mxu0
    %v6300 = vpop.f32.mrb[0].mxu0
    %v6301 = vadd.f32 0.0, %v6300
    %v6302 = vpop.f32.mrb[0].mxu0
    %6303 = vmatprep.mubr.bf16.mxu0 0
    %6304 = vmatmul.mubr.bf16.gmra.mrb[0].mxu0 %v5595
    %v6305 = vpop.f32.mrb[0].mxu0
    %v6306 = vadd.f32 0.0, %v6305
    %v6307 = vpop.f32.mrb[0].mxu0
    %v6308 = vpop.f32.mrb[0].mxu0
    %v6309 = vadd.f32 0.0, %v6308
    %v6310 = vpop.f32.mrb[0].mxu0
    %6311 = vmatprep.mubr.bf16.mxu0 0
    %6312 = vmatmul.mubr.bf16.gmra.mrb[0].mxu0 %v5598
    %v6313 = vpop.f32.mrb[0].mxu0
    %v6314 = vadd.f32 0.0, %v6313
    %v6315 = vpop.f32.mrb[0].mxu0
    %v6316 = vpop.f32.mrb[0].mxu0
    %v6317 = vadd.f32 0.0, %v6316
    %v6318 = vpop.f32.mrb[0].mxu0
    %6319 = vmatprep.mubr.bf16.mxu0 0
    %6320 = vmatmul.mubr.bf16.gmra.mrb[0].mxu0 %v5601
    %v6321 = vpop.f32.mrb[0].mxu0
    %v6322 = vpop.f32.mrb[0].mxu0
    %v6323 = vpop.f32.mrb[0].mxu0
    %v6324 = vpop.f32.mrb[0].mxu0
    %6325 = vdwg.mxu0
    %v6326 = vadd.f32 %v5916, %v6054
    %v6327 = vadd.f32 %v5917, %v6057
    %v6328 = vadd.f32 %v5918, %v6062
    %v6329 = vadd.f32 %v5919, %v6065
    %v6330 = vadd.f32 %v5920, %v6070
    %v6331 = vadd.f32 %v5921, %v6073
    %v6332 = vadd.f32 %v5922, %v6078
    %v6333 = vadd.f32 %v5923, %v6081
    %v6334 = vadd.f32 %v5924, %v6086
    %v6335 = vadd.f32 %v5925, %v6089
    %v6336 = vadd.f32 %v5926, %v6094
    %v6337 = vadd.f32 %v5927, %v6097
    %v6338 = vadd.f32 %v5928, %v6102
    %v6339 = vadd.f32 %v5929, %v6105
    %v6340 = vadd.f32 %v5930, %v6110
    %v6341 = vadd.f32 %v5931, %v6113
    %v6342 = vadd.f32 %v5932, %v6118
    %v6343 = vadd.f32 %v5933, %v6121
    %v6344 = vadd.f32 %v5934, %v6126
    %v6345 = vadd.f32 %v5935, %v6129
    %v6346 = vadd.f32 %v5936, %v6134
    %v6347 = vadd.f32 %v5937, %v6137
    %v6348 = vadd.f32 %v5938, %v6142
    %v6349 = vadd.f32 %v5939, %v6145
    %v6350 = vadd.f32 %v5940, %v6150
    %v6351 = vadd.f32 %v5941, %v6153
    %v6352 = vadd.f32 %v5942, %v6158
    %v6353 = vadd.f32 %v5943, %v6161
    %v6354 = vadd.f32 %v5944, %v6166
    %v6355 = vadd.f32 %v5945, %v6169
    %v6356 = vadd.f32 %v5946, %v6174
    %v6357 = vadd.f32 %v5947, %v6177
    %v6358 = vadd.f32 %v5948, %v6194
    %v6359 = vadd.f32 %v5949, %v6197
    %v6360 = vadd.f32 %v5950, %v6202
    %v6361 = vadd.f32 %v5951, %v6205
    %v6362 = vadd.f32 %v5952, %v6210
    %v6363 = vadd.f32 %v5953, %v6213
    %v6364 = vadd.f32 %v5954, %v6218
    %v6365 = vadd.f32 %v5955, %v6221
    %v6366 = vadd.f32 %v5956, %v6226
    %v6367 = vadd.f32 %v5957, %v6229
    %v6368 = vadd.f32 %v5958, %v6234
    %v6369 = vadd.f32 %v5959, %v6237
    %v6370 = vadd.f32 %v5960, %v6242
    %v6371 = vadd.f32 %v5961, %v6245
    %v6372 = vadd.f32 %v5962, %v6250
    %v6373 = vadd.f32 %v5963, %v6253
    %v6374 = vadd.f32 %v5964, %v6258
    %v6375 = vadd.f32 %v5965, %v6261
    %v6376 = vadd.f32 %v5966, %v6266
    %v6377 = vadd.f32 %v5967, %v6269
    %v6378 = vadd.f32 %v5968, %v6274
    %v6379 = vadd.f32 %v5969, %v6277
    %v6380 = vadd.f32 %v5970, %v6282
    %v6381 = vadd.f32 %v5971, %v6285
    %v6382 = vadd.f32 %v5972, %v6290
    %v6383 = vadd.f32 %v5973, %v6293
    %v6384 = vadd.f32 %v5974, %v6298
    %v6385 = vadd.f32 %v5975, %v6301
    %v6386 = vadd.f32 %v5976, %v6306
    %v6387 = vadd.f32 %v5977, %v6309
    %v6388 = vadd.f32 %v5978, %v6314
    %v6389 = vadd.f32 %v5979, %v6317
    %s6390 = scalar_lea.vmem %s4, 224
    %v6391 = vld [vmem:[%s6390] sm:$0xf]
    %v6392 = vld [vmem:[%s6390 + $0x4] sm:$0xf]
    %v6393 = vld [vmem:[%s6390 + $0x8] sm:$0xf]
    %v6394 = vld [vmem:[%s6390 + $0xc] sm:$0xf]
    %v6395 = vld [vmem:[%s6390 + $0x10] sm:$0xf]
    %v6396 = vld [vmem:[%s6390 + $0x14] sm:$0xf]
    %v6397 = vld [vmem:[%s6390 + $0x18] sm:$0xf]
    %v6398 = vld [vmem:[%s6390 + $0x1c] sm:$0xf]
    %v6407 = vunpack.c.l.b16 %v6391
    %v6408 = vunpack.c.l.b16 %v6392
    %v6409 = vunpack.c.l.b16 %v6393
    %v6410 = vunpack.c.l.b16 %v6394
    %v6411 = vunpack.c.l.b16 %v6395
    %v6412 = vunpack.c.l.b16 %v6396
    %v6413 = vunpack.c.l.b16 %v6397
    %v6414 = vunpack.c.l.b16 %v6398
    %v6415 = vpack.c.b16 %v6408, %v6407
    %v6416 = vpack.c.b16 %v6410, %v6409
    %v6417 = vpack.c.b16 %v6412, %v6411
    %v6418 = vpack.c.b16 %v6414, %v6413
    %6423 = vmatprep.subr.bf16.mxu0 0
    %6424 = vmatpush1.bf16.msra.mxu0 %v6415
    %6425 = vmatprep.subr.bf16.mxu0 0
    %6426 = vmatpush1.bf16.msra.mxu0 %v6416
    %6427 = vmatprep.subr.bf16.mxu0 0
    %6428 = vmatpush1.bf16.msra.mxu0 %v6417
    %6429 = vmatprep.subr.bf16.mxu0 0
    %6430 = vmatpush1.bf16.msra.mxu0 %v6418
    %6431 = vmatprep.subr.bf16.mxu0 0
    %6432 = vmatpush1.bf16.msra.mxu0 0
    %6433 = vmatprep.subr.bf16.mxu0 0
    %6434 = vmatpush1.bf16.msra.mxu0 0
    %6435 = vmatprep.subr.bf16.mxu0 0
    %6436 = vmatpush1.bf16.msra.mxu0 0
    %6437 = vmatprep.subr.bf16.mxu0 0
    %6438 = vmatpush1.bf16.msra.mxu0 0
    %6439 = vmatprep.subr.bf16.mxu0 0
    %6440 = vmatpush1.bf16.msra.mxu0 0
    %6441 = vmatprep.subr.bf16.mxu0 0
    %6442 = vmatpush1.bf16.msra.mxu0 0
    %6443 = vmatprep.subr.bf16.mxu0 0
    %6444 = vmatpush1.bf16.msra.mxu0 0
    %6445 = vmatprep.subr.bf16.mxu0 0
    %6446 = vmatpush1.bf16.msra.mxu0 0
    %6447 = vmatprep.subr.bf16.mxu0 0
    %6448 = vmatpush1.bf16.msra.mxu0 0
    %6449 = vmatprep.subr.bf16.mxu0 0
    %6450 = vmatpush1.bf16.msra.mxu0 0
    %6451 = vmatprep.subr.bf16.mxu0 0
    %6452 = vmatpush1.bf16.msra.mxu0 0
    %6453 = vmatprep.subr.bf16.mxu0 0
    %6454 = vmatpush1.bf16.msra.mxu0 0
    %6455 = vmatprep.mubr.bf16.mxu0 0
    %6456 = vmatmul.mubr.bf16.gmra.mrb[0].mxu0 %v5496
    %v6457 = vpop.f32.mrb[0].mxu0
    %v6458 = vpop.f32.mrb[0].mxu0
    %v6459 = vpop.f32.mrb[0].mxu0
    %v6460 = vpop.f32.mrb[0].mxu0
    %6461 = vmatprep.mubr.bf16.mxu0 0
    %6462 = vmatmul.mubr.bf16.gmra.mrb[0].mxu0 %v5499
    %v6463 = vpop.f32.mrb[0].mxu0
    %v6464 = vpop.f32.mrb[0].mxu0
    %v6465 = vpop.f32.mrb[0].mxu0
    %v6466 = vpop.f32.mrb[0].mxu0
    %6467 = vmatprep.mubr.bf16.mxu0 0
    %6468 = vmatmul.mubr.bf16.gmra.mrb[0].mxu0 %v5502
    %v6469 = vpop.f32.mrb[0].mxu0
    %v6470 = vadd.f32 0.0, %v6469
    %v6471 = vpop.f32.mrb[0].mxu0
    %v6472 = vpop.f32.mrb[0].mxu0
    %v6473 = vadd.f32 0.0, %v6472
    %v6474 = vpop.f32.mrb[0].mxu0
    %6475 = vmatprep.mubr.bf16.mxu0 0
    %6476 = vmatmul.mubr.bf16.gmra.mrb[0].mxu0 %v5505
    %v6477 = vpop.f32.mrb[0].mxu0
    %v6478 = vadd.f32 0.0, %v6477
    %v6479 = vpop.f32.mrb[0].mxu0
    %v6480 = vpop.f32.mrb[0].mxu0
    %v6481 = vadd.f32 0.0, %v6480
    %v6482 = vpop.f32.mrb[0].mxu0
    %6483 = vmatprep.mubr.bf16.mxu0 0
    %6484 = vmatmul.mubr.bf16.gmra.mrb[0].mxu0 %v5508
    %v6485 = vpop.f32.mrb[0].mxu0
    %v6486 = vadd.f32 0.0, %v6485
    %v6487 = vpop.f32.mrb[0].mxu0
    %v6488 = vpop.f32.mrb[0].mxu0
    %v6489 = vadd.f32 0.0, %v6488
    %v6490 = vpop.f32.mrb[0].mxu0
    %6491 = vmatprep.mubr.bf16.mxu0 0
    %6492 = vmatmul.mubr.bf16.gmra.mrb[0].mxu0 %v5511
    %v6493 = vpop.f32.mrb[0].mxu0
    %v6494 = vadd.f32 0.0, %v6493
    %v6495 = vpop.f32.mrb[0].mxu0
    %v6496 = vpop.f32.mrb[0].mxu0
    %v6497 = vadd.f32 0.0, %v6496
    %v6498 = vpop.f32.mrb[0].mxu0
    %6499 = vmatprep.mubr.bf16.mxu0 0
    %6500 = vmatmul.mubr.bf16.gmra.mrb[0].mxu0 %v5514
    %v6501 = vpop.f32.mrb[0].mxu0
    %v6502 = vadd.f32 0.0, %v6501
    %v6503 = vpop.f32.mrb[0].mxu0
    %v6504 = vpop.f32.mrb[0].mxu0
    %v6505 = vadd.f32 0.0, %v6504
    %v6506 = vpop.f32.mrb[0].mxu0
    %6507 = vmatprep.mubr.bf16.mxu0 0
    %6508 = vmatmul.mubr.bf16.gmra.mrb[0].mxu0 %v5517
    %v6509 = vpop.f32.mrb[0].mxu0
    %v6510 = vadd.f32 0.0, %v6509
    %v6511 = vpop.f32.mrb[0].mxu0
    %v6512 = vpop.f32.mrb[0].mxu0
    %v6513 = vadd.f32 0.0, %v6512
    %v6514 = vpop.f32.mrb[0].mxu0
    %6515 = vmatprep.mubr.bf16.mxu0 0
    %6516 = vmatmul.mubr.bf16.gmra.mrb[0].mxu0 %v5520
    %v6517 = vpop.f32.mrb[0].mxu0
    %v6518 = vadd.f32 0.0, %v6517
    %v6519 = vpop.f32.mrb[0].mxu0
    %v6520 = vpop.f32.mrb[0].mxu0
    %v6521 = vadd.f32 0.0, %v6520
    %v6522 = vpop.f32.mrb[0].mxu0
    %6523 = vmatprep.mubr.bf16.mxu0 0
    %6524 = vmatmul.mubr.bf16.gmra.mrb[0].mxu0 %v5523
    %v6525 = vpop.f32.mrb[0].mxu0
    %v6526 = vadd.f32 0.0, %v6525
    %v6527 = vpop.f32.mrb[0].mxu0
    %v6528 = vpop.f32.mrb[0].mxu0
    %v6529 = vadd.f32 0.0, %v6528
    %v6530 = vpop.f32.mrb[0].mxu0
    %6531 = vmatprep.mubr.bf16.mxu0 0
    %6532 = vmatmul.mubr.bf16.gmra.mrb[0].mxu0 %v5526
    %v6533 = vpop.f32.mrb[0].mxu0
    %v6534 = vadd.f32 0.0, %v6533
    %v6535 = vpop.f32.mrb[0].mxu0
    %v6536 = vpop.f32.mrb[0].mxu0
    %v6537 = vadd.f32 0.0, %v6536
    %v6538 = vpop.f32.mrb[0].mxu0
    %6539 = vmatprep.mubr.bf16.mxu0 0
    %6540 = vmatmul.mubr.bf16.gmra.mrb[0].mxu0 %v5529
    %v6541 = vpop.f32.mrb[0].mxu0
    %v6542 = vadd.f32 0.0, %v6541
    %v6543 = vpop.f32.mrb[0].mxu0
    %v6544 = vpop.f32.mrb[0].mxu0
    %v6545 = vadd.f32 0.0, %v6544
    %v6546 = vpop.f32.mrb[0].mxu0
    %6547 = vmatprep.mubr.bf16.mxu0 0
    %6548 = vmatmul.mubr.bf16.gmra.mrb[0].mxu0 %v5532
    %v6549 = vpop.f32.mrb[0].mxu0
    %v6550 = vadd.f32 0.0, %v6549
    %v6551 = vpop.f32.mrb[0].mxu0
    %v6552 = vpop.f32.mrb[0].mxu0
    %v6553 = vadd.f32 0.0, %v6552
    %v6554 = vpop.f32.mrb[0].mxu0
    %6555 = vmatprep.mubr.bf16.mxu0 0
    %6556 = vmatmul.mubr.bf16.gmra.mrb[0].mxu0 %v5535
    %v6557 = vpop.f32.mrb[0].mxu0
    %v6558 = vadd.f32 0.0, %v6557
    %v6559 = vpop.f32.mrb[0].mxu0
    %v6560 = vpop.f32.mrb[0].mxu0
    %v6561 = vadd.f32 0.0, %v6560
    %v6562 = vpop.f32.mrb[0].mxu0
    %6563 = vmatprep.mubr.bf16.mxu0 0
    %6564 = vmatmul.mubr.bf16.gmra.mrb[0].mxu0 %v5538
    %v6565 = vpop.f32.mrb[0].mxu0
    %v6566 = vadd.f32 0.0, %v6565
    %v6567 = vpop.f32.mrb[0].mxu0
    %v6568 = vpop.f32.mrb[0].mxu0
    %v6569 = vadd.f32 0.0, %v6568
    %v6570 = vpop.f32.mrb[0].mxu0
    %6571 = vmatprep.mubr.bf16.mxu0 0
    %6572 = vmatmul.mubr.bf16.gmra.mrb[0].mxu0 %v5541
    %v6573 = vpop.f32.mrb[0].mxu0
    %v6574 = vadd.f32 0.0, %v6573
    %v6575 = vpop.f32.mrb[0].mxu0
    %v6576 = vpop.f32.mrb[0].mxu0
    %v6577 = vadd.f32 0.0, %v6576
    %v6578 = vpop.f32.mrb[0].mxu0
    %6579 = vmatprep.mubr.bf16.mxu0 0
    %6580 = vmatmul.mubr.bf16.gmra.mrb[0].mxu0 %v5544
    %v6581 = vpop.f32.mrb[0].mxu0
    %v6582 = vadd.f32 0.0, %v6581
    %v6583 = vpop.f32.mrb[0].mxu0
    %v6584 = vpop.f32.mrb[0].mxu0
    %v6585 = vadd.f32 0.0, %v6584
    %v6586 = vpop.f32.mrb[0].mxu0
    %6587 = vmatprep.mubr.bf16.mxu0 0
    %6588 = vmatmul.mubr.bf16.gmra.mrb[0].mxu0 %v5547
    %v6589 = vpop.f32.mrb[0].mxu0
    %v6590 = vadd.f32 0.0, %v6589
    %v6591 = vpop.f32.mrb[0].mxu0
    %v6592 = vpop.f32.mrb[0].mxu0
    %v6593 = vadd.f32 0.0, %v6592
    %v6594 = vpop.f32.mrb[0].mxu0
    %6595 = vmatprep.mubr.bf16.mxu0 0
    %6596 = vmatmul.mubr.bf16.gmra.mrb[0].mxu0 %v5550
    %v6597 = vpop.f32.mrb[0].mxu0
    %v6598 = vpop.f32.mrb[0].mxu0
    %v6599 = vpop.f32.mrb[0].mxu0
    %v6600 = vpop.f32.mrb[0].mxu0
    %6601 = vmatprep.mubr.bf16.mxu0 0
    %6602 = vmatmul.mubr.bf16.gmra.mrb[0].mxu0 %v5553
    %v6603 = vpop.f32.mrb[0].mxu0
    %v6604 = vpop.f32.mrb[0].mxu0
    %v6605 = vpop.f32.mrb[0].mxu0
    %v6606 = vpop.f32.mrb[0].mxu0
    %6607 = vmatprep.mubr.bf16.mxu0 0
    %6608 = vmatmul.mubr.bf16.gmra.mrb[0].mxu0 %v5556
    %v6609 = vpop.f32.mrb[0].mxu0
    %v6610 = vadd.f32 0.0, %v6609
    %v6611 = vpop.f32.mrb[0].mxu0
    %v6612 = vpop.f32.mrb[0].mxu0
    %v6613 = vadd.f32 0.0, %v6612
    %v6614 = vpop.f32.mrb[0].mxu0
    %6615 = vmatprep.mubr.bf16.mxu0 0
    %6616 = vmatmul.mubr.bf16.gmra.mrb[0].mxu0 %v5559
    %v6617 = vpop.f32.mrb[0].mxu0
    %v6618 = vadd.f32 0.0, %v6617
    %v6619 = vpop.f32.mrb[0].mxu0
    %v6620 = vpop.f32.mrb[0].mxu0
    %v6621 = vadd.f32 0.0, %v6620
    %v6622 = vpop.f32.mrb[0].mxu0
    %6623 = vmatprep.mubr.bf16.mxu0 0
    %6624 = vmatmul.mubr.bf16.gmra.mrb[0].mxu0 %v5562
    %v6625 = vpop.f32.mrb[0].mxu0
    %v6626 = vadd.f32 0.0, %v6625
    %v6627 = vpop.f32.mrb[0].mxu0
    %v6628 = vpop.f32.mrb[0].mxu0
    %v6629 = vadd.f32 0.0, %v6628
    %v6630 = vpop.f32.mrb[0].mxu0
    %6631 = vmatprep.mubr.bf16.mxu0 0
    %6632 = vmatmul.mubr.bf16.gmra.mrb[0].mxu0 %v5565
    %v6633 = vpop.f32.mrb[0].mxu0
    %v6634 = vadd.f32 0.0, %v6633
    %v6635 = vpop.f32.mrb[0].mxu0
    %v6636 = vpop.f32.mrb[0].mxu0
    %v6637 = vadd.f32 0.0, %v6636
    %v6638 = vpop.f32.mrb[0].mxu0
    %6639 = vmatprep.mubr.bf16.mxu0 0
    %6640 = vmatmul.mubr.bf16.gmra.mrb[0].mxu0 %v5568
    %v6641 = vpop.f32.mrb[0].mxu0
    %v6642 = vadd.f32 0.0, %v6641
    %v6643 = vpop.f32.mrb[0].mxu0
    %v6644 = vpop.f32.mrb[0].mxu0
    %v6645 = vadd.f32 0.0, %v6644
    %v6646 = vpop.f32.mrb[0].mxu0
    %6647 = vmatprep.mubr.bf16.mxu0 0
    %6648 = vmatmul.mubr.bf16.gmra.mrb[0].mxu0 %v5571
    %v6649 = vpop.f32.mrb[0].mxu0
    %v6650 = vadd.f32 0.0, %v6649
    %v6651 = vpop.f32.mrb[0].mxu0
    %v6652 = vpop.f32.mrb[0].mxu0
    %v6653 = vadd.f32 0.0, %v6652
    %v6654 = vpop.f32.mrb[0].mxu0
    %6655 = vmatprep.mubr.bf16.mxu0 0
    %6656 = vmatmul.mubr.bf16.gmra.mrb[0].mxu0 %v5574
    %v6657 = vpop.f32.mrb[0].mxu0
    %v6658 = vadd.f32 0.0, %v6657
    %v6659 = vpop.f32.mrb[0].mxu0
    %v6660 = vpop.f32.mrb[0].mxu0
    %v6661 = vadd.f32 0.0, %v6660
    %v6662 = vpop.f32.mrb[0].mxu0
    %6663 = vmatprep.mubr.bf16.mxu0 0
    %6664 = vmatmul.mubr.bf16.gmra.mrb[0].mxu0 %v5577
    %v6665 = vpop.f32.mrb[0].mxu0
    %v6666 = vadd.f32 0.0, %v6665
    %v6667 = vpop.f32.mrb[0].mxu0
    %v6668 = vpop.f32.mrb[0].mxu0
    %v6669 = vadd.f32 0.0, %v6668
    %v6670 = vpop.f32.mrb[0].mxu0
    %6671 = vmatprep.mubr.bf16.mxu0 0
    %6672 = vmatmul.mubr.bf16.gmra.mrb[0].mxu0 %v5580
    %v6673 = vpop.f32.mrb[0].mxu0
    %v6674 = vadd.f32 0.0, %v6673
    %v6675 = vpop.f32.mrb[0].mxu0
    %v6676 = vpop.f32.mrb[0].mxu0
    %v6677 = vadd.f32 0.0, %v6676
    %v6678 = vpop.f32.mrb[0].mxu0
    %6679 = vmatprep.mubr.bf16.mxu0 0
    %6680 = vmatmul.mubr.bf16.gmra.mrb[0].mxu0 %v5583
    %v6681 = vpop.f32.mrb[0].mxu0
    %v6682 = vadd.f32 0.0, %v6681
    %v6683 = vpop.f32.mrb[0].mxu0
    %v6684 = vpop.f32.mrb[0].mxu0
    %v6685 = vadd.f32 0.0, %v6684
    %v6686 = vpop.f32.mrb[0].mxu0
    %6687 = vmatprep.mubr.bf16.mxu0 0
    %6688 = vmatmul.mubr.bf16.gmra.mrb[0].mxu0 %v5586
    %v6689 = vpop.f32.mrb[0].mxu0
    %v6690 = vadd.f32 0.0, %v6689
    %v6691 = vpop.f32.mrb[0].mxu0
    %v6692 = vpop.f32.mrb[0].mxu0
    %v6693 = vadd.f32 0.0, %v6692
    %v6694 = vpop.f32.mrb[0].mxu0
    %6695 = vmatprep.mubr.bf16.mxu0 0
    %6696 = vmatmul.mubr.bf16.gmra.mrb[0].mxu0 %v5589
    %v6697 = vpop.f32.mrb[0].mxu0
    %v6698 = vadd.f32 0.0, %v6697
    %v6699 = vpop.f32.mrb[0].mxu0
    %v6700 = vpop.f32.mrb[0].mxu0
    %v6701 = vadd.f32 0.0, %v6700
    %v6702 = vpop.f32.mrb[0].mxu0
    %6703 = vmatprep.mubr.bf16.mxu0 0
    %6704 = vmatmul.mubr.bf16.gmra.mrb[0].mxu0 %v5592
    %v6705 = vpop.f32.mrb[0].mxu0
    %v6706 = vadd.f32 0.0, %v6705
    %v6707 = vpop.f32.mrb[0].mxu0
    %v6708 = vpop.f32.mrb[0].mxu0
    %v6709 = vadd.f32 0.0, %v6708
    %v6710 = vpop.f32.mrb[0].mxu0
    %6711 = vmatprep.mubr.bf16.mxu0 0
    %6712 = vmatmul.mubr.bf16.gmra.mrb[0].mxu0 %v5595
    %v6713 = vpop.f32.mrb[0].mxu0
    %v6714 = vadd.f32 0.0, %v6713
    %v6715 = vpop.f32.mrb[0].mxu0
    %v6716 = vpop.f32.mrb[0].mxu0
    %v6717 = vadd.f32 0.0, %v6716
    %v6718 = vpop.f32.mrb[0].mxu0
    %6719 = vmatprep.mubr.bf16.mxu0 0
    %6720 = vmatmul.mubr.bf16.gmra.mrb[0].mxu0 %v5598
    %v6721 = vpop.f32.mrb[0].mxu0
    %v6722 = vadd.f32 0.0, %v6721
    %v6723 = vpop.f32.mrb[0].mxu0
    %v6724 = vpop.f32.mrb[0].mxu0
    %v6725 = vadd.f32 0.0, %v6724
    %v6726 = vpop.f32.mrb[0].mxu0
    %6727 = vmatprep.mubr.bf16.mxu0 0
    %6728 = vmatmul.mubr.bf16.gmra.mrb[0].mxu0 %v5601
    %v6729 = vpop.f32.mrb[0].mxu0
    %v6730 = vadd.f32 0.0, %v6729
    %v6731 = vpop.f32.mrb[0].mxu0
    %v6732 = vpop.f32.mrb[0].mxu0
    %v6733 = vadd.f32 0.0, %v6732
    %v6734 = vpop.f32.mrb[0].mxu0
    %6735 = vdwg.mxu0
    %v6736 = vadd.f32 %v6326, %v6470
    %v6737 = vadd.f32 %v6327, %v6473
    %v6738 = vadd.f32 %v6328, %v6478
    %v6739 = vadd.f32 %v6329, %v6481
    %v6740 = vadd.f32 %v6330, %v6486
    %v6741 = vadd.f32 %v6331, %v6489
    %v6742 = vadd.f32 %v6332, %v6494
    %v6743 = vadd.f32 %v6333, %v6497
    %v6744 = vadd.f32 %v6334, %v6502
    %v6745 = vadd.f32 %v6335, %v6505
    %v6746 = vadd.f32 %v6336, %v6510
    %v6747 = vadd.f32 %v6337, %v6513
    %v6748 = vadd.f32 %v6338, %v6518
    %v6749 = vadd.f32 %v6339, %v6521
    %v6750 = vadd.f32 %v6340, %v6526
    %v6751 = vadd.f32 %v6341, %v6529
    %v6752 = vadd.f32 %v6342, %v6534
    %v6753 = vadd.f32 %v6343, %v6537
    %v6754 = vadd.f32 %v6344, %v6542
    %v6755 = vadd.f32 %v6345, %v6545
    %v6756 = vadd.f32 %v6346, %v6550
    %v6757 = vadd.f32 %v6347, %v6553
    %v6758 = vadd.f32 %v6348, %v6558
    %v6759 = vadd.f32 %v6349, %v6561
    %v6760 = vadd.f32 %v6350, %v6566
    %v6761 = vadd.f32 %v6351, %v6569
    %v6762 = vadd.f32 %v6352, %v6574
    %v6763 = vadd.f32 %v6353, %v6577
    %v6764 = vadd.f32 %v6354, %v6582
    %v6765 = vadd.f32 %v6355, %v6585
    %v6766 = vadd.f32 %v6356, %v6590
    %v6767 = vadd.f32 %v6357, %v6593
    %v6768 = vadd.f32 %v6358, %v6610
    %v6769 = vadd.f32 %v6359, %v6613
    %v6770 = vadd.f32 %v6360, %v6618
    %v6771 = vadd.f32 %v6361, %v6621
    %v6772 = vadd.f32 %v6362, %v6626
    %v6773 = vadd.f32 %v6363, %v6629
    %v6774 = vadd.f32 %v6364, %v6634
    %v6775 = vadd.f32 %v6365, %v6637
    %v6776 = vadd.f32 %v6366, %v6642
    %v6777 = vadd.f32 %v6367, %v6645
    %v6778 = vadd.f32 %v6368, %v6650
    %v6779 = vadd.f32 %v6369, %v6653
    %v6780 = vadd.f32 %v6370, %v6658
    %v6781 = vadd.f32 %v6371, %v6661
    %v6782 = vadd.f32 %v6372, %v6666
    %v6783 = vadd.f32 %v6373, %v6669
    %v6784 = vadd.f32 %v6374, %v6674
    %v6785 = vadd.f32 %v6375, %v6677
    %v6786 = vadd.f32 %v6376, %v6682
    %v6787 = vadd.f32 %v6377, %v6685
    %v6788 = vadd.f32 %v6378, %v6690
    %v6789 = vadd.f32 %v6379, %v6693
    %v6790 = vadd.f32 %v6380, %v6698
    %v6791 = vadd.f32 %v6381, %v6701
    %v6792 = vadd.f32 %v6382, %v6706
    %v6793 = vadd.f32 %v6383, %v6709
    %v6794 = vadd.f32 %v6384, %v6714
    %v6795 = vadd.f32 %v6385, %v6717
    %v6796 = vadd.f32 %v6386, %v6722
    %v6797 = vadd.f32 %v6387, %v6725
    %v6798 = vadd.f32 %v6388, %v6730
    %v6799 = vadd.f32 %v6389, %v6733
    %s6800 = scalar_lea.vmem [#allocation3], 576
    %v6801 = vld [vmem:[%s6800] sm:$0xff]
    %v6802 = vld [vmem:[%s6800 + $0x8] sm:$0xff]
    %v6803 = vld [vmem:[%s6800 + $0x10] sm:$0xff]
    %v6804 = vld [vmem:[%s6800 + $0x18] sm:$0xff]
    %v6805 = vld [vmem:[%s6800 + $0x20] sm:$0xff]
    %v6806 = vld [vmem:[%s6800 + $0x28] sm:$0xff]
    %v6807 = vld [vmem:[%s6800 + $0x30] sm:$0xff]
    %v6808 = vld [vmem:[%s6800 + $0x38] sm:$0xff]
    %v6809 = vld [vmem:[%s6800 + $0x40] sm:$0xff]
    %v6810 = vld [vmem:[%s6800 + $0x48] sm:$0xff]
    %v6811 = vld [vmem:[%s6800 + $0x50] sm:$0xff]
    %v6812 = vld [vmem:[%s6800 + $0x58] sm:$0xff]
    %v6813 = vld [vmem:[%s6800 + $0x60] sm:$0xff]
    %v6814 = vld [vmem:[%s6800 + $0x68] sm:$0xff]
    %v6815 = vld [vmem:[%s6800 + $0x70] sm:$0xff]
    %v6816 = vld [vmem:[%s6800 + $0x78] sm:$0xff]
    %v6817 = vld [vmem:[%s6800 + $0x80] sm:$0xff]
    %v6818 = vld [vmem:[%s6800 + $0x88] sm:$0xff]
    %v6819 = vld [vmem:[%s6800 + $0x90] sm:$0xff]
    %v6820 = vld [vmem:[%s6800 + $0x98] sm:$0xff]
    %v6821 = vld [vmem:[%s6800 + $0xa0] sm:$0xff]
    %v6822 = vld [vmem:[%s6800 + $0xa8] sm:$0xff]
    %v6823 = vld [vmem:[%s6800 + $0xb0] sm:$0xff]
    %v6824 = vld [vmem:[%s6800 + $0xb8] sm:$0xff]
    %v6825 = vld [vmem:[%s6800 + $0xc0] sm:$0xff]
    %v6826 = vld [vmem:[%s6800 + $0xc8] sm:$0xff]
    %v6827 = vld [vmem:[%s6800 + $0xd0] sm:$0xff]
    %v6828 = vld [vmem:[%s6800 + $0xd8] sm:$0xff]
    %v6829 = vld [vmem:[%s6800 + $0xe0] sm:$0xff]
    %v6830 = vld [vmem:[%s6800 + $0xe8] sm:$0xff]
    %v6831 = vld [vmem:[%s6800 + $0xf0] sm:$0xff]
    %v6832 = vld [vmem:[%s6800 + $0xf8] sm:$0xff]
    %v6833 = vld [vmem:[%s6800 + $0x100] sm:$0xff]
    %v6834 = vld [vmem:[%s6800 + $0x108] sm:$0xff]
    %v6835 = vld [vmem:[%s6800 + $0x110] sm:$0xff]
    %v6836 = vld [vmem:[%s6800 + $0x118] sm:$0xff]
    %s6837 = scalar_lea.vmem %s4, 64
    %v6838 = vld [vmem:[%s6837] sm:$0xf]
    %v6839 = vld [vmem:[%s6837 + $0x4] sm:$0xf]
    %v6840 = vld [vmem:[%s6837 + $0x8] sm:$0xf]
    %v6841 = vld [vmem:[%s6837 + $0xc] sm:$0xf]
    %v6842 = vld [vmem:[%s6837 + $0x10] sm:$0xf]
    %v6843 = vld [vmem:[%s6837 + $0x14] sm:$0xf]
    %v6844 = vld [vmem:[%s6837 + $0x18] sm:$0xf]
    %v6845 = vld [vmem:[%s6837 + $0x1c] sm:$0xf]
    %v6854 = vunpack.c.l.b16 %v6838
    %v6855 = vunpack.c.l.b16 %v6839
    %v6856 = vunpack.c.l.b16 %v6840
    %v6857 = vunpack.c.l.b16 %v6841
    %v6858 = vunpack.c.l.b16 %v6842
    %v6859 = vunpack.c.l.b16 %v6843
    %v6860 = vunpack.c.l.b16 %v6844
    %v6861 = vunpack.c.l.b16 %v6845
    %v6862 = vpack.c.b16 %v6855, %v6854
    %v6863 = vpack.c.b16 %v6857, %v6856
    %v6864 = vpack.c.b16 %v6859, %v6858
    %v6865 = vpack.c.b16 %v6861, %v6860
    %v6871 = vsel %vm4119, %v6801, 0
    %v6874 = vsel %vm4119, %v6802, 0
    %v6877 = vsel %vm4119, %v6803, 0
    %v6880 = vsel %vm4119, %v6804, 0
    %v6883 = vsel %vm4119, %v6805, 0
    %v6886 = vsel %vm4119, %v6806, 0
    %v6889 = vsel %vm4119, %v6807, 0
    %v6892 = vsel %vm4119, %v6808, 0
    %v6895 = vsel %vm4119, %v6809, 0
    %v6898 = vsel %vm4119, %v6810, 0
    %v6901 = vsel %vm4119, %v6811, 0
    %v6904 = vsel %vm4119, %v6812, 0
    %v6907 = vsel %vm4119, %v6813, 0
    %v6910 = vsel %vm4119, %v6814, 0
    %v6913 = vsel %vm4119, %v6815, 0
    %v6916 = vsel %vm4119, %v6816, 0
    %v6919 = vsel %vm4119, %v6817, 0
    %v6922 = vsel %vm4119, %v6818, 0
    %v6925 = vsel %vm4119, %v6819, 0
    %v6928 = vsel %vm4119, %v6820, 0
    %v6931 = vsel %vm4119, %v6821, 0
    %v6934 = vsel %vm4119, %v6822, 0
    %v6937 = vsel %vm4119, %v6823, 0
    %v6940 = vsel %vm4119, %v6824, 0
    %v6943 = vsel %vm4119, %v6825, 0
    %v6946 = vsel %vm4119, %v6826, 0
    %v6949 = vsel %vm4119, %v6827, 0
    %v6952 = vsel %vm4119, %v6828, 0
    %v6955 = vsel %vm4119, %v6829, 0
    %v6958 = vsel %vm4119, %v6830, 0
    %v6961 = vsel %vm4119, %v6831, 0
    %v6964 = vsel %vm4119, %v6832, 0
    %v6967 = vsel %vm4119, %v6833, 0
    %v6970 = vsel %vm4119, %v6834, 0
    %v6973 = vsel %vm4119, %v6835, 0
    %v6976 = vsel %vm4119, %v6836, 0
    %6978 = vmatprep.subr.bf16.mxu0 0
    %6979 = vmatpush1.bf16.msra.mxu0 %v6862
    %6980 = vmatprep.subr.bf16.mxu0 0
    %6981 = vmatpush1.bf16.msra.mxu0 %v6863
    %6982 = vmatprep.subr.bf16.mxu0 0
    %6983 = vmatpush1.bf16.msra.mxu0 %v6864
    %6984 = vmatprep.subr.bf16.mxu0 0
    %6985 = vmatpush1.bf16.msra.mxu0 %v6865
    %6986 = vmatprep.subr.bf16.mxu0 0
    %6987 = vmatpush1.bf16.msra.mxu0 0
    %6988 = vmatprep.subr.bf16.mxu0 0
    %6989 = vmatpush1.bf16.msra.mxu0 0
    %6990 = vmatprep.subr.bf16.mxu0 0
    %6991 = vmatpush1.bf16.msra.mxu0 0
    %6992 = vmatprep.subr.bf16.mxu0 0
    %6993 = vmatpush1.bf16.msra.mxu0 0
    %6994 = vmatprep.subr.bf16.mxu0 0
    %6995 = vmatpush1.bf16.msra.mxu0 0
    %6996 = vmatprep.subr.bf16.mxu0 0
    %6997 = vmatpush1.bf16.msra.mxu0 0
    %6998 = vmatprep.subr.bf16.mxu0 0
    %6999 = vmatpush1.bf16.msra.mxu0 0
    %7000 = vmatprep.subr.bf16.mxu0 0
    %7001 = vmatpush1.bf16.msra.mxu0 0
    %7002 = vmatprep.subr.bf16.mxu0 0
    %7003 = vmatpush1.bf16.msra.mxu0 0
    %7004 = vmatprep.subr.bf16.mxu0 0
    %7005 = vmatpush1.bf16.msra.mxu0 0
    %7006 = vmatprep.subr.bf16.mxu0 0
    %7007 = vmatpush1.bf16.msra.mxu0 0
    %7008 = vmatprep.subr.bf16.mxu0 0
    %7009 = vmatpush1.bf16.msra.mxu0 0
    %7010 = vmatprep.mubr.bf16.mxu0 0
    %7011 = vmatmul.mubr.bf16.gmra.mrb[0].mxu0 %v6871
    %v7012 = vpop.f32.mrb[0].mxu0
    %v7013 = vadd.f32 0.0, %v7012
    %v7014 = vpop.f32.mrb[0].mxu0
    %v7015 = vpop.f32.mrb[0].mxu0
    %v7016 = vadd.f32 0.0, %v7015
    %v7017 = vpop.f32.mrb[0].mxu0
    %7018 = vmatprep.mubr.bf16.mxu0 0
    %7019 = vmatmul.mubr.bf16.gmra.mrb[0].mxu0 %v6874
    %v7020 = vpop.f32.mrb[0].mxu0
    %v7021 = vadd.f32 0.0, %v7020
    %v7022 = vpop.f32.mrb[0].mxu0
    %v7023 = vpop.f32.mrb[0].mxu0
    %v7024 = vadd.f32 0.0, %v7023
    %v7025 = vpop.f32.mrb[0].mxu0
    %7026 = vmatprep.mubr.bf16.mxu0 0
    %7027 = vmatmul.mubr.bf16.gmra.mrb[0].mxu0 %v6877
    %v7028 = vpop.f32.mrb[0].mxu0
    %v7029 = vadd.f32 0.0, %v7028
    %v7030 = vpop.f32.mrb[0].mxu0
    %v7031 = vpop.f32.mrb[0].mxu0
    %v7032 = vadd.f32 0.0, %v7031
    %v7033 = vpop.f32.mrb[0].mxu0
    %7034 = vmatprep.mubr.bf16.mxu0 0
    %7035 = vmatmul.mubr.bf16.gmra.mrb[0].mxu0 %v6880
    %v7036 = vpop.f32.mrb[0].mxu0
    %v7037 = vadd.f32 0.0, %v7036
    %v7038 = vpop.f32.mrb[0].mxu0
    %v7039 = vpop.f32.mrb[0].mxu0
    %v7040 = vadd.f32 0.0, %v7039
    %v7041 = vpop.f32.mrb[0].mxu0
    %7042 = vmatprep.mubr.bf16.mxu0 0
    %7043 = vmatmul.mubr.bf16.gmra.mrb[0].mxu0 %v6883
    %v7044 = vpop.f32.mrb[0].mxu0
    %v7045 = vadd.f32 0.0, %v7044
    %v7046 = vpop.f32.mrb[0].mxu0
    %v7047 = vpop.f32.mrb[0].mxu0
    %v7048 = vadd.f32 0.0, %v7047
    %v7049 = vpop.f32.mrb[0].mxu0
    %7050 = vmatprep.mubr.bf16.mxu0 0
    %7051 = vmatmul.mubr.bf16.gmra.mrb[0].mxu0 %v6886
    %v7052 = vpop.f32.mrb[0].mxu0
    %v7053 = vadd.f32 0.0, %v7052
    %v7054 = vpop.f32.mrb[0].mxu0
    %v7055 = vpop.f32.mrb[0].mxu0
    %v7056 = vadd.f32 0.0, %v7055
    %v7057 = vpop.f32.mrb[0].mxu0
    %7058 = vmatprep.mubr.bf16.mxu0 0
    %7059 = vmatmul.mubr.bf16.gmra.mrb[0].mxu0 %v6889
    %v7060 = vpop.f32.mrb[0].mxu0
    %v7061 = vadd.f32 0.0, %v7060
    %v7062 = vpop.f32.mrb[0].mxu0
    %v7063 = vpop.f32.mrb[0].mxu0
    %v7064 = vadd.f32 0.0, %v7063
    %v7065 = vpop.f32.mrb[0].mxu0
    %7066 = vmatprep.mubr.bf16.mxu0 0
    %7067 = vmatmul.mubr.bf16.gmra.mrb[0].mxu0 %v6892
    %v7068 = vpop.f32.mrb[0].mxu0
    %v7069 = vadd.f32 0.0, %v7068
    %v7070 = vpop.f32.mrb[0].mxu0
    %v7071 = vpop.f32.mrb[0].mxu0
    %v7072 = vadd.f32 0.0, %v7071
    %v7073 = vpop.f32.mrb[0].mxu0
    %7074 = vmatprep.mubr.bf16.mxu0 0
    %7075 = vmatmul.mubr.bf16.gmra.mrb[0].mxu0 %v6895
    %v7076 = vpop.f32.mrb[0].mxu0
    %v7077 = vadd.f32 0.0, %v7076
    %v7078 = vpop.f32.mrb[0].mxu0
    %v7079 = vpop.f32.mrb[0].mxu0
    %v7080 = vadd.f32 0.0, %v7079
    %v7081 = vpop.f32.mrb[0].mxu0
    %7082 = vmatprep.mubr.bf16.mxu0 0
    %7083 = vmatmul.mubr.bf16.gmra.mrb[0].mxu0 %v6898
    %v7084 = vpop.f32.mrb[0].mxu0
    %v7085 = vadd.f32 0.0, %v7084
    %v7086 = vpop.f32.mrb[0].mxu0
    %v7087 = vpop.f32.mrb[0].mxu0
    %v7088 = vadd.f32 0.0, %v7087
    %v7089 = vpop.f32.mrb[0].mxu0
    %7090 = vmatprep.mubr.bf16.mxu0 0
    %7091 = vmatmul.mubr.bf16.gmra.mrb[0].mxu0 %v6901
    %v7092 = vpop.f32.mrb[0].mxu0
    %v7093 = vadd.f32 0.0, %v7092
    %v7094 = vpop.f32.mrb[0].mxu0
    %v7095 = vpop.f32.mrb[0].mxu0
    %v7096 = vadd.f32 0.0, %v7095
    %v7097 = vpop.f32.mrb[0].mxu0
    %7098 = vmatprep.mubr.bf16.mxu0 0
    %7099 = vmatmul.mubr.bf16.gmra.mrb[0].mxu0 %v6904
    %v7100 = vpop.f32.mrb[0].mxu0
    %v7101 = vadd.f32 0.0, %v7100
    %v7102 = vpop.f32.mrb[0].mxu0
    %v7103 = vpop.f32.mrb[0].mxu0
    %v7104 = vadd.f32 0.0, %v7103
    %v7105 = vpop.f32.mrb[0].mxu0
    %7106 = vmatprep.mubr.bf16.mxu0 0
    %7107 = vmatmul.mubr.bf16.gmra.mrb[0].mxu0 %v6907
    %v7108 = vpop.f32.mrb[0].mxu0
    %v7109 = vadd.f32 0.0, %v7108
    %v7110 = vpop.f32.mrb[0].mxu0
    %v7111 = vpop.f32.mrb[0].mxu0
    %v7112 = vadd.f32 0.0, %v7111
    %v7113 = vpop.f32.mrb[0].mxu0
    %7114 = vmatprep.mubr.bf16.mxu0 0
    %7115 = vmatmul.mubr.bf16.gmra.mrb[0].mxu0 %v6910
    %v7116 = vpop.f32.mrb[0].mxu0
    %v7117 = vadd.f32 0.0, %v7116
    %v7118 = vpop.f32.mrb[0].mxu0
    %v7119 = vpop.f32.mrb[0].mxu0
    %v7120 = vadd.f32 0.0, %v7119
    %v7121 = vpop.f32.mrb[0].mxu0
    %7122 = vmatprep.mubr.bf16.mxu0 0
    %7123 = vmatmul.mubr.bf16.gmra.mrb[0].mxu0 %v6913
    %v7124 = vpop.f32.mrb[0].mxu0
    %v7125 = vadd.f32 0.0, %v7124
    %v7126 = vpop.f32.mrb[0].mxu0
    %v7127 = vpop.f32.mrb[0].mxu0
    %v7128 = vadd.f32 0.0, %v7127
    %v7129 = vpop.f32.mrb[0].mxu0
    %7130 = vmatprep.mubr.bf16.mxu0 0
    %7131 = vmatmul.mubr.bf16.gmra.mrb[0].mxu0 %v6916
    %v7132 = vpop.f32.mrb[0].mxu0
    %v7133 = vadd.f32 0.0, %v7132
    %v7134 = vpop.f32.mrb[0].mxu0
    %v7135 = vpop.f32.mrb[0].mxu0
    %v7136 = vadd.f32 0.0, %v7135
    %v7137 = vpop.f32.mrb[0].mxu0
    %7138 = vmatprep.mubr.bf16.mxu0 0
    %7139 = vmatmul.mubr.bf16.gmra.mrb[0].mxu0 %v6919
    %v7140 = vpop.f32.mrb[0].mxu0
    %v7141 = vpop.f32.mrb[0].mxu0
    %v7142 = vpop.f32.mrb[0].mxu0
    %v7143 = vpop.f32.mrb[0].mxu0
    %7144 = vmatprep.mubr.bf16.mxu0 0
    %7145 = vmatmul.mubr.bf16.gmra.mrb[0].mxu0 %v6922
    %v7146 = vpop.f32.mrb[0].mxu0
    %v7147 = vpop.f32.mrb[0].mxu0
    %v7148 = vpop.f32.mrb[0].mxu0
    %v7149 = vpop.f32.mrb[0].mxu0
    %7150 = vmatprep.mubr.bf16.mxu0 0
    %7151 = vmatmul.mubr.bf16.gmra.mrb[0].mxu0 %v6925
    %v7152 = vpop.f32.mrb[0].mxu0
    %v7153 = vadd.f32 0.0, %v7152
    %v7154 = vpop.f32.mrb[0].mxu0
    %v7155 = vpop.f32.mrb[0].mxu0
    %v7156 = vadd.f32 0.0, %v7155
    %v7157 = vpop.f32.mrb[0].mxu0
    %7158 = vmatprep.mubr.bf16.mxu0 0
    %7159 = vmatmul.mubr.bf16.gmra.mrb[0].mxu0 %v6928
    %v7160 = vpop.f32.mrb[0].mxu0
    %v7161 = vadd.f32 0.0, %v7160
    %v7162 = vpop.f32.mrb[0].mxu0
    %v7163 = vpop.f32.mrb[0].mxu0
    %v7164 = vadd.f32 0.0, %v7163
    %v7165 = vpop.f32.mrb[0].mxu0
    %7166 = vmatprep.mubr.bf16.mxu0 0
    %7167 = vmatmul.mubr.bf16.gmra.mrb[0].mxu0 %v6931
    %v7168 = vpop.f32.mrb[0].mxu0
    %v7169 = vadd.f32 0.0, %v7168
    %v7170 = vpop.f32.mrb[0].mxu0
    %v7171 = vpop.f32.mrb[0].mxu0
    %v7172 = vadd.f32 0.0, %v7171
    %v7173 = vpop.f32.mrb[0].mxu0
    %7174 = vmatprep.mubr.bf16.mxu0 0
    %7175 = vmatmul.mubr.bf16.gmra.mrb[0].mxu0 %v6934
    %v7176 = vpop.f32.mrb[0].mxu0
    %v7177 = vadd.f32 0.0, %v7176
    %v7178 = vpop.f32.mrb[0].mxu0
    %v7179 = vpop.f32.mrb[0].mxu0
    %v7180 = vadd.f32 0.0, %v7179
    %v7181 = vpop.f32.mrb[0].mxu0
    %7182 = vmatprep.mubr.bf16.mxu0 0
    %7183 = vmatmul.mubr.bf16.gmra.mrb[0].mxu0 %v6937
    %v7184 = vpop.f32.mrb[0].mxu0
    %v7185 = vadd.f32 0.0, %v7184
    %v7186 = vpop.f32.mrb[0].mxu0
    %v7187 = vpop.f32.mrb[0].mxu0
    %v7188 = vadd.f32 0.0, %v7187
    %v7189 = vpop.f32.mrb[0].mxu0
    %7190 = vmatprep.mubr.bf16.mxu0 0
    %7191 = vmatmul.mubr.bf16.gmra.mrb[0].mxu0 %v6940
    %v7192 = vpop.f32.mrb[0].mxu0
    %v7193 = vadd.f32 0.0, %v7192
    %v7194 = vpop.f32.mrb[0].mxu0
    %v7195 = vpop.f32.mrb[0].mxu0
    %v7196 = vadd.f32 0.0, %v7195
    %v7197 = vpop.f32.mrb[0].mxu0
    %7198 = vmatprep.mubr.bf16.mxu0 0
    %7199 = vmatmul.mubr.bf16.gmra.mrb[0].mxu0 %v6943
    %v7200 = vpop.f32.mrb[0].mxu0
    %v7201 = vadd.f32 0.0, %v7200
    %v7202 = vpop.f32.mrb[0].mxu0
    %v7203 = vpop.f32.mrb[0].mxu0
    %v7204 = vadd.f32 0.0, %v7203
    %v7205 = vpop.f32.mrb[0].mxu0
    %7206 = vmatprep.mubr.bf16.mxu0 0
    %7207 = vmatmul.mubr.bf16.gmra.mrb[0].mxu0 %v6946
    %v7208 = vpop.f32.mrb[0].mxu0
    %v7209 = vadd.f32 0.0, %v7208
    %v7210 = vpop.f32.mrb[0].mxu0
    %v7211 = vpop.f32.mrb[0].mxu0
    %v7212 = vadd.f32 0.0, %v7211
    %v7213 = vpop.f32.mrb[0].mxu0
    %7214 = vmatprep.mubr.bf16.mxu0 0
    %7215 = vmatmul.mubr.bf16.gmra.mrb[0].mxu0 %v6949
    %v7216 = vpop.f32.mrb[0].mxu0
    %v7217 = vadd.f32 0.0, %v7216
    %v7218 = vpop.f32.mrb[0].mxu0
    %v7219 = vpop.f32.mrb[0].mxu0
    %v7220 = vadd.f32 0.0, %v7219
    %v7221 = vpop.f32.mrb[0].mxu0
    %7222 = vmatprep.mubr.bf16.mxu0 0
    %7223 = vmatmul.mubr.bf16.gmra.mrb[0].mxu0 %v6952
    %v7224 = vpop.f32.mrb[0].mxu0
    %v7225 = vadd.f32 0.0, %v7224
    %v7226 = vpop.f32.mrb[0].mxu0
    %v7227 = vpop.f32.mrb[0].mxu0
    %v7228 = vadd.f32 0.0, %v7227
    %v7229 = vpop.f32.mrb[0].mxu0
    %7230 = vmatprep.mubr.bf16.mxu0 0
    %7231 = vmatmul.mubr.bf16.gmra.mrb[0].mxu0 %v6955
    %v7232 = vpop.f32.mrb[0].mxu0
    %v7233 = vadd.f32 0.0, %v7232
    %v7234 = vpop.f32.mrb[0].mxu0
    %v7235 = vpop.f32.mrb[0].mxu0
    %v7236 = vadd.f32 0.0, %v7235
    %v7237 = vpop.f32.mrb[0].mxu0
    %7238 = vmatprep.mubr.bf16.mxu0 0
    %7239 = vmatmul.mubr.bf16.gmra.mrb[0].mxu0 %v6958
    %v7240 = vpop.f32.mrb[0].mxu0
    %v7241 = vadd.f32 0.0, %v7240
    %v7242 = vpop.f32.mrb[0].mxu0
    %v7243 = vpop.f32.mrb[0].mxu0
    %v7244 = vadd.f32 0.0, %v7243
    %v7245 = vpop.f32.mrb[0].mxu0
    %7246 = vmatprep.mubr.bf16.mxu0 0
    %7247 = vmatmul.mubr.bf16.gmra.mrb[0].mxu0 %v6961
    %v7248 = vpop.f32.mrb[0].mxu0
    %v7249 = vadd.f32 0.0, %v7248
    %v7250 = vpop.f32.mrb[0].mxu0
    %v7251 = vpop.f32.mrb[0].mxu0
    %v7252 = vadd.f32 0.0, %v7251
    %v7253 = vpop.f32.mrb[0].mxu0
    %7254 = vmatprep.mubr.bf16.mxu0 0
    %7255 = vmatmul.mubr.bf16.gmra.mrb[0].mxu0 %v6964
    %v7256 = vpop.f32.mrb[0].mxu0
    %v7257 = vadd.f32 0.0, %v7256
    %v7258 = vpop.f32.mrb[0].mxu0
    %v7259 = vpop.f32.mrb[0].mxu0
    %v7260 = vadd.f32 0.0, %v7259
    %v7261 = vpop.f32.mrb[0].mxu0
    %7262 = vmatprep.mubr.bf16.mxu0 0
    %7263 = vmatmul.mubr.bf16.gmra.mrb[0].mxu0 %v6967
    %v7264 = vpop.f32.mrb[0].mxu0
    %v7265 = vadd.f32 0.0, %v7264
    %v7266 = vpop.f32.mrb[0].mxu0
    %v7267 = vpop.f32.mrb[0].mxu0
    %v7268 = vadd.f32 0.0, %v7267
    %v7269 = vpop.f32.mrb[0].mxu0
    %7270 = vmatprep.mubr.bf16.mxu0 0
    %7271 = vmatmul.mubr.bf16.gmra.mrb[0].mxu0 %v6970
    %v7272 = vpop.f32.mrb[0].mxu0
    %v7273 = vadd.f32 0.0, %v7272
    %v7274 = vpop.f32.mrb[0].mxu0
    %v7275 = vpop.f32.mrb[0].mxu0
    %v7276 = vadd.f32 0.0, %v7275
    %v7277 = vpop.f32.mrb[0].mxu0
    %7278 = vmatprep.mubr.bf16.mxu0 0
    %7279 = vmatmul.mubr.bf16.gmra.mrb[0].mxu0 %v6973
    %v7280 = vpop.f32.mrb[0].mxu0
    %v7281 = vpop.f32.mrb[0].mxu0
    %v7282 = vpop.f32.mrb[0].mxu0
    %v7283 = vpop.f32.mrb[0].mxu0
    %7284 = vmatprep.mubr.bf16.mxu0 0
    %7285 = vmatmul.mubr.bf16.gmra.mrb[0].mxu0 %v6976
    %v7286 = vpop.f32.mrb[0].mxu0
    %v7287 = vpop.f32.mrb[0].mxu0
    %v7288 = vpop.f32.mrb[0].mxu0
    %v7289 = vpop.f32.mrb[0].mxu0
    %7290 = vdwg.mxu0
    %v7291 = vadd.f32 %v6736, %v7013
    %v7292 = vadd.f32 %v6737, %v7016
    %v7293 = vadd.f32 %v6738, %v7021
    %v7294 = vadd.f32 %v6739, %v7024
    %v7295 = vadd.f32 %v6740, %v7029
    %v7296 = vadd.f32 %v6741, %v7032
    %v7297 = vadd.f32 %v6742, %v7037
    %v7298 = vadd.f32 %v6743, %v7040
    %v7299 = vadd.f32 %v6744, %v7045
    %v7300 = vadd.f32 %v6745, %v7048
    %v7301 = vadd.f32 %v6746, %v7053
    %v7302 = vadd.f32 %v6747, %v7056
    %v7303 = vadd.f32 %v6748, %v7061
    %v7304 = vadd.f32 %v6749, %v7064
    %v7305 = vadd.f32 %v6750, %v7069
    %v7306 = vadd.f32 %v6751, %v7072
    %v7307 = vadd.f32 %v6752, %v7077
    %v7308 = vadd.f32 %v6753, %v7080
    %v7309 = vadd.f32 %v6754, %v7085
    %v7310 = vadd.f32 %v6755, %v7088
    %v7311 = vadd.f32 %v6756, %v7093
    %v7312 = vadd.f32 %v6757, %v7096
    %v7313 = vadd.f32 %v6758, %v7101
    %v7314 = vadd.f32 %v6759, %v7104
    %v7315 = vadd.f32 %v6760, %v7109
    %v7316 = vadd.f32 %v6761, %v7112
    %v7317 = vadd.f32 %v6762, %v7117
    %v7318 = vadd.f32 %v6763, %v7120
    %v7319 = vadd.f32 %v6764, %v7125
    %v7320 = vadd.f32 %v6765, %v7128
    %v7321 = vadd.f32 %v6766, %v7133
    %v7322 = vadd.f32 %v6767, %v7136
    %v7323 = vadd.f32 %v6768, %v7153
    %v7324 = vadd.f32 %v6769, %v7156
    %v7325 = vadd.f32 %v6770, %v7161
    %v7326 = vadd.f32 %v6771, %v7164
    %v7327 = vadd.f32 %v6772, %v7169
    %v7328 = vadd.f32 %v6773, %v7172
    %v7329 = vadd.f32 %v6774, %v7177
    %v7330 = vadd.f32 %v6775, %v7180
    %v7331 = vadd.f32 %v6776, %v7185
    %v7332 = vadd.f32 %v6777, %v7188
    %v7333 = vadd.f32 %v6778, %v7193
    %v7334 = vadd.f32 %v6779, %v7196
    %v7335 = vadd.f32 %v6780, %v7201
    %v7336 = vadd.f32 %v6781, %v7204
    %v7337 = vadd.f32 %v6782, %v7209
    %v7338 = vadd.f32 %v6783, %v7212
    %v7339 = vadd.f32 %v6784, %v7217
    %v7340 = vadd.f32 %v6785, %v7220
    %v7341 = vadd.f32 %v6786, %v7225
    %v7342 = vadd.f32 %v6787, %v7228
    %v7343 = vadd.f32 %v6788, %v7233
    %v7344 = vadd.f32 %v6789, %v7236
    %v7345 = vadd.f32 %v6790, %v7241
    %v7346 = vadd.f32 %v6791, %v7244
    %v7347 = vadd.f32 %v6792, %v7249
    %v7348 = vadd.f32 %v6793, %v7252
    %v7349 = vadd.f32 %v6794, %v7257
    %v7350 = vadd.f32 %v6795, %v7260
    %v7351 = vadd.f32 %v6796, %v7265
    %v7352 = vadd.f32 %v6797, %v7268
    %v7353 = vadd.f32 %v6798, %v7273
    %v7354 = vadd.f32 %v6799, %v7276
    %s7355 = scalar_lea.vmem %s4, 160
    %v7356 = vld [vmem:[%s7355] sm:$0xf]
    %v7357 = vld [vmem:[%s7355 + $0x4] sm:$0xf]
    %v7358 = vld [vmem:[%s7355 + $0x8] sm:$0xf]
    %v7359 = vld [vmem:[%s7355 + $0xc] sm:$0xf]
    %v7360 = vld [vmem:[%s7355 + $0x10] sm:$0xf]
    %v7361 = vld [vmem:[%s7355 + $0x14] sm:$0xf]
    %v7362 = vld [vmem:[%s7355 + $0x18] sm:$0xf]
    %v7363 = vld [vmem:[%s7355 + $0x1c] sm:$0xf]
    %v7372 = vunpack.c.l.b16 %v7356
    %v7373 = vunpack.c.l.b16 %v7357
    %v7374 = vunpack.c.l.b16 %v7358
    %v7375 = vunpack.c.l.b16 %v7359
    %v7376 = vunpack.c.l.b16 %v7360
    %v7377 = vunpack.c.l.b16 %v7361
    %v7378 = vunpack.c.l.b16 %v7362
    %v7379 = vunpack.c.l.b16 %v7363
    %v7380 = vpack.c.b16 %v7373, %v7372
    %v7381 = vpack.c.b16 %v7375, %v7374
    %v7382 = vpack.c.b16 %v7377, %v7376
    %v7383 = vpack.c.b16 %v7379, %v7378
    %7388 = vmatprep.subr.bf16.mxu0 0
    %7389 = vmatpush1.bf16.msra.mxu0 %v7380
    %7390 = vmatprep.subr.bf16.mxu0 0
    %7391 = vmatpush1.bf16.msra.mxu0 %v7381
    %7392 = vmatprep.subr.bf16.mxu0 0
    %7393 = vmatpush1.bf16.msra.mxu0 %v7382
    %7394 = vmatprep.subr.bf16.mxu0 0
    %7395 = vmatpush1.bf16.msra.mxu0 %v7383
    %7396 = vmatprep.subr.bf16.mxu0 0
    %7397 = vmatpush1.bf16.msra.mxu0 0
    %7398 = vmatprep.subr.bf16.mxu0 0
    %7399 = vmatpush1.bf16.msra.mxu0 0
    %7400 = vmatprep.subr.bf16.mxu0 0
    %7401 = vmatpush1.bf16.msra.mxu0 0
    %7402 = vmatprep.subr.bf16.mxu0 0
    %7403 = vmatpush1.bf16.msra.mxu0 0
    %7404 = vmatprep.subr.bf16.mxu0 0
    %7405 = vmatpush1.bf16.msra.mxu0 0
    %7406 = vmatprep.subr.bf16.mxu0 0
    %7407 = vmatpush1.bf16.msra.mxu0 0
    %7408 = vmatprep.subr.bf16.mxu0 0
    %7409 = vmatpush1.bf16.msra.mxu0 0
    %7410 = vmatprep.subr.bf16.mxu0 0
    %7411 = vmatpush1.bf16.msra.mxu0 0
    %7412 = vmatprep.subr.bf16.mxu0 0
    %7413 = vmatpush1.bf16.msra.mxu0 0
    %7414 = vmatprep.subr.bf16.mxu0 0
    %7415 = vmatpush1.bf16.msra.mxu0 0
    %7416 = vmatprep.subr.bf16.mxu0 0
    %7417 = vmatpush1.bf16.msra.mxu0 0
    %7418 = vmatprep.subr.bf16.mxu0 0
    %7419 = vmatpush1.bf16.msra.mxu0 0
    %7420 = vmatprep.mubr.bf16.mxu0 0
    %7421 = vmatmul.mubr.bf16.gmra.mrb[0].mxu0 %v6871
    %v7422 = vpop.f32.mrb[0].mxu0
    %v7423 = vpop.f32.mrb[0].mxu0
    %v7424 = vpop.f32.mrb[0].mxu0
    %v7425 = vpop.f32.mrb[0].mxu0
    %7426 = vmatprep.mubr.bf16.mxu0 0
    %7427 = vmatmul.mubr.bf16.gmra.mrb[0].mxu0 %v6874
    %v7428 = vpop.f32.mrb[0].mxu0
    %v7429 = vadd.f32 0.0, %v7428
    %v7430 = vpop.f32.mrb[0].mxu0
    %v7431 = vpop.f32.mrb[0].mxu0
    %v7432 = vadd.f32 0.0, %v7431
    %v7433 = vpop.f32.mrb[0].mxu0
    %7434 = vmatprep.mubr.bf16.mxu0 0
    %7435 = vmatmul.mubr.bf16.gmra.mrb[0].mxu0 %v6877
    %v7436 = vpop.f32.mrb[0].mxu0
    %v7437 = vadd.f32 0.0, %v7436
    %v7438 = vpop.f32.mrb[0].mxu0
    %v7439 = vpop.f32.mrb[0].mxu0
    %v7440 = vadd.f32 0.0, %v7439
    %v7441 = vpop.f32.mrb[0].mxu0
    %7442 = vmatprep.mubr.bf16.mxu0 0
    %7443 = vmatmul.mubr.bf16.gmra.mrb[0].mxu0 %v6880
    %v7444 = vpop.f32.mrb[0].mxu0
    %v7445 = vadd.f32 0.0, %v7444
    %v7446 = vpop.f32.mrb[0].mxu0
    %v7447 = vpop.f32.mrb[0].mxu0
    %v7448 = vadd.f32 0.0, %v7447
    %v7449 = vpop.f32.mrb[0].mxu0
    %7450 = vmatprep.mubr.bf16.mxu0 0
    %7451 = vmatmul.mubr.bf16.gmra.mrb[0].mxu0 %v6883
    %v7452 = vpop.f32.mrb[0].mxu0
    %v7453 = vadd.f32 0.0, %v7452
    %v7454 = vpop.f32.mrb[0].mxu0
    %v7455 = vpop.f32.mrb[0].mxu0
    %v7456 = vadd.f32 0.0, %v7455
    %v7457 = vpop.f32.mrb[0].mxu0
    %7458 = vmatprep.mubr.bf16.mxu0 0
    %7459 = vmatmul.mubr.bf16.gmra.mrb[0].mxu0 %v6886
    %v7460 = vpop.f32.mrb[0].mxu0
    %v7461 = vadd.f32 0.0, %v7460
    %v7462 = vpop.f32.mrb[0].mxu0
    %v7463 = vpop.f32.mrb[0].mxu0
    %v7464 = vadd.f32 0.0, %v7463
    %v7465 = vpop.f32.mrb[0].mxu0
    %7466 = vmatprep.mubr.bf16.mxu0 0
    %7467 = vmatmul.mubr.bf16.gmra.mrb[0].mxu0 %v6889
    %v7468 = vpop.f32.mrb[0].mxu0
    %v7469 = vadd.f32 0.0, %v7468
    %v7470 = vpop.f32.mrb[0].mxu0
    %v7471 = vpop.f32.mrb[0].mxu0
    %v7472 = vadd.f32 0.0, %v7471
    %v7473 = vpop.f32.mrb[0].mxu0
    %7474 = vmatprep.mubr.bf16.mxu0 0
    %7475 = vmatmul.mubr.bf16.gmra.mrb[0].mxu0 %v6892
    %v7476 = vpop.f32.mrb[0].mxu0
    %v7477 = vadd.f32 0.0, %v7476
    %v7478 = vpop.f32.mrb[0].mxu0
    %v7479 = vpop.f32.mrb[0].mxu0
    %v7480 = vadd.f32 0.0, %v7479
    %v7481 = vpop.f32.mrb[0].mxu0
    %7482 = vmatprep.mubr.bf16.mxu0 0
    %7483 = vmatmul.mubr.bf16.gmra.mrb[0].mxu0 %v6895
    %v7484 = vpop.f32.mrb[0].mxu0
    %v7485 = vadd.f32 0.0, %v7484
    %v7486 = vpop.f32.mrb[0].mxu0
    %v7487 = vpop.f32.mrb[0].mxu0
    %v7488 = vadd.f32 0.0, %v7487
    %v7489 = vpop.f32.mrb[0].mxu0
    %7490 = vmatprep.mubr.bf16.mxu0 0
    %7491 = vmatmul.mubr.bf16.gmra.mrb[0].mxu0 %v6898
    %v7492 = vpop.f32.mrb[0].mxu0
    %v7493 = vadd.f32 0.0, %v7492
    %v7494 = vpop.f32.mrb[0].mxu0
    %v7495 = vpop.f32.mrb[0].mxu0
    %v7496 = vadd.f32 0.0, %v7495
    %v7497 = vpop.f32.mrb[0].mxu0
    %7498 = vmatprep.mubr.bf16.mxu0 0
    %7499 = vmatmul.mubr.bf16.gmra.mrb[0].mxu0 %v6901
    %v7500 = vpop.f32.mrb[0].mxu0
    %v7501 = vadd.f32 0.0, %v7500
    %v7502 = vpop.f32.mrb[0].mxu0
    %v7503 = vpop.f32.mrb[0].mxu0
    %v7504 = vadd.f32 0.0, %v7503
    %v7505 = vpop.f32.mrb[0].mxu0
    %7506 = vmatprep.mubr.bf16.mxu0 0
    %7507 = vmatmul.mubr.bf16.gmra.mrb[0].mxu0 %v6904
    %v7508 = vpop.f32.mrb[0].mxu0
    %v7509 = vadd.f32 0.0, %v7508
    %v7510 = vpop.f32.mrb[0].mxu0
    %v7511 = vpop.f32.mrb[0].mxu0
    %v7512 = vadd.f32 0.0, %v7511
    %v7513 = vpop.f32.mrb[0].mxu0
    %7514 = vmatprep.mubr.bf16.mxu0 0
    %7515 = vmatmul.mubr.bf16.gmra.mrb[0].mxu0 %v6907
    %v7516 = vpop.f32.mrb[0].mxu0
    %v7517 = vadd.f32 0.0, %v7516
    %v7518 = vpop.f32.mrb[0].mxu0
    %v7519 = vpop.f32.mrb[0].mxu0
    %v7520 = vadd.f32 0.0, %v7519
    %v7521 = vpop.f32.mrb[0].mxu0
    %7522 = vmatprep.mubr.bf16.mxu0 0
    %7523 = vmatmul.mubr.bf16.gmra.mrb[0].mxu0 %v6910
    %v7524 = vpop.f32.mrb[0].mxu0
    %v7525 = vadd.f32 0.0, %v7524
    %v7526 = vpop.f32.mrb[0].mxu0
    %v7527 = vpop.f32.mrb[0].mxu0
    %v7528 = vadd.f32 0.0, %v7527
    %v7529 = vpop.f32.mrb[0].mxu0
    %7530 = vmatprep.mubr.bf16.mxu0 0
    %7531 = vmatmul.mubr.bf16.gmra.mrb[0].mxu0 %v6913
    %v7532 = vpop.f32.mrb[0].mxu0
    %v7533 = vadd.f32 0.0, %v7532
    %v7534 = vpop.f32.mrb[0].mxu0
    %v7535 = vpop.f32.mrb[0].mxu0
    %v7536 = vadd.f32 0.0, %v7535
    %v7537 = vpop.f32.mrb[0].mxu0
    %7538 = vmatprep.mubr.bf16.mxu0 0
    %7539 = vmatmul.mubr.bf16.gmra.mrb[0].mxu0 %v6916
    %v7540 = vpop.f32.mrb[0].mxu0
    %v7541 = vadd.f32 0.0, %v7540
    %v7542 = vpop.f32.mrb[0].mxu0
    %v7543 = vpop.f32.mrb[0].mxu0
    %v7544 = vadd.f32 0.0, %v7543
    %v7545 = vpop.f32.mrb[0].mxu0
    %7546 = vmatprep.mubr.bf16.mxu0 0
    %7547 = vmatmul.mubr.bf16.gmra.mrb[0].mxu0 %v6919
    %v7548 = vpop.f32.mrb[0].mxu0
    %v7549 = vadd.f32 0.0, %v7548
    %v7550 = vpop.f32.mrb[0].mxu0
    %v7551 = vpop.f32.mrb[0].mxu0
    %v7552 = vadd.f32 0.0, %v7551
    %v7553 = vpop.f32.mrb[0].mxu0
    %7554 = vmatprep.mubr.bf16.mxu0 0
    %7555 = vmatmul.mubr.bf16.gmra.mrb[0].mxu0 %v6922
    %v7556 = vpop.f32.mrb[0].mxu0
    %v7557 = vpop.f32.mrb[0].mxu0
    %v7558 = vpop.f32.mrb[0].mxu0
    %v7559 = vpop.f32.mrb[0].mxu0
    %7560 = vmatprep.mubr.bf16.mxu0 0
    %7561 = vmatmul.mubr.bf16.gmra.mrb[0].mxu0 %v6925
    %v7562 = vpop.f32.mrb[0].mxu0
    %v7563 = vpop.f32.mrb[0].mxu0
    %v7564 = vpop.f32.mrb[0].mxu0
    %v7565 = vpop.f32.mrb[0].mxu0
    %7566 = vmatprep.mubr.bf16.mxu0 0
    %7567 = vmatmul.mubr.bf16.gmra.mrb[0].mxu0 %v6928
    %v7568 = vpop.f32.mrb[0].mxu0
    %v7569 = vadd.f32 0.0, %v7568
    %v7570 = vpop.f32.mrb[0].mxu0
    %v7571 = vpop.f32.mrb[0].mxu0
    %v7572 = vadd.f32 0.0, %v7571
    %v7573 = vpop.f32.mrb[0].mxu0
    %7574 = vmatprep.mubr.bf16.mxu0 0
    %7575 = vmatmul.mubr.bf16.gmra.mrb[0].mxu0 %v6931
    %v7576 = vpop.f32.mrb[0].mxu0
    %v7577 = vadd.f32 0.0, %v7576
    %v7578 = vpop.f32.mrb[0].mxu0
    %v7579 = vpop.f32.mrb[0].mxu0
    %v7580 = vadd.f32 0.0, %v7579
    %v7581 = vpop.f32.mrb[0].mxu0
    %7582 = vmatprep.mubr.bf16.mxu0 0
    %7583 = vmatmul.mubr.bf16.gmra.mrb[0].mxu0 %v6934
    %v7584 = vpop.f32.mrb[0].mxu0
    %v7585 = vadd.f32 0.0, %v7584
    %v7586 = vpop.f32.mrb[0].mxu0
    %v7587 = vpop.f32.mrb[0].mxu0
    %v7588 = vadd.f32 0.0, %v7587
    %v7589 = vpop.f32.mrb[0].mxu0
    %7590 = vmatprep.mubr.bf16.mxu0 0
    %7591 = vmatmul.mubr.bf16.gmra.mrb[0].mxu0 %v6937
    %v7592 = vpop.f32.mrb[0].mxu0
    %v7593 = vadd.f32 0.0, %v7592
    %v7594 = vpop.f32.mrb[0].mxu0
    %v7595 = vpop.f32.mrb[0].mxu0
    %v7596 = vadd.f32 0.0, %v7595
    %v7597 = vpop.f32.mrb[0].mxu0
    %7598 = vmatprep.mubr.bf16.mxu0 0
    %7599 = vmatmul.mubr.bf16.gmra.mrb[0].mxu0 %v6940
    %v7600 = vpop.f32.mrb[0].mxu0
    %v7601 = vadd.f32 0.0, %v7600
    %v7602 = vpop.f32.mrb[0].mxu0
    %v7603 = vpop.f32.mrb[0].mxu0
    %v7604 = vadd.f32 0.0, %v7603
    %v7605 = vpop.f32.mrb[0].mxu0
    %7606 = vmatprep.mubr.bf16.mxu0 0
    %7607 = vmatmul.mubr.bf16.gmra.mrb[0].mxu0 %v6943
    %v7608 = vpop.f32.mrb[0].mxu0
    %v7609 = vadd.f32 0.0, %v7608
    %v7610 = vpop.f32.mrb[0].mxu0
    %v7611 = vpop.f32.mrb[0].mxu0
    %v7612 = vadd.f32 0.0, %v7611
    %v7613 = vpop.f32.mrb[0].mxu0
    %7614 = vmatprep.mubr.bf16.mxu0 0
    %7615 = vmatmul.mubr.bf16.gmra.mrb[0].mxu0 %v6946
    %v7616 = vpop.f32.mrb[0].mxu0
    %v7617 = vadd.f32 0.0, %v7616
    %v7618 = vpop.f32.mrb[0].mxu0
    %v7619 = vpop.f32.mrb[0].mxu0
    %v7620 = vadd.f32 0.0, %v7619
    %v7621 = vpop.f32.mrb[0].mxu0
    %7622 = vmatprep.mubr.bf16.mxu0 0
    %7623 = vmatmul.mubr.bf16.gmra.mrb[0].mxu0 %v6949
    %v7624 = vpop.f32.mrb[0].mxu0
    %v7625 = vadd.f32 0.0, %v7624
    %v7626 = vpop.f32.mrb[0].mxu0
    %v7627 = vpop.f32.mrb[0].mxu0
    %v7628 = vadd.f32 0.0, %v7627
    %v7629 = vpop.f32.mrb[0].mxu0
    %7630 = vmatprep.mubr.bf16.mxu0 0
    %7631 = vmatmul.mubr.bf16.gmra.mrb[0].mxu0 %v6952
    %v7632 = vpop.f32.mrb[0].mxu0
    %v7633 = vadd.f32 0.0, %v7632
    %v7634 = vpop.f32.mrb[0].mxu0
    %v7635 = vpop.f32.mrb[0].mxu0
    %v7636 = vadd.f32 0.0, %v7635
    %v7637 = vpop.f32.mrb[0].mxu0
    %7638 = vmatprep.mubr.bf16.mxu0 0
    %7639 = vmatmul.mubr.bf16.gmra.mrb[0].mxu0 %v6955
    %v7640 = vpop.f32.mrb[0].mxu0
    %v7641 = vadd.f32 0.0, %v7640
    %v7642 = vpop.f32.mrb[0].mxu0
    %v7643 = vpop.f32.mrb[0].mxu0
    %v7644 = vadd.f32 0.0, %v7643
    %v7645 = vpop.f32.mrb[0].mxu0
    %7646 = vmatprep.mubr.bf16.mxu0 0
    %7647 = vmatmul.mubr.bf16.gmra.mrb[0].mxu0 %v6958
    %v7648 = vpop.f32.mrb[0].mxu0
    %v7649 = vadd.f32 0.0, %v7648
    %v7650 = vpop.f32.mrb[0].mxu0
    %v7651 = vpop.f32.mrb[0].mxu0
    %v7652 = vadd.f32 0.0, %v7651
    %v7653 = vpop.f32.mrb[0].mxu0
    %7654 = vmatprep.mubr.bf16.mxu0 0
    %7655 = vmatmul.mubr.bf16.gmra.mrb[0].mxu0 %v6961
    %v7656 = vpop.f32.mrb[0].mxu0
    %v7657 = vadd.f32 0.0, %v7656
    %v7658 = vpop.f32.mrb[0].mxu0
    %v7659 = vpop.f32.mrb[0].mxu0
    %v7660 = vadd.f32 0.0, %v7659
    %v7661 = vpop.f32.mrb[0].mxu0
    %7662 = vmatprep.mubr.bf16.mxu0 0
    %7663 = vmatmul.mubr.bf16.gmra.mrb[0].mxu0 %v6964
    %v7664 = vpop.f32.mrb[0].mxu0
    %v7665 = vadd.f32 0.0, %v7664
    %v7666 = vpop.f32.mrb[0].mxu0
    %v7667 = vpop.f32.mrb[0].mxu0
    %v7668 = vadd.f32 0.0, %v7667
    %v7669 = vpop.f32.mrb[0].mxu0
    %7670 = vmatprep.mubr.bf16.mxu0 0
    %7671 = vmatmul.mubr.bf16.gmra.mrb[0].mxu0 %v6967
    %v7672 = vpop.f32.mrb[0].mxu0
    %v7673 = vadd.f32 0.0, %v7672
    %v7674 = vpop.f32.mrb[0].mxu0
    %v7675 = vpop.f32.mrb[0].mxu0
    %v7676 = vadd.f32 0.0, %v7675
    %v7677 = vpop.f32.mrb[0].mxu0
    %7678 = vmatprep.mubr.bf16.mxu0 0
    %7679 = vmatmul.mubr.bf16.gmra.mrb[0].mxu0 %v6970
    %v7680 = vpop.f32.mrb[0].mxu0
    %v7681 = vadd.f32 0.0, %v7680
    %v7682 = vpop.f32.mrb[0].mxu0
    %v7683 = vpop.f32.mrb[0].mxu0
    %v7684 = vadd.f32 0.0, %v7683
    %v7685 = vpop.f32.mrb[0].mxu0
    %7686 = vmatprep.mubr.bf16.mxu0 0
    %7687 = vmatmul.mubr.bf16.gmra.mrb[0].mxu0 %v6973
    %v7688 = vpop.f32.mrb[0].mxu0
    %v7689 = vadd.f32 0.0, %v7688
    %v7690 = vpop.f32.mrb[0].mxu0
    %v7691 = vpop.f32.mrb[0].mxu0
    %v7692 = vadd.f32 0.0, %v7691
    %v7693 = vpop.f32.mrb[0].mxu0
    %7694 = vmatprep.mubr.bf16.mxu0 0
    %7695 = vmatmul.mubr.bf16.gmra.mrb[0].mxu0 %v6976
    %v7696 = vpop.f32.mrb[0].mxu0
    %v7697 = vpop.f32.mrb[0].mxu0
    %v7698 = vpop.f32.mrb[0].mxu0
    %v7699 = vpop.f32.mrb[0].mxu0
    %7700 = vdwg.mxu0
    %v7701 = vadd.f32 %v7291, %v7429
    %v7702 = vadd.f32 %v7292, %v7432
    %v7703 = vadd.f32 %v7293, %v7437
    %v7704 = vadd.f32 %v7294, %v7440
    %v7705 = vadd.f32 %v7295, %v7445
    %v7706 = vadd.f32 %v7296, %v7448
    %v7707 = vadd.f32 %v7297, %v7453
    %v7708 = vadd.f32 %v7298, %v7456
    %v7709 = vadd.f32 %v7299, %v7461
    %v7710 = vadd.f32 %v7300, %v7464
    %v7711 = vadd.f32 %v7301, %v7469
    %v7712 = vadd.f32 %v7302, %v7472
    %v7713 = vadd.f32 %v7303, %v7477
    %v7714 = vadd.f32 %v7304, %v7480
    %v7715 = vadd.f32 %v7305, %v7485
    %v7716 = vadd.f32 %v7306, %v7488
    %v7717 = vadd.f32 %v7307, %v7493
    %v7718 = vadd.f32 %v7308, %v7496
    %v7719 = vadd.f32 %v7309, %v7501
    %v7720 = vadd.f32 %v7310, %v7504
    %v7721 = vadd.f32 %v7311, %v7509
    %v7722 = vadd.f32 %v7312, %v7512
    %v7723 = vadd.f32 %v7313, %v7517
    %v7724 = vadd.f32 %v7314, %v7520
    %v7725 = vadd.f32 %v7315, %v7525
    %v7726 = vadd.f32 %v7316, %v7528
    %v7727 = vadd.f32 %v7317, %v7533
    %v7728 = vadd.f32 %v7318, %v7536
    %v7729 = vadd.f32 %v7319, %v7541
    %v7730 = vadd.f32 %v7320, %v7544
    %v7731 = vadd.f32 %v7321, %v7549
    %v7732 = vadd.f32 %v7322, %v7552
    %v7733 = vadd.f32 %v7323, %v7569
    %v7734 = vadd.f32 %v7324, %v7572
    %v7735 = vadd.f32 %v7325, %v7577
    %v7736 = vadd.f32 %v7326, %v7580
    %v7737 = vadd.f32 %v7327, %v7585
    %v7738 = vadd.f32 %v7328, %v7588
    %v7739 = vadd.f32 %v7329, %v7593
    %v7740 = vadd.f32 %v7330, %v7596
    %v7741 = vadd.f32 %v7331, %v7601
    %v7742 = vadd.f32 %v7332, %v7604
    %v7743 = vadd.f32 %v7333, %v7609
    %v7744 = vadd.f32 %v7334, %v7612
    %v7745 = vadd.f32 %v7335, %v7617
    %v7746 = vadd.f32 %v7336, %v7620
    %v7747 = vadd.f32 %v7337, %v7625
    %v7748 = vadd.f32 %v7338, %v7628
    %v7749 = vadd.f32 %v7339, %v7633
    %v7750 = vadd.f32 %v7340, %v7636
    %v7751 = vadd.f32 %v7341, %v7641
    %v7752 = vadd.f32 %v7342, %v7644
    %v7753 = vadd.f32 %v7343, %v7649
    %v7754 = vadd.f32 %v7344, %v7652
    %v7755 = vadd.f32 %v7345, %v7657
    %v7756 = vadd.f32 %v7346, %v7660
    %v7757 = vadd.f32 %v7347, %v7665
    %v7758 = vadd.f32 %v7348, %v7668
    %v7759 = vadd.f32 %v7349, %v7673
    %v7760 = vadd.f32 %v7350, %v7676
    %v7761 = vadd.f32 %v7351, %v7681
    %v7762 = vadd.f32 %v7352, %v7684
    %v7763 = vadd.f32 %v7353, %v7689
    %v7764 = vadd.f32 %v7354, %v7692
    %s7765 = scalar_lea.vmem %s4, 256
    %v7766 = vld [vmem:[%s7765] sm:$0xf]
    %v7767 = vld [vmem:[%s7765 + $0x4] sm:$0xf]
    %v7768 = vld [vmem:[%s7765 + $0x8] sm:$0xf]
    %v7769 = vld [vmem:[%s7765 + $0xc] sm:$0xf]
    %v7770 = vld [vmem:[%s7765 + $0x10] sm:$0xf]
    %v7771 = vld [vmem:[%s7765 + $0x14] sm:$0xf]
    %v7772 = vld [vmem:[%s7765 + $0x18] sm:$0xf]
    %v7773 = vld [vmem:[%s7765 + $0x1c] sm:$0xf]
    %v7782 = vunpack.c.l.b16 %v7766
    %v7783 = vunpack.c.l.b16 %v7767
    %v7784 = vunpack.c.l.b16 %v7768
    %v7785 = vunpack.c.l.b16 %v7769
    %v7786 = vunpack.c.l.b16 %v7770
    %v7787 = vunpack.c.l.b16 %v7771
    %v7788 = vunpack.c.l.b16 %v7772
    %v7789 = vunpack.c.l.b16 %v7773
    %v7790 = vpack.c.b16 %v7783, %v7782
    %v7791 = vpack.c.b16 %v7785, %v7784
    %v7792 = vpack.c.b16 %v7787, %v7786
    %v7793 = vpack.c.b16 %v7789, %v7788
    %7798 = vmatprep.subr.bf16.mxu0 0
    %7799 = vmatpush1.bf16.msra.mxu0 %v7790
    %7800 = vmatprep.subr.bf16.mxu0 0
    %7801 = vmatpush1.bf16.msra.mxu0 %v7791
    %7802 = vmatprep.subr.bf16.mxu0 0
    %7803 = vmatpush1.bf16.msra.mxu0 %v7792
    %7804 = vmatprep.subr.bf16.mxu0 0
    %7805 = vmatpush1.bf16.msra.mxu0 %v7793
    %7806 = vmatprep.subr.bf16.mxu0 0
    %7807 = vmatpush1.bf16.msra.mxu0 0
    %7808 = vmatprep.subr.bf16.mxu0 0
    %7809 = vmatpush1.bf16.msra.mxu0 0
    %7810 = vmatprep.subr.bf16.mxu0 0
    %7811 = vmatpush1.bf16.msra.mxu0 0
    %7812 = vmatprep.subr.bf16.mxu0 0
    %7813 = vmatpush1.bf16.msra.mxu0 0
    %7814 = vmatprep.subr.bf16.mxu0 0
    %7815 = vmatpush1.bf16.msra.mxu0 0
    %7816 = vmatprep.subr.bf16.mxu0 0
    %7817 = vmatpush1.bf16.msra.mxu0 0
    %7818 = vmatprep.subr.bf16.mxu0 0
    %7819 = vmatpush1.bf16.msra.mxu0 0
    %7820 = vmatprep.subr.bf16.mxu0 0
    %7821 = vmatpush1.bf16.msra.mxu0 0
    %7822 = vmatprep.subr.bf16.mxu0 0
    %7823 = vmatpush1.bf16.msra.mxu0 0
    %7824 = vmatprep.subr.bf16.mxu0 0
    %7825 = vmatpush1.bf16.msra.mxu0 0
    %7826 = vmatprep.subr.bf16.mxu0 0
    %7827 = vmatpush1.bf16.msra.mxu0 0
    %7828 = vmatprep.subr.bf16.mxu0 0
    %7829 = vmatpush1.bf16.msra.mxu0 0
    %7830 = vmatprep.mubr.bf16.mxu0 0
    %7831 = vmatmul.mubr.bf16.gmra.mrb[0].mxu0 %v6871
    %v7832 = vpop.f32.mrb[0].mxu0
    %v7833 = vpop.f32.mrb[0].mxu0
    %v7834 = vpop.f32.mrb[0].mxu0
    %v7835 = vpop.f32.mrb[0].mxu0
    %7836 = vmatprep.mubr.bf16.mxu0 0
    %7837 = vmatmul.mubr.bf16.gmra.mrb[0].mxu0 %v6874
    %v7838 = vpop.f32.mrb[0].mxu0
    %v7839 = vpop.f32.mrb[0].mxu0
    %v7840 = vpop.f32.mrb[0].mxu0
    %v7841 = vpop.f32.mrb[0].mxu0
    %7842 = vmatprep.mubr.bf16.mxu0 0
    %7843 = vmatmul.mubr.bf16.gmra.mrb[0].mxu0 %v6877
    %v7844 = vpop.f32.mrb[0].mxu0
    %v7845 = vadd.f32 0.0, %v7844
    %v7846 = vpop.f32.mrb[0].mxu0
    %v7847 = vpop.f32.mrb[0].mxu0
    %v7848 = vadd.f32 0.0, %v7847
    %v7849 = vpop.f32.mrb[0].mxu0
    %7850 = vmatprep.mubr.bf16.mxu0 0
    %7851 = vmatmul.mubr.bf16.gmra.mrb[0].mxu0 %v6880
    %v7852 = vpop.f32.mrb[0].mxu0
    %v7853 = vadd.f32 0.0, %v7852
    %v7854 = vpop.f32.mrb[0].mxu0
    %v7855 = vpop.f32.mrb[0].mxu0
    %v7856 = vadd.f32 0.0, %v7855
    %v7857 = vpop.f32.mrb[0].mxu0
    %7858 = vmatprep.mubr.bf16.mxu0 0
    %7859 = vmatmul.mubr.bf16.gmra.mrb[0].mxu0 %v6883
    %v7860 = vpop.f32.mrb[0].mxu0
    %v7861 = vadd.f32 0.0, %v7860
    %v7862 = vpop.f32.mrb[0].mxu0
    %v7863 = vpop.f32.mrb[0].mxu0
    %v7864 = vadd.f32 0.0, %v7863
    %v7865 = vpop.f32.mrb[0].mxu0
    %7866 = vmatprep.mubr.bf16.mxu0 0
    %7867 = vmatmul.mubr.bf16.gmra.mrb[0].mxu0 %v6886
    %v7868 = vpop.f32.mrb[0].mxu0
    %v7869 = vadd.f32 0.0, %v7868
    %v7870 = vpop.f32.mrb[0].mxu0
    %v7871 = vpop.f32.mrb[0].mxu0
    %v7872 = vadd.f32 0.0, %v7871
    %v7873 = vpop.f32.mrb[0].mxu0
    %7874 = vmatprep.mubr.bf16.mxu0 0
    %7875 = vmatmul.mubr.bf16.gmra.mrb[0].mxu0 %v6889
    %v7876 = vpop.f32.mrb[0].mxu0
    %v7877 = vadd.f32 0.0, %v7876
    %v7878 = vpop.f32.mrb[0].mxu0
    %v7879 = vpop.f32.mrb[0].mxu0
    %v7880 = vadd.f32 0.0, %v7879
    %v7881 = vpop.f32.mrb[0].mxu0
    %7882 = vmatprep.mubr.bf16.mxu0 0
    %7883 = vmatmul.mubr.bf16.gmra.mrb[0].mxu0 %v6892
    %v7884 = vpop.f32.mrb[0].mxu0
    %v7885 = vadd.f32 0.0, %v7884
    %v7886 = vpop.f32.mrb[0].mxu0
    %v7887 = vpop.f32.mrb[0].mxu0
    %v7888 = vadd.f32 0.0, %v7887
    %v7889 = vpop.f32.mrb[0].mxu0
    %7890 = vmatprep.mubr.bf16.mxu0 0
    %7891 = vmatmul.mubr.bf16.gmra.mrb[0].mxu0 %v6895
    %v7892 = vpop.f32.mrb[0].mxu0
    %v7893 = vadd.f32 0.0, %v7892
    %v7894 = vpop.f32.mrb[0].mxu0
    %v7895 = vpop.f32.mrb[0].mxu0
    %v7896 = vadd.f32 0.0, %v7895
    %v7897 = vpop.f32.mrb[0].mxu0
    %7898 = vmatprep.mubr.bf16.mxu0 0
    %7899 = vmatmul.mubr.bf16.gmra.mrb[0].mxu0 %v6898
    %v7900 = vpop.f32.mrb[0].mxu0
    %v7901 = vadd.f32 0.0, %v7900
    %v7902 = vpop.f32.mrb[0].mxu0
    %v7903 = vpop.f32.mrb[0].mxu0
    %v7904 = vadd.f32 0.0, %v7903
    %v7905 = vpop.f32.mrb[0].mxu0
    %7906 = vmatprep.mubr.bf16.mxu0 0
    %7907 = vmatmul.mubr.bf16.gmra.mrb[0].mxu0 %v6901
    %v7908 = vpop.f32.mrb[0].mxu0
    %v7909 = vadd.f32 0.0, %v7908
    %v7910 = vpop.f32.mrb[0].mxu0
    %v7911 = vpop.f32.mrb[0].mxu0
    %v7912 = vadd.f32 0.0, %v7911
    %v7913 = vpop.f32.mrb[0].mxu0
    %7914 = vmatprep.mubr.bf16.mxu0 0
    %7915 = vmatmul.mubr.bf16.gmra.mrb[0].mxu0 %v6904
    %v7916 = vpop.f32.mrb[0].mxu0
    %v7917 = vadd.f32 0.0, %v7916
    %v7918 = vpop.f32.mrb[0].mxu0
    %v7919 = vpop.f32.mrb[0].mxu0
    %v7920 = vadd.f32 0.0, %v7919
    %v7921 = vpop.f32.mrb[0].mxu0
    %7922 = vmatprep.mubr.bf16.mxu0 0
    %7923 = vmatmul.mubr.bf16.gmra.mrb[0].mxu0 %v6907
    %v7924 = vpop.f32.mrb[0].mxu0
    %v7925 = vadd.f32 0.0, %v7924
    %v7926 = vpop.f32.mrb[0].mxu0
    %v7927 = vpop.f32.mrb[0].mxu0
    %v7928 = vadd.f32 0.0, %v7927
    %v7929 = vpop.f32.mrb[0].mxu0
    %7930 = vmatprep.mubr.bf16.mxu0 0
    %7931 = vmatmul.mubr.bf16.gmra.mrb[0].mxu0 %v6910
    %v7932 = vpop.f32.mrb[0].mxu0
    %v7933 = vadd.f32 0.0, %v7932
    %v7934 = vpop.f32.mrb[0].mxu0
    %v7935 = vpop.f32.mrb[0].mxu0
    %v7936 = vadd.f32 0.0, %v7935
    %v7937 = vpop.f32.mrb[0].mxu0
    %7938 = vmatprep.mubr.bf16.mxu0 0
    %7939 = vmatmul.mubr.bf16.gmra.mrb[0].mxu0 %v6913
    %v7940 = vpop.f32.mrb[0].mxu0
    %v7941 = vadd.f32 0.0, %v7940
    %v7942 = vpop.f32.mrb[0].mxu0
    %v7943 = vpop.f32.mrb[0].mxu0
    %v7944 = vadd.f32 0.0, %v7943
    %v7945 = vpop.f32.mrb[0].mxu0
    %7946 = vmatprep.mubr.bf16.mxu0 0
    %7947 = vmatmul.mubr.bf16.gmra.mrb[0].mxu0 %v6916
    %v7948 = vpop.f32.mrb[0].mxu0
    %v7949 = vadd.f32 0.0, %v7948
    %v7950 = vpop.f32.mrb[0].mxu0
    %v7951 = vpop.f32.mrb[0].mxu0
    %v7952 = vadd.f32 0.0, %v7951
    %v7953 = vpop.f32.mrb[0].mxu0
    %7954 = vmatprep.mubr.bf16.mxu0 0
    %7955 = vmatmul.mubr.bf16.gmra.mrb[0].mxu0 %v6919
    %v7956 = vpop.f32.mrb[0].mxu0
    %v7957 = vadd.f32 0.0, %v7956
    %v7958 = vpop.f32.mrb[0].mxu0
    %v7959 = vpop.f32.mrb[0].mxu0
    %v7960 = vadd.f32 0.0, %v7959
    %v7961 = vpop.f32.mrb[0].mxu0
    %7962 = vmatprep.mubr.bf16.mxu0 0
    %7963 = vmatmul.mubr.bf16.gmra.mrb[0].mxu0 %v6922
    %v7964 = vpop.f32.mrb[0].mxu0
    %v7965 = vadd.f32 0.0, %v7964
    %v7966 = vpop.f32.mrb[0].mxu0
    %v7967 = vpop.f32.mrb[0].mxu0
    %v7968 = vadd.f32 0.0, %v7967
    %v7969 = vpop.f32.mrb[0].mxu0
    %7970 = vmatprep.mubr.bf16.mxu0 0
    %7971 = vmatmul.mubr.bf16.gmra.mrb[0].mxu0 %v6925
    %v7972 = vpop.f32.mrb[0].mxu0
    %v7973 = vpop.f32.mrb[0].mxu0
    %v7974 = vpop.f32.mrb[0].mxu0
    %v7975 = vpop.f32.mrb[0].mxu0
    %7976 = vmatprep.mubr.bf16.mxu0 0
    %7977 = vmatmul.mubr.bf16.gmra.mrb[0].mxu0 %v6928
    %v7978 = vpop.f32.mrb[0].mxu0
    %v7979 = vpop.f32.mrb[0].mxu0
    %v7980 = vpop.f32.mrb[0].mxu0
    %v7981 = vpop.f32.mrb[0].mxu0
    %7982 = vmatprep.mubr.bf16.mxu0 0
    %7983 = vmatmul.mubr.bf16.gmra.mrb[0].mxu0 %v6931
    %v7984 = vpop.f32.mrb[0].mxu0
    %v7985 = vadd.f32 0.0, %v7984
    %v7986 = vpop.f32.mrb[0].mxu0
    %v7987 = vpop.f32.mrb[0].mxu0
    %v7988 = vadd.f32 0.0, %v7987
    %v7989 = vpop.f32.mrb[0].mxu0
    %7990 = vmatprep.mubr.bf16.mxu0 0
    %7991 = vmatmul.mubr.bf16.gmra.mrb[0].mxu0 %v6934
    %v7992 = vpop.f32.mrb[0].mxu0
    %v7993 = vadd.f32 0.0, %v7992
    %v7994 = vpop.f32.mrb[0].mxu0
    %v7995 = vpop.f32.mrb[0].mxu0
    %v7996 = vadd.f32 0.0, %v7995
    %v7997 = vpop.f32.mrb[0].mxu0
    %7998 = vmatprep.mubr.bf16.mxu0 0
    %7999 = vmatmul.mubr.bf16.gmra.mrb[0].mxu0 %v6937
    %v8000 = vpop.f32.mrb[0].mxu0
    %v8001 = vadd.f32 0.0, %v8000
    %v8002 = vpop.f32.mrb[0].mxu0
    %v8003 = vpop.f32.mrb[0].mxu0
    %v8004 = vadd.f32 0.0, %v8003
    %v8005 = vpop.f32.mrb[0].mxu0
    %8006 = vmatprep.mubr.bf16.mxu0 0
    %8007 = vmatmul.mubr.bf16.gmra.mrb[0].mxu0 %v6940
    %v8008 = vpop.f32.mrb[0].mxu0
    %v8009 = vadd.f32 0.0, %v8008
    %v8010 = vpop.f32.mrb[0].mxu0
    %v8011 = vpop.f32.mrb[0].mxu0
    %v8012 = vadd.f32 0.0, %v8011
    %v8013 = vpop.f32.mrb[0].mxu0
    %8014 = vmatprep.mubr.bf16.mxu0 0
    %8015 = vmatmul.mubr.bf16.gmra.mrb[0].mxu0 %v6943
    %v8016 = vpop.f32.mrb[0].mxu0
    %v8017 = vadd.f32 0.0, %v8016
    %v8018 = vpop.f32.mrb[0].mxu0
    %v8019 = vpop.f32.mrb[0].mxu0
    %v8020 = vadd.f32 0.0, %v8019
    %v8021 = vpop.f32.mrb[0].mxu0
    %8022 = vmatprep.mubr.bf16.mxu0 0
    %8023 = vmatmul.mubr.bf16.gmra.mrb[0].mxu0 %v6946
    %v8024 = vpop.f32.mrb[0].mxu0
    %v8025 = vadd.f32 0.0, %v8024
    %v8026 = vpop.f32.mrb[0].mxu0
    %v8027 = vpop.f32.mrb[0].mxu0
    %v8028 = vadd.f32 0.0, %v8027
    %v8029 = vpop.f32.mrb[0].mxu0
    %8030 = vmatprep.mubr.bf16.mxu0 0
    %8031 = vmatmul.mubr.bf16.gmra.mrb[0].mxu0 %v6949
    %v8032 = vpop.f32.mrb[0].mxu0
    %v8033 = vadd.f32 0.0, %v8032
    %v8034 = vpop.f32.mrb[0].mxu0
    %v8035 = vpop.f32.mrb[0].mxu0
    %v8036 = vadd.f32 0.0, %v8035
    %v8037 = vpop.f32.mrb[0].mxu0
    %8038 = vmatprep.mubr.bf16.mxu0 0
    %8039 = vmatmul.mubr.bf16.gmra.mrb[0].mxu0 %v6952
    %v8040 = vpop.f32.mrb[0].mxu0
    %v8041 = vadd.f32 0.0, %v8040
    %v8042 = vpop.f32.mrb[0].mxu0
    %v8043 = vpop.f32.mrb[0].mxu0
    %v8044 = vadd.f32 0.0, %v8043
    %v8045 = vpop.f32.mrb[0].mxu0
    %8046 = vmatprep.mubr.bf16.mxu0 0
    %8047 = vmatmul.mubr.bf16.gmra.mrb[0].mxu0 %v6955
    %v8048 = vpop.f32.mrb[0].mxu0
    %v8049 = vadd.f32 0.0, %v8048
    %v8050 = vpop.f32.mrb[0].mxu0
    %v8051 = vpop.f32.mrb[0].mxu0
    %v8052 = vadd.f32 0.0, %v8051
    %v8053 = vpop.f32.mrb[0].mxu0
    %8054 = vmatprep.mubr.bf16.mxu0 0
    %8055 = vmatmul.mubr.bf16.gmra.mrb[0].mxu0 %v6958
    %v8056 = vpop.f32.mrb[0].mxu0
    %v8057 = vadd.f32 0.0, %v8056
    %v8058 = vpop.f32.mrb[0].mxu0
    %v8059 = vpop.f32.mrb[0].mxu0
    %v8060 = vadd.f32 0.0, %v8059
    %v8061 = vpop.f32.mrb[0].mxu0
    %8062 = vmatprep.mubr.bf16.mxu0 0
    %8063 = vmatmul.mubr.bf16.gmra.mrb[0].mxu0 %v6961
    %v8064 = vpop.f32.mrb[0].mxu0
    %v8065 = vadd.f32 0.0, %v8064
    %v8066 = vpop.f32.mrb[0].mxu0
    %v8067 = vpop.f32.mrb[0].mxu0
    %v8068 = vadd.f32 0.0, %v8067
    %v8069 = vpop.f32.mrb[0].mxu0
    %8070 = vmatprep.mubr.bf16.mxu0 0
    %8071 = vmatmul.mubr.bf16.gmra.mrb[0].mxu0 %v6964
    %v8072 = vpop.f32.mrb[0].mxu0
    %v8073 = vadd.f32 0.0, %v8072
    %v8074 = vpop.f32.mrb[0].mxu0
    %v8075 = vpop.f32.mrb[0].mxu0
    %v8076 = vadd.f32 0.0, %v8075
    %v8077 = vpop.f32.mrb[0].mxu0
    %8078 = vmatprep.mubr.bf16.mxu0 0
    %8079 = vmatmul.mubr.bf16.gmra.mrb[0].mxu0 %v6967
    %v8080 = vpop.f32.mrb[0].mxu0
    %v8081 = vadd.f32 0.0, %v8080
    %v8082 = vpop.f32.mrb[0].mxu0
    %v8083 = vpop.f32.mrb[0].mxu0
    %v8084 = vadd.f32 0.0, %v8083
    %v8085 = vpop.f32.mrb[0].mxu0
    %8086 = vmatprep.mubr.bf16.mxu0 0
    %8087 = vmatmul.mubr.bf16.gmra.mrb[0].mxu0 %v6970
    %v8088 = vpop.f32.mrb[0].mxu0
    %v8089 = vadd.f32 0.0, %v8088
    %v8090 = vpop.f32.mrb[0].mxu0
    %v8091 = vpop.f32.mrb[0].mxu0
    %v8092 = vadd.f32 0.0, %v8091
    %v8093 = vpop.f32.mrb[0].mxu0
    %8094 = vmatprep.mubr.bf16.mxu0 0
    %8095 = vmatmul.mubr.bf16.gmra.mrb[0].mxu0 %v6973
    %v8096 = vpop.f32.mrb[0].mxu0
    %v8097 = vadd.f32 0.0, %v8096
    %v8098 = vpop.f32.mrb[0].mxu0
    %v8099 = vpop.f32.mrb[0].mxu0
    %v8100 = vadd.f32 0.0, %v8099
    %v8101 = vpop.f32.mrb[0].mxu0
    %8102 = vmatprep.mubr.bf16.mxu0 0
    %8103 = vmatmul.mubr.bf16.gmra.mrb[0].mxu0 %v6976
    %v8104 = vpop.f32.mrb[0].mxu0
    %v8105 = vadd.f32 0.0, %v8104
    %v8106 = vpop.f32.mrb[0].mxu0
    %v8107 = vpop.f32.mrb[0].mxu0
    %v8108 = vadd.f32 0.0, %v8107
    %v8109 = vpop.f32.mrb[0].mxu0
    %8110 = vdwg.mxu0
    %v8111 = vadd.f32 %v7701, %v7845
    %v8112 = vadd.f32 %v7702, %v7848
    %v8113 = vadd.f32 %v7703, %v7853
    %v8114 = vadd.f32 %v7704, %v7856
    %v8115 = vadd.f32 %v7705, %v7861
    %v8116 = vadd.f32 %v7706, %v7864
    %v8117 = vadd.f32 %v7707, %v7869
    %v8118 = vadd.f32 %v7708, %v7872
    %v8119 = vadd.f32 %v7709, %v7877
    %v8120 = vadd.f32 %v7710, %v7880
    %v8121 = vadd.f32 %v7711, %v7885
    %v8122 = vadd.f32 %v7712, %v7888
    %v8123 = vadd.f32 %v7713, %v7893
    %v8124 = vadd.f32 %v7714, %v7896
    %v8125 = vadd.f32 %v7715, %v7901
    %v8126 = vadd.f32 %v7716, %v7904
    %v8127 = vadd.f32 %v7717, %v7909
    %v8128 = vadd.f32 %v7718, %v7912
    %v8129 = vadd.f32 %v7719, %v7917
    %v8130 = vadd.f32 %v7720, %v7920
    %v8131 = vadd.f32 %v7721, %v7925
    %v8132 = vadd.f32 %v7722, %v7928
    %v8133 = vadd.f32 %v7723, %v7933
    %v8134 = vadd.f32 %v7724, %v7936
    %v8135 = vadd.f32 %v7725, %v7941
    %v8136 = vadd.f32 %v7726, %v7944
    %v8137 = vadd.f32 %v7727, %v7949
    %v8138 = vadd.f32 %v7728, %v7952
    %v8139 = vadd.f32 %v7729, %v7957
    %v8140 = vadd.f32 %v7730, %v7960
    %v8141 = vadd.f32 %v7731, %v7965
    %v8142 = vadd.f32 %v7732, %v7968
    %v8143 = vadd.f32 %v7733, %v7985
    %v8144 = vadd.f32 %v7734, %v7988
    %v8145 = vadd.f32 %v7735, %v7993
    %v8146 = vadd.f32 %v7736, %v7996
    %v8147 = vadd.f32 %v7737, %v8001
    %v8148 = vadd.f32 %v7738, %v8004
    %v8149 = vadd.f32 %v7739, %v8009
    %v8150 = vadd.f32 %v7740, %v8012
    %v8151 = vadd.f32 %v7741, %v8017
    %v8152 = vadd.f32 %v7742, %v8020
    %v8153 = vadd.f32 %v7743, %v8025
    %v8154 = vadd.f32 %v7744, %v8028
    %v8155 = vadd.f32 %v7745, %v8033
    %v8156 = vadd.f32 %v7746, %v8036
    %v8157 = vadd.f32 %v7747, %v8041
    %v8158 = vadd.f32 %v7748, %v8044
    %v8159 = vadd.f32 %v7749, %v8049
    %v8160 = vadd.f32 %v7750, %v8052
    %v8161 = vadd.f32 %v7751, %v8057
    %v8162 = vadd.f32 %v7752, %v8060
    %v8163 = vadd.f32 %v7753, %v8065
    %v8164 = vadd.f32 %v7754, %v8068
    %v8165 = vadd.f32 %v7755, %v8073
    %v8166 = vadd.f32 %v7756, %v8076
    %v8167 = vadd.f32 %v7757, %v8081
    %v8168 = vadd.f32 %v7758, %v8084
    %v8169 = vadd.f32 %v7759, %v8089
    %v8170 = vadd.f32 %v7760, %v8092
    %v8171 = vadd.f32 %v7761, %v8097
    %v8172 = vadd.f32 %v7762, %v8100
    %v8173 = vadd.f32 %v7763, %v8105
    %v8174 = vadd.f32 %v7764, %v8108
    %v8175 = vld [vmem:[%s5] sm:$0x1]
    %v8177 = vlaneseq
    %v8178 = vshrl.u32 %v8177, 7
    %v8179 = vsub.s32 0, %v8178
    %v8180 = vrot.slane %v8175, %v8179
    %v8182 = vmul.f32 %v8111, %v8180
    %v8183 = vmul.f32 %v8112, %v8180
    %v8184 = vmul.f32 %v8113, %v8180
    %v8185 = vmul.f32 %v8114, %v8180
    %v8186 = vmul.f32 %v8115, %v8180
    %v8187 = vmul.f32 %v8116, %v8180
    %v8188 = vmul.f32 %v8117, %v8180
    %v8189 = vmul.f32 %v8118, %v8180
    %v8190 = vmul.f32 %v8119, %v8180
    %v8191 = vmul.f32 %v8120, %v8180
    %v8192 = vmul.f32 %v8121, %v8180
    %v8193 = vmul.f32 %v8122, %v8180
    %v8194 = vmul.f32 %v8123, %v8180
    %v8195 = vmul.f32 %v8124, %v8180
    %v8196 = vmul.f32 %v8125, %v8180
    %v8197 = vmul.f32 %v8126, %v8180
    %v8198 = vmul.f32 %v8127, %v8180
    %v8199 = vmul.f32 %v8128, %v8180
    %v8200 = vmul.f32 %v8129, %v8180
    %v8201 = vmul.f32 %v8130, %v8180
    %v8202 = vmul.f32 %v8131, %v8180
    %v8203 = vmul.f32 %v8132, %v8180
    %v8204 = vmul.f32 %v8133, %v8180
    %v8205 = vmul.f32 %v8134, %v8180
    %v8206 = vmul.f32 %v8135, %v8180
    %v8207 = vmul.f32 %v8136, %v8180
    %v8208 = vmul.f32 %v8137, %v8180
    %v8209 = vmul.f32 %v8138, %v8180
    %v8210 = vmul.f32 %v8139, %v8180
    %v8211 = vmul.f32 %v8140, %v8180
    %v8212 = vmul.f32 %v8141, %v8180
    %v8213 = vmul.f32 %v8142, %v8180
    %v8214 = vmul.f32 %v8143, %v8180
    %v8215 = vmul.f32 %v8144, %v8180
    %v8216 = vmul.f32 %v8145, %v8180
    %v8217 = vmul.f32 %v8146, %v8180
    %v8218 = vmul.f32 %v8147, %v8180
    %v8219 = vmul.f32 %v8148, %v8180
    %v8220 = vmul.f32 %v8149, %v8180
    %v8221 = vmul.f32 %v8150, %v8180
    %v8222 = vmul.f32 %v8151, %v8180
    %v8223 = vmul.f32 %v8152, %v8180
    %v8224 = vmul.f32 %v8153, %v8180
    %v8225 = vmul.f32 %v8154, %v8180
    %v8226 = vmul.f32 %v8155, %v8180
    %v8227 = vmul.f32 %v8156, %v8180
    %v8228 = vmul.f32 %v8157, %v8180
    %v8229 = vmul.f32 %v8158, %v8180
    %v8230 = vmul.f32 %v8159, %v8180
    %v8231 = vmul.f32 %v8160, %v8180
    %v8232 = vmul.f32 %v8161, %v8180
    %v8233 = vmul.f32 %v8162, %v8180
    %v8234 = vmul.f32 %v8163, %v8180
    %v8235 = vmul.f32 %v8164, %v8180
    %v8236 = vmul.f32 %v8165, %v8180
    %v8237 = vmul.f32 %v8166, %v8180
    %v8238 = vmul.f32 %v8167, %v8180
    %v8239 = vmul.f32 %v8168, %v8180
    %v8240 = vmul.f32 %v8169, %v8180
    %v8241 = vmul.f32 %v8170, %v8180
    %v8242 = vmul.f32 %v8171, %v8180
    %v8243 = vmul.f32 %v8172, %v8180
    %v8244 = vmul.f32 %v8173, %v8180
    %v8245 = vmul.f32 %v8174, %v8180
    %v8246 = vld [vmem:[%s6] sm:$0x1]
    %v8248 = vlaneseq
    %v8249 = vshrl.u32 %v8248, 7
    %v8250 = vsub.s32 0, %v8249
    %v8251 = vrot.slane %v8246, %v8250
    %v8253 = vadd.f32 %v8182, %v8251
    %v8254 = vadd.f32 %v8183, %v8251
    %v8255 = vadd.f32 %v8184, %v8251
    %v8256 = vadd.f32 %v8185, %v8251
    %v8257 = vadd.f32 %v8186, %v8251
    %v8258 = vadd.f32 %v8187, %v8251
    %v8259 = vadd.f32 %v8188, %v8251
    %v8260 = vadd.f32 %v8189, %v8251
    %v8261 = vadd.f32 %v8190, %v8251
    %v8262 = vadd.f32 %v8191, %v8251
    %v8263 = vadd.f32 %v8192, %v8251
    %v8264 = vadd.f32 %v8193, %v8251
    %v8265 = vadd.f32 %v8194, %v8251
    %v8266 = vadd.f32 %v8195, %v8251
    %v8267 = vadd.f32 %v8196, %v8251
    %v8268 = vadd.f32 %v8197, %v8251
    %v8269 = vadd.f32 %v8198, %v8251
    %v8270 = vadd.f32 %v8199, %v8251
    %v8271 = vadd.f32 %v8200, %v8251
    %v8272 = vadd.f32 %v8201, %v8251
    %v8273 = vadd.f32 %v8202, %v8251
    %v8274 = vadd.f32 %v8203, %v8251
    %v8275 = vadd.f32 %v8204, %v8251
    %v8276 = vadd.f32 %v8205, %v8251
    %v8277 = vadd.f32 %v8206, %v8251
    %v8278 = vadd.f32 %v8207, %v8251
    %v8279 = vadd.f32 %v8208, %v8251
    %v8280 = vadd.f32 %v8209, %v8251
    %v8281 = vadd.f32 %v8210, %v8251
    %v8282 = vadd.f32 %v8211, %v8251
    %v8283 = vadd.f32 %v8212, %v8251
    %v8284 = vadd.f32 %v8213, %v8251
    %v8285 = vadd.f32 %v8214, %v8251
    %v8286 = vadd.f32 %v8215, %v8251
    %v8287 = vadd.f32 %v8216, %v8251
    %v8288 = vadd.f32 %v8217, %v8251
    %v8289 = vadd.f32 %v8218, %v8251
    %v8290 = vadd.f32 %v8219, %v8251
    %v8291 = vadd.f32 %v8220, %v8251
    %v8292 = vadd.f32 %v8221, %v8251
    %v8293 = vadd.f32 %v8222, %v8251
    %v8294 = vadd.f32 %v8223, %v8251
    %v8295 = vadd.f32 %v8224, %v8251
    %v8296 = vadd.f32 %v8225, %v8251
    %v8297 = vadd.f32 %v8226, %v8251
    %v8298 = vadd.f32 %v8227, %v8251
    %v8299 = vadd.f32 %v8228, %v8251
    %v8300 = vadd.f32 %v8229, %v8251
    %v8301 = vadd.f32 %v8230, %v8251
    %v8302 = vadd.f32 %v8231, %v8251
    %v8303 = vadd.f32 %v8232, %v8251
    %v8304 = vadd.f32 %v8233, %v8251
    %v8305 = vadd.f32 %v8234, %v8251
    %v8306 = vadd.f32 %v8235, %v8251
    %v8307 = vadd.f32 %v8236, %v8251
    %v8308 = vadd.f32 %v8237, %v8251
    %v8309 = vadd.f32 %v8238, %v8251
    %v8310 = vadd.f32 %v8239, %v8251
    %v8311 = vadd.f32 %v8240, %v8251
    %v8312 = vadd.f32 %v8241, %v8251
    %v8313 = vadd.f32 %v8242, %v8251
    %v8314 = vadd.f32 %v8243, %v8251
    %v8315 = vadd.f32 %v8244, %v8251
    %v8316 = vadd.f32 %v8245, %v8251
    %v8317 = vmax.f32 %v8253, 0.0
    %v8318 = vmax.f32 %v8254, 0.0
    %v8319 = vmax.f32 %v8255, 0.0
    %v8320 = vmax.f32 %v8256, 0.0
    %v8321 = vmax.f32 %v8257, 0.0
    %v8322 = vmax.f32 %v8258, 0.0
    %v8323 = vmax.f32 %v8259, 0.0
    %v8324 = vmax.f32 %v8260, 0.0
    %v8325 = vmax.f32 %v8261, 0.0
    %v8326 = vmax.f32 %v8262, 0.0
    %v8327 = vmax.f32 %v8263, 0.0
    %v8328 = vmax.f32 %v8264, 0.0
    %v8329 = vmax.f32 %v8265, 0.0
    %v8330 = vmax.f32 %v8266, 0.0
    %v8331 = vmax.f32 %v8267, 0.0
    %v8332 = vmax.f32 %v8268, 0.0
    %v8333 = vmax.f32 %v8269, 0.0
    %v8334 = vmax.f32 %v8270, 0.0
    %v8335 = vmax.f32 %v8271, 0.0
    %v8336 = vmax.f32 %v8272, 0.0
    %v8337 = vmax.f32 %v8273, 0.0
    %v8338 = vmax.f32 %v8274, 0.0
    %v8339 = vmax.f32 %v8275, 0.0
    %v8340 = vmax.f32 %v8276, 0.0
    %v8341 = vmax.f32 %v8277, 0.0
    %v8342 = vmax.f32 %v8278, 0.0
    %v8343 = vmax.f32 %v8279, 0.0
    %v8344 = vmax.f32 %v8280, 0.0
    %v8345 = vmax.f32 %v8281, 0.0
    %v8346 = vmax.f32 %v8282, 0.0
    %v8347 = vmax.f32 %v8283, 0.0
    %v8348 = vmax.f32 %v8284, 0.0
    %v8349 = vmax.f32 %v8285, 0.0
    %v8350 = vmax.f32 %v8286, 0.0
    %v8351 = vmax.f32 %v8287, 0.0
    %v8352 = vmax.f32 %v8288, 0.0
    %v8353 = vmax.f32 %v8289, 0.0
    %v8354 = vmax.f32 %v8290, 0.0
    %v8355 = vmax.f32 %v8291, 0.0
    %v8356 = vmax.f32 %v8292, 0.0
    %v8357 = vmax.f32 %v8293, 0.0
    %v8358 = vmax.f32 %v8294, 0.0
    %v8359 = vmax.f32 %v8295, 0.0
    %v8360 = vmax.f32 %v8296, 0.0
    %v8361 = vmax.f32 %v8297, 0.0
    %v8362 = vmax.f32 %v8298, 0.0
    %v8363 = vmax.f32 %v8299, 0.0
    %v8364 = vmax.f32 %v8300, 0.0
    %v8365 = vmax.f32 %v8301, 0.0
    %v8366 = vmax.f32 %v8302, 0.0
    %v8367 = vmax.f32 %v8303, 0.0
    %v8368 = vmax.f32 %v8304, 0.0
    %v8369 = vmax.f32 %v8305, 0.0
    %v8370 = vmax.f32 %v8306, 0.0
    %v8371 = vmax.f32 %v8307, 0.0
    %v8372 = vmax.f32 %v8308, 0.0
    %v8373 = vmax.f32 %v8309, 0.0
    %v8374 = vmax.f32 %v8310, 0.0
    %v8375 = vmax.f32 %v8311, 0.0
    %v8376 = vmax.f32 %v8312, 0.0
    %v8377 = vmax.f32 %v8313, 0.0
    %v8378 = vmax.f32 %v8314, 0.0
    %v8379 = vmax.f32 %v8315, 0.0
    %v8380 = vmax.f32 %v8316, 0.0
    %v8381 = vpack.c.bf16 %v8318, %v8317
    %v8382 = vpack.c.bf16 %v8320, %v8319
    %v8383 = vpack.c.bf16 %v8322, %v8321
    %v8384 = vpack.c.bf16 %v8324, %v8323
    %v8385 = vpack.c.bf16 %v8326, %v8325
    %v8386 = vpack.c.bf16 %v8328, %v8327
    %v8387 = vpack.c.bf16 %v8330, %v8329
    %v8388 = vpack.c.bf16 %v8332, %v8331
    %v8389 = vpack.c.bf16 %v8334, %v8333
    %v8390 = vpack.c.bf16 %v8336, %v8335
    %v8391 = vpack.c.bf16 %v8338, %v8337
    %v8392 = vpack.c.bf16 %v8340, %v8339
    %v8393 = vpack.c.bf16 %v8342, %v8341
    %v8394 = vpack.c.bf16 %v8344, %v8343
    %v8395 = vpack.c.bf16 %v8346, %v8345
    %v8396 = vpack.c.bf16 %v8348, %v8347
    %v8397 = vpack.c.bf16 %v8350, %v8349
    %v8398 = vpack.c.bf16 %v8352, %v8351
    %v8399 = vpack.c.bf16 %v8354, %v8353
    %v8400 = vpack.c.bf16 %v8356, %v8355
    %v8401 = vpack.c.bf16 %v8358, %v8357
    %v8402 = vpack.c.bf16 %v8360, %v8359
    %v8403 = vpack.c.bf16 %v8362, %v8361
    %v8404 = vpack.c.bf16 %v8364, %v8363
    %v8405 = vpack.c.bf16 %v8366, %v8365
    %v8406 = vpack.c.bf16 %v8368, %v8367
    %v8407 = vpack.c.bf16 %v8370, %v8369
    %v8408 = vpack.c.bf16 %v8372, %v8371
    %v8409 = vpack.c.bf16 %v8374, %v8373
    %v8410 = vpack.c.bf16 %v8376, %v8375
    %v8411 = vpack.c.bf16 %v8378, %v8377
    %v8412 = vpack.c.bf16 %v8380, %v8379
    %v8445 = vunpack.c.l.b16 %v8381
    %v8446 = vunpack.c.h.b16 %v8381
    %v8447 = vunpack.c.l.b16 %v8382
    %v8448 = vunpack.c.h.b16 %v8382
    %v8449 = vunpack.c.l.b16 %v8383
    %v8450 = vunpack.c.h.b16 %v8383
    %v8451 = vunpack.c.l.b16 %v8384
    %v8452 = vunpack.c.h.b16 %v8384
    %v8453 = vunpack.c.l.b16 %v8385
    %v8454 = vunpack.c.h.b16 %v8385
    %v8455 = vunpack.c.l.b16 %v8386
    %v8456 = vunpack.c.h.b16 %v8386
    %v8457 = vunpack.c.l.b16 %v8387
    %v8458 = vunpack.c.h.b16 %v8387
    %v8459 = vunpack.c.l.b16 %v8388
    %v8460 = vunpack.c.h.b16 %v8388
    %v8461 = vunpack.c.l.b16 %v8389
    %v8462 = vunpack.c.h.b16 %v8389
    %v8463 = vunpack.c.l.b16 %v8390
    %v8464 = vunpack.c.h.b16 %v8390
    %v8465 = vunpack.c.l.b16 %v8391
    %v8466 = vunpack.c.h.b16 %v8391
    %v8467 = vunpack.c.l.b16 %v8392
    %v8468 = vunpack.c.h.b16 %v8392
    %v8469 = vunpack.c.l.b16 %v8393
    %v8470 = vunpack.c.h.b16 %v8393
    %v8471 = vunpack.c.l.b16 %v8394
    %v8472 = vunpack.c.h.b16 %v8394
    %v8473 = vunpack.c.l.b16 %v8395
    %v8474 = vunpack.c.h.b16 %v8395
    %v8475 = vunpack.c.l.b16 %v8396
    %v8476 = vunpack.c.h.b16 %v8396
    %v8477 = vunpack.c.l.b16 %v8397
    %v8478 = vunpack.c.h.b16 %v8397
    %v8479 = vunpack.c.l.b16 %v8398
    %v8480 = vunpack.c.h.b16 %v8398
    %v8481 = vunpack.c.l.b16 %v8399
    %v8482 = vunpack.c.h.b16 %v8399
    %v8483 = vunpack.c.l.b16 %v8400
    %v8484 = vunpack.c.h.b16 %v8400
    %v8485 = vunpack.c.l.b16 %v8401
    %v8486 = vunpack.c.h.b16 %v8401
    %v8487 = vunpack.c.l.b16 %v8402
    %v8488 = vunpack.c.h.b16 %v8402
    %v8489 = vunpack.c.l.b16 %v8403
    %v8490 = vunpack.c.h.b16 %v8403
    %v8491 = vunpack.c.l.b16 %v8404
    %v8492 = vunpack.c.h.b16 %v8404
    %v8493 = vunpack.c.l.b16 %v8405
    %v8494 = vunpack.c.h.b16 %v8405
    %v8495 = vunpack.c.l.b16 %v8406
    %v8496 = vunpack.c.h.b16 %v8406
    %v8497 = vunpack.c.l.b16 %v8407
    %v8498 = vunpack.c.h.b16 %v8407
    %v8499 = vunpack.c.l.b16 %v8408
    %v8500 = vunpack.c.h.b16 %v8408
    %v8501 = vunpack.c.l.b16 %v8409
    %v8502 = vunpack.c.h.b16 %v8409
    %v8503 = vunpack.c.l.b16 %v8410
    %v8504 = vunpack.c.h.b16 %v8410
    %v8505 = vunpack.c.l.b16 %v8411
    %v8506 = vunpack.c.h.b16 %v8411
    %v8507 = vunpack.c.l.b16 %v8412
    %v8508 = vunpack.c.h.b16 %v8412
    %v8509 = vpack.c.b16 %v8445, %v8445
    %v8510 = vpack.c.b16 %v8446, %v8446
    %v8511 = vpack.c.b16 %v8447, %v8447
    %v8512 = vpack.c.b16 %v8448, %v8448
    %v8513 = vpack.c.b16 %v8449, %v8449
    %v8514 = vpack.c.b16 %v8450, %v8450
    %v8515 = vpack.c.b16 %v8451, %v8451
    %v8516 = vpack.c.b16 %v8452, %v8452
    %v8517 = vpack.c.b16 %v8453, %v8453
    %v8518 = vpack.c.b16 %v8454, %v8454
    %v8519 = vpack.c.b16 %v8455, %v8455
    %v8520 = vpack.c.b16 %v8456, %v8456
    %v8521 = vpack.c.b16 %v8457, %v8457
    %v8522 = vpack.c.b16 %v8458, %v8458
    %v8523 = vpack.c.b16 %v8459, %v8459
    %v8524 = vpack.c.b16 %v8460, %v8460
    %v8525 = vpack.c.b16 %v8461, %v8461
    %v8526 = vpack.c.b16 %v8462, %v8462
    %v8527 = vpack.c.b16 %v8463, %v8463
    %v8528 = vpack.c.b16 %v8464, %v8464
    %v8529 = vpack.c.b16 %v8465, %v8465
    %v8530 = vpack.c.b16 %v8466, %v8466
    %v8531 = vpack.c.b16 %v8467, %v8467
    %v8532 = vpack.c.b16 %v8468, %v8468
    %v8533 = vpack.c.b16 %v8469, %v8469
    %v8534 = vpack.c.b16 %v8470, %v8470
    %v8535 = vpack.c.b16 %v8471, %v8471
    %v8536 = vpack.c.b16 %v8472, %v8472
    %v8537 = vpack.c.b16 %v8473, %v8473
    %v8538 = vpack.c.b16 %v8474, %v8474
    %v8539 = vpack.c.b16 %v8475, %v8475
    %v8540 = vpack.c.b16 %v8476, %v8476
    %v8541 = vpack.c.b16 %v8477, %v8477
    %v8542 = vpack.c.b16 %v8478, %v8478
    %v8543 = vpack.c.b16 %v8479, %v8479
    %v8544 = vpack.c.b16 %v8480, %v8480
    %v8545 = vpack.c.b16 %v8481, %v8481
    %v8546 = vpack.c.b16 %v8482, %v8482
    %v8547 = vpack.c.b16 %v8483, %v8483
    %v8548 = vpack.c.b16 %v8484, %v8484
    %v8549 = vpack.c.b16 %v8485, %v8485
    %v8550 = vpack.c.b16 %v8486, %v8486
    %v8551 = vpack.c.b16 %v8487, %v8487
    %v8552 = vpack.c.b16 %v8488, %v8488
    %v8553 = vpack.c.b16 %v8489, %v8489
    %v8554 = vpack.c.b16 %v8490, %v8490
    %v8555 = vpack.c.b16 %v8491, %v8491
    %v8556 = vpack.c.b16 %v8492, %v8492
    %v8557 = vpack.c.b16 %v8493, %v8493
    %v8558 = vpack.c.b16 %v8494, %v8494
    %v8559 = vpack.c.b16 %v8495, %v8495
    %v8560 = vpack.c.b16 %v8496, %v8496
    %v8561 = vpack.c.b16 %v8497, %v8497
    %v8562 = vpack.c.b16 %v8498, %v8498
    %v8563 = vpack.c.b16 %v8499, %v8499
    %v8564 = vpack.c.b16 %v8500, %v8500
    %v8565 = vpack.c.b16 %v8501, %v8501
    %v8566 = vpack.c.b16 %v8502, %v8502
    %v8567 = vpack.c.b16 %v8503, %v8503
    %v8568 = vpack.c.b16 %v8504, %v8504
    %v8569 = vpack.c.b16 %v8505, %v8505
    %v8570 = vpack.c.b16 %v8506, %v8506
    %v8571 = vpack.c.b16 %v8507, %v8507
    %v8572 = vpack.c.b16 %v8508, %v8508
    %vm8637 = vcmask 519168
    %8638 = vst.msk [vmem:[#allocation4] sm:$0xf] %vm8637, %v8509
    %8639 = vst.msk [vmem:[#allocation4 + $0x4] sm:$0xf] %vm8637, %v8510
    %8640 = vst.msk [vmem:[#allocation4 + $0x8] sm:$0xf] %vm8637, %v8511
    %8641 = vst.msk [vmem:[#allocation4 + $0xc] sm:$0xf] %vm8637, %v8512
    %8642 = vst.msk [vmem:[#allocation4 + $0x10] sm:$0xf] %vm8637, %v8513
    %8643 = vst.msk [vmem:[#allocation4 + $0x14] sm:$0xf] %vm8637, %v8514
    %8644 = vst.msk [vmem:[#allocation4 + $0x18] sm:$0xf] %vm8637, %v8515
    %8645 = vst.msk [vmem:[#allocation4 + $0x1c] sm:$0xf] %vm8637, %v8516
    %8646 = vst.msk [vmem:[#allocation4 + $0x20] sm:$0xf] %vm8637, %v8517
    %8647 = vst.msk [vmem:[#allocation4 + $0x24] sm:$0xf] %vm8637, %v8518
    %8648 = vst.msk [vmem:[#allocation4 + $0x28] sm:$0xf] %vm8637, %v8519
    %8649 = vst.msk [vmem:[#allocation4 + $0x2c] sm:$0xf] %vm8637, %v8520
    %8650 = vst.msk [vmem:[#allocation4 + $0x30] sm:$0xf] %vm8637, %v8521
    %8651 = vst.msk [vmem:[#allocation4 + $0x34] sm:$0xf] %vm8637, %v8522
    %8652 = vst.msk [vmem:[#allocation4 + $0x38] sm:$0xf] %vm8637, %v8523
    %8653 = vst.msk [vmem:[#allocation4 + $0x3c] sm:$0xf] %vm8637, %v8524
    %8654 = vst.msk [vmem:[#allocation4 + $0x40] sm:$0xf] %vm8637, %v8525
    %8655 = vst.msk [vmem:[#allocation4 + $0x44] sm:$0xf] %vm8637, %v8526
    %8656 = vst.msk [vmem:[#allocation4 + $0x48] sm:$0xf] %vm8637, %v8527
    %8657 = vst.msk [vmem:[#allocation4 + $0x4c] sm:$0xf] %vm8637, %v8528
    %8658 = vst.msk [vmem:[#allocation4 + $0x50] sm:$0xf] %vm8637, %v8529
    %8659 = vst.msk [vmem:[#allocation4 + $0x54] sm:$0xf] %vm8637, %v8530
    %8660 = vst.msk [vmem:[#allocation4 + $0x58] sm:$0xf] %vm8637, %v8531
    %8661 = vst.msk [vmem:[#allocation4 + $0x5c] sm:$0xf] %vm8637, %v8532
    %8662 = vst.msk [vmem:[#allocation4 + $0x60] sm:$0xf] %vm8637, %v8533
    %8663 = vst.msk [vmem:[#allocation4 + $0x64] sm:$0xf] %vm8637, %v8534
    %8664 = vst.msk [vmem:[#allocation4 + $0x68] sm:$0xf] %vm8637, %v8535
    %8665 = vst.msk [vmem:[#allocation4 + $0x6c] sm:$0xf] %vm8637, %v8536
    %8666 = vst.msk [vmem:[#allocation4 + $0x70] sm:$0xf] %vm8637, %v8537
    %8667 = vst.msk [vmem:[#allocation4 + $0x74] sm:$0xf] %vm8637, %v8538
    %8668 = vst.msk [vmem:[#allocation4 + $0x78] sm:$0xf] %vm8637, %v8539
    %8669 = vst.msk [vmem:[#allocation4 + $0x7c] sm:$0xf] %vm8637, %v8540
    %8670 = vst.msk [vmem:[#allocation4 + $0x80] sm:$0xf] %vm8637, %v8541
    %8671 = vst.msk [vmem:[#allocation4 + $0x84] sm:$0xf] %vm8637, %v8542
    %8672 = vst.msk [vmem:[#allocation4 + $0x88] sm:$0xf] %vm8637, %v8543
    %8673 = vst.msk [vmem:[#allocation4 + $0x8c] sm:$0xf] %vm8637, %v8544
    %8674 = vst.msk [vmem:[#allocation4 + $0x90] sm:$0xf] %vm8637, %v8545
    %8675 = vst.msk [vmem:[#allocation4 + $0x94] sm:$0xf] %vm8637, %v8546
    %8676 = vst.msk [vmem:[#allocation4 + $0x98] sm:$0xf] %vm8637, %v8547
    %8677 = vst.msk [vmem:[#allocation4 + $0x9c] sm:$0xf] %vm8637, %v8548
    %8678 = vst.msk [vmem:[#allocation4 + $0xa0] sm:$0xf] %vm8637, %v8549
    %8679 = vst.msk [vmem:[#allocation4 + $0xa4] sm:$0xf] %vm8637, %v8550
    %8680 = vst.msk [vmem:[#allocation4 + $0xa8] sm:$0xf] %vm8637, %v8551
    %8681 = vst.msk [vmem:[#allocation4 + $0xac] sm:$0xf] %vm8637, %v8552
    %8682 = vst.msk [vmem:[#allocation4 + $0xb0] sm:$0xf] %vm8637, %v8553
    %8683 = vst.msk [vmem:[#allocation4 + $0xb4] sm:$0xf] %vm8637, %v8554
    %8684 = vst.msk [vmem:[#allocation4 + $0xb8] sm:$0xf] %vm8637, %v8555
    %8685 = vst.msk [vmem:[#allocation4 + $0xbc] sm:$0xf] %vm8637, %v8556
    %8686 = vst.msk [vmem:[#allocation4 + $0xc0] sm:$0xf] %vm8637, %v8557
    %8687 = vst.msk [vmem:[#allocation4 + $0xc4] sm:$0xf] %vm8637, %v8558
    %8688 = vst.msk [vmem:[#allocation4 + $0xc8] sm:$0xf] %vm8637, %v8559
    %8689 = vst.msk [vmem:[#allocation4 + $0xcc] sm:$0xf] %vm8637, %v8560
    %8690 = vst.msk [vmem:[#allocation4 + $0xd0] sm:$0xf] %vm8637, %v8561
    %8691 = vst.msk [vmem:[#allocation4 + $0xd4] sm:$0xf] %vm8637, %v8562
    %8692 = vst.msk [vmem:[#allocation4 + $0xd8] sm:$0xf] %vm8637, %v8563
    %8693 = vst.msk [vmem:[#allocation4 + $0xdc] sm:$0xf] %vm8637, %v8564
    %8694 = vst.msk [vmem:[#allocation4 + $0xe0] sm:$0xf] %vm8637, %v8565
    %8695 = vst.msk [vmem:[#allocation4 + $0xe4] sm:$0xf] %vm8637, %v8566
    %8696 = vst.msk [vmem:[#allocation4 + $0xe8] sm:$0xf] %vm8637, %v8567
    %8697 = vst.msk [vmem:[#allocation4 + $0xec] sm:$0xf] %vm8637, %v8568
    %8698 = vst.msk [vmem:[#allocation4 + $0xf0] sm:$0xf] %vm8637, %v8569
    %8699 = vst.msk [vmem:[#allocation4 + $0xf4] sm:$0xf] %vm8637, %v8570
    %8700 = vst.msk [vmem:[#allocation4 + $0xf8] sm:$0xf] %vm8637, %v8571
    %8701 = vst.msk [vmem:[#allocation4 + $0xfc] sm:$0xf] %vm8637, %v8572
    // Predicated region
    $region34: #{tpu_custom_call.1} parent=1 // pred_check
      _
    $region35: #{tpu_custom_call.1} parent=1 // pred_check_branch
      %8703 = sbr.rel (0) target = $region37
    $region36: #{tpu_custom_call.1} parent=1 // pred_region
      %s8705 = ssub.s32 4096, 4096
      %8706 = vsyncadd [#allocation5], %s8705
      %s8707 = sshll.u32 [#allocation4], 4
      %s8708 = int_to_ptr.vmem [resolvable:$true] %s8707
      %8713 = dma.vmem_to_hbm [thread:$0]  %s8708, 4096, %s7, [#allocation5], 64, 64, 4
    $region37: #{tpu_custom_call.1} parent=1 // pred_fallthru
      _
    // Predicated region
    $region38: #{tpu_custom_call.1} parent=1 // pred_check
      _
    $region39: #{tpu_custom_call.1} parent=1 // pred_check_branch
      %8715 = sbr.rel (0) target = $region41
    $region40: #{tpu_custom_call.1} parent=1 // pred_region
      %8716 = dma.done [#allocation5], 4096
    $region41: #{tpu_custom_call.1} parent=1 // pred_fallthru
      _
    %8717 = vsyncpa [#allocation5], 1

</llo_original>
